<compile_context>
chip_gen: v5e
topology: v5e:2x2
jax: 0.10.0
libtpu: 0.0.40
codegen_flags: <defaults>
</compile_context>

<pallas_src>
import jax
import jax.numpy as jnp
from jax import lax
from jax.experimental import pallas as pl
from jax.experimental.pallas import tpu as pltpu

KH = KW = 7
STRIDE = 2
CIN = COUT = 4
NEG_SLOPE = 0.01          # F.leaky_relu default negative_slope
LANE = 128


# ----------------------------- Pallas kernel --------------------------------
def _nodes_kernel(patches_ref, wct_ref, bc_ref, fw_ref, out_ref):
    """One grid step == Bt batch elements; every tree node's conv+fc fused, lane-dense.

    patches_ref: (Bt, K, P_pad)   im2col'ed input, spatial on the lane axis
    wct_ref:     (NC, K)          stacked conv weights  (NC = n_nodes * COUT)
    bc_ref:      (NC, 1)          stacked conv bias
    fw_ref:      (NC, P_pad)      stacked fc1 weights, zero-padded lanes
    out_ref:     (1, NC, Bt)      per-(node, channel) fc1 partial sums
    """
    Bt = patches_ref.shape[0]                         # static
    wc = wct_ref[...]
    bc = bc_ref[...]
    fw = fw_ref[...]
    cols = []
    for b in range(Bt):                               # static unroll, Bt is small
        # conv for all nodes/channels at once: (NC, K) @ (K, P_pad) on the MXU.
        z = jnp.dot(wc, patches_ref[b],
                    preferred_element_type=jnp.float32,
                    precision=lax.Precision.HIGHEST) + bc
        # Streamed epilogue: leaky_relu -> fc-weight mul -> single lane reduction.
        # Padded lanes carry garbage z, but fw is zero there, so the sum is exact.
        cols.append(jnp.sum(jnp.where(z > 0, z, NEG_SLOPE * z) * fw,
                            axis=-1, keepdims=True))  # (NC, 1)
    out_ref[0] = jnp.concatenate(cols, axis=1)        # (NC, Bt)


def node_probs_partial_pallas(patches_t, wc_t, bc, fw):
    """Per-(node, channel) fc1 partial sums for every batch element: (B, NC)."""
    B, K, P_pad = patches_t.shape
    NC = wc_t.shape[0]
    # Batch tile: amortize the ~0.35us per-grid-step overhead, but keep >= 2 grid steps
    # so the "parallel" axis can shard across both TensorCores on v7x; cap Bt so the
    # double-buffered patches (2 * Bt * K * P_pad * 4B) stay well under the default
    # scoped-VMEM limit on every generation (v5e: 16 MiB).
    patch_bytes = K * P_pad * 4
    bt_cap = max(1, (8 * 1024 * 1024) // (2 * patch_bytes))
    Bt = max(1, min(pl.cdiv(B, 2), bt_cap))
    G = pl.cdiv(B, Bt)
    Bp = G * Bt
    if Bp != B:
        patches_t = jnp.pad(patches_t, ((0, Bp - B), (0, 0), (0, 0)))

    out = pl.pallas_call(
        _nodes_kernel,
        out_shape=jax.ShapeDtypeStruct((G, NC, Bt), jnp.float32),
        grid=(G,),
        in_specs=[
            pl.BlockSpec((Bt, K, P_pad), lambda g: (g, 0, 0)),   # this tile's patches
            pl.BlockSpec((NC, K), lambda g: (0, 0)),             # stacked conv weights
            pl.BlockSpec((NC, 1), lambda g: (0, 0)),             # stacked conv bias
            pl.BlockSpec((NC, P_pad), lambda g: (0, 0)),         # stacked fc1 weights
        ],
        out_specs=pl.BlockSpec((1, NC, Bt), lambda g: (g, 0, 0)),
        compiler_params=pltpu.CompilerParams(
            dimension_semantics=("parallel",)),                  # megacore shard on v7x
    )(patches_t, wc_t, bc, fw)
    # (G, NC, Bt) -> (Bp, NC) -> (B, NC); 12*Bt floats per step, XLA-side cost is nil.
    return jnp.moveaxis(out, -1, 1).reshape(Bp, NC)[:B]


# ------------------------------- JAX glue ------------------------------------
def im2col_t(x):
    """x: (B, H, W, C) NHWC -> patches^T (B, K=C*KH*KW, P=OH*OW), rows in (c, ky, kx) order.

    Built directly in the kernel's target row order (one stack + contiguous reshape);
    no 5-D transpose of the 21x-expanded slab.
    """
    B, H, W, C = x.shape
    OH = (H - KH) // STRIDE + 1
    OW = (W - KW) // STRIDE + 1
    x_nchw = jnp.transpose(x, (0, 3, 1, 2))           # transpose only the small raw frame
    cols = []
    for ky in range(KH):
        for kx in range(KW):
            cols.append(lax.slice(
                x_nchw,
                (0, 0, ky, kx),
                (B, C, ky + STRIDE * (OH - 1) + 1, kx + STRIDE * (OW - 1) + 1),
                (1, 1, STRIDE, STRIDE)))              # (B, C, OH, OW)
    pat = jnp.stack(cols, axis=2)                     # (B, C, KH*KW, OH, OW)
    return pat.reshape(B, C * KH * KW, OH * OW), OH, OW


def tree_traverse(probs):
    """Replicates SoftDecisionTree.forward recursion (root path_prob = ones(B,1))."""
    n_nodes, B = probs.shape
    eps = 1e-8
    pp = [None] * (2 * n_nodes + 1)      # heap-ordered: internal 0..n_nodes-1, leaves after
    pp[0] = jnp.ones((B, 1), jnp.float32)
    alphas = []
    for i in range(n_nodes):
        p = probs[i][:, None]                                # (B, 1)
        alpha = jnp.sum(p * pp[i], axis=1) / (jnp.sum(pp[i], axis=1) + eps)
        alphas.append(jnp.clip(alpha, eps, 1.0 - eps))
        pp[2 * i + 1] = p * pp[i]                            # left child
        pp[2 * i + 2] = (1.0 - p) * pp[i]                    # right child
    # TODO(synk): the data-dependent "Tree is dying" print diagnostic has no kernel equivalent.
    leaf_path_prob = jnp.stack(pp[n_nodes:], axis=0)         # (n_leaves, B, 1)
    return jnp.stack(alphas, axis=0), leaf_path_prob


def init_params(key, n_nodes, n_leaves, nb_classes, in_features):
    """Deterministic synthetic init matching PyTorch default layer shapes/ranges."""
    ks = jax.random.split(key, 5)
    bound_c = 1.0 / (CIN * KH * KW) ** 0.5
    conv_w = jax.random.uniform(ks[0], (n_nodes, COUT, CIN, KH, KW), jnp.float32, -bound_c, bound_c)
    conv_b = jax.random.uniform(ks[1], (n_nodes, COUT), jnp.float32, -bound_c, bound_c)
    bound_f = 1.0 / in_features ** 0.5
    fc_w = jax.random.uniform(ks[2], (n_nodes, in_features), jnp.float32, -bound_f, bound_f)
    fc_b = jax.random.uniform(ks[3], (n_nodes,), jnp.float32, -bound_f, bound_f)
    # Leaf distributions (torch.rand(nb_classes)); unused by forward(), kept for fidelity.
    leaf_dist = jax.random.uniform(ks[4], (n_leaves, nb_classes), jnp.float32)
    return conv_w, conv_b, fc_w, fc_b, leaf_dist


def soft_decision_tree_forward(x, params):
    conv_w, conv_b, fc_w, fc_b, _ = params
    n_nodes = conv_w.shape[0]
    B = x.shape[0]
    patches_t, OH, OW = im2col_t(x)                          # (B, K, P)
    P = OH * OW
    P_pad = pl.cdiv(P, LANE) * LANE                          # pad spatial (lane) dim to 128
    patches_t = jnp.pad(patches_t, ((0, 0), (0, 0), (0, P_pad - P)))
    # conv weight (n, O, I, kh, kw) -> (n*O, I*KH*KW): columns already in (c, ky, kx)
    # order, matching the im2col row order -> free reshape, no transpose.
    wc_t = conv_w.reshape(n_nodes * COUT, CIN * KH * KW)
    bc = conv_b.reshape(n_nodes * COUT, 1)
    # fc1 weight: torch flattens the conv output as (C_out, OH, OW) -> rows = (node, channel),
    # lanes = spatial, ZERO-padded (see invariant at top of file).
    fw = jnp.pad(fc_w.reshape(n_nodes * COUT, P), ((0, 0), (0, P_pad - P)))
    s = node_probs_partial_pallas(patches_t, wc_t, bc, fw)   # (B, NC) partial fc sums
    logits = s.reshape(B, n_nodes, COUT).sum(-1) + fc_b[None, :]   # channel fold + bias
    probs = jax.nn.sigmoid(logits).T                         # (n_nodes, B)
    alphas, leaf_path_prob = tree_traverse(probs)
    return probs, alphas, leaf_path_prob


# --------------------------- pure-JAX reference -------------------------------
def node_probs_reference(x, conv_w, conv_b, fc_w, fc_b):
    x_nchw = jnp.transpose(x, (0, 3, 1, 2))
    probs = []
    for i in range(conv_w.shape[0]):
        out = lax.conv_general_dilated(
            x_nchw, conv_w[i], window_strides=(STRIDE, STRIDE), padding="VALID",
            dimension_numbers=("NCHW", "OIHW", "NCHW"),
            precision=lax.Precision.HIGHEST)
        out = out + conv_b[i][None, :, None, None]
        out = jnp.where(out > 0, out, NEG_SLOPE * out)
        flat = out.reshape(out.shape[0], -1)
        probs.append(jax.nn.sigmoid(flat @ fc_w[i] + fc_b[i]))
    return jnp.stack(probs, axis=0)


if __name__ == "__main__":
    DEPTH = 2                          # SoftDecisionTree(depth=2, ...)
    CLASS_REWARD = [0.0, 1.0, -1.0]    # nb_classes = 3
    NB_CLASSES = len(CLASS_REWARD)
    N_NODES = 2 ** DEPTH - 1           # internal nodes, each with its own conv1 + fc1
    N_LEAVES = 2 ** DEPTH
    B, H, W = 2, 83, 83                # fc1 in_features = 6084 = 4*39*39 -> input is 83x83x4
    IN_FEATURES = COUT * 39 * 39       # 6084, as in nn.Linear(6084, 1)

    key = jax.random.PRNGKey(0)
    kx, kp = jax.random.split(key)
    x = jax.random.normal(kx, (B, H, W, CIN), jnp.float32)   # NHWC (module permutes internally)
    params = init_params(kp, N_NODES, N_LEAVES, NB_CLASSES, IN_FEATURES)

    probs, alphas, leaf_path_prob = soft_decision_tree_forward(x, params)
    jax.block_until_ready((probs, alphas, leaf_path_prob))

    ref_probs = node_probs_reference(x, params[0], params[1], params[2], params[3])
    max_err = float(jnp.max(jnp.abs(probs - ref_probs)))
    assert max_err < 1e-4, f"mismatch vs reference: {max_err}"
    # sanity: sibling-leaf path probabilities sum to the parent's, root level sums to 1
    total = float(jnp.max(jnp.abs(jnp.sum(leaf_path_prob, axis=0) - 1.0)))
    assert total < 1e-5, f"leaf path probs do not sum to 1: {total}"
    print("KERNEL_OK")
</pallas_src>

<mosaic_0001>
module attributes {stable_mosaic.version = 11 : i64} {
  func.func @_nodes_kernel(%arg0: i32, %arg1: memref<1x196x1536xf32, #tpu.memory_space<vmem>>, %arg2: memref<12x196xf32, #tpu.memory_space<vmem>>, %arg3: memref<12x1xf32, #tpu.memory_space<vmem>>, %arg4: memref<12x1536xf32, #tpu.memory_space<vmem>>, %arg5: memref<1x12x1xf32, #tpu.memory_space<vmem>>) attributes {dimension_semantics = [#tpu.dimension_semantics<parallel>], iteration_bounds = array<i64: 2>, scalar_prefetch = 0 : i64, scratch_operands = 0 : i64, tpu.core_type = #tpu.core_type<tc>, window_params = [{transform_indices = @transform_0, window_bounds = array<i64: 1, 196, 1536>}, {pipeline_mode = #tpu.pipeline_mode<synchronous>, transform_indices = @transform_1, window_bounds = array<i64: 12, 196>}, {pipeline_mode = #tpu.pipeline_mode<synchronous>, transform_indices = @transform_2, window_bounds = array<i64: 12, 1>}, {pipeline_mode = #tpu.pipeline_mode<synchronous>, transform_indices = @transform_3, window_bounds = array<i64: 12, 1536>}, {transform_indices = @transform_4, window_bounds = array<i64: 1, 12, 1>}]} {
    %c0 = arith.constant 0 : index
    %c0_0 = arith.constant 0 : index
    %0 = vector.load %arg2[%c0, %c0_0] : memref<12x196xf32, #tpu.memory_space<vmem>>, vector<12x196xf32>
    %c0_1 = arith.constant 0 : index
    %c0_2 = arith.constant 0 : index
    %1 = vector.load %arg3[%c0_1, %c0_2] : memref<12x1xf32, #tpu.memory_space<vmem>>, vector<12x1xf32>
    %c0_3 = arith.constant 0 : index
    %c0_4 = arith.constant 0 : index
    %2 = vector.load %arg4[%c0_3, %c0_4] : memref<12x1536xf32, #tpu.memory_space<vmem>>, vector<12x1536xf32>
    %c0_5 = arith.constant 0 : index
    %c0_6 = arith.constant 0 : index
    %c0_7 = arith.constant 0 : index
    %3 = vector.load %arg1[%c0_5, %c0_6, %c0_7] : memref<1x196x1536xf32, #tpu.memory_space<vmem>>, vector<1x196x1536xf32>
    %4 = vector.shape_cast %3 : vector<1x196x1536xf32> to vector<196x1536xf32>
    %cst = arith.constant dense<0.000000e+00> : vector<12x1536xf32>
    %5 = tpu.matmul %0, %4, %cst {dimension_numbers = #tpu.dot_dimension_numbers<[1], [0], [0], [1], [0, 0, 1, 1], [], []>, precision = #tpu.contract_precision<fp32>} : vector<12x196xf32>, vector<196x1536xf32>, vector<12x1536xf32> -> vector<12x1536xf32>
    %6 = vector.broadcast %1 : vector<12x1xf32> to vector<12x1536xf32>
    %7 = arith.addf %5, %6 : vector<12x1536xf32>
    %cst_8 = arith.constant 0.000000e+00 : f32
    %8 = vector.broadcast %cst_8 : f32 to vector<12x1536xf32>
    %9 = arith.cmpf ogt, %7, %8 : vector<12x1536xf32>
    %cst_9 = arith.constant 0.00999999977 : f32
    %10 = vector.broadcast %cst_9 : f32 to vector<12x1536xf32>
    %11 = arith.mulf %10, %7 : vector<12x1536xf32>
    %12 = arith.select %9, %7, %11 : vector<12x1536xi1>, vector<12x1536xf32>
    %13 = arith.mulf %12, %2 : vector<12x1536xf32>
    %cst_10 = arith.constant dense<0.000000e+00> : vector<12xf32>
    %14 = vector.multi_reduction <add>, %13, %cst_10 [1] : vector<12x1536xf32> to vector<12xf32>
    %15 = vector.shape_cast %14 : vector<12xf32> to vector<12x1xf32>
    %c0_11 = arith.constant 0 : index
    %c0_12 = arith.constant 0 : index
    %c0_13 = arith.constant 0 : index
    %16 = vector.load %arg5[%c0_11, %c0_12, %c0_13] : memref<1x12x1xf32, #tpu.memory_space<vmem>>, vector<1x12x1xf32>
    %17 = vector.shape_cast %16 : vector<1x12x1xf32> to vector<12x1xf32>
    %18 = vector.shape_cast %15 : vector<12x1xf32> to vector<1x12x1xf32>
    tpu.vector_store %arg5[%c0_11, %c0_12, %c0_13], %18 {strides = array<i32>} : memref<1x12x1xf32, #tpu.memory_space<vmem>>, vector<1x12x1xf32>,
    return
  }
  func.func @transform_0(%arg0: i32) -> (i32, i32, i32) {
    %c0_i32 = arith.constant 0 : i32
    %c0_i32_0 = arith.constant 0 : i32
    %c0_i32_1 = arith.constant 0 : i32
    return %arg0, %c0_i32, %c0_i32_0 : i32, i32, i32
  }
  func.func @transform_1(%arg0: i32) -> (i32, i32) {
    %c0_i32 = arith.constant 0 : i32
    %c0_i32_0 = arith.constant 0 : i32
    %c0_i32_1 = arith.constant 0 : i32
    return %c0_i32, %c0_i32_0 : i32, i32
  }
  func.func @transform_2(%arg0: i32) -> (i32, i32) {
    %c0_i32 = arith.constant 0 : i32
    %c0_i32_0 = arith.constant 0 : i32
    %c0_i32_1 = arith.constant 0 : i32
    return %c0_i32, %c0_i32_0 : i32, i32
  }
  func.func @transform_3(%arg0: i32) -> (i32, i32) {
    %c0_i32 = arith.constant 0 : i32
    %c0_i32_0 = arith.constant 0 : i32
    %c0_i32_1 = arith.constant 0 : i32
    return %c0_i32, %c0_i32_0 : i32, i32
  }
  func.func @transform_4(%arg0: i32) -> (i32, i32, i32) {
    %c0_i32 = arith.constant 0 : i32
    %c0_i32_0 = arith.constant 0 : i32
    %c0_i32_1 = arith.constant 0 : i32
    return %arg0, %c0_i32, %c0_i32_0 : i32, i32, i32
  }
}

</mosaic_0001>

<llo_original>
// kernel: tpu_custom_call.1
$region0: #{tpu_custom_call.1}
  #allocation0 [shape = 'u32[]', space=smem, size = 0x4, offset = 0x4, fixed_abs, tag = 'smem constant byte address 0x4 - core index']
  #allocation1 [shape = 'u32[72,128]{1,0:T(1,128)}', space=vmem, size = 0x9000, scoped, tag = 'internal scratch']
  %s0 = inlined_call_operand.vmem [shape: f32[2,196,1536], index: 0, kind: input, shape index: {}]
  %s1 = inlined_call_operand.vmem [shape: f32[12,196], index: 1, kind: input, shape index: {}]
  %s2 = inlined_call_operand.vmem [shape: f32[12,1], index: 2, kind: input, shape index: {}]
  %s3 = inlined_call_operand.vmem [shape: f32[12,1536], index: 3, kind: input, shape index: {}]
  %s4 = inlined_call_operand.vmem [shape: f32[2,12,1], index: 4, kind: output, shape index: {}]
  %s5 = sld [smem:[#allocation0]]
  $region49: #{tpu_custom_call.1} parent=0
    _
  %s7 = ssub.s32 1, %s5
  %s8 = scalar_select 0, %s7, %s5
  loop: start=0, step=1, limit=4
  $region2: #{tpu_custom_call.1} parent=0 // loop_pre_header
    _
  $region3: #{tpu_custom_call.1} parent=0 // loop_header
    %s10 = sphi 0, %s14
    %p11 = scmp.ge.s32.totalorder %s10, 4
    %s20 = sphi 0, %s22
    %s23 = sphi 0, %s20
    %s24 = sphi 0, %s23
    %s40 = sphi 0, %s24
    %s44 = sphi 0, %s44
    %s46 = sphi 0, %s44
    %s47 = sphi 0, %s46
    %s61 = sphi 0, %s47
    %s65 = sphi 0, %s65
    %s67 = sphi 0, %s65
    %s68 = sphi 0, %s67
    %s82 = sphi 0, %s68
    %s86 = sphi 0, %s86
    %s88 = sphi 0, %s86
    %s89 = sphi 0, %s88
    %s103 = sphi 0, %s89
    %s109 = sphi 0, %s111
    %s112 = sphi 0, %s109
    %s113 = sphi 0, %s112
    %s129 = sphi 0, %s113
  $region4: #{tpu_custom_call.1} parent=0 // loop_header_branch
    %13 = sbr.rel (%p11) target = $region8
  $region5: #{tpu_custom_call.1} parent=0 // loop_body
    %s15 = ssub.s32 %s10, 1
    %s16 = ssub.s32 %s10, 2
    %s17 = sadd.s32 %s10, 1
    %s18 = ssub.s32 %s10, %s17
    %p19 = scmp.eq.s32.totalorder %s18, 0
    %s21 = sadd.s32 %s20, 1
    %s22 = scalar_select %p19, %s20, %s21
    %p25 = pneg %p19
    %p26 = scmp.eq.s32.totalorder %s10, 1
    %p27 = por %p25, %p26
    %p28 = scmp.ne.s32.totalorder %s20, %s23
    %p29 = scmp.eq.s32.totalorder %s10, 0
    %p30 = por %p28, %p29
    %p31 = scmp.ne.s32.totalorder %s20, %s23
    %p32 = scmp.eq.s32.totalorder %s15, 1
    %p33 = por %p31, %p32
    %p34 = scmp.ne.s32.totalorder %s23, %s24
    %p35 = scmp.eq.s32.totalorder %s15, 0
    %p36 = por %p34, %p35
    %p37 = scmp.ne.s32.totalorder %s23, %s24
    %p38 = scmp.eq.s32.totalorder %s16, 1
    %p39 = por %p37, %p38
    %p41 = scmp.ne.s32.totalorder %s24, %s40
    %p42 = scmp.eq.s32.totalorder %s16, 0
    %p43 = por %p41, %p42
    %s45 = sadd.s32 %s44, 1
    %p48 = scmp.eq.s32.totalorder %s10, 1
    %p49 = scmp.ne.s32.totalorder %s44, %s46
    %p50 = scmp.eq.s32.totalorder %s10, 0
    %p51 = por %p49, %p50
    %p52 = scmp.ne.s32.totalorder %s44, %s46
    %p53 = scmp.eq.s32.totalorder %s15, 1
    %p54 = por %p52, %p53
    %p55 = scmp.ne.s32.totalorder %s46, %s47
    %p56 = scmp.eq.s32.totalorder %s15, 0
    %p57 = por %p55, %p56
    %p58 = scmp.ne.s32.totalorder %s46, %s47
    %p59 = scmp.eq.s32.totalorder %s16, 1
    %p60 = por %p58, %p59
    %p62 = scmp.ne.s32.totalorder %s47, %s61
    %p63 = scmp.eq.s32.totalorder %s16, 0
    %p64 = por %p62, %p63
    %s66 = sadd.s32 %s65, 1
    %p69 = scmp.eq.s32.totalorder %s10, 1
    %p70 = scmp.ne.s32.totalorder %s65, %s67
    %p71 = scmp.eq.s32.totalorder %s10, 0
    %p72 = por %p70, %p71
    %p73 = scmp.ne.s32.totalorder %s65, %s67
    %p74 = scmp.eq.s32.totalorder %s15, 1
    %p75 = por %p73, %p74
    %p76 = scmp.ne.s32.totalorder %s67, %s68
    %p77 = scmp.eq.s32.totalorder %s15, 0
    %p78 = por %p76, %p77
    %p79 = scmp.ne.s32.totalorder %s67, %s68
    %p80 = scmp.eq.s32.totalorder %s16, 1
    %p81 = por %p79, %p80
    %p83 = scmp.ne.s32.totalorder %s68, %s82
    %p84 = scmp.eq.s32.totalorder %s16, 0
    %p85 = por %p83, %p84
    %s87 = sadd.s32 %s86, 1
    %p90 = scmp.eq.s32.totalorder %s10, 1
    %p91 = scmp.ne.s32.totalorder %s86, %s88
    %p92 = scmp.eq.s32.totalorder %s10, 0
    %p93 = por %p91, %p92
    %p94 = scmp.ne.s32.totalorder %s86, %s88
    %p95 = scmp.eq.s32.totalorder %s15, 1
    %p96 = por %p94, %p95
    %p97 = scmp.ne.s32.totalorder %s88, %s89
    %p98 = scmp.eq.s32.totalorder %s15, 0
    %p99 = por %p97, %p98
    %p100 = scmp.ne.s32.totalorder %s88, %s89
    %p101 = scmp.eq.s32.totalorder %s16, 1
    %p102 = por %p100, %p101
    %p104 = scmp.ne.s32.totalorder %s89, %s103
    %p105 = scmp.eq.s32.totalorder %s16, 0
    %p106 = por %p104, %p105
    %s107 = ssub.s32 %s10, %s17
    %p108 = scmp.eq.s32.totalorder %s107, 0
    %s110 = sadd.s32 %s109, 1
    %s111 = scalar_select %p108, %s109, %s110
    %p114 = pneg %p108
    %p115 = scmp.eq.s32.totalorder %s10, 1
    %p116 = por %p114, %p115
    %p117 = scmp.ne.s32.totalorder %s109, %s112
    %p118 = scmp.eq.s32.totalorder %s10, 0
    %p119 = por %p117, %p118
    %p120 = scmp.ne.s32.totalorder %s109, %s112
    %p121 = scmp.eq.s32.totalorder %s15, 1
    %p122 = por %p120, %p121
    %p123 = scmp.ne.s32.totalorder %s112, %s113
    %p124 = scmp.eq.s32.totalorder %s15, 0
    %p125 = por %p123, %p124
    %p126 = scmp.ne.s32.totalorder %s112, %s113
    %p127 = scmp.eq.s32.totalorder %s16, 1
    %p128 = por %p126, %p127
    %p130 = scmp.ne.s32.totalorder %s113, %s129
    %p131 = scmp.eq.s32.totalorder %s16, 0
    %p132 = por %p130, %p131
    %p133 = scmp.le.s32.totalorder 1, %s10
    %p134 = scmp.lt.s32.totalorder %s10, 3
    %p135 = pnand %p133, %p134
    %p136 = pneg %p135
    // Predicated region
    $region9: #{tpu_custom_call.1} parent=5 // pred_check
      _
    $region10: #{tpu_custom_call.1} parent=5 // pred_check_branch
      %138 = sbr.rel (%p135) target = $region12
    $region11: #{tpu_custom_call.1} parent=5 // pred_region
      %s139 = ssub.s32 %s10, 1
      // Predicated region
      $region13: #{tpu_custom_call.1} parent=11 // pred_check
        %p140 = pneg %p57
      $region14: #{tpu_custom_call.1} parent=11 // pred_check_branch
        %142 = sbr.rel (%p140) target = $region16
      $region15: #{tpu_custom_call.1} parent=11 // pred_region
        _
      $region16: #{tpu_custom_call.1} parent=11 // pred_fallthru
        _
      // Predicated region
      $region17: #{tpu_custom_call.1} parent=11 // pred_check
        %p143 = pneg %p78
      $region18: #{tpu_custom_call.1} parent=11 // pred_check_branch
        %145 = sbr.rel (%p143) target = $region20
      $region19: #{tpu_custom_call.1} parent=11 // pred_region
        _
      $region20: #{tpu_custom_call.1} parent=11 // pred_fallthru
        _
      // Predicated region
      $region21: #{tpu_custom_call.1} parent=11 // pred_check
        %p146 = pneg %p99
      $region22: #{tpu_custom_call.1} parent=11 // pred_check_branch
        %148 = sbr.rel (%p146) target = $region24
      $region23: #{tpu_custom_call.1} parent=11 // pred_region
        _
      $region24: #{tpu_custom_call.1} parent=11 // pred_fallthru
        _
    $region12: #{tpu_custom_call.1} parent=5 // pred_fallthru
      _
    %p149 = scmp.lt.s32.totalorder %s10, 2
    // Predicated region
    $region25: #{tpu_custom_call.1} parent=5 // pred_check
      %p150 = pneg %p149
    $region26: #{tpu_custom_call.1} parent=5 // pred_check_branch
      %152 = sbr.rel (%p150) target = $region28
    $region27: #{tpu_custom_call.1} parent=5 // pred_region
      // Predicated region
      $region29: #{tpu_custom_call.1} parent=27 // pred_check
        %p153 = pneg %p30
      $region30: #{tpu_custom_call.1} parent=27 // pred_check_branch
        %155 = sbr.rel (%p153) target = $region32
      $region31: #{tpu_custom_call.1} parent=27 // pred_region
        %p156 = scmp.lt.s32.totalorder %s10, 1
        %s157 = scalar_select %p156, %s10, 1
        %s158 = smul.addr %s157, 300
        %s159 = smul.addr %s158, 8
        %s160 = scalar_lea.vmem %s0, %s159
      $region32: #{tpu_custom_call.1} parent=27 // pred_fallthru
        _
    $region28: #{tpu_custom_call.1} parent=5 // pred_fallthru
      _
    %p161 = scmp.le.s32.totalorder 1, %s10
    %p162 = scmp.lt.s32.totalorder %s10, 3
    %p163 = pnand %p161, %p162
    %p164 = pneg %p163
    // Predicated region
    $region33: #{tpu_custom_call.1} parent=5 // pred_check
      _
    $region34: #{tpu_custom_call.1} parent=5 // pred_check_branch
      %166 = sbr.rel (%p163) target = $region36
    $region35: #{tpu_custom_call.1} parent=5 // pred_region
      %s167 = ssub.s32 %s10, 1
      %p168 = scmp.lt.s32.totalorder %s15, 1
      %s169 = scalar_select %p168, %s15, 1
      %s170 = smul.addr %s169, 300
      %s171 = smul.addr %s170, 8
      %s172 = scalar_lea.vmem %s0, %s171
      %p173 = pneg %p36
      %p174 = pneg %p33
      %p175 = pneg %p57
      %p176 = pneg %p54
      %p177 = pneg %p78
      %p178 = pneg %p75
      %p179 = pneg %p99
      %p180 = pneg %p96
      %p181 = pneg %p125
      %p182 = pneg %p122
      %p183 = scmp.lt.s32.totalorder %s15, 1
      %s184 = scalar_select %p183, %s15, 1
      %s185 = smul.addr %s184, 2
      %s186 = smul.addr %s185, 8
      %s187 = scalar_lea.vmem %s4, %s186
      %p188 = scmp.lt.s32.totalorder %s15, 1
      %s189 = scalar_select %p188, %s15, 1
      %s190 = smul.addr %s189, 300
      %s191 = smul.addr %s190, 8
      %s192 = scalar_lea.vmem %s0, %s191
      %p193 = scmp.lt.s32.totalorder %s15, 1
      %s194 = scalar_select %p193, %s15, 1
      %s195 = smul.addr %s194, 2
      %s196 = smul.addr %s195, 8
      %s197 = scalar_lea.vmem %s4, %s196
      %v198 = vld [vmem:[%s1] sm:$0xff]
      %v199 = vld [vmem:[%s1 + $0x8] sm:$0xff]
      %v200 = vld [vmem:[%s1 + $0x10] sm:$0xf]
      %v201 = vld [vmem:[%s1 + $0x18] sm:$0xf]
      %v202 = vld [vmem:[%s2] sm:$0xff]
      %v203 = vld [vmem:[%s2 + $0x8] sm:$0xf]
      %v204 = vld [vmem:[%s3] sm:$0xff]
      %v205 = vld [vmem:[%s3 + $0x8] sm:$0xff]
      %v206 = vld [vmem:[%s3 + $0x10] sm:$0xff]
      %v207 = vld [vmem:[%s3 + $0x18] sm:$0xff]
      %v208 = vld [vmem:[%s3 + $0x20] sm:$0xff]
      %v209 = vld [vmem:[%s3 + $0x28] sm:$0xff]
      %v210 = vld [vmem:[%s3 + $0x30] sm:$0xff]
      %v211 = vld [vmem:[%s3 + $0x38] sm:$0xff]
      %v212 = vld [vmem:[%s3 + $0x40] sm:$0xff]
      %v213 = vld [vmem:[%s3 + $0x48] sm:$0xff]
      %v214 = vld [vmem:[%s3 + $0x50] sm:$0xff]
      %v215 = vld [vmem:[%s3 + $0x58] sm:$0xff]
      %v216 = vld [vmem:[%s3 + $0x60] sm:$0xf]
      %v217 = vld [vmem:[%s3 + $0x68] sm:$0xf]
      %v218 = vld [vmem:[%s3 + $0x70] sm:$0xf]
      %v219 = vld [vmem:[%s3 + $0x78] sm:$0xf]
      %v220 = vld [vmem:[%s3 + $0x80] sm:$0xf]
      %v221 = vld [vmem:[%s3 + $0x88] sm:$0xf]
      %v222 = vld [vmem:[%s3 + $0x90] sm:$0xf]
      %v223 = vld [vmem:[%s3 + $0x98] sm:$0xf]
      %v224 = vld [vmem:[%s3 + $0xa0] sm:$0xf]
      %v225 = vld [vmem:[%s3 + $0xa8] sm:$0xf]
      %v226 = vld [vmem:[%s3 + $0xb0] sm:$0xf]
      %v227 = vld [vmem:[%s3 + $0xb8] sm:$0xf]
      %v228 = vld [vmem:[%s192] sm:$0xff]
      %v229 = vld [vmem:[%s192 + $0x8] sm:$0xff]
      %v230 = vld [vmem:[%s192 + $0x10] sm:$0xff]
      %v231 = vld [vmem:[%s192 + $0x18] sm:$0xff]
      %v232 = vld [vmem:[%s192 + $0x20] sm:$0xff]
      %v233 = vld [vmem:[%s192 + $0x28] sm:$0xff]
      %v234 = vld [vmem:[%s192 + $0x30] sm:$0xff]
      %v235 = vld [vmem:[%s192 + $0x38] sm:$0xff]
      %v236 = vld [vmem:[%s192 + $0x40] sm:$0xff]
      %v237 = vld [vmem:[%s192 + $0x48] sm:$0xff]
      %v238 = vld [vmem:[%s192 + $0x50] sm:$0xff]
      %v239 = vld [vmem:[%s192 + $0x58] sm:$0xff]
      %v240 = vld [vmem:[%s192 + $0x60] sm:$0xff]
      %v241 = vld [vmem:[%s192 + $0x68] sm:$0xff]
      %v242 = vld [vmem:[%s192 + $0x70] sm:$0xff]
      %v243 = vld [vmem:[%s192 + $0x78] sm:$0xff]
      %v244 = vld [vmem:[%s192 + $0x80] sm:$0xff]
      %v245 = vld [vmem:[%s192 + $0x88] sm:$0xff]
      %v246 = vld [vmem:[%s192 + $0x90] sm:$0xff]
      %v247 = vld [vmem:[%s192 + $0x98] sm:$0xff]
      %v248 = vld [vmem:[%s192 + $0xa0] sm:$0xff]
      %v249 = vld [vmem:[%s192 + $0xa8] sm:$0xff]
      %v250 = vld [vmem:[%s192 + $0xb0] sm:$0xff]
      %v251 = vld [vmem:[%s192 + $0xb8] sm:$0xff]
      %v252 = vld [vmem:[%s192 + $0xc0] sm:$0xff]
      %v253 = vld [vmem:[%s192 + $0xc8] sm:$0xff]
      %v254 = vld [vmem:[%s192 + $0xd0] sm:$0xff]
      %v255 = vld [vmem:[%s192 + $0xd8] sm:$0xff]
      %v256 = vld [vmem:[%s192 + $0xe0] sm:$0xff]
      %v257 = vld [vmem:[%s192 + $0xe8] sm:$0xff]
      %v258 = vld [vmem:[%s192 + $0xf0] sm:$0xff]
      %v259 = vld [vmem:[%s192 + $0xf8] sm:$0xff]
      %v260 = vld [vmem:[%s192 + $0x100] sm:$0xff]
      %v261 = vld [vmem:[%s192 + $0x108] sm:$0xff]
      %v262 = vld [vmem:[%s192 + $0x110] sm:$0xff]
      %v263 = vld [vmem:[%s192 + $0x118] sm:$0xff]
      %v264 = vld [vmem:[%s192 + $0x120] sm:$0xff]
      %v265 = vld [vmem:[%s192 + $0x128] sm:$0xff]
      %v266 = vld [vmem:[%s192 + $0x130] sm:$0xff]
      %v267 = vld [vmem:[%s192 + $0x138] sm:$0xff]
      %v268 = vld [vmem:[%s192 + $0x140] sm:$0xff]
      %v269 = vld [vmem:[%s192 + $0x148] sm:$0xff]
      %v270 = vld [vmem:[%s192 + $0x150] sm:$0xff]
      %v271 = vld [vmem:[%s192 + $0x158] sm:$0xff]
      %v272 = vld [vmem:[%s192 + $0x160] sm:$0xff]
      %v273 = vld [vmem:[%s192 + $0x168] sm:$0xff]
      %v274 = vld [vmem:[%s192 + $0x170] sm:$0xff]
      %v275 = vld [vmem:[%s192 + $0x178] sm:$0xff]
      %v276 = vld [vmem:[%s192 + $0x180] sm:$0xff]
      %v277 = vld [vmem:[%s192 + $0x188] sm:$0xff]
      %v278 = vld [vmem:[%s192 + $0x190] sm:$0xff]
      %v279 = vld [vmem:[%s192 + $0x198] sm:$0xff]
      %v280 = vld [vmem:[%s192 + $0x1a0] sm:$0xff]
      %v281 = vld [vmem:[%s192 + $0x1a8] sm:$0xff]
      %v282 = vld [vmem:[%s192 + $0x1b0] sm:$0xff]
      %v283 = vld [vmem:[%s192 + $0x1b8] sm:$0xff]
      %v284 = vld [vmem:[%s192 + $0x1c0] sm:$0xff]
      %v285 = vld [vmem:[%s192 + $0x1c8] sm:$0xff]
      %v286 = vld [vmem:[%s192 + $0x1d0] sm:$0xff]
      %v287 = vld [vmem:[%s192 + $0x1d8] sm:$0xff]
      %v288 = vld [vmem:[%s192 + $0x1e0] sm:$0xff]
      %v289 = vld [vmem:[%s192 + $0x1e8] sm:$0xff]
      %v290 = vld [vmem:[%s192 + $0x1f0] sm:$0xff]
      %v291 = vld [vmem:[%s192 + $0x1f8] sm:$0xff]
      %v292 = vld [vmem:[%s192 + $0x200] sm:$0xff]
      %v293 = vld [vmem:[%s192 + $0x208] sm:$0xff]
      %v294 = vld [vmem:[%s192 + $0x210] sm:$0xff]
      %v295 = vld [vmem:[%s192 + $0x218] sm:$0xff]
      %v296 = vld [vmem:[%s192 + $0x220] sm:$0xff]
      %v297 = vld [vmem:[%s192 + $0x228] sm:$0xff]
      %v298 = vld [vmem:[%s192 + $0x230] sm:$0xff]
      %v299 = vld [vmem:[%s192 + $0x238] sm:$0xff]
      %v300 = vld [vmem:[%s192 + $0x240] sm:$0xff]
      %v301 = vld [vmem:[%s192 + $0x248] sm:$0xff]
      %v302 = vld [vmem:[%s192 + $0x250] sm:$0xff]
      %v303 = vld [vmem:[%s192 + $0x258] sm:$0xff]
      %v304 = vld [vmem:[%s192 + $0x260] sm:$0xff]
      %v305 = vld [vmem:[%s192 + $0x268] sm:$0xff]
      %v306 = vld [vmem:[%s192 + $0x270] sm:$0xff]
      %v307 = vld [vmem:[%s192 + $0x278] sm:$0xff]
      %v308 = vld [vmem:[%s192 + $0x280] sm:$0xff]
      %v309 = vld [vmem:[%s192 + $0x288] sm:$0xff]
      %v310 = vld [vmem:[%s192 + $0x290] sm:$0xff]
      %v311 = vld [vmem:[%s192 + $0x298] sm:$0xff]
      %v312 = vld [vmem:[%s192 + $0x2a0] sm:$0xff]
      %v313 = vld [vmem:[%s192 + $0x2a8] sm:$0xff]
      %v314 = vld [vmem:[%s192 + $0x2b0] sm:$0xff]
      %v315 = vld [vmem:[%s192 + $0x2b8] sm:$0xff]
      %v316 = vld [vmem:[%s192 + $0x2c0] sm:$0xff]
      %v317 = vld [vmem:[%s192 + $0x2c8] sm:$0xff]
      %v318 = vld [vmem:[%s192 + $0x2d0] sm:$0xff]
      %v319 = vld [vmem:[%s192 + $0x2d8] sm:$0xff]
      %v320 = vld [vmem:[%s192 + $0x2e0] sm:$0xff]
      %v321 = vld [vmem:[%s192 + $0x2e8] sm:$0xff]
      %v322 = vld [vmem:[%s192 + $0x2f0] sm:$0xff]
      %v323 = vld [vmem:[%s192 + $0x2f8] sm:$0xff]
      %v324 = vld [vmem:[%s192 + $0x300] sm:$0xff]
      %v325 = vld [vmem:[%s192 + $0x308] sm:$0xff]
      %v326 = vld [vmem:[%s192 + $0x310] sm:$0xff]
      %v327 = vld [vmem:[%s192 + $0x318] sm:$0xff]
      %v328 = vld [vmem:[%s192 + $0x320] sm:$0xff]
      %v329 = vld [vmem:[%s192 + $0x328] sm:$0xff]
      %v330 = vld [vmem:[%s192 + $0x330] sm:$0xff]
      %v331 = vld [vmem:[%s192 + $0x338] sm:$0xff]
      %v332 = vld [vmem:[%s192 + $0x340] sm:$0xff]
      %v333 = vld [vmem:[%s192 + $0x348] sm:$0xff]
      %v334 = vld [vmem:[%s192 + $0x350] sm:$0xff]
      %v335 = vld [vmem:[%s192 + $0x358] sm:$0xff]
      %v336 = vld [vmem:[%s192 + $0x360] sm:$0xff]
      %v337 = vld [vmem:[%s192 + $0x368] sm:$0xff]
      %v338 = vld [vmem:[%s192 + $0x370] sm:$0xff]
      %v339 = vld [vmem:[%s192 + $0x378] sm:$0xff]
      %v340 = vld [vmem:[%s192 + $0x380] sm:$0xff]
      %v341 = vld [vmem:[%s192 + $0x388] sm:$0xff]
      %v342 = vld [vmem:[%s192 + $0x390] sm:$0xff]
      %v343 = vld [vmem:[%s192 + $0x398] sm:$0xff]
      %v344 = vld [vmem:[%s192 + $0x3a0] sm:$0xff]
      %v345 = vld [vmem:[%s192 + $0x3a8] sm:$0xff]
      %v346 = vld [vmem:[%s192 + $0x3b0] sm:$0xff]
      %v347 = vld [vmem:[%s192 + $0x3b8] sm:$0xff]
      %v348 = vld [vmem:[%s192 + $0x3c0] sm:$0xff]
      %v349 = vld [vmem:[%s192 + $0x3c8] sm:$0xff]
      %v350 = vld [vmem:[%s192 + $0x3d0] sm:$0xff]
      %v351 = vld [vmem:[%s192 + $0x3d8] sm:$0xff]
      %v352 = vld [vmem:[%s192 + $0x3e0] sm:$0xff]
      %v353 = vld [vmem:[%s192 + $0x3e8] sm:$0xff]
      %v354 = vld [vmem:[%s192 + $0x3f0] sm:$0xff]
      %v355 = vld [vmem:[%s192 + $0x3f8] sm:$0xff]
      %v356 = vld [vmem:[%s192 + $0x400] sm:$0xff]
      %v357 = vld [vmem:[%s192 + $0x408] sm:$0xff]
      %v358 = vld [vmem:[%s192 + $0x410] sm:$0xff]
      %v359 = vld [vmem:[%s192 + $0x418] sm:$0xff]
      %v360 = vld [vmem:[%s192 + $0x420] sm:$0xff]
      %v361 = vld [vmem:[%s192 + $0x428] sm:$0xff]
      %v362 = vld [vmem:[%s192 + $0x430] sm:$0xff]
      %v363 = vld [vmem:[%s192 + $0x438] sm:$0xff]
      %v364 = vld [vmem:[%s192 + $0x440] sm:$0xff]
      %v365 = vld [vmem:[%s192 + $0x448] sm:$0xff]
      %v366 = vld [vmem:[%s192 + $0x450] sm:$0xff]
      %v367 = vld [vmem:[%s192 + $0x458] sm:$0xff]
      %v368 = vld [vmem:[%s192 + $0x460] sm:$0xff]
      %v369 = vld [vmem:[%s192 + $0x468] sm:$0xff]
      %v370 = vld [vmem:[%s192 + $0x470] sm:$0xff]
      %v371 = vld [vmem:[%s192 + $0x478] sm:$0xff]
      %v372 = vld [vmem:[%s192 + $0x480] sm:$0xff]
      %v373 = vld [vmem:[%s192 + $0x488] sm:$0xff]
      %v374 = vld [vmem:[%s192 + $0x490] sm:$0xff]
      %v375 = vld [vmem:[%s192 + $0x498] sm:$0xff]
      %v376 = vld [vmem:[%s192 + $0x4a0] sm:$0xff]
      %v377 = vld [vmem:[%s192 + $0x4a8] sm:$0xff]
      %v378 = vld [vmem:[%s192 + $0x4b0] sm:$0xff]
      %v379 = vld [vmem:[%s192 + $0x4b8] sm:$0xff]
      %v380 = vld [vmem:[%s192 + $0x4c0] sm:$0xff]
      %v381 = vld [vmem:[%s192 + $0x4c8] sm:$0xff]
      %v382 = vld [vmem:[%s192 + $0x4d0] sm:$0xff]
      %v383 = vld [vmem:[%s192 + $0x4d8] sm:$0xff]
      %v384 = vld [vmem:[%s192 + $0x4e0] sm:$0xff]
      %v385 = vld [vmem:[%s192 + $0x4e8] sm:$0xff]
      %v386 = vld [vmem:[%s192 + $0x4f0] sm:$0xff]
      %v387 = vld [vmem:[%s192 + $0x4f8] sm:$0xff]
      %v388 = vld [vmem:[%s192 + $0x500] sm:$0xff]
      %v389 = vld [vmem:[%s192 + $0x508] sm:$0xff]
      %v390 = vld [vmem:[%s192 + $0x510] sm:$0xff]
      %v391 = vld [vmem:[%s192 + $0x518] sm:$0xff]
      %v392 = vld [vmem:[%s192 + $0x520] sm:$0xff]
      %v393 = vld [vmem:[%s192 + $0x528] sm:$0xff]
      %v394 = vld [vmem:[%s192 + $0x530] sm:$0xff]
      %v395 = vld [vmem:[%s192 + $0x538] sm:$0xff]
      %v396 = vld [vmem:[%s192 + $0x540] sm:$0xff]
      %v397 = vld [vmem:[%s192 + $0x548] sm:$0xff]
      %v398 = vld [vmem:[%s192 + $0x550] sm:$0xff]
      %v399 = vld [vmem:[%s192 + $0x558] sm:$0xff]
      %v400 = vld [vmem:[%s192 + $0x560] sm:$0xff]
      %v401 = vld [vmem:[%s192 + $0x568] sm:$0xff]
      %v402 = vld [vmem:[%s192 + $0x570] sm:$0xff]
      %v403 = vld [vmem:[%s192 + $0x578] sm:$0xff]
      %v404 = vld [vmem:[%s192 + $0x580] sm:$0xff]
      %v405 = vld [vmem:[%s192 + $0x588] sm:$0xff]
      %v406 = vld [vmem:[%s192 + $0x590] sm:$0xff]
      %v407 = vld [vmem:[%s192 + $0x598] sm:$0xff]
      %v408 = vld [vmem:[%s192 + $0x5a0] sm:$0xff]
      %v409 = vld [vmem:[%s192 + $0x5a8] sm:$0xff]
      %v410 = vld [vmem:[%s192 + $0x5b0] sm:$0xff]
      %v411 = vld [vmem:[%s192 + $0x5b8] sm:$0xff]
      %v412 = vld [vmem:[%s192 + $0x5c0] sm:$0xff]
      %v413 = vld [vmem:[%s192 + $0x5c8] sm:$0xff]
      %v414 = vld [vmem:[%s192 + $0x5d0] sm:$0xff]
      %v415 = vld [vmem:[%s192 + $0x5d8] sm:$0xff]
      %v416 = vld [vmem:[%s192 + $0x5e0] sm:$0xff]
      %v417 = vld [vmem:[%s192 + $0x5e8] sm:$0xff]
      %v418 = vld [vmem:[%s192 + $0x5f0] sm:$0xff]
      %v419 = vld [vmem:[%s192 + $0x5f8] sm:$0xff]
      %v420 = vld [vmem:[%s192 + $0x600] sm:$0xff]
      %v421 = vld [vmem:[%s192 + $0x608] sm:$0xff]
      %v422 = vld [vmem:[%s192 + $0x610] sm:$0xff]
      %v423 = vld [vmem:[%s192 + $0x618] sm:$0xff]
      %v424 = vld [vmem:[%s192 + $0x620] sm:$0xff]
      %v425 = vld [vmem:[%s192 + $0x628] sm:$0xff]
      %v426 = vld [vmem:[%s192 + $0x630] sm:$0xff]
      %v427 = vld [vmem:[%s192 + $0x638] sm:$0xff]
      %v428 = vld [vmem:[%s192 + $0x640] sm:$0xff]
      %v429 = vld [vmem:[%s192 + $0x648] sm:$0xff]
      %v430 = vld [vmem:[%s192 + $0x650] sm:$0xff]
      %v431 = vld [vmem:[%s192 + $0x658] sm:$0xff]
      %v432 = vld [vmem:[%s192 + $0x660] sm:$0xff]
      %v433 = vld [vmem:[%s192 + $0x668] sm:$0xff]
      %v434 = vld [vmem:[%s192 + $0x670] sm:$0xff]
      %v435 = vld [vmem:[%s192 + $0x678] sm:$0xff]
      %v436 = vld [vmem:[%s192 + $0x680] sm:$0xff]
      %v437 = vld [vmem:[%s192 + $0x688] sm:$0xff]
      %v438 = vld [vmem:[%s192 + $0x690] sm:$0xff]
      %v439 = vld [vmem:[%s192 + $0x698] sm:$0xff]
      %v440 = vld [vmem:[%s192 + $0x6a0] sm:$0xff]
      %v441 = vld [vmem:[%s192 + $0x6a8] sm:$0xff]
      %v442 = vld [vmem:[%s192 + $0x6b0] sm:$0xff]
      %v443 = vld [vmem:[%s192 + $0x6b8] sm:$0xff]
      %v444 = vld [vmem:[%s192 + $0x6c0] sm:$0xff]
      %v445 = vld [vmem:[%s192 + $0x6c8] sm:$0xff]
      %v446 = vld [vmem:[%s192 + $0x6d0] sm:$0xff]
      %v447 = vld [vmem:[%s192 + $0x6d8] sm:$0xff]
      %v448 = vld [vmem:[%s192 + $0x6e0] sm:$0xff]
      %v449 = vld [vmem:[%s192 + $0x6e8] sm:$0xff]
      %v450 = vld [vmem:[%s192 + $0x6f0] sm:$0xff]
      %v451 = vld [vmem:[%s192 + $0x6f8] sm:$0xff]
      %v452 = vld [vmem:[%s192 + $0x700] sm:$0xff]
      %v453 = vld [vmem:[%s192 + $0x708] sm:$0xff]
      %v454 = vld [vmem:[%s192 + $0x710] sm:$0xff]
      %v455 = vld [vmem:[%s192 + $0x718] sm:$0xff]
      %v456 = vld [vmem:[%s192 + $0x720] sm:$0xff]
      %v457 = vld [vmem:[%s192 + $0x728] sm:$0xff]
      %v458 = vld [vmem:[%s192 + $0x730] sm:$0xff]
      %v459 = vld [vmem:[%s192 + $0x738] sm:$0xff]
      %v460 = vld [vmem:[%s192 + $0x740] sm:$0xff]
      %v461 = vld [vmem:[%s192 + $0x748] sm:$0xff]
      %v462 = vld [vmem:[%s192 + $0x750] sm:$0xff]
      %v463 = vld [vmem:[%s192 + $0x758] sm:$0xff]
      %v464 = vld [vmem:[%s192 + $0x760] sm:$0xff]
      %v465 = vld [vmem:[%s192 + $0x768] sm:$0xff]
      %v466 = vld [vmem:[%s192 + $0x770] sm:$0xff]
      %v467 = vld [vmem:[%s192 + $0x778] sm:$0xff]
      %v468 = vld [vmem:[%s192 + $0x780] sm:$0xff]
      %v469 = vld [vmem:[%s192 + $0x788] sm:$0xff]
      %v470 = vld [vmem:[%s192 + $0x790] sm:$0xff]
      %v471 = vld [vmem:[%s192 + $0x798] sm:$0xff]
      %v472 = vld [vmem:[%s192 + $0x7a0] sm:$0xff]
      %v473 = vld [vmem:[%s192 + $0x7a8] sm:$0xff]
      %v474 = vld [vmem:[%s192 + $0x7b0] sm:$0xff]
      %v475 = vld [vmem:[%s192 + $0x7b8] sm:$0xff]
      %v476 = vld [vmem:[%s192 + $0x7c0] sm:$0xff]
      %v477 = vld [vmem:[%s192 + $0x7c8] sm:$0xff]
      %v478 = vld [vmem:[%s192 + $0x7d0] sm:$0xff]
      %v479 = vld [vmem:[%s192 + $0x7d8] sm:$0xff]
      %v480 = vld [vmem:[%s192 + $0x7e0] sm:$0xff]
      %v481 = vld [vmem:[%s192 + $0x7e8] sm:$0xff]
      %v482 = vld [vmem:[%s192 + $0x7f0] sm:$0xff]
      %v483 = vld [vmem:[%s192 + $0x7f8] sm:$0xff]
      %v484 = vld [vmem:[%s192 + $0x800] sm:$0xff]
      %v485 = vld [vmem:[%s192 + $0x808] sm:$0xff]
      %v486 = vld [vmem:[%s192 + $0x810] sm:$0xff]
      %v487 = vld [vmem:[%s192 + $0x818] sm:$0xff]
      %v488 = vld [vmem:[%s192 + $0x820] sm:$0xff]
      %v489 = vld [vmem:[%s192 + $0x828] sm:$0xff]
      %v490 = vld [vmem:[%s192 + $0x830] sm:$0xff]
      %v491 = vld [vmem:[%s192 + $0x838] sm:$0xff]
      %v492 = vld [vmem:[%s192 + $0x840] sm:$0xff]
      %v493 = vld [vmem:[%s192 + $0x848] sm:$0xff]
      %v494 = vld [vmem:[%s192 + $0x850] sm:$0xff]
      %v495 = vld [vmem:[%s192 + $0x858] sm:$0xff]
      %v496 = vld [vmem:[%s192 + $0x860] sm:$0xff]
      %v497 = vld [vmem:[%s192 + $0x868] sm:$0xff]
      %v498 = vld [vmem:[%s192 + $0x870] sm:$0xff]
      %v499 = vld [vmem:[%s192 + $0x878] sm:$0xff]
      %v500 = vld [vmem:[%s192 + $0x880] sm:$0xff]
      %v501 = vld [vmem:[%s192 + $0x888] sm:$0xff]
      %v502 = vld [vmem:[%s192 + $0x890] sm:$0xff]
      %v503 = vld [vmem:[%s192 + $0x898] sm:$0xff]
      %v504 = vld [vmem:[%s192 + $0x8a0] sm:$0xff]
      %v505 = vld [vmem:[%s192 + $0x8a8] sm:$0xff]
      %v506 = vld [vmem:[%s192 + $0x8b0] sm:$0xff]
      %v507 = vld [vmem:[%s192 + $0x8b8] sm:$0xff]
      %v508 = vld [vmem:[%s192 + $0x8c0] sm:$0xff]
      %v509 = vld [vmem:[%s192 + $0x8c8] sm:$0xff]
      %v510 = vld [vmem:[%s192 + $0x8d0] sm:$0xff]
      %v511 = vld [vmem:[%s192 + $0x8d8] sm:$0xff]
      %v512 = vld [vmem:[%s192 + $0x8e0] sm:$0xff]
      %v513 = vld [vmem:[%s192 + $0x8e8] sm:$0xff]
      %v514 = vld [vmem:[%s192 + $0x8f0] sm:$0xff]
      %v515 = vld [vmem:[%s192 + $0x8f8] sm:$0xff]
      %v516 = vld [vmem:[%s192 + $0x900] sm:$0xf]
      %v517 = vld [vmem:[%s192 + $0x908] sm:$0xf]
      %v518 = vld [vmem:[%s192 + $0x910] sm:$0xf]
      %v519 = vld [vmem:[%s192 + $0x918] sm:$0xf]
      %v520 = vld [vmem:[%s192 + $0x920] sm:$0xf]
      %v521 = vld [vmem:[%s192 + $0x928] sm:$0xf]
      %v522 = vld [vmem:[%s192 + $0x930] sm:$0xf]
      %v523 = vld [vmem:[%s192 + $0x938] sm:$0xf]
      %v524 = vld [vmem:[%s192 + $0x940] sm:$0xf]
      %v525 = vld [vmem:[%s192 + $0x948] sm:$0xf]
      %v526 = vld [vmem:[%s192 + $0x950] sm:$0xf]
      %v527 = vld [vmem:[%s192 + $0x958] sm:$0xf]
      %529 = vset.pattern.permute.xlu0 0
      %530 = vperm.xlu0 %529, %v202
      %v531 = vpop.permute.xlu0 %530
      %534 = vset.pattern.permute.xlu0 0
      %535 = vperm.xlu0 %534, %v203
      %v536 = vpop.permute.xlu0 %535
      %vm538 = vcmask 556032
      %v540 = vsel %vm538, %v199, 0
      %v543 = vsel %vm538, %v201, 0
      %vm545 = vcmask 1043456
      %v547 = vsel %vm545, %v516, 0
      %v550 = vsel %vm545, %v517, 0
      %v553 = vsel %vm545, %v518, 0
      %v556 = vsel %vm545, %v519, 0
      %v559 = vsel %vm545, %v520, 0
      %v562 = vsel %vm545, %v521, 0
      %v565 = vsel %vm545, %v522, 0
      %v568 = vsel %vm545, %v523, 0
      %v571 = vsel %vm545, %v524, 0
      %v574 = vsel %vm545, %v525, 0
      %v577 = vsel %vm545, %v526, 0
      %v580 = vsel %vm545, %v527, 0
      %v582 = vand.u32 %v408, 4294901760
      %583 = vmatpush.msra.mxu0 %v582
      %v584 = vand.u32 %v396, 4294901760
      %585 = vmatpush.msra.mxu0 %v584
      %v586 = vand.u32 %v384, 4294901760
      %587 = vmatpush.msra.mxu0 %v586
      %v588 = vand.u32 %v372, 4294901760
      %589 = vmatpush.msra.mxu0 %v588
      %v590 = vand.u32 %v360, 4294901760
      %591 = vmatpush.msra.mxu0 %v590
      %v592 = vand.u32 %v348, 4294901760
      %593 = vmatpush.msra.mxu0 %v592
      %v594 = vand.u32 %v336, 4294901760
      %595 = vmatpush.msra.mxu0 %v594
      %v596 = vand.u32 %v324, 4294901760
      %597 = vmatpush.msra.mxu0 %v596
      %v598 = vand.u32 %v312, 4294901760
      %599 = vmatpush.msra.mxu0 %v598
      %v600 = vand.u32 %v300, 4294901760
      %601 = vmatpush.msra.mxu0 %v600
      %v602 = vand.u32 %v288, 4294901760
      %603 = vmatpush.msra.mxu0 %v602
      %v604 = vand.u32 %v276, 4294901760
      %605 = vmatpush.msra.mxu0 %v604
      %v606 = vand.u32 %v264, 4294901760
      %607 = vmatpush.msra.mxu0 %v606
      %v608 = vand.u32 %v252, 4294901760
      %609 = vmatpush.msra.mxu0 %v608
      %v610 = vand.u32 %v240, 4294901760
      %611 = vmatpush.msra.mxu0 %v610
      %v612 = vand.u32 %v228, 4294901760
      %613 = vmatpush.msra.mxu0 %v612
      %v614 = vand.u32 %v198, 4294901760
      %v615 = vsub.f32 %v198, %v614
      %v616 = vand.u32 %v615, 4294901760
      %v617 = vsub.f32 %v615, %v616
      %v618 = vand.u32 %v617, 4294901760
      %619 = vmatmul.f32.gmra.mxu0 %v618
      %v620 = vpop.f32.mrf.mxu0
      %v621 = vadd.f32 %v531, %v620
      %v622 = vand.u32 %v200, 4294901760
      %v623 = vsub.f32 %v200, %v622
      %v624 = vand.u32 %v623, 4294901760
      %v625 = vsub.f32 %v623, %v624
      %v626 = vand.u32 %v625, 4294901760
      %627 = vmatmul.f32.gmra.mxu0 %v626
      %v628 = vpop.f32.mrf.mxu0
      %v629 = vadd.f32 %v536, %v628
      %630 = vdwg.mxu0
      %v631 = vand.u32 %v408, 4294901760
      %v632 = vsub.f32 %v408, %v631
      %v633 = vand.u32 %v632, 4294901760
      %v634 = vsub.f32 %v632, %v633
      %v635 = vand.u32 %v634, 4294901760
      %636 = vmatpush.msra.mxu0 %v635
      %v637 = vand.u32 %v396, 4294901760
      %v638 = vsub.f32 %v396, %v637
      %v639 = vand.u32 %v638, 4294901760
      %v640 = vsub.f32 %v638, %v639
      %v641 = vand.u32 %v640, 4294901760
      %642 = vmatpush.msra.mxu0 %v641
      %v643 = vand.u32 %v384, 4294901760
      %v644 = vsub.f32 %v384, %v643
      %v645 = vand.u32 %v644, 4294901760
      %v646 = vsub.f32 %v644, %v645
      %v647 = vand.u32 %v646, 4294901760
      %648 = vmatpush.msra.mxu0 %v647
      %v649 = vand.u32 %v372, 4294901760
      %v650 = vsub.f32 %v372, %v649
      %v651 = vand.u32 %v650, 4294901760
      %v652 = vsub.f32 %v650, %v651
      %v653 = vand.u32 %v652, 4294901760
      %654 = vmatpush.msra.mxu0 %v653
      %v655 = vand.u32 %v360, 4294901760
      %v656 = vsub.f32 %v360, %v655
      %v657 = vand.u32 %v656, 4294901760
      %v658 = vsub.f32 %v656, %v657
      %v659 = vand.u32 %v658, 4294901760
      %660 = vmatpush.msra.mxu0 %v659
      %v661 = vand.u32 %v348, 4294901760
      %v662 = vsub.f32 %v348, %v661
      %v663 = vand.u32 %v662, 4294901760
      %v664 = vsub.f32 %v662, %v663
      %v665 = vand.u32 %v664, 4294901760
      %666 = vmatpush.msra.mxu0 %v665
      %v667 = vand.u32 %v336, 4294901760
      %v668 = vsub.f32 %v336, %v667
      %v669 = vand.u32 %v668, 4294901760
      %v670 = vsub.f32 %v668, %v669
      %v671 = vand.u32 %v670, 4294901760
      %672 = vmatpush.msra.mxu0 %v671
      %v673 = vand.u32 %v324, 4294901760
      %v674 = vsub.f32 %v324, %v673
      %v675 = vand.u32 %v674, 4294901760
      %v676 = vsub.f32 %v674, %v675
      %v677 = vand.u32 %v676, 4294901760
      %678 = vmatpush.msra.mxu0 %v677
      %v679 = vand.u32 %v312, 4294901760
      %v680 = vsub.f32 %v312, %v679
      %v681 = vand.u32 %v680, 4294901760
      %v682 = vsub.f32 %v680, %v681
      %v683 = vand.u32 %v682, 4294901760
      %684 = vmatpush.msra.mxu0 %v683
      %v685 = vand.u32 %v300, 4294901760
      %v686 = vsub.f32 %v300, %v685
      %v687 = vand.u32 %v686, 4294901760
      %v688 = vsub.f32 %v686, %v687
      %v689 = vand.u32 %v688, 4294901760
      %690 = vmatpush.msra.mxu0 %v689
      %v691 = vand.u32 %v288, 4294901760
      %v692 = vsub.f32 %v288, %v691
      %v693 = vand.u32 %v692, 4294901760
      %v694 = vsub.f32 %v692, %v693
      %v695 = vand.u32 %v694, 4294901760
      %696 = vmatpush.msra.mxu0 %v695
      %v697 = vand.u32 %v276, 4294901760
      %v698 = vsub.f32 %v276, %v697
      %v699 = vand.u32 %v698, 4294901760
      %v700 = vsub.f32 %v698, %v699
      %v701 = vand.u32 %v700, 4294901760
      %702 = vmatpush.msra.mxu0 %v701
      %v703 = vand.u32 %v264, 4294901760
      %v704 = vsub.f32 %v264, %v703
      %v705 = vand.u32 %v704, 4294901760
      %v706 = vsub.f32 %v704, %v705
      %v707 = vand.u32 %v706, 4294901760
      %708 = vmatpush.msra.mxu0 %v707
      %v709 = vand.u32 %v252, 4294901760
      %v710 = vsub.f32 %v252, %v709
      %v711 = vand.u32 %v710, 4294901760
      %v712 = vsub.f32 %v710, %v711
      %v713 = vand.u32 %v712, 4294901760
      %714 = vmatpush.msra.mxu0 %v713
      %v715 = vand.u32 %v240, 4294901760
      %v716 = vsub.f32 %v240, %v715
      %v717 = vand.u32 %v716, 4294901760
      %v718 = vsub.f32 %v716, %v717
      %v719 = vand.u32 %v718, 4294901760
      %720 = vmatpush.msra.mxu0 %v719
      %v721 = vand.u32 %v228, 4294901760
      %v722 = vsub.f32 %v228, %v721
      %v723 = vand.u32 %v722, 4294901760
      %v724 = vsub.f32 %v722, %v723
      %v725 = vand.u32 %v724, 4294901760
      %726 = vmatpush.msra.mxu0 %v725
      %v727 = vand.u32 %v198, 4294901760
      %728 = vmatmul.f32.gmra.mxu0 %v727
      %v729 = vpop.f32.mrf.mxu0
      %v730 = vadd.f32 %v621, %v729
      %v731 = vand.u32 %v200, 4294901760
      %732 = vmatmul.f32.gmra.mxu0 %v731
      %v733 = vpop.f32.mrf.mxu0
      %v734 = vadd.f32 %v629, %v733
      %735 = vdwg.mxu0
      %v736 = vand.u32 %v408, 4294901760
      %v737 = vsub.f32 %v408, %v736
      %738 = vmatpush.msra.mxu0 %v737
      %v739 = vand.u32 %v396, 4294901760
      %v740 = vsub.f32 %v396, %v739
      %741 = vmatpush.msra.mxu0 %v740
      %v742 = vand.u32 %v384, 4294901760
      %v743 = vsub.f32 %v384, %v742
      %744 = vmatpush.msra.mxu0 %v743
      %v745 = vand.u32 %v372, 4294901760
      %v746 = vsub.f32 %v372, %v745
      %747 = vmatpush.msra.mxu0 %v746
      %v748 = vand.u32 %v360, 4294901760
      %v749 = vsub.f32 %v360, %v748
      %750 = vmatpush.msra.mxu0 %v749
      %v751 = vand.u32 %v348, 4294901760
      %v752 = vsub.f32 %v348, %v751
      %753 = vmatpush.msra.mxu0 %v752
      %v754 = vand.u32 %v336, 4294901760
      %v755 = vsub.f32 %v336, %v754
      %756 = vmatpush.msra.mxu0 %v755
      %v757 = vand.u32 %v324, 4294901760
      %v758 = vsub.f32 %v324, %v757
      %759 = vmatpush.msra.mxu0 %v758
      %v760 = vand.u32 %v312, 4294901760
      %v761 = vsub.f32 %v312, %v760
      %762 = vmatpush.msra.mxu0 %v761
      %v763 = vand.u32 %v300, 4294901760
      %v764 = vsub.f32 %v300, %v763
      %765 = vmatpush.msra.mxu0 %v764
      %v766 = vand.u32 %v288, 4294901760
      %v767 = vsub.f32 %v288, %v766
      %768 = vmatpush.msra.mxu0 %v767
      %v769 = vand.u32 %v276, 4294901760
      %v770 = vsub.f32 %v276, %v769
      %771 = vmatpush.msra.mxu0 %v770
      %v772 = vand.u32 %v264, 4294901760
      %v773 = vsub.f32 %v264, %v772
      %774 = vmatpush.msra.mxu0 %v773
      %v775 = vand.u32 %v252, 4294901760
      %v776 = vsub.f32 %v252, %v775
      %777 = vmatpush.msra.mxu0 %v776
      %v778 = vand.u32 %v240, 4294901760
      %v779 = vsub.f32 %v240, %v778
      %780 = vmatpush.msra.mxu0 %v779
      %v781 = vand.u32 %v228, 4294901760
      %v782 = vsub.f32 %v228, %v781
      %783 = vmatpush.msra.mxu0 %v782
      %v784 = vand.u32 %v198, 4294901760
      %v785 = vsub.f32 %v198, %v784
      %786 = vmatmul.f32.gmra.mxu0 %v785
      %v787 = vpop.f32.mrf.mxu0
      %v788 = vadd.f32 %v730, %v787
      %v789 = vand.u32 %v200, 4294901760
      %v790 = vsub.f32 %v200, %v789
      %791 = vmatmul.f32.gmra.mxu0 %v790
      %v792 = vpop.f32.mrf.mxu0
      %v793 = vadd.f32 %v734, %v792
      %794 = vdwg.mxu0
      %v795 = vand.u32 %v408, 4294901760
      %796 = vmatpush.msra.mxu0 %v795
      %v797 = vand.u32 %v396, 4294901760
      %798 = vmatpush.msra.mxu0 %v797
      %v799 = vand.u32 %v384, 4294901760
      %800 = vmatpush.msra.mxu0 %v799
      %v801 = vand.u32 %v372, 4294901760
      %802 = vmatpush.msra.mxu0 %v801
      %v803 = vand.u32 %v360, 4294901760
      %804 = vmatpush.msra.mxu0 %v803
      %v805 = vand.u32 %v348, 4294901760
      %806 = vmatpush.msra.mxu0 %v805
      %v807 = vand.u32 %v336, 4294901760
      %808 = vmatpush.msra.mxu0 %v807
      %v809 = vand.u32 %v324, 4294901760
      %810 = vmatpush.msra.mxu0 %v809
      %v811 = vand.u32 %v312, 4294901760
      %812 = vmatpush.msra.mxu0 %v811
      %v813 = vand.u32 %v300, 4294901760
      %814 = vmatpush.msra.mxu0 %v813
      %v815 = vand.u32 %v288, 4294901760
      %816 = vmatpush.msra.mxu0 %v815
      %v817 = vand.u32 %v276, 4294901760
      %818 = vmatpush.msra.mxu0 %v817
      %v819 = vand.u32 %v264, 4294901760
      %820 = vmatpush.msra.mxu0 %v819
      %v821 = vand.u32 %v252, 4294901760
      %822 = vmatpush.msra.mxu0 %v821
      %v823 = vand.u32 %v240, 4294901760
      %824 = vmatpush.msra.mxu0 %v823
      %v825 = vand.u32 %v228, 4294901760
      %826 = vmatpush.msra.mxu0 %v825
      %v827 = vand.u32 %v198, 4294901760
      %v828 = vsub.f32 %v198, %v827
      %v829 = vand.u32 %v828, 4294901760
      %830 = vmatmul.f32.gmra.mxu0 %v829
      %v831 = vpop.f32.mrf.mxu0
      %v832 = vadd.f32 %v788, %v831
      %v833 = vand.u32 %v200, 4294901760
      %v834 = vsub.f32 %v200, %v833
      %v835 = vand.u32 %v834, 4294901760
      %836 = vmatmul.f32.gmra.mxu0 %v835
      %v837 = vpop.f32.mrf.mxu0
      %v838 = vadd.f32 %v793, %v837
      %839 = vdwg.mxu0
      %v840 = vand.u32 %v408, 4294901760
      %v841 = vsub.f32 %v408, %v840
      %v842 = vand.u32 %v841, 4294901760
      %843 = vmatpush.msra.mxu0 %v842
      %v844 = vand.u32 %v396, 4294901760
      %v845 = vsub.f32 %v396, %v844
      %v846 = vand.u32 %v845, 4294901760
      %847 = vmatpush.msra.mxu0 %v846
      %v848 = vand.u32 %v384, 4294901760
      %v849 = vsub.f32 %v384, %v848
      %v850 = vand.u32 %v849, 4294901760
      %851 = vmatpush.msra.mxu0 %v850
      %v852 = vand.u32 %v372, 4294901760
      %v853 = vsub.f32 %v372, %v852
      %v854 = vand.u32 %v853, 4294901760
      %855 = vmatpush.msra.mxu0 %v854
      %v856 = vand.u32 %v360, 4294901760
      %v857 = vsub.f32 %v360, %v856
      %v858 = vand.u32 %v857, 4294901760
      %859 = vmatpush.msra.mxu0 %v858
      %v860 = vand.u32 %v348, 4294901760
      %v861 = vsub.f32 %v348, %v860
      %v862 = vand.u32 %v861, 4294901760
      %863 = vmatpush.msra.mxu0 %v862
      %v864 = vand.u32 %v336, 4294901760
      %v865 = vsub.f32 %v336, %v864
      %v866 = vand.u32 %v865, 4294901760
      %867 = vmatpush.msra.mxu0 %v866
      %v868 = vand.u32 %v324, 4294901760
      %v869 = vsub.f32 %v324, %v868
      %v870 = vand.u32 %v869, 4294901760
      %871 = vmatpush.msra.mxu0 %v870
      %v872 = vand.u32 %v312, 4294901760
      %v873 = vsub.f32 %v312, %v872
      %v874 = vand.u32 %v873, 4294901760
      %875 = vmatpush.msra.mxu0 %v874
      %v876 = vand.u32 %v300, 4294901760
      %v877 = vsub.f32 %v300, %v876
      %v878 = vand.u32 %v877, 4294901760
      %879 = vmatpush.msra.mxu0 %v878
      %v880 = vand.u32 %v288, 4294901760
      %v881 = vsub.f32 %v288, %v880
      %v882 = vand.u32 %v881, 4294901760
      %883 = vmatpush.msra.mxu0 %v882
      %v884 = vand.u32 %v276, 4294901760
      %v885 = vsub.f32 %v276, %v884
      %v886 = vand.u32 %v885, 4294901760
      %887 = vmatpush.msra.mxu0 %v886
      %v888 = vand.u32 %v264, 4294901760
      %v889 = vsub.f32 %v264, %v888
      %v890 = vand.u32 %v889, 4294901760
      %891 = vmatpush.msra.mxu0 %v890
      %v892 = vand.u32 %v252, 4294901760
      %v893 = vsub.f32 %v252, %v892
      %v894 = vand.u32 %v893, 4294901760
      %895 = vmatpush.msra.mxu0 %v894
      %v896 = vand.u32 %v240, 4294901760
      %v897 = vsub.f32 %v240, %v896
      %v898 = vand.u32 %v897, 4294901760
      %899 = vmatpush.msra.mxu0 %v898
      %v900 = vand.u32 %v228, 4294901760
      %v901 = vsub.f32 %v228, %v900
      %v902 = vand.u32 %v901, 4294901760
      %903 = vmatpush.msra.mxu0 %v902
      %v904 = vand.u32 %v198, 4294901760
      %905 = vmatmul.f32.gmra.mxu0 %v904
      %v906 = vpop.f32.mrf.mxu0
      %v907 = vadd.f32 %v832, %v906
      %v908 = vand.u32 %v200, 4294901760
      %909 = vmatmul.f32.gmra.mxu0 %v908
      %v910 = vpop.f32.mrf.mxu0
      %v911 = vadd.f32 %v838, %v910
      %912 = vdwg.mxu0
      %v913 = vand.u32 %v408, 4294901760
      %914 = vmatpush.msra.mxu0 %v913
      %v915 = vand.u32 %v396, 4294901760
      %916 = vmatpush.msra.mxu0 %v915
      %v917 = vand.u32 %v384, 4294901760
      %918 = vmatpush.msra.mxu0 %v917
      %v919 = vand.u32 %v372, 4294901760
      %920 = vmatpush.msra.mxu0 %v919
      %v921 = vand.u32 %v360, 4294901760
      %922 = vmatpush.msra.mxu0 %v921
      %v923 = vand.u32 %v348, 4294901760
      %924 = vmatpush.msra.mxu0 %v923
      %v925 = vand.u32 %v336, 4294901760
      %926 = vmatpush.msra.mxu0 %v925
      %v927 = vand.u32 %v324, 4294901760
      %928 = vmatpush.msra.mxu0 %v927
      %v929 = vand.u32 %v312, 4294901760
      %930 = vmatpush.msra.mxu0 %v929
      %v931 = vand.u32 %v300, 4294901760
      %932 = vmatpush.msra.mxu0 %v931
      %v933 = vand.u32 %v288, 4294901760
      %934 = vmatpush.msra.mxu0 %v933
      %v935 = vand.u32 %v276, 4294901760
      %936 = vmatpush.msra.mxu0 %v935
      %v937 = vand.u32 %v264, 4294901760
      %938 = vmatpush.msra.mxu0 %v937
      %v939 = vand.u32 %v252, 4294901760
      %940 = vmatpush.msra.mxu0 %v939
      %v941 = vand.u32 %v240, 4294901760
      %942 = vmatpush.msra.mxu0 %v941
      %v943 = vand.u32 %v228, 4294901760
      %944 = vmatpush.msra.mxu0 %v943
      %v945 = vand.u32 %v198, 4294901760
      %946 = vmatmul.f32.gmra.mxu0 %v945
      %v947 = vpop.f32.mrf.mxu0
      %v948 = vadd.f32 %v907, %v947
      %v949 = vand.u32 %v200, 4294901760
      %950 = vmatmul.f32.gmra.mxu0 %v949
      %v951 = vpop.f32.mrf.mxu0
      %v952 = vadd.f32 %v911, %v951
      %953 = vdwg.mxu0
      %954 = vmatpush.msra.mxu0 0.0
      %955 = vmatpush.msra.mxu0 0.0
      %956 = vmatpush.msra.mxu0 0.0
      %957 = vmatpush.msra.mxu0 0.0
      %958 = vmatpush.msra.mxu0 0.0
      %959 = vmatpush.msra.mxu0 0.0
      %960 = vmatpush.msra.mxu0 0.0
      %v961 = vand.u32 %v547, 4294901760
      %962 = vmatpush.msra.mxu0 %v961
      %v963 = vand.u32 %v504, 4294901760
      %964 = vmatpush.msra.mxu0 %v963
      %v965 = vand.u32 %v492, 4294901760
      %966 = vmatpush.msra.mxu0 %v965
      %v967 = vand.u32 %v480, 4294901760
      %968 = vmatpush.msra.mxu0 %v967
      %v969 = vand.u32 %v468, 4294901760
      %970 = vmatpush.msra.mxu0 %v969
      %v971 = vand.u32 %v456, 4294901760
      %972 = vmatpush.msra.mxu0 %v971
      %v973 = vand.u32 %v444, 4294901760
      %974 = vmatpush.msra.mxu0 %v973
      %v975 = vand.u32 %v432, 4294901760
      %976 = vmatpush.msra.mxu0 %v975
      %v977 = vand.u32 %v420, 4294901760
      %978 = vmatpush.msra.mxu0 %v977
      %v979 = vand.u32 %v540, 4294901760
      %v980 = vsub.f32 %v540, %v979
      %v981 = vand.u32 %v980, 4294901760
      %v982 = vsub.f32 %v980, %v981
      %v983 = vand.u32 %v982, 4294901760
      %984 = vmatmul.f32.gmra.mxu0 %v983
      %v985 = vpop.f32.mrf.mxu0
      %v986 = vadd.f32 %v948, %v985
      %v987 = vand.u32 %v543, 4294901760
      %v988 = vsub.f32 %v543, %v987
      %v989 = vand.u32 %v988, 4294901760
      %v990 = vsub.f32 %v988, %v989
      %v991 = vand.u32 %v990, 4294901760
      %992 = vmatmul.f32.gmra.mxu0 %v991
      %v993 = vpop.f32.mrf.mxu0
      %v994 = vadd.f32 %v952, %v993
      %995 = vdwg.mxu0
      %996 = vmatpush.msra.mxu0 0.0
      %997 = vmatpush.msra.mxu0 0.0
      %998 = vmatpush.msra.mxu0 0.0
      %999 = vmatpush.msra.mxu0 0.0
      %1000 = vmatpush.msra.mxu0 0.0
      %1001 = vmatpush.msra.mxu0 0.0
      %1002 = vmatpush.msra.mxu0 0.0
      %v1003 = vand.u32 %v547, 4294901760
      %v1004 = vsub.f32 %v547, %v1003
      %v1005 = vand.u32 %v1004, 4294901760
      %v1006 = vsub.f32 %v1004, %v1005
      %v1007 = vand.u32 %v1006, 4294901760
      %1008 = vmatpush.msra.mxu0 %v1007
      %v1009 = vand.u32 %v504, 4294901760
      %v1010 = vsub.f32 %v504, %v1009
      %v1011 = vand.u32 %v1010, 4294901760
      %v1012 = vsub.f32 %v1010, %v1011
      %v1013 = vand.u32 %v1012, 4294901760
      %1014 = vmatpush.msra.mxu0 %v1013
      %v1015 = vand.u32 %v492, 4294901760
      %v1016 = vsub.f32 %v492, %v1015
      %v1017 = vand.u32 %v1016, 4294901760
      %v1018 = vsub.f32 %v1016, %v1017
      %v1019 = vand.u32 %v1018, 4294901760
      %1020 = vmatpush.msra.mxu0 %v1019
      %v1021 = vand.u32 %v480, 4294901760
      %v1022 = vsub.f32 %v480, %v1021
      %v1023 = vand.u32 %v1022, 4294901760
      %v1024 = vsub.f32 %v1022, %v1023
      %v1025 = vand.u32 %v1024, 4294901760
      %1026 = vmatpush.msra.mxu0 %v1025
      %v1027 = vand.u32 %v468, 4294901760
      %v1028 = vsub.f32 %v468, %v1027
      %v1029 = vand.u32 %v1028, 4294901760
      %v1030 = vsub.f32 %v1028, %v1029
      %v1031 = vand.u32 %v1030, 4294901760
      %1032 = vmatpush.msra.mxu0 %v1031
      %v1033 = vand.u32 %v456, 4294901760
      %v1034 = vsub.f32 %v456, %v1033
      %v1035 = vand.u32 %v1034, 4294901760
      %v1036 = vsub.f32 %v1034, %v1035
      %v1037 = vand.u32 %v1036, 4294901760
      %1038 = vmatpush.msra.mxu0 %v1037
      %v1039 = vand.u32 %v444, 4294901760
      %v1040 = vsub.f32 %v444, %v1039
      %v1041 = vand.u32 %v1040, 4294901760
      %v1042 = vsub.f32 %v1040, %v1041
      %v1043 = vand.u32 %v1042, 4294901760
      %1044 = vmatpush.msra.mxu0 %v1043
      %v1045 = vand.u32 %v432, 4294901760
      %v1046 = vsub.f32 %v432, %v1045
      %v1047 = vand.u32 %v1046, 4294901760
      %v1048 = vsub.f32 %v1046, %v1047
      %v1049 = vand.u32 %v1048, 4294901760
      %1050 = vmatpush.msra.mxu0 %v1049
      %v1051 = vand.u32 %v420, 4294901760
      %v1052 = vsub.f32 %v420, %v1051
      %v1053 = vand.u32 %v1052, 4294901760
      %v1054 = vsub.f32 %v1052, %v1053
      %v1055 = vand.u32 %v1054, 4294901760
      %1056 = vmatpush.msra.mxu0 %v1055
      %v1057 = vand.u32 %v540, 4294901760
      %1058 = vmatmul.f32.gmra.mxu0 %v1057
      %v1059 = vpop.f32.mrf.mxu0
      %v1060 = vadd.f32 %v986, %v1059
      %v1061 = vand.u32 %v543, 4294901760
      %1062 = vmatmul.f32.gmra.mxu0 %v1061
      %v1063 = vpop.f32.mrf.mxu0
      %v1064 = vadd.f32 %v994, %v1063
      %1065 = vdwg.mxu0
      %1066 = vmatpush.msra.mxu0 0.0
      %1067 = vmatpush.msra.mxu0 0.0
      %1068 = vmatpush.msra.mxu0 0.0
      %1069 = vmatpush.msra.mxu0 0.0
      %1070 = vmatpush.msra.mxu0 0.0
      %1071 = vmatpush.msra.mxu0 0.0
      %1072 = vmatpush.msra.mxu0 0.0
      %v1073 = vand.u32 %v547, 4294901760
      %v1074 = vsub.f32 %v547, %v1073
      %1075 = vmatpush.msra.mxu0 %v1074
      %v1076 = vand.u32 %v504, 4294901760
      %v1077 = vsub.f32 %v504, %v1076
      %1078 = vmatpush.msra.mxu0 %v1077
      %v1079 = vand.u32 %v492, 4294901760
      %v1080 = vsub.f32 %v492, %v1079
      %1081 = vmatpush.msra.mxu0 %v1080
      %v1082 = vand.u32 %v480, 4294901760
      %v1083 = vsub.f32 %v480, %v1082
      %1084 = vmatpush.msra.mxu0 %v1083
      %v1085 = vand.u32 %v468, 4294901760
      %v1086 = vsub.f32 %v468, %v1085
      %1087 = vmatpush.msra.mxu0 %v1086
      %v1088 = vand.u32 %v456, 4294901760
      %v1089 = vsub.f32 %v456, %v1088
      %1090 = vmatpush.msra.mxu0 %v1089
      %v1091 = vand.u32 %v444, 4294901760
      %v1092 = vsub.f32 %v444, %v1091
      %1093 = vmatpush.msra.mxu0 %v1092
      %v1094 = vand.u32 %v432, 4294901760
      %v1095 = vsub.f32 %v432, %v1094
      %1096 = vmatpush.msra.mxu0 %v1095
      %v1097 = vand.u32 %v420, 4294901760
      %v1098 = vsub.f32 %v420, %v1097
      %1099 = vmatpush.msra.mxu0 %v1098
      %v1100 = vand.u32 %v540, 4294901760
      %v1101 = vsub.f32 %v540, %v1100
      %1102 = vmatmul.f32.gmra.mxu0 %v1101
      %v1103 = vpop.f32.mrf.mxu0
      %v1104 = vadd.f32 %v1060, %v1103
      %v1105 = vand.u32 %v543, 4294901760
      %v1106 = vsub.f32 %v543, %v1105
      %1107 = vmatmul.f32.gmra.mxu0 %v1106
      %v1108 = vpop.f32.mrf.mxu0
      %v1109 = vadd.f32 %v1064, %v1108
      %1110 = vdwg.mxu0
      %1111 = vmatpush.msra.mxu0 0.0
      %1112 = vmatpush.msra.mxu0 0.0
      %1113 = vmatpush.msra.mxu0 0.0
      %1114 = vmatpush.msra.mxu0 0.0
      %1115 = vmatpush.msra.mxu0 0.0
      %1116 = vmatpush.msra.mxu0 0.0
      %1117 = vmatpush.msra.mxu0 0.0
      %v1118 = vand.u32 %v547, 4294901760
      %1119 = vmatpush.msra.mxu0 %v1118
      %v1120 = vand.u32 %v504, 4294901760
      %1121 = vmatpush.msra.mxu0 %v1120
      %v1122 = vand.u32 %v492, 4294901760
      %1123 = vmatpush.msra.mxu0 %v1122
      %v1124 = vand.u32 %v480, 4294901760
      %1125 = vmatpush.msra.mxu0 %v1124
      %v1126 = vand.u32 %v468, 4294901760
      %1127 = vmatpush.msra.mxu0 %v1126
      %v1128 = vand.u32 %v456, 4294901760
      %1129 = vmatpush.msra.mxu0 %v1128
      %v1130 = vand.u32 %v444, 4294901760
      %1131 = vmatpush.msra.mxu0 %v1130
      %v1132 = vand.u32 %v432, 4294901760
      %1133 = vmatpush.msra.mxu0 %v1132
      %v1134 = vand.u32 %v420, 4294901760
      %1135 = vmatpush.msra.mxu0 %v1134
      %v1136 = vand.u32 %v540, 4294901760
      %v1137 = vsub.f32 %v540, %v1136
      %v1138 = vand.u32 %v1137, 4294901760
      %1139 = vmatmul.f32.gmra.mxu0 %v1138
      %v1140 = vpop.f32.mrf.mxu0
      %v1141 = vadd.f32 %v1104, %v1140
      %v1142 = vand.u32 %v543, 4294901760
      %v1143 = vsub.f32 %v543, %v1142
      %v1144 = vand.u32 %v1143, 4294901760
      %1145 = vmatmul.f32.gmra.mxu0 %v1144
      %v1146 = vpop.f32.mrf.mxu0
      %v1147 = vadd.f32 %v1109, %v1146
      %1148 = vdwg.mxu0
      %1149 = vmatpush.msra.mxu0 0.0
      %1150 = vmatpush.msra.mxu0 0.0
      %1151 = vmatpush.msra.mxu0 0.0
      %1152 = vmatpush.msra.mxu0 0.0
      %1153 = vmatpush.msra.mxu0 0.0
      %1154 = vmatpush.msra.mxu0 0.0
      %1155 = vmatpush.msra.mxu0 0.0
      %v1156 = vand.u32 %v547, 4294901760
      %v1157 = vsub.f32 %v547, %v1156
      %v1158 = vand.u32 %v1157, 4294901760
      %1159 = vmatpush.msra.mxu0 %v1158
      %v1160 = vand.u32 %v504, 4294901760
      %v1161 = vsub.f32 %v504, %v1160
      %v1162 = vand.u32 %v1161, 4294901760
      %1163 = vmatpush.msra.mxu0 %v1162
      %v1164 = vand.u32 %v492, 4294901760
      %v1165 = vsub.f32 %v492, %v1164
      %v1166 = vand.u32 %v1165, 4294901760
      %1167 = vmatpush.msra.mxu0 %v1166
      %v1168 = vand.u32 %v480, 4294901760
      %v1169 = vsub.f32 %v480, %v1168
      %v1170 = vand.u32 %v1169, 4294901760
      %1171 = vmatpush.msra.mxu0 %v1170
      %v1172 = vand.u32 %v468, 4294901760
      %v1173 = vsub.f32 %v468, %v1172
      %v1174 = vand.u32 %v1173, 4294901760
      %1175 = vmatpush.msra.mxu0 %v1174
      %v1176 = vand.u32 %v456, 4294901760
      %v1177 = vsub.f32 %v456, %v1176
      %v1178 = vand.u32 %v1177, 4294901760
      %1179 = vmatpush.msra.mxu0 %v1178
      %v1180 = vand.u32 %v444, 4294901760
      %v1181 = vsub.f32 %v444, %v1180
      %v1182 = vand.u32 %v1181, 4294901760
      %1183 = vmatpush.msra.mxu0 %v1182
      %v1184 = vand.u32 %v432, 4294901760
      %v1185 = vsub.f32 %v432, %v1184
      %v1186 = vand.u32 %v1185, 4294901760
      %1187 = vmatpush.msra.mxu0 %v1186
      %v1188 = vand.u32 %v420, 4294901760
      %v1189 = vsub.f32 %v420, %v1188
      %v1190 = vand.u32 %v1189, 4294901760
      %1191 = vmatpush.msra.mxu0 %v1190
      %v1192 = vand.u32 %v540, 4294901760
      %1193 = vmatmul.f32.gmra.mxu0 %v1192
      %v1194 = vpop.f32.mrf.mxu0
      %v1195 = vadd.f32 %v1141, %v1194
      %v1196 = vand.u32 %v543, 4294901760
      %1197 = vmatmul.f32.gmra.mxu0 %v1196
      %v1198 = vpop.f32.mrf.mxu0
      %v1199 = vadd.f32 %v1147, %v1198
      %1200 = vdwg.mxu0
      %1201 = vmatpush.msra.mxu0 0.0
      %1202 = vmatpush.msra.mxu0 0.0
      %1203 = vmatpush.msra.mxu0 0.0
      %1204 = vmatpush.msra.mxu0 0.0
      %1205 = vmatpush.msra.mxu0 0.0
      %1206 = vmatpush.msra.mxu0 0.0
      %1207 = vmatpush.msra.mxu0 0.0
      %v1208 = vand.u32 %v547, 4294901760
      %1209 = vmatpush.msra.mxu0 %v1208
      %v1210 = vand.u32 %v504, 4294901760
      %1211 = vmatpush.msra.mxu0 %v1210
      %v1212 = vand.u32 %v492, 4294901760
      %1213 = vmatpush.msra.mxu0 %v1212
      %v1214 = vand.u32 %v480, 4294901760
      %1215 = vmatpush.msra.mxu0 %v1214
      %v1216 = vand.u32 %v468, 4294901760
      %1217 = vmatpush.msra.mxu0 %v1216
      %v1218 = vand.u32 %v456, 4294901760
      %1219 = vmatpush.msra.mxu0 %v1218
      %v1220 = vand.u32 %v444, 4294901760
      %1221 = vmatpush.msra.mxu0 %v1220
      %v1222 = vand.u32 %v432, 4294901760
      %1223 = vmatpush.msra.mxu0 %v1222
      %v1224 = vand.u32 %v420, 4294901760
      %1225 = vmatpush.msra.mxu0 %v1224
      %v1226 = vand.u32 %v540, 4294901760
      %1227 = vmatmul.f32.gmra.mxu0 %v1226
      %v1228 = vpop.f32.mrf.mxu0
      %v1229 = vadd.f32 %v1195, %v1228
      %v1230 = vand.u32 %v543, 4294901760
      %1231 = vmatmul.f32.gmra.mxu0 %v1230
      %v1232 = vpop.f32.mrf.mxu0
      %v1233 = vadd.f32 %v1199, %v1232
      %1234 = vdwg.mxu0
      %v1235 = vand.u32 %v409, 4294901760
      %1236 = vmatpush.msra.mxu0 %v1235
      %v1237 = vand.u32 %v397, 4294901760
      %1238 = vmatpush.msra.mxu0 %v1237
      %v1239 = vand.u32 %v385, 4294901760
      %1240 = vmatpush.msra.mxu0 %v1239
      %v1241 = vand.u32 %v373, 4294901760
      %1242 = vmatpush.msra.mxu0 %v1241
      %v1243 = vand.u32 %v361, 4294901760
      %1244 = vmatpush.msra.mxu0 %v1243
      %v1245 = vand.u32 %v349, 4294901760
      %1246 = vmatpush.msra.mxu0 %v1245
      %v1247 = vand.u32 %v337, 4294901760
      %1248 = vmatpush.msra.mxu0 %v1247
      %v1249 = vand.u32 %v325, 4294901760
      %1250 = vmatpush.msra.mxu0 %v1249
      %v1251 = vand.u32 %v313, 4294901760
      %1252 = vmatpush.msra.mxu0 %v1251
      %v1253 = vand.u32 %v301, 4294901760
      %1254 = vmatpush.msra.mxu0 %v1253
      %v1255 = vand.u32 %v289, 4294901760
      %1256 = vmatpush.msra.mxu0 %v1255
      %v1257 = vand.u32 %v277, 4294901760
      %1258 = vmatpush.msra.mxu0 %v1257
      %v1259 = vand.u32 %v265, 4294901760
      %1260 = vmatpush.msra.mxu0 %v1259
      %v1261 = vand.u32 %v253, 4294901760
      %1262 = vmatpush.msra.mxu0 %v1261
      %v1263 = vand.u32 %v241, 4294901760
      %1264 = vmatpush.msra.mxu0 %v1263
      %v1265 = vand.u32 %v229, 4294901760
      %1266 = vmatpush.msra.mxu0 %v1265
      %v1267 = vand.u32 %v198, 4294901760
      %v1268 = vsub.f32 %v198, %v1267
      %v1269 = vand.u32 %v1268, 4294901760
      %v1270 = vsub.f32 %v1268, %v1269
      %v1271 = vand.u32 %v1270, 4294901760
      %1272 = vmatmul.f32.gmra.mxu0 %v1271
      %v1273 = vpop.f32.mrf.mxu0
      %v1274 = vadd.f32 %v531, %v1273
      %v1275 = vand.u32 %v200, 4294901760
      %v1276 = vsub.f32 %v200, %v1275
      %v1277 = vand.u32 %v1276, 4294901760
      %v1278 = vsub.f32 %v1276, %v1277
      %v1279 = vand.u32 %v1278, 4294901760
      %1280 = vmatmul.f32.gmra.mxu0 %v1279
      %v1281 = vpop.f32.mrf.mxu0
      %v1282 = vadd.f32 %v536, %v1281
      %1283 = vdwg.mxu0
      %v1284 = vand.u32 %v409, 4294901760
      %v1285 = vsub.f32 %v409, %v1284
      %v1286 = vand.u32 %v1285, 4294901760
      %v1287 = vsub.f32 %v1285, %v1286
      %v1288 = vand.u32 %v1287, 4294901760
      %1289 = vmatpush.msra.mxu0 %v1288
      %v1290 = vand.u32 %v397, 4294901760
      %v1291 = vsub.f32 %v397, %v1290
      %v1292 = vand.u32 %v1291, 4294901760
      %v1293 = vsub.f32 %v1291, %v1292
      %v1294 = vand.u32 %v1293, 4294901760
      %1295 = vmatpush.msra.mxu0 %v1294
      %v1296 = vand.u32 %v385, 4294901760
      %v1297 = vsub.f32 %v385, %v1296
      %v1298 = vand.u32 %v1297, 4294901760
      %v1299 = vsub.f32 %v1297, %v1298
      %v1300 = vand.u32 %v1299, 4294901760
      %1301 = vmatpush.msra.mxu0 %v1300
      %v1302 = vand.u32 %v373, 4294901760
      %v1303 = vsub.f32 %v373, %v1302
      %v1304 = vand.u32 %v1303, 4294901760
      %v1305 = vsub.f32 %v1303, %v1304
      %v1306 = vand.u32 %v1305, 4294901760
      %1307 = vmatpush.msra.mxu0 %v1306
      %v1308 = vand.u32 %v361, 4294901760
      %v1309 = vsub.f32 %v361, %v1308
      %v1310 = vand.u32 %v1309, 4294901760
      %v1311 = vsub.f32 %v1309, %v1310
      %v1312 = vand.u32 %v1311, 4294901760
      %1313 = vmatpush.msra.mxu0 %v1312
      %v1314 = vand.u32 %v349, 4294901760
      %v1315 = vsub.f32 %v349, %v1314
      %v1316 = vand.u32 %v1315, 4294901760
      %v1317 = vsub.f32 %v1315, %v1316
      %v1318 = vand.u32 %v1317, 4294901760
      %1319 = vmatpush.msra.mxu0 %v1318
      %v1320 = vand.u32 %v337, 4294901760
      %v1321 = vsub.f32 %v337, %v1320
      %v1322 = vand.u32 %v1321, 4294901760
      %v1323 = vsub.f32 %v1321, %v1322
      %v1324 = vand.u32 %v1323, 4294901760
      %1325 = vmatpush.msra.mxu0 %v1324
      %v1326 = vand.u32 %v325, 4294901760
      %v1327 = vsub.f32 %v325, %v1326
      %v1328 = vand.u32 %v1327, 4294901760
      %v1329 = vsub.f32 %v1327, %v1328
      %v1330 = vand.u32 %v1329, 4294901760
      %1331 = vmatpush.msra.mxu0 %v1330
      %v1332 = vand.u32 %v313, 4294901760
      %v1333 = vsub.f32 %v313, %v1332
      %v1334 = vand.u32 %v1333, 4294901760
      %v1335 = vsub.f32 %v1333, %v1334
      %v1336 = vand.u32 %v1335, 4294901760
      %1337 = vmatpush.msra.mxu0 %v1336
      %v1338 = vand.u32 %v301, 4294901760
      %v1339 = vsub.f32 %v301, %v1338
      %v1340 = vand.u32 %v1339, 4294901760
      %v1341 = vsub.f32 %v1339, %v1340
      %v1342 = vand.u32 %v1341, 4294901760
      %1343 = vmatpush.msra.mxu0 %v1342
      %v1344 = vand.u32 %v289, 4294901760
      %v1345 = vsub.f32 %v289, %v1344
      %v1346 = vand.u32 %v1345, 4294901760
      %v1347 = vsub.f32 %v1345, %v1346
      %v1348 = vand.u32 %v1347, 4294901760
      %1349 = vmatpush.msra.mxu0 %v1348
      %v1350 = vand.u32 %v277, 4294901760
      %v1351 = vsub.f32 %v277, %v1350
      %v1352 = vand.u32 %v1351, 4294901760
      %v1353 = vsub.f32 %v1351, %v1352
      %v1354 = vand.u32 %v1353, 4294901760
      %1355 = vmatpush.msra.mxu0 %v1354
      %v1356 = vand.u32 %v265, 4294901760
      %v1357 = vsub.f32 %v265, %v1356
      %v1358 = vand.u32 %v1357, 4294901760
      %v1359 = vsub.f32 %v1357, %v1358
      %v1360 = vand.u32 %v1359, 4294901760
      %1361 = vmatpush.msra.mxu0 %v1360
      %v1362 = vand.u32 %v253, 4294901760
      %v1363 = vsub.f32 %v253, %v1362
      %v1364 = vand.u32 %v1363, 4294901760
      %v1365 = vsub.f32 %v1363, %v1364
      %v1366 = vand.u32 %v1365, 4294901760
      %1367 = vmatpush.msra.mxu0 %v1366
      %v1368 = vand.u32 %v241, 4294901760
      %v1369 = vsub.f32 %v241, %v1368
      %v1370 = vand.u32 %v1369, 4294901760
      %v1371 = vsub.f32 %v1369, %v1370
      %v1372 = vand.u32 %v1371, 4294901760
      %1373 = vmatpush.msra.mxu0 %v1372
      %v1374 = vand.u32 %v229, 4294901760
      %v1375 = vsub.f32 %v229, %v1374
      %v1376 = vand.u32 %v1375, 4294901760
      %v1377 = vsub.f32 %v1375, %v1376
      %v1378 = vand.u32 %v1377, 4294901760
      %1379 = vmatpush.msra.mxu0 %v1378
      %v1380 = vand.u32 %v198, 4294901760
      %1381 = vmatmul.f32.gmra.mxu0 %v1380
      %v1382 = vpop.f32.mrf.mxu0
      %v1383 = vadd.f32 %v1274, %v1382
      %v1384 = vand.u32 %v200, 4294901760
      %1385 = vmatmul.f32.gmra.mxu0 %v1384
      %v1386 = vpop.f32.mrf.mxu0
      %v1387 = vadd.f32 %v1282, %v1386
      %1388 = vdwg.mxu0
      %v1389 = vand.u32 %v409, 4294901760
      %v1390 = vsub.f32 %v409, %v1389
      %1391 = vmatpush.msra.mxu0 %v1390
      %v1392 = vand.u32 %v397, 4294901760
      %v1393 = vsub.f32 %v397, %v1392
      %1394 = vmatpush.msra.mxu0 %v1393
      %v1395 = vand.u32 %v385, 4294901760
      %v1396 = vsub.f32 %v385, %v1395
      %1397 = vmatpush.msra.mxu0 %v1396
      %v1398 = vand.u32 %v373, 4294901760
      %v1399 = vsub.f32 %v373, %v1398
      %1400 = vmatpush.msra.mxu0 %v1399
      %v1401 = vand.u32 %v361, 4294901760
      %v1402 = vsub.f32 %v361, %v1401
      %1403 = vmatpush.msra.mxu0 %v1402
      %v1404 = vand.u32 %v349, 4294901760
      %v1405 = vsub.f32 %v349, %v1404
      %1406 = vmatpush.msra.mxu0 %v1405
      %v1407 = vand.u32 %v337, 4294901760
      %v1408 = vsub.f32 %v337, %v1407
      %1409 = vmatpush.msra.mxu0 %v1408
      %v1410 = vand.u32 %v325, 4294901760
      %v1411 = vsub.f32 %v325, %v1410
      %1412 = vmatpush.msra.mxu0 %v1411
      %v1413 = vand.u32 %v313, 4294901760
      %v1414 = vsub.f32 %v313, %v1413
      %1415 = vmatpush.msra.mxu0 %v1414
      %v1416 = vand.u32 %v301, 4294901760
      %v1417 = vsub.f32 %v301, %v1416
      %1418 = vmatpush.msra.mxu0 %v1417
      %v1419 = vand.u32 %v289, 4294901760
      %v1420 = vsub.f32 %v289, %v1419
      %1421 = vmatpush.msra.mxu0 %v1420
      %v1422 = vand.u32 %v277, 4294901760
      %v1423 = vsub.f32 %v277, %v1422
      %1424 = vmatpush.msra.mxu0 %v1423
      %v1425 = vand.u32 %v265, 4294901760
      %v1426 = vsub.f32 %v265, %v1425
      %1427 = vmatpush.msra.mxu0 %v1426
      %v1428 = vand.u32 %v253, 4294901760
      %v1429 = vsub.f32 %v253, %v1428
      %1430 = vmatpush.msra.mxu0 %v1429
      %v1431 = vand.u32 %v241, 4294901760
      %v1432 = vsub.f32 %v241, %v1431
      %1433 = vmatpush.msra.mxu0 %v1432
      %v1434 = vand.u32 %v229, 4294901760
      %v1435 = vsub.f32 %v229, %v1434
      %1436 = vmatpush.msra.mxu0 %v1435
      %v1437 = vand.u32 %v198, 4294901760
      %v1438 = vsub.f32 %v198, %v1437
      %1439 = vmatmul.f32.gmra.mxu0 %v1438
      %v1440 = vpop.f32.mrf.mxu0
      %v1441 = vadd.f32 %v1383, %v1440
      %v1442 = vand.u32 %v200, 4294901760
      %v1443 = vsub.f32 %v200, %v1442
      %1444 = vmatmul.f32.gmra.mxu0 %v1443
      %v1445 = vpop.f32.mrf.mxu0
      %v1446 = vadd.f32 %v1387, %v1445
      %1447 = vdwg.mxu0
      %v1448 = vand.u32 %v409, 4294901760
      %1449 = vmatpush.msra.mxu0 %v1448
      %v1450 = vand.u32 %v397, 4294901760
      %1451 = vmatpush.msra.mxu0 %v1450
      %v1452 = vand.u32 %v385, 4294901760
      %1453 = vmatpush.msra.mxu0 %v1452
      %v1454 = vand.u32 %v373, 4294901760
      %1455 = vmatpush.msra.mxu0 %v1454
      %v1456 = vand.u32 %v361, 4294901760
      %1457 = vmatpush.msra.mxu0 %v1456
      %v1458 = vand.u32 %v349, 4294901760
      %1459 = vmatpush.msra.mxu0 %v1458
      %v1460 = vand.u32 %v337, 4294901760
      %1461 = vmatpush.msra.mxu0 %v1460
      %v1462 = vand.u32 %v325, 4294901760
      %1463 = vmatpush.msra.mxu0 %v1462
      %v1464 = vand.u32 %v313, 4294901760
      %1465 = vmatpush.msra.mxu0 %v1464
      %v1466 = vand.u32 %v301, 4294901760
      %1467 = vmatpush.msra.mxu0 %v1466
      %v1468 = vand.u32 %v289, 4294901760
      %1469 = vmatpush.msra.mxu0 %v1468
      %v1470 = vand.u32 %v277, 4294901760
      %1471 = vmatpush.msra.mxu0 %v1470
      %v1472 = vand.u32 %v265, 4294901760
      %1473 = vmatpush.msra.mxu0 %v1472
      %v1474 = vand.u32 %v253, 4294901760
      %1475 = vmatpush.msra.mxu0 %v1474
      %v1476 = vand.u32 %v241, 4294901760
      %1477 = vmatpush.msra.mxu0 %v1476
      %v1478 = vand.u32 %v229, 4294901760
      %1479 = vmatpush.msra.mxu0 %v1478
      %v1480 = vand.u32 %v198, 4294901760
      %v1481 = vsub.f32 %v198, %v1480
      %v1482 = vand.u32 %v1481, 4294901760
      %1483 = vmatmul.f32.gmra.mxu0 %v1482
      %v1484 = vpop.f32.mrf.mxu0
      %v1485 = vadd.f32 %v1441, %v1484
      %v1486 = vand.u32 %v200, 4294901760
      %v1487 = vsub.f32 %v200, %v1486
      %v1488 = vand.u32 %v1487, 4294901760
      %1489 = vmatmul.f32.gmra.mxu0 %v1488
      %v1490 = vpop.f32.mrf.mxu0
      %v1491 = vadd.f32 %v1446, %v1490
      %1492 = vdwg.mxu0
      %v1493 = vand.u32 %v409, 4294901760
      %v1494 = vsub.f32 %v409, %v1493
      %v1495 = vand.u32 %v1494, 4294901760
      %1496 = vmatpush.msra.mxu0 %v1495
      %v1497 = vand.u32 %v397, 4294901760
      %v1498 = vsub.f32 %v397, %v1497
      %v1499 = vand.u32 %v1498, 4294901760
      %1500 = vmatpush.msra.mxu0 %v1499
      %v1501 = vand.u32 %v385, 4294901760
      %v1502 = vsub.f32 %v385, %v1501
      %v1503 = vand.u32 %v1502, 4294901760
      %1504 = vmatpush.msra.mxu0 %v1503
      %v1505 = vand.u32 %v373, 4294901760
      %v1506 = vsub.f32 %v373, %v1505
      %v1507 = vand.u32 %v1506, 4294901760
      %1508 = vmatpush.msra.mxu0 %v1507
      %v1509 = vand.u32 %v361, 4294901760
      %v1510 = vsub.f32 %v361, %v1509
      %v1511 = vand.u32 %v1510, 4294901760
      %1512 = vmatpush.msra.mxu0 %v1511
      %v1513 = vand.u32 %v349, 4294901760
      %v1514 = vsub.f32 %v349, %v1513
      %v1515 = vand.u32 %v1514, 4294901760
      %1516 = vmatpush.msra.mxu0 %v1515
      %v1517 = vand.u32 %v337, 4294901760
      %v1518 = vsub.f32 %v337, %v1517
      %v1519 = vand.u32 %v1518, 4294901760
      %1520 = vmatpush.msra.mxu0 %v1519
      %v1521 = vand.u32 %v325, 4294901760
      %v1522 = vsub.f32 %v325, %v1521
      %v1523 = vand.u32 %v1522, 4294901760
      %1524 = vmatpush.msra.mxu0 %v1523
      %v1525 = vand.u32 %v313, 4294901760
      %v1526 = vsub.f32 %v313, %v1525
      %v1527 = vand.u32 %v1526, 4294901760
      %1528 = vmatpush.msra.mxu0 %v1527
      %v1529 = vand.u32 %v301, 4294901760
      %v1530 = vsub.f32 %v301, %v1529
      %v1531 = vand.u32 %v1530, 4294901760
      %1532 = vmatpush.msra.mxu0 %v1531
      %v1533 = vand.u32 %v289, 4294901760
      %v1534 = vsub.f32 %v289, %v1533
      %v1535 = vand.u32 %v1534, 4294901760
      %1536 = vmatpush.msra.mxu0 %v1535
      %v1537 = vand.u32 %v277, 4294901760
      %v1538 = vsub.f32 %v277, %v1537
      %v1539 = vand.u32 %v1538, 4294901760
      %1540 = vmatpush.msra.mxu0 %v1539
      %v1541 = vand.u32 %v265, 4294901760
      %v1542 = vsub.f32 %v265, %v1541
      %v1543 = vand.u32 %v1542, 4294901760
      %1544 = vmatpush.msra.mxu0 %v1543
      %v1545 = vand.u32 %v253, 4294901760
      %v1546 = vsub.f32 %v253, %v1545
      %v1547 = vand.u32 %v1546, 4294901760
      %1548 = vmatpush.msra.mxu0 %v1547
      %v1549 = vand.u32 %v241, 4294901760
      %v1550 = vsub.f32 %v241, %v1549
      %v1551 = vand.u32 %v1550, 4294901760
      %1552 = vmatpush.msra.mxu0 %v1551
      %v1553 = vand.u32 %v229, 4294901760
      %v1554 = vsub.f32 %v229, %v1553
      %v1555 = vand.u32 %v1554, 4294901760
      %1556 = vmatpush.msra.mxu0 %v1555
      %v1557 = vand.u32 %v198, 4294901760
      %1558 = vmatmul.f32.gmra.mxu0 %v1557
      %v1559 = vpop.f32.mrf.mxu0
      %v1560 = vadd.f32 %v1485, %v1559
      %v1561 = vand.u32 %v200, 4294901760
      %1562 = vmatmul.f32.gmra.mxu0 %v1561
      %v1563 = vpop.f32.mrf.mxu0
      %v1564 = vadd.f32 %v1491, %v1563
      %1565 = vdwg.mxu0
      %v1566 = vand.u32 %v409, 4294901760
      %1567 = vmatpush.msra.mxu0 %v1566
      %v1568 = vand.u32 %v397, 4294901760
      %1569 = vmatpush.msra.mxu0 %v1568
      %v1570 = vand.u32 %v385, 4294901760
      %1571 = vmatpush.msra.mxu0 %v1570
      %v1572 = vand.u32 %v373, 4294901760
      %1573 = vmatpush.msra.mxu0 %v1572
      %v1574 = vand.u32 %v361, 4294901760
      %1575 = vmatpush.msra.mxu0 %v1574
      %v1576 = vand.u32 %v349, 4294901760
      %1577 = vmatpush.msra.mxu0 %v1576
      %v1578 = vand.u32 %v337, 4294901760
      %1579 = vmatpush.msra.mxu0 %v1578
      %v1580 = vand.u32 %v325, 4294901760
      %1581 = vmatpush.msra.mxu0 %v1580
      %v1582 = vand.u32 %v313, 4294901760
      %1583 = vmatpush.msra.mxu0 %v1582
      %v1584 = vand.u32 %v301, 4294901760
      %1585 = vmatpush.msra.mxu0 %v1584
      %v1586 = vand.u32 %v289, 4294901760
      %1587 = vmatpush.msra.mxu0 %v1586
      %v1588 = vand.u32 %v277, 4294901760
      %1589 = vmatpush.msra.mxu0 %v1588
      %v1590 = vand.u32 %v265, 4294901760
      %1591 = vmatpush.msra.mxu0 %v1590
      %v1592 = vand.u32 %v253, 4294901760
      %1593 = vmatpush.msra.mxu0 %v1592
      %v1594 = vand.u32 %v241, 4294901760
      %1595 = vmatpush.msra.mxu0 %v1594
      %v1596 = vand.u32 %v229, 4294901760
      %1597 = vmatpush.msra.mxu0 %v1596
      %v1598 = vand.u32 %v198, 4294901760
      %1599 = vmatmul.f32.gmra.mxu0 %v1598
      %v1600 = vpop.f32.mrf.mxu0
      %v1601 = vadd.f32 %v1560, %v1600
      %v1602 = vand.u32 %v200, 4294901760
      %1603 = vmatmul.f32.gmra.mxu0 %v1602
      %v1604 = vpop.f32.mrf.mxu0
      %v1605 = vadd.f32 %v1564, %v1604
      %1606 = vdwg.mxu0
      %1607 = vmatpush.msra.mxu0 0.0
      %1608 = vmatpush.msra.mxu0 0.0
      %1609 = vmatpush.msra.mxu0 0.0
      %1610 = vmatpush.msra.mxu0 0.0
      %1611 = vmatpush.msra.mxu0 0.0
      %1612 = vmatpush.msra.mxu0 0.0
      %1613 = vmatpush.msra.mxu0 0.0
      %v1614 = vand.u32 %v550, 4294901760
      %1615 = vmatpush.msra.mxu0 %v1614
      %v1616 = vand.u32 %v505, 4294901760
      %1617 = vmatpush.msra.mxu0 %v1616
      %v1618 = vand.u32 %v493, 4294901760
      %1619 = vmatpush.msra.mxu0 %v1618
      %v1620 = vand.u32 %v481, 4294901760
      %1621 = vmatpush.msra.mxu0 %v1620
      %v1622 = vand.u32 %v469, 4294901760
      %1623 = vmatpush.msra.mxu0 %v1622
      %v1624 = vand.u32 %v457, 4294901760
      %1625 = vmatpush.msra.mxu0 %v1624
      %v1626 = vand.u32 %v445, 4294901760
      %1627 = vmatpush.msra.mxu0 %v1626
      %v1628 = vand.u32 %v433, 4294901760
      %1629 = vmatpush.msra.mxu0 %v1628
      %v1630 = vand.u32 %v421, 4294901760
      %1631 = vmatpush.msra.mxu0 %v1630
      %v1632 = vand.u32 %v540, 4294901760
      %v1633 = vsub.f32 %v540, %v1632
      %v1634 = vand.u32 %v1633, 4294901760
      %v1635 = vsub.f32 %v1633, %v1634
      %v1636 = vand.u32 %v1635, 4294901760
      %1637 = vmatmul.f32.gmra.mxu0 %v1636
      %v1638 = vpop.f32.mrf.mxu0
      %v1639 = vadd.f32 %v1601, %v1638
      %v1640 = vand.u32 %v543, 4294901760
      %v1641 = vsub.f32 %v543, %v1640
      %v1642 = vand.u32 %v1641, 4294901760
      %v1643 = vsub.f32 %v1641, %v1642
      %v1644 = vand.u32 %v1643, 4294901760
      %1645 = vmatmul.f32.gmra.mxu0 %v1644
      %v1646 = vpop.f32.mrf.mxu0
      %v1647 = vadd.f32 %v1605, %v1646
      %1648 = vdwg.mxu0
      %1649 = vmatpush.msra.mxu0 0.0
      %1650 = vmatpush.msra.mxu0 0.0
      %1651 = vmatpush.msra.mxu0 0.0
      %1652 = vmatpush.msra.mxu0 0.0
      %1653 = vmatpush.msra.mxu0 0.0
      %1654 = vmatpush.msra.mxu0 0.0
      %1655 = vmatpush.msra.mxu0 0.0
      %v1656 = vand.u32 %v550, 4294901760
      %v1657 = vsub.f32 %v550, %v1656
      %v1658 = vand.u32 %v1657, 4294901760
      %v1659 = vsub.f32 %v1657, %v1658
      %v1660 = vand.u32 %v1659, 4294901760
      %1661 = vmatpush.msra.mxu0 %v1660
      %v1662 = vand.u32 %v505, 4294901760
      %v1663 = vsub.f32 %v505, %v1662
      %v1664 = vand.u32 %v1663, 4294901760
      %v1665 = vsub.f32 %v1663, %v1664
      %v1666 = vand.u32 %v1665, 4294901760
      %1667 = vmatpush.msra.mxu0 %v1666
      %v1668 = vand.u32 %v493, 4294901760
      %v1669 = vsub.f32 %v493, %v1668
      %v1670 = vand.u32 %v1669, 4294901760
      %v1671 = vsub.f32 %v1669, %v1670
      %v1672 = vand.u32 %v1671, 4294901760
      %1673 = vmatpush.msra.mxu0 %v1672
      %v1674 = vand.u32 %v481, 4294901760
      %v1675 = vsub.f32 %v481, %v1674
      %v1676 = vand.u32 %v1675, 4294901760
      %v1677 = vsub.f32 %v1675, %v1676
      %v1678 = vand.u32 %v1677, 4294901760
      %1679 = vmatpush.msra.mxu0 %v1678
      %v1680 = vand.u32 %v469, 4294901760
      %v1681 = vsub.f32 %v469, %v1680
      %v1682 = vand.u32 %v1681, 4294901760
      %v1683 = vsub.f32 %v1681, %v1682
      %v1684 = vand.u32 %v1683, 4294901760
      %1685 = vmatpush.msra.mxu0 %v1684
      %v1686 = vand.u32 %v457, 4294901760
      %v1687 = vsub.f32 %v457, %v1686
      %v1688 = vand.u32 %v1687, 4294901760
      %v1689 = vsub.f32 %v1687, %v1688
      %v1690 = vand.u32 %v1689, 4294901760
      %1691 = vmatpush.msra.mxu0 %v1690
      %v1692 = vand.u32 %v445, 4294901760
      %v1693 = vsub.f32 %v445, %v1692
      %v1694 = vand.u32 %v1693, 4294901760
      %v1695 = vsub.f32 %v1693, %v1694
      %v1696 = vand.u32 %v1695, 4294901760
      %1697 = vmatpush.msra.mxu0 %v1696
      %v1698 = vand.u32 %v433, 4294901760
      %v1699 = vsub.f32 %v433, %v1698
      %v1700 = vand.u32 %v1699, 4294901760
      %v1701 = vsub.f32 %v1699, %v1700
      %v1702 = vand.u32 %v1701, 4294901760
      %1703 = vmatpush.msra.mxu0 %v1702
      %v1704 = vand.u32 %v421, 4294901760
      %v1705 = vsub.f32 %v421, %v1704
      %v1706 = vand.u32 %v1705, 4294901760
      %v1707 = vsub.f32 %v1705, %v1706
      %v1708 = vand.u32 %v1707, 4294901760
      %1709 = vmatpush.msra.mxu0 %v1708
      %v1710 = vand.u32 %v540, 4294901760
      %1711 = vmatmul.f32.gmra.mxu0 %v1710
      %v1712 = vpop.f32.mrf.mxu0
      %v1713 = vadd.f32 %v1639, %v1712
      %v1714 = vand.u32 %v543, 4294901760
      %1715 = vmatmul.f32.gmra.mxu0 %v1714
      %v1716 = vpop.f32.mrf.mxu0
      %v1717 = vadd.f32 %v1647, %v1716
      %1718 = vdwg.mxu0
      %1719 = vmatpush.msra.mxu0 0.0
      %1720 = vmatpush.msra.mxu0 0.0
      %1721 = vmatpush.msra.mxu0 0.0
      %1722 = vmatpush.msra.mxu0 0.0
      %1723 = vmatpush.msra.mxu0 0.0
      %1724 = vmatpush.msra.mxu0 0.0
      %1725 = vmatpush.msra.mxu0 0.0
      %v1726 = vand.u32 %v550, 4294901760
      %v1727 = vsub.f32 %v550, %v1726
      %1728 = vmatpush.msra.mxu0 %v1727
      %v1729 = vand.u32 %v505, 4294901760
      %v1730 = vsub.f32 %v505, %v1729
      %1731 = vmatpush.msra.mxu0 %v1730
      %v1732 = vand.u32 %v493, 4294901760
      %v1733 = vsub.f32 %v493, %v1732
      %1734 = vmatpush.msra.mxu0 %v1733
      %v1735 = vand.u32 %v481, 4294901760
      %v1736 = vsub.f32 %v481, %v1735
      %1737 = vmatpush.msra.mxu0 %v1736
      %v1738 = vand.u32 %v469, 4294901760
      %v1739 = vsub.f32 %v469, %v1738
      %1740 = vmatpush.msra.mxu0 %v1739
      %v1741 = vand.u32 %v457, 4294901760
      %v1742 = vsub.f32 %v457, %v1741
      %1743 = vmatpush.msra.mxu0 %v1742
      %v1744 = vand.u32 %v445, 4294901760
      %v1745 = vsub.f32 %v445, %v1744
      %1746 = vmatpush.msra.mxu0 %v1745
      %v1747 = vand.u32 %v433, 4294901760
      %v1748 = vsub.f32 %v433, %v1747
      %1749 = vmatpush.msra.mxu0 %v1748
      %v1750 = vand.u32 %v421, 4294901760
      %v1751 = vsub.f32 %v421, %v1750
      %1752 = vmatpush.msra.mxu0 %v1751
      %v1753 = vand.u32 %v540, 4294901760
      %v1754 = vsub.f32 %v540, %v1753
      %1755 = vmatmul.f32.gmra.mxu0 %v1754
      %v1756 = vpop.f32.mrf.mxu0
      %v1757 = vadd.f32 %v1713, %v1756
      %v1758 = vand.u32 %v543, 4294901760
      %v1759 = vsub.f32 %v543, %v1758
      %1760 = vmatmul.f32.gmra.mxu0 %v1759
      %v1761 = vpop.f32.mrf.mxu0
      %v1762 = vadd.f32 %v1717, %v1761
      %1763 = vdwg.mxu0
      %1764 = vmatpush.msra.mxu0 0.0
      %1765 = vmatpush.msra.mxu0 0.0
      %1766 = vmatpush.msra.mxu0 0.0
      %1767 = vmatpush.msra.mxu0 0.0
      %1768 = vmatpush.msra.mxu0 0.0
      %1769 = vmatpush.msra.mxu0 0.0
      %1770 = vmatpush.msra.mxu0 0.0
      %v1771 = vand.u32 %v550, 4294901760
      %1772 = vmatpush.msra.mxu0 %v1771
      %v1773 = vand.u32 %v505, 4294901760
      %1774 = vmatpush.msra.mxu0 %v1773
      %v1775 = vand.u32 %v493, 4294901760
      %1776 = vmatpush.msra.mxu0 %v1775
      %v1777 = vand.u32 %v481, 4294901760
      %1778 = vmatpush.msra.mxu0 %v1777
      %v1779 = vand.u32 %v469, 4294901760
      %1780 = vmatpush.msra.mxu0 %v1779
      %v1781 = vand.u32 %v457, 4294901760
      %1782 = vmatpush.msra.mxu0 %v1781
      %v1783 = vand.u32 %v445, 4294901760
      %1784 = vmatpush.msra.mxu0 %v1783
      %v1785 = vand.u32 %v433, 4294901760
      %1786 = vmatpush.msra.mxu0 %v1785
      %v1787 = vand.u32 %v421, 4294901760
      %1788 = vmatpush.msra.mxu0 %v1787
      %v1789 = vand.u32 %v540, 4294901760
      %v1790 = vsub.f32 %v540, %v1789
      %v1791 = vand.u32 %v1790, 4294901760
      %1792 = vmatmul.f32.gmra.mxu0 %v1791
      %v1793 = vpop.f32.mrf.mxu0
      %v1794 = vadd.f32 %v1757, %v1793
      %v1795 = vand.u32 %v543, 4294901760
      %v1796 = vsub.f32 %v543, %v1795
      %v1797 = vand.u32 %v1796, 4294901760
      %1798 = vmatmul.f32.gmra.mxu0 %v1797
      %v1799 = vpop.f32.mrf.mxu0
      %v1800 = vadd.f32 %v1762, %v1799
      %1801 = vdwg.mxu0
      %1802 = vmatpush.msra.mxu0 0.0
      %1803 = vmatpush.msra.mxu0 0.0
      %1804 = vmatpush.msra.mxu0 0.0
      %1805 = vmatpush.msra.mxu0 0.0
      %1806 = vmatpush.msra.mxu0 0.0
      %1807 = vmatpush.msra.mxu0 0.0
      %1808 = vmatpush.msra.mxu0 0.0
      %v1809 = vand.u32 %v550, 4294901760
      %v1810 = vsub.f32 %v550, %v1809
      %v1811 = vand.u32 %v1810, 4294901760
      %1812 = vmatpush.msra.mxu0 %v1811
      %v1813 = vand.u32 %v505, 4294901760
      %v1814 = vsub.f32 %v505, %v1813
      %v1815 = vand.u32 %v1814, 4294901760
      %1816 = vmatpush.msra.mxu0 %v1815
      %v1817 = vand.u32 %v493, 4294901760
      %v1818 = vsub.f32 %v493, %v1817
      %v1819 = vand.u32 %v1818, 4294901760
      %1820 = vmatpush.msra.mxu0 %v1819
      %v1821 = vand.u32 %v481, 4294901760
      %v1822 = vsub.f32 %v481, %v1821
      %v1823 = vand.u32 %v1822, 4294901760
      %1824 = vmatpush.msra.mxu0 %v1823
      %v1825 = vand.u32 %v469, 4294901760
      %v1826 = vsub.f32 %v469, %v1825
      %v1827 = vand.u32 %v1826, 4294901760
      %1828 = vmatpush.msra.mxu0 %v1827
      %v1829 = vand.u32 %v457, 4294901760
      %v1830 = vsub.f32 %v457, %v1829
      %v1831 = vand.u32 %v1830, 4294901760
      %1832 = vmatpush.msra.mxu0 %v1831
      %v1833 = vand.u32 %v445, 4294901760
      %v1834 = vsub.f32 %v445, %v1833
      %v1835 = vand.u32 %v1834, 4294901760
      %1836 = vmatpush.msra.mxu0 %v1835
      %v1837 = vand.u32 %v433, 4294901760
      %v1838 = vsub.f32 %v433, %v1837
      %v1839 = vand.u32 %v1838, 4294901760
      %1840 = vmatpush.msra.mxu0 %v1839
      %v1841 = vand.u32 %v421, 4294901760
      %v1842 = vsub.f32 %v421, %v1841
      %v1843 = vand.u32 %v1842, 4294901760
      %1844 = vmatpush.msra.mxu0 %v1843
      %v1845 = vand.u32 %v540, 4294901760
      %1846 = vmatmul.f32.gmra.mxu0 %v1845
      %v1847 = vpop.f32.mrf.mxu0
      %v1848 = vadd.f32 %v1794, %v1847
      %v1849 = vand.u32 %v543, 4294901760
      %1850 = vmatmul.f32.gmra.mxu0 %v1849
      %v1851 = vpop.f32.mrf.mxu0
      %v1852 = vadd.f32 %v1800, %v1851
      %1853 = vdwg.mxu0
      %1854 = vmatpush.msra.mxu0 0.0
      %1855 = vmatpush.msra.mxu0 0.0
      %1856 = vmatpush.msra.mxu0 0.0
      %1857 = vmatpush.msra.mxu0 0.0
      %1858 = vmatpush.msra.mxu0 0.0
      %1859 = vmatpush.msra.mxu0 0.0
      %1860 = vmatpush.msra.mxu0 0.0
      %v1861 = vand.u32 %v550, 4294901760
      %1862 = vmatpush.msra.mxu0 %v1861
      %v1863 = vand.u32 %v505, 4294901760
      %1864 = vmatpush.msra.mxu0 %v1863
      %v1865 = vand.u32 %v493, 4294901760
      %1866 = vmatpush.msra.mxu0 %v1865
      %v1867 = vand.u32 %v481, 4294901760
      %1868 = vmatpush.msra.mxu0 %v1867
      %v1869 = vand.u32 %v469, 4294901760
      %1870 = vmatpush.msra.mxu0 %v1869
      %v1871 = vand.u32 %v457, 4294901760
      %1872 = vmatpush.msra.mxu0 %v1871
      %v1873 = vand.u32 %v445, 4294901760
      %1874 = vmatpush.msra.mxu0 %v1873
      %v1875 = vand.u32 %v433, 4294901760
      %1876 = vmatpush.msra.mxu0 %v1875
      %v1877 = vand.u32 %v421, 4294901760
      %1878 = vmatpush.msra.mxu0 %v1877
      %v1879 = vand.u32 %v540, 4294901760
      %1880 = vmatmul.f32.gmra.mxu0 %v1879
      %v1881 = vpop.f32.mrf.mxu0
      %v1882 = vadd.f32 %v1848, %v1881
      %v1883 = vand.u32 %v543, 4294901760
      %1884 = vmatmul.f32.gmra.mxu0 %v1883
      %v1885 = vpop.f32.mrf.mxu0
      %v1886 = vadd.f32 %v1852, %v1885
      %1887 = vdwg.mxu0
      %v1888 = vand.u32 %v410, 4294901760
      %1889 = vmatpush.msra.mxu0 %v1888
      %v1890 = vand.u32 %v398, 4294901760
      %1891 = vmatpush.msra.mxu0 %v1890
      %v1892 = vand.u32 %v386, 4294901760
      %1893 = vmatpush.msra.mxu0 %v1892
      %v1894 = vand.u32 %v374, 4294901760
      %1895 = vmatpush.msra.mxu0 %v1894
      %v1896 = vand.u32 %v362, 4294901760
      %1897 = vmatpush.msra.mxu0 %v1896
      %v1898 = vand.u32 %v350, 4294901760
      %1899 = vmatpush.msra.mxu0 %v1898
      %v1900 = vand.u32 %v338, 4294901760
      %1901 = vmatpush.msra.mxu0 %v1900
      %v1902 = vand.u32 %v326, 4294901760
      %1903 = vmatpush.msra.mxu0 %v1902
      %v1904 = vand.u32 %v314, 4294901760
      %1905 = vmatpush.msra.mxu0 %v1904
      %v1906 = vand.u32 %v302, 4294901760
      %1907 = vmatpush.msra.mxu0 %v1906
      %v1908 = vand.u32 %v290, 4294901760
      %1909 = vmatpush.msra.mxu0 %v1908
      %v1910 = vand.u32 %v278, 4294901760
      %1911 = vmatpush.msra.mxu0 %v1910
      %v1912 = vand.u32 %v266, 4294901760
      %1913 = vmatpush.msra.mxu0 %v1912
      %v1914 = vand.u32 %v254, 4294901760
      %1915 = vmatpush.msra.mxu0 %v1914
      %v1916 = vand.u32 %v242, 4294901760
      %1917 = vmatpush.msra.mxu0 %v1916
      %v1918 = vand.u32 %v230, 4294901760
      %1919 = vmatpush.msra.mxu0 %v1918
      %v1920 = vand.u32 %v198, 4294901760
      %v1921 = vsub.f32 %v198, %v1920
      %v1922 = vand.u32 %v1921, 4294901760
      %v1923 = vsub.f32 %v1921, %v1922
      %v1924 = vand.u32 %v1923, 4294901760
      %1925 = vmatmul.f32.gmra.mxu0 %v1924
      %v1926 = vpop.f32.mrf.mxu0
      %v1927 = vadd.f32 %v531, %v1926
      %v1928 = vand.u32 %v200, 4294901760
      %v1929 = vsub.f32 %v200, %v1928
      %v1930 = vand.u32 %v1929, 4294901760
      %v1931 = vsub.f32 %v1929, %v1930
      %v1932 = vand.u32 %v1931, 4294901760
      %1933 = vmatmul.f32.gmra.mxu0 %v1932
      %v1934 = vpop.f32.mrf.mxu0
      %v1935 = vadd.f32 %v536, %v1934
      %1936 = vdwg.mxu0
      %v1937 = vand.u32 %v410, 4294901760
      %v1938 = vsub.f32 %v410, %v1937
      %v1939 = vand.u32 %v1938, 4294901760
      %v1940 = vsub.f32 %v1938, %v1939
      %v1941 = vand.u32 %v1940, 4294901760
      %1942 = vmatpush.msra.mxu0 %v1941
      %v1943 = vand.u32 %v398, 4294901760
      %v1944 = vsub.f32 %v398, %v1943
      %v1945 = vand.u32 %v1944, 4294901760
      %v1946 = vsub.f32 %v1944, %v1945
      %v1947 = vand.u32 %v1946, 4294901760
      %1948 = vmatpush.msra.mxu0 %v1947
      %v1949 = vand.u32 %v386, 4294901760
      %v1950 = vsub.f32 %v386, %v1949
      %v1951 = vand.u32 %v1950, 4294901760
      %v1952 = vsub.f32 %v1950, %v1951
      %v1953 = vand.u32 %v1952, 4294901760
      %1954 = vmatpush.msra.mxu0 %v1953
      %v1955 = vand.u32 %v374, 4294901760
      %v1956 = vsub.f32 %v374, %v1955
      %v1957 = vand.u32 %v1956, 4294901760
      %v1958 = vsub.f32 %v1956, %v1957
      %v1959 = vand.u32 %v1958, 4294901760
      %1960 = vmatpush.msra.mxu0 %v1959
      %v1961 = vand.u32 %v362, 4294901760
      %v1962 = vsub.f32 %v362, %v1961
      %v1963 = vand.u32 %v1962, 4294901760
      %v1964 = vsub.f32 %v1962, %v1963
      %v1965 = vand.u32 %v1964, 4294901760
      %1966 = vmatpush.msra.mxu0 %v1965
      %v1967 = vand.u32 %v350, 4294901760
      %v1968 = vsub.f32 %v350, %v1967
      %v1969 = vand.u32 %v1968, 4294901760
      %v1970 = vsub.f32 %v1968, %v1969
      %v1971 = vand.u32 %v1970, 4294901760
      %1972 = vmatpush.msra.mxu0 %v1971
      %v1973 = vand.u32 %v338, 4294901760
      %v1974 = vsub.f32 %v338, %v1973
      %v1975 = vand.u32 %v1974, 4294901760
      %v1976 = vsub.f32 %v1974, %v1975
      %v1977 = vand.u32 %v1976, 4294901760
      %1978 = vmatpush.msra.mxu0 %v1977
      %v1979 = vand.u32 %v326, 4294901760
      %v1980 = vsub.f32 %v326, %v1979
      %v1981 = vand.u32 %v1980, 4294901760
      %v1982 = vsub.f32 %v1980, %v1981
      %v1983 = vand.u32 %v1982, 4294901760
      %1984 = vmatpush.msra.mxu0 %v1983
      %v1985 = vand.u32 %v314, 4294901760
      %v1986 = vsub.f32 %v314, %v1985
      %v1987 = vand.u32 %v1986, 4294901760
      %v1988 = vsub.f32 %v1986, %v1987
      %v1989 = vand.u32 %v1988, 4294901760
      %1990 = vmatpush.msra.mxu0 %v1989
      %v1991 = vand.u32 %v302, 4294901760
      %v1992 = vsub.f32 %v302, %v1991
      %v1993 = vand.u32 %v1992, 4294901760
      %v1994 = vsub.f32 %v1992, %v1993
      %v1995 = vand.u32 %v1994, 4294901760
      %1996 = vmatpush.msra.mxu0 %v1995
      %v1997 = vand.u32 %v290, 4294901760
      %v1998 = vsub.f32 %v290, %v1997
      %v1999 = vand.u32 %v1998, 4294901760
      %v2000 = vsub.f32 %v1998, %v1999
      %v2001 = vand.u32 %v2000, 4294901760
      %2002 = vmatpush.msra.mxu0 %v2001
      %v2003 = vand.u32 %v278, 4294901760
      %v2004 = vsub.f32 %v278, %v2003
      %v2005 = vand.u32 %v2004, 4294901760
      %v2006 = vsub.f32 %v2004, %v2005
      %v2007 = vand.u32 %v2006, 4294901760
      %2008 = vmatpush.msra.mxu0 %v2007
      %v2009 = vand.u32 %v266, 4294901760
      %v2010 = vsub.f32 %v266, %v2009
      %v2011 = vand.u32 %v2010, 4294901760
      %v2012 = vsub.f32 %v2010, %v2011
      %v2013 = vand.u32 %v2012, 4294901760
      %2014 = vmatpush.msra.mxu0 %v2013
      %v2015 = vand.u32 %v254, 4294901760
      %v2016 = vsub.f32 %v254, %v2015
      %v2017 = vand.u32 %v2016, 4294901760
      %v2018 = vsub.f32 %v2016, %v2017
      %v2019 = vand.u32 %v2018, 4294901760
      %2020 = vmatpush.msra.mxu0 %v2019
      %v2021 = vand.u32 %v242, 4294901760
      %v2022 = vsub.f32 %v242, %v2021
      %v2023 = vand.u32 %v2022, 4294901760
      %v2024 = vsub.f32 %v2022, %v2023
      %v2025 = vand.u32 %v2024, 4294901760
      %2026 = vmatpush.msra.mxu0 %v2025
      %v2027 = vand.u32 %v230, 4294901760
      %v2028 = vsub.f32 %v230, %v2027
      %v2029 = vand.u32 %v2028, 4294901760
      %v2030 = vsub.f32 %v2028, %v2029
      %v2031 = vand.u32 %v2030, 4294901760
      %2032 = vmatpush.msra.mxu0 %v2031
      %v2033 = vand.u32 %v198, 4294901760
      %2034 = vmatmul.f32.gmra.mxu0 %v2033
      %v2035 = vpop.f32.mrf.mxu0
      %v2036 = vadd.f32 %v1927, %v2035
      %v2037 = vand.u32 %v200, 4294901760
      %2038 = vmatmul.f32.gmra.mxu0 %v2037
      %v2039 = vpop.f32.mrf.mxu0
      %v2040 = vadd.f32 %v1935, %v2039
      %2041 = vdwg.mxu0
      %v2042 = vand.u32 %v410, 4294901760
      %v2043 = vsub.f32 %v410, %v2042
      %2044 = vmatpush.msra.mxu0 %v2043
      %v2045 = vand.u32 %v398, 4294901760
      %v2046 = vsub.f32 %v398, %v2045
      %2047 = vmatpush.msra.mxu0 %v2046
      %v2048 = vand.u32 %v386, 4294901760
      %v2049 = vsub.f32 %v386, %v2048
      %2050 = vmatpush.msra.mxu0 %v2049
      %v2051 = vand.u32 %v374, 4294901760
      %v2052 = vsub.f32 %v374, %v2051
      %2053 = vmatpush.msra.mxu0 %v2052
      %v2054 = vand.u32 %v362, 4294901760
      %v2055 = vsub.f32 %v362, %v2054
      %2056 = vmatpush.msra.mxu0 %v2055
      %v2057 = vand.u32 %v350, 4294901760
      %v2058 = vsub.f32 %v350, %v2057
      %2059 = vmatpush.msra.mxu0 %v2058
      %v2060 = vand.u32 %v338, 4294901760
      %v2061 = vsub.f32 %v338, %v2060
      %2062 = vmatpush.msra.mxu0 %v2061
      %v2063 = vand.u32 %v326, 4294901760
      %v2064 = vsub.f32 %v326, %v2063
      %2065 = vmatpush.msra.mxu0 %v2064
      %v2066 = vand.u32 %v314, 4294901760
      %v2067 = vsub.f32 %v314, %v2066
      %2068 = vmatpush.msra.mxu0 %v2067
      %v2069 = vand.u32 %v302, 4294901760
      %v2070 = vsub.f32 %v302, %v2069
      %2071 = vmatpush.msra.mxu0 %v2070
      %v2072 = vand.u32 %v290, 4294901760
      %v2073 = vsub.f32 %v290, %v2072
      %2074 = vmatpush.msra.mxu0 %v2073
      %v2075 = vand.u32 %v278, 4294901760
      %v2076 = vsub.f32 %v278, %v2075
      %2077 = vmatpush.msra.mxu0 %v2076
      %v2078 = vand.u32 %v266, 4294901760
      %v2079 = vsub.f32 %v266, %v2078
      %2080 = vmatpush.msra.mxu0 %v2079
      %v2081 = vand.u32 %v254, 4294901760
      %v2082 = vsub.f32 %v254, %v2081
      %2083 = vmatpush.msra.mxu0 %v2082
      %v2084 = vand.u32 %v242, 4294901760
      %v2085 = vsub.f32 %v242, %v2084
      %2086 = vmatpush.msra.mxu0 %v2085
      %v2087 = vand.u32 %v230, 4294901760
      %v2088 = vsub.f32 %v230, %v2087
      %2089 = vmatpush.msra.mxu0 %v2088
      %v2090 = vand.u32 %v198, 4294901760
      %v2091 = vsub.f32 %v198, %v2090
      %2092 = vmatmul.f32.gmra.mxu0 %v2091
      %v2093 = vpop.f32.mrf.mxu0
      %v2094 = vadd.f32 %v2036, %v2093
      %v2095 = vand.u32 %v200, 4294901760
      %v2096 = vsub.f32 %v200, %v2095
      %2097 = vmatmul.f32.gmra.mxu0 %v2096
      %v2098 = vpop.f32.mrf.mxu0
      %v2099 = vadd.f32 %v2040, %v2098
      %2100 = vdwg.mxu0
      %v2101 = vand.u32 %v410, 4294901760
      %2102 = vmatpush.msra.mxu0 %v2101
      %v2103 = vand.u32 %v398, 4294901760
      %2104 = vmatpush.msra.mxu0 %v2103
      %v2105 = vand.u32 %v386, 4294901760
      %2106 = vmatpush.msra.mxu0 %v2105
      %v2107 = vand.u32 %v374, 4294901760
      %2108 = vmatpush.msra.mxu0 %v2107
      %v2109 = vand.u32 %v362, 4294901760
      %2110 = vmatpush.msra.mxu0 %v2109
      %v2111 = vand.u32 %v350, 4294901760
      %2112 = vmatpush.msra.mxu0 %v2111
      %v2113 = vand.u32 %v338, 4294901760
      %2114 = vmatpush.msra.mxu0 %v2113
      %v2115 = vand.u32 %v326, 4294901760
      %2116 = vmatpush.msra.mxu0 %v2115
      %v2117 = vand.u32 %v314, 4294901760
      %2118 = vmatpush.msra.mxu0 %v2117
      %v2119 = vand.u32 %v302, 4294901760
      %2120 = vmatpush.msra.mxu0 %v2119
      %v2121 = vand.u32 %v290, 4294901760
      %2122 = vmatpush.msra.mxu0 %v2121
      %v2123 = vand.u32 %v278, 4294901760
      %2124 = vmatpush.msra.mxu0 %v2123
      %v2125 = vand.u32 %v266, 4294901760
      %2126 = vmatpush.msra.mxu0 %v2125
      %v2127 = vand.u32 %v254, 4294901760
      %2128 = vmatpush.msra.mxu0 %v2127
      %v2129 = vand.u32 %v242, 4294901760
      %2130 = vmatpush.msra.mxu0 %v2129
      %v2131 = vand.u32 %v230, 4294901760
      %2132 = vmatpush.msra.mxu0 %v2131
      %v2133 = vand.u32 %v198, 4294901760
      %v2134 = vsub.f32 %v198, %v2133
      %v2135 = vand.u32 %v2134, 4294901760
      %2136 = vmatmul.f32.gmra.mxu0 %v2135
      %v2137 = vpop.f32.mrf.mxu0
      %v2138 = vadd.f32 %v2094, %v2137
      %v2139 = vand.u32 %v200, 4294901760
      %v2140 = vsub.f32 %v200, %v2139
      %v2141 = vand.u32 %v2140, 4294901760
      %2142 = vmatmul.f32.gmra.mxu0 %v2141
      %v2143 = vpop.f32.mrf.mxu0
      %v2144 = vadd.f32 %v2099, %v2143
      %2145 = vdwg.mxu0
      %v2146 = vand.u32 %v410, 4294901760
      %v2147 = vsub.f32 %v410, %v2146
      %v2148 = vand.u32 %v2147, 4294901760
      %2149 = vmatpush.msra.mxu0 %v2148
      %v2150 = vand.u32 %v398, 4294901760
      %v2151 = vsub.f32 %v398, %v2150
      %v2152 = vand.u32 %v2151, 4294901760
      %2153 = vmatpush.msra.mxu0 %v2152
      %v2154 = vand.u32 %v386, 4294901760
      %v2155 = vsub.f32 %v386, %v2154
      %v2156 = vand.u32 %v2155, 4294901760
      %2157 = vmatpush.msra.mxu0 %v2156
      %v2158 = vand.u32 %v374, 4294901760
      %v2159 = vsub.f32 %v374, %v2158
      %v2160 = vand.u32 %v2159, 4294901760
      %2161 = vmatpush.msra.mxu0 %v2160
      %v2162 = vand.u32 %v362, 4294901760
      %v2163 = vsub.f32 %v362, %v2162
      %v2164 = vand.u32 %v2163, 4294901760
      %2165 = vmatpush.msra.mxu0 %v2164
      %v2166 = vand.u32 %v350, 4294901760
      %v2167 = vsub.f32 %v350, %v2166
      %v2168 = vand.u32 %v2167, 4294901760
      %2169 = vmatpush.msra.mxu0 %v2168
      %v2170 = vand.u32 %v338, 4294901760
      %v2171 = vsub.f32 %v338, %v2170
      %v2172 = vand.u32 %v2171, 4294901760
      %2173 = vmatpush.msra.mxu0 %v2172
      %v2174 = vand.u32 %v326, 4294901760
      %v2175 = vsub.f32 %v326, %v2174
      %v2176 = vand.u32 %v2175, 4294901760
      %2177 = vmatpush.msra.mxu0 %v2176
      %v2178 = vand.u32 %v314, 4294901760
      %v2179 = vsub.f32 %v314, %v2178
      %v2180 = vand.u32 %v2179, 4294901760
      %2181 = vmatpush.msra.mxu0 %v2180
      %v2182 = vand.u32 %v302, 4294901760
      %v2183 = vsub.f32 %v302, %v2182
      %v2184 = vand.u32 %v2183, 4294901760
      %2185 = vmatpush.msra.mxu0 %v2184
      %v2186 = vand.u32 %v290, 4294901760
      %v2187 = vsub.f32 %v290, %v2186
      %v2188 = vand.u32 %v2187, 4294901760
      %2189 = vmatpush.msra.mxu0 %v2188
      %v2190 = vand.u32 %v278, 4294901760
      %v2191 = vsub.f32 %v278, %v2190
      %v2192 = vand.u32 %v2191, 4294901760
      %2193 = vmatpush.msra.mxu0 %v2192
      %v2194 = vand.u32 %v266, 4294901760
      %v2195 = vsub.f32 %v266, %v2194
      %v2196 = vand.u32 %v2195, 4294901760
      %2197 = vmatpush.msra.mxu0 %v2196
      %v2198 = vand.u32 %v254, 4294901760
      %v2199 = vsub.f32 %v254, %v2198
      %v2200 = vand.u32 %v2199, 4294901760
      %2201 = vmatpush.msra.mxu0 %v2200
      %v2202 = vand.u32 %v242, 4294901760
      %v2203 = vsub.f32 %v242, %v2202
      %v2204 = vand.u32 %v2203, 4294901760
      %2205 = vmatpush.msra.mxu0 %v2204
      %v2206 = vand.u32 %v230, 4294901760
      %v2207 = vsub.f32 %v230, %v2206
      %v2208 = vand.u32 %v2207, 4294901760
      %2209 = vmatpush.msra.mxu0 %v2208
      %v2210 = vand.u32 %v198, 4294901760
      %2211 = vmatmul.f32.gmra.mxu0 %v2210
      %v2212 = vpop.f32.mrf.mxu0
      %v2213 = vadd.f32 %v2138, %v2212
      %v2214 = vand.u32 %v200, 4294901760
      %2215 = vmatmul.f32.gmra.mxu0 %v2214
      %v2216 = vpop.f32.mrf.mxu0
      %v2217 = vadd.f32 %v2144, %v2216
      %2218 = vdwg.mxu0
      %v2219 = vand.u32 %v410, 4294901760
      %2220 = vmatpush.msra.mxu0 %v2219
      %v2221 = vand.u32 %v398, 4294901760
      %2222 = vmatpush.msra.mxu0 %v2221
      %v2223 = vand.u32 %v386, 4294901760
      %2224 = vmatpush.msra.mxu0 %v2223
      %v2225 = vand.u32 %v374, 4294901760
      %2226 = vmatpush.msra.mxu0 %v2225
      %v2227 = vand.u32 %v362, 4294901760
      %2228 = vmatpush.msra.mxu0 %v2227
      %v2229 = vand.u32 %v350, 4294901760
      %2230 = vmatpush.msra.mxu0 %v2229
      %v2231 = vand.u32 %v338, 4294901760
      %2232 = vmatpush.msra.mxu0 %v2231
      %v2233 = vand.u32 %v326, 4294901760
      %2234 = vmatpush.msra.mxu0 %v2233
      %v2235 = vand.u32 %v314, 4294901760
      %2236 = vmatpush.msra.mxu0 %v2235
      %v2237 = vand.u32 %v302, 4294901760
      %2238 = vmatpush.msra.mxu0 %v2237
      %v2239 = vand.u32 %v290, 4294901760
      %2240 = vmatpush.msra.mxu0 %v2239
      %v2241 = vand.u32 %v278, 4294901760
      %2242 = vmatpush.msra.mxu0 %v2241
      %v2243 = vand.u32 %v266, 4294901760
      %2244 = vmatpush.msra.mxu0 %v2243
      %v2245 = vand.u32 %v254, 4294901760
      %2246 = vmatpush.msra.mxu0 %v2245
      %v2247 = vand.u32 %v242, 4294901760
      %2248 = vmatpush.msra.mxu0 %v2247
      %v2249 = vand.u32 %v230, 4294901760
      %2250 = vmatpush.msra.mxu0 %v2249
      %v2251 = vand.u32 %v198, 4294901760
      %2252 = vmatmul.f32.gmra.mxu0 %v2251
      %v2253 = vpop.f32.mrf.mxu0
      %v2254 = vadd.f32 %v2213, %v2253
      %v2255 = vand.u32 %v200, 4294901760
      %2256 = vmatmul.f32.gmra.mxu0 %v2255
      %v2257 = vpop.f32.mrf.mxu0
      %v2258 = vadd.f32 %v2217, %v2257
      %2259 = vdwg.mxu0
      %2260 = vmatpush.msra.mxu0 0.0
      %2261 = vmatpush.msra.mxu0 0.0
      %2262 = vmatpush.msra.mxu0 0.0
      %2263 = vmatpush.msra.mxu0 0.0
      %2264 = vmatpush.msra.mxu0 0.0
      %2265 = vmatpush.msra.mxu0 0.0
      %2266 = vmatpush.msra.mxu0 0.0
      %v2267 = vand.u32 %v553, 4294901760
      %2268 = vmatpush.msra.mxu0 %v2267
      %v2269 = vand.u32 %v506, 4294901760
      %2270 = vmatpush.msra.mxu0 %v2269
      %v2271 = vand.u32 %v494, 4294901760
      %2272 = vmatpush.msra.mxu0 %v2271
      %v2273 = vand.u32 %v482, 4294901760
      %2274 = vmatpush.msra.mxu0 %v2273
      %v2275 = vand.u32 %v470, 4294901760
      %2276 = vmatpush.msra.mxu0 %v2275
      %v2277 = vand.u32 %v458, 4294901760
      %2278 = vmatpush.msra.mxu0 %v2277
      %v2279 = vand.u32 %v446, 4294901760
      %2280 = vmatpush.msra.mxu0 %v2279
      %v2281 = vand.u32 %v434, 4294901760
      %2282 = vmatpush.msra.mxu0 %v2281
      %v2283 = vand.u32 %v422, 4294901760
      %2284 = vmatpush.msra.mxu0 %v2283
      %v2285 = vand.u32 %v540, 4294901760
      %v2286 = vsub.f32 %v540, %v2285
      %v2287 = vand.u32 %v2286, 4294901760
      %v2288 = vsub.f32 %v2286, %v2287
      %v2289 = vand.u32 %v2288, 4294901760
      %2290 = vmatmul.f32.gmra.mxu0 %v2289
      %v2291 = vpop.f32.mrf.mxu0
      %v2292 = vadd.f32 %v2254, %v2291
      %v2293 = vand.u32 %v543, 4294901760
      %v2294 = vsub.f32 %v543, %v2293
      %v2295 = vand.u32 %v2294, 4294901760
      %v2296 = vsub.f32 %v2294, %v2295
      %v2297 = vand.u32 %v2296, 4294901760
      %2298 = vmatmul.f32.gmra.mxu0 %v2297
      %v2299 = vpop.f32.mrf.mxu0
      %v2300 = vadd.f32 %v2258, %v2299
      %2301 = vdwg.mxu0
      %2302 = vmatpush.msra.mxu0 0.0
      %2303 = vmatpush.msra.mxu0 0.0
      %2304 = vmatpush.msra.mxu0 0.0
      %2305 = vmatpush.msra.mxu0 0.0
      %2306 = vmatpush.msra.mxu0 0.0
      %2307 = vmatpush.msra.mxu0 0.0
      %2308 = vmatpush.msra.mxu0 0.0
      %v2309 = vand.u32 %v553, 4294901760
      %v2310 = vsub.f32 %v553, %v2309
      %v2311 = vand.u32 %v2310, 4294901760
      %v2312 = vsub.f32 %v2310, %v2311
      %v2313 = vand.u32 %v2312, 4294901760
      %2314 = vmatpush.msra.mxu0 %v2313
      %v2315 = vand.u32 %v506, 4294901760
      %v2316 = vsub.f32 %v506, %v2315
      %v2317 = vand.u32 %v2316, 4294901760
      %v2318 = vsub.f32 %v2316, %v2317
      %v2319 = vand.u32 %v2318, 4294901760
      %2320 = vmatpush.msra.mxu0 %v2319
      %v2321 = vand.u32 %v494, 4294901760
      %v2322 = vsub.f32 %v494, %v2321
      %v2323 = vand.u32 %v2322, 4294901760
      %v2324 = vsub.f32 %v2322, %v2323
      %v2325 = vand.u32 %v2324, 4294901760
      %2326 = vmatpush.msra.mxu0 %v2325
      %v2327 = vand.u32 %v482, 4294901760
      %v2328 = vsub.f32 %v482, %v2327
      %v2329 = vand.u32 %v2328, 4294901760
      %v2330 = vsub.f32 %v2328, %v2329
      %v2331 = vand.u32 %v2330, 4294901760
      %2332 = vmatpush.msra.mxu0 %v2331
      %v2333 = vand.u32 %v470, 4294901760
      %v2334 = vsub.f32 %v470, %v2333
      %v2335 = vand.u32 %v2334, 4294901760
      %v2336 = vsub.f32 %v2334, %v2335
      %v2337 = vand.u32 %v2336, 4294901760
      %2338 = vmatpush.msra.mxu0 %v2337
      %v2339 = vand.u32 %v458, 4294901760
      %v2340 = vsub.f32 %v458, %v2339
      %v2341 = vand.u32 %v2340, 4294901760
      %v2342 = vsub.f32 %v2340, %v2341
      %v2343 = vand.u32 %v2342, 4294901760
      %2344 = vmatpush.msra.mxu0 %v2343
      %v2345 = vand.u32 %v446, 4294901760
      %v2346 = vsub.f32 %v446, %v2345
      %v2347 = vand.u32 %v2346, 4294901760
      %v2348 = vsub.f32 %v2346, %v2347
      %v2349 = vand.u32 %v2348, 4294901760
      %2350 = vmatpush.msra.mxu0 %v2349
      %v2351 = vand.u32 %v434, 4294901760
      %v2352 = vsub.f32 %v434, %v2351
      %v2353 = vand.u32 %v2352, 4294901760
      %v2354 = vsub.f32 %v2352, %v2353
      %v2355 = vand.u32 %v2354, 4294901760
      %2356 = vmatpush.msra.mxu0 %v2355
      %v2357 = vand.u32 %v422, 4294901760
      %v2358 = vsub.f32 %v422, %v2357
      %v2359 = vand.u32 %v2358, 4294901760
      %v2360 = vsub.f32 %v2358, %v2359
      %v2361 = vand.u32 %v2360, 4294901760
      %2362 = vmatpush.msra.mxu0 %v2361
      %v2363 = vand.u32 %v540, 4294901760
      %2364 = vmatmul.f32.gmra.mxu0 %v2363
      %v2365 = vpop.f32.mrf.mxu0
      %v2366 = vadd.f32 %v2292, %v2365
      %v2367 = vand.u32 %v543, 4294901760
      %2368 = vmatmul.f32.gmra.mxu0 %v2367
      %v2369 = vpop.f32.mrf.mxu0
      %v2370 = vadd.f32 %v2300, %v2369
      %2371 = vdwg.mxu0
      %2372 = vmatpush.msra.mxu0 0.0
      %2373 = vmatpush.msra.mxu0 0.0
      %2374 = vmatpush.msra.mxu0 0.0
      %2375 = vmatpush.msra.mxu0 0.0
      %2376 = vmatpush.msra.mxu0 0.0
      %2377 = vmatpush.msra.mxu0 0.0
      %2378 = vmatpush.msra.mxu0 0.0
      %v2379 = vand.u32 %v553, 4294901760
      %v2380 = vsub.f32 %v553, %v2379
      %2381 = vmatpush.msra.mxu0 %v2380
      %v2382 = vand.u32 %v506, 4294901760
      %v2383 = vsub.f32 %v506, %v2382
      %2384 = vmatpush.msra.mxu0 %v2383
      %v2385 = vand.u32 %v494, 4294901760
      %v2386 = vsub.f32 %v494, %v2385
      %2387 = vmatpush.msra.mxu0 %v2386
      %v2388 = vand.u32 %v482, 4294901760
      %v2389 = vsub.f32 %v482, %v2388
      %2390 = vmatpush.msra.mxu0 %v2389
      %v2391 = vand.u32 %v470, 4294901760
      %v2392 = vsub.f32 %v470, %v2391
      %2393 = vmatpush.msra.mxu0 %v2392
      %v2394 = vand.u32 %v458, 4294901760
      %v2395 = vsub.f32 %v458, %v2394
      %2396 = vmatpush.msra.mxu0 %v2395
      %v2397 = vand.u32 %v446, 4294901760
      %v2398 = vsub.f32 %v446, %v2397
      %2399 = vmatpush.msra.mxu0 %v2398
      %v2400 = vand.u32 %v434, 4294901760
      %v2401 = vsub.f32 %v434, %v2400
      %2402 = vmatpush.msra.mxu0 %v2401
      %v2403 = vand.u32 %v422, 4294901760
      %v2404 = vsub.f32 %v422, %v2403
      %2405 = vmatpush.msra.mxu0 %v2404
      %v2406 = vand.u32 %v540, 4294901760
      %v2407 = vsub.f32 %v540, %v2406
      %2408 = vmatmul.f32.gmra.mxu0 %v2407
      %v2409 = vpop.f32.mrf.mxu0
      %v2410 = vadd.f32 %v2366, %v2409
      %v2411 = vand.u32 %v543, 4294901760
      %v2412 = vsub.f32 %v543, %v2411
      %2413 = vmatmul.f32.gmra.mxu0 %v2412
      %v2414 = vpop.f32.mrf.mxu0
      %v2415 = vadd.f32 %v2370, %v2414
      %2416 = vdwg.mxu0
      %2417 = vmatpush.msra.mxu0 0.0
      %2418 = vmatpush.msra.mxu0 0.0
      %2419 = vmatpush.msra.mxu0 0.0
      %2420 = vmatpush.msra.mxu0 0.0
      %2421 = vmatpush.msra.mxu0 0.0
      %2422 = vmatpush.msra.mxu0 0.0
      %2423 = vmatpush.msra.mxu0 0.0
      %v2424 = vand.u32 %v553, 4294901760
      %2425 = vmatpush.msra.mxu0 %v2424
      %v2426 = vand.u32 %v506, 4294901760
      %2427 = vmatpush.msra.mxu0 %v2426
      %v2428 = vand.u32 %v494, 4294901760
      %2429 = vmatpush.msra.mxu0 %v2428
      %v2430 = vand.u32 %v482, 4294901760
      %2431 = vmatpush.msra.mxu0 %v2430
      %v2432 = vand.u32 %v470, 4294901760
      %2433 = vmatpush.msra.mxu0 %v2432
      %v2434 = vand.u32 %v458, 4294901760
      %2435 = vmatpush.msra.mxu0 %v2434
      %v2436 = vand.u32 %v446, 4294901760
      %2437 = vmatpush.msra.mxu0 %v2436
      %v2438 = vand.u32 %v434, 4294901760
      %2439 = vmatpush.msra.mxu0 %v2438
      %v2440 = vand.u32 %v422, 4294901760
      %2441 = vmatpush.msra.mxu0 %v2440
      %v2442 = vand.u32 %v540, 4294901760
      %v2443 = vsub.f32 %v540, %v2442
      %v2444 = vand.u32 %v2443, 4294901760
      %2445 = vmatmul.f32.gmra.mxu0 %v2444
      %v2446 = vpop.f32.mrf.mxu0
      %v2447 = vadd.f32 %v2410, %v2446
      %v2448 = vand.u32 %v543, 4294901760
      %v2449 = vsub.f32 %v543, %v2448
      %v2450 = vand.u32 %v2449, 4294901760
      %2451 = vmatmul.f32.gmra.mxu0 %v2450
      %v2452 = vpop.f32.mrf.mxu0
      %v2453 = vadd.f32 %v2415, %v2452
      %2454 = vdwg.mxu0
      %2455 = vmatpush.msra.mxu0 0.0
      %2456 = vmatpush.msra.mxu0 0.0
      %2457 = vmatpush.msra.mxu0 0.0
      %2458 = vmatpush.msra.mxu0 0.0
      %2459 = vmatpush.msra.mxu0 0.0
      %2460 = vmatpush.msra.mxu0 0.0
      %2461 = vmatpush.msra.mxu0 0.0
      %v2462 = vand.u32 %v553, 4294901760
      %v2463 = vsub.f32 %v553, %v2462
      %v2464 = vand.u32 %v2463, 4294901760
      %2465 = vmatpush.msra.mxu0 %v2464
      %v2466 = vand.u32 %v506, 4294901760
      %v2467 = vsub.f32 %v506, %v2466
      %v2468 = vand.u32 %v2467, 4294901760
      %2469 = vmatpush.msra.mxu0 %v2468
      %v2470 = vand.u32 %v494, 4294901760
      %v2471 = vsub.f32 %v494, %v2470
      %v2472 = vand.u32 %v2471, 4294901760
      %2473 = vmatpush.msra.mxu0 %v2472
      %v2474 = vand.u32 %v482, 4294901760
      %v2475 = vsub.f32 %v482, %v2474
      %v2476 = vand.u32 %v2475, 4294901760
      %2477 = vmatpush.msra.mxu0 %v2476
      %v2478 = vand.u32 %v470, 4294901760
      %v2479 = vsub.f32 %v470, %v2478
      %v2480 = vand.u32 %v2479, 4294901760
      %2481 = vmatpush.msra.mxu0 %v2480
      %v2482 = vand.u32 %v458, 4294901760
      %v2483 = vsub.f32 %v458, %v2482
      %v2484 = vand.u32 %v2483, 4294901760
      %2485 = vmatpush.msra.mxu0 %v2484
      %v2486 = vand.u32 %v446, 4294901760
      %v2487 = vsub.f32 %v446, %v2486
      %v2488 = vand.u32 %v2487, 4294901760
      %2489 = vmatpush.msra.mxu0 %v2488
      %v2490 = vand.u32 %v434, 4294901760
      %v2491 = vsub.f32 %v434, %v2490
      %v2492 = vand.u32 %v2491, 4294901760
      %2493 = vmatpush.msra.mxu0 %v2492
      %v2494 = vand.u32 %v422, 4294901760
      %v2495 = vsub.f32 %v422, %v2494
      %v2496 = vand.u32 %v2495, 4294901760
      %2497 = vmatpush.msra.mxu0 %v2496
      %v2498 = vand.u32 %v540, 4294901760
      %2499 = vmatmul.f32.gmra.mxu0 %v2498
      %v2500 = vpop.f32.mrf.mxu0
      %v2501 = vadd.f32 %v2447, %v2500
      %v2502 = vand.u32 %v543, 4294901760
      %2503 = vmatmul.f32.gmra.mxu0 %v2502
      %v2504 = vpop.f32.mrf.mxu0
      %v2505 = vadd.f32 %v2453, %v2504
      %2506 = vdwg.mxu0
      %2507 = vmatpush.msra.mxu0 0.0
      %2508 = vmatpush.msra.mxu0 0.0
      %2509 = vmatpush.msra.mxu0 0.0
      %2510 = vmatpush.msra.mxu0 0.0
      %2511 = vmatpush.msra.mxu0 0.0
      %2512 = vmatpush.msra.mxu0 0.0
      %2513 = vmatpush.msra.mxu0 0.0
      %v2514 = vand.u32 %v553, 4294901760
      %2515 = vmatpush.msra.mxu0 %v2514
      %v2516 = vand.u32 %v506, 4294901760
      %2517 = vmatpush.msra.mxu0 %v2516
      %v2518 = vand.u32 %v494, 4294901760
      %2519 = vmatpush.msra.mxu0 %v2518
      %v2520 = vand.u32 %v482, 4294901760
      %2521 = vmatpush.msra.mxu0 %v2520
      %v2522 = vand.u32 %v470, 4294901760
      %2523 = vmatpush.msra.mxu0 %v2522
      %v2524 = vand.u32 %v458, 4294901760
      %2525 = vmatpush.msra.mxu0 %v2524
      %v2526 = vand.u32 %v446, 4294901760
      %2527 = vmatpush.msra.mxu0 %v2526
      %v2528 = vand.u32 %v434, 4294901760
      %2529 = vmatpush.msra.mxu0 %v2528
      %v2530 = vand.u32 %v422, 4294901760
      %2531 = vmatpush.msra.mxu0 %v2530
      %v2532 = vand.u32 %v540, 4294901760
      %2533 = vmatmul.f32.gmra.mxu0 %v2532
      %v2534 = vpop.f32.mrf.mxu0
      %v2535 = vadd.f32 %v2501, %v2534
      %v2536 = vand.u32 %v543, 4294901760
      %2537 = vmatmul.f32.gmra.mxu0 %v2536
      %v2538 = vpop.f32.mrf.mxu0
      %v2539 = vadd.f32 %v2505, %v2538
      %2540 = vdwg.mxu0
      %v2541 = vand.u32 %v411, 4294901760
      %2542 = vmatpush.msra.mxu0 %v2541
      %v2543 = vand.u32 %v399, 4294901760
      %2544 = vmatpush.msra.mxu0 %v2543
      %v2545 = vand.u32 %v387, 4294901760
      %2546 = vmatpush.msra.mxu0 %v2545
      %v2547 = vand.u32 %v375, 4294901760
      %2548 = vmatpush.msra.mxu0 %v2547
      %v2549 = vand.u32 %v363, 4294901760
      %2550 = vmatpush.msra.mxu0 %v2549
      %v2551 = vand.u32 %v351, 4294901760
      %2552 = vmatpush.msra.mxu0 %v2551
      %v2553 = vand.u32 %v339, 4294901760
      %2554 = vmatpush.msra.mxu0 %v2553
      %v2555 = vand.u32 %v327, 4294901760
      %2556 = vmatpush.msra.mxu0 %v2555
      %v2557 = vand.u32 %v315, 4294901760
      %2558 = vmatpush.msra.mxu0 %v2557
      %v2559 = vand.u32 %v303, 4294901760
      %2560 = vmatpush.msra.mxu0 %v2559
      %v2561 = vand.u32 %v291, 4294901760
      %2562 = vmatpush.msra.mxu0 %v2561
      %v2563 = vand.u32 %v279, 4294901760
      %2564 = vmatpush.msra.mxu0 %v2563
      %v2565 = vand.u32 %v267, 4294901760
      %2566 = vmatpush.msra.mxu0 %v2565
      %v2567 = vand.u32 %v255, 4294901760
      %2568 = vmatpush.msra.mxu0 %v2567
      %v2569 = vand.u32 %v243, 4294901760
      %2570 = vmatpush.msra.mxu0 %v2569
      %v2571 = vand.u32 %v231, 4294901760
      %2572 = vmatpush.msra.mxu0 %v2571
      %v2573 = vand.u32 %v198, 4294901760
      %v2574 = vsub.f32 %v198, %v2573
      %v2575 = vand.u32 %v2574, 4294901760
      %v2576 = vsub.f32 %v2574, %v2575
      %v2577 = vand.u32 %v2576, 4294901760
      %2578 = vmatmul.f32.gmra.mxu0 %v2577
      %v2579 = vpop.f32.mrf.mxu0
      %v2580 = vadd.f32 %v531, %v2579
      %v2581 = vand.u32 %v200, 4294901760
      %v2582 = vsub.f32 %v200, %v2581
      %v2583 = vand.u32 %v2582, 4294901760
      %v2584 = vsub.f32 %v2582, %v2583
      %v2585 = vand.u32 %v2584, 4294901760
      %2586 = vmatmul.f32.gmra.mxu0 %v2585
      %v2587 = vpop.f32.mrf.mxu0
      %v2588 = vadd.f32 %v536, %v2587
      %2589 = vdwg.mxu0
      %v2590 = vand.u32 %v411, 4294901760
      %v2591 = vsub.f32 %v411, %v2590
      %v2592 = vand.u32 %v2591, 4294901760
      %v2593 = vsub.f32 %v2591, %v2592
      %v2594 = vand.u32 %v2593, 4294901760
      %2595 = vmatpush.msra.mxu0 %v2594
      %v2596 = vand.u32 %v399, 4294901760
      %v2597 = vsub.f32 %v399, %v2596
      %v2598 = vand.u32 %v2597, 4294901760
      %v2599 = vsub.f32 %v2597, %v2598
      %v2600 = vand.u32 %v2599, 4294901760
      %2601 = vmatpush.msra.mxu0 %v2600
      %v2602 = vand.u32 %v387, 4294901760
      %v2603 = vsub.f32 %v387, %v2602
      %v2604 = vand.u32 %v2603, 4294901760
      %v2605 = vsub.f32 %v2603, %v2604
      %v2606 = vand.u32 %v2605, 4294901760
      %2607 = vmatpush.msra.mxu0 %v2606
      %v2608 = vand.u32 %v375, 4294901760
      %v2609 = vsub.f32 %v375, %v2608
      %v2610 = vand.u32 %v2609, 4294901760
      %v2611 = vsub.f32 %v2609, %v2610
      %v2612 = vand.u32 %v2611, 4294901760
      %2613 = vmatpush.msra.mxu0 %v2612
      %v2614 = vand.u32 %v363, 4294901760
      %v2615 = vsub.f32 %v363, %v2614
      %v2616 = vand.u32 %v2615, 4294901760
      %v2617 = vsub.f32 %v2615, %v2616
      %v2618 = vand.u32 %v2617, 4294901760
      %2619 = vmatpush.msra.mxu0 %v2618
      %v2620 = vand.u32 %v351, 4294901760
      %v2621 = vsub.f32 %v351, %v2620
      %v2622 = vand.u32 %v2621, 4294901760
      %v2623 = vsub.f32 %v2621, %v2622
      %v2624 = vand.u32 %v2623, 4294901760
      %2625 = vmatpush.msra.mxu0 %v2624
      %v2626 = vand.u32 %v339, 4294901760
      %v2627 = vsub.f32 %v339, %v2626
      %v2628 = vand.u32 %v2627, 4294901760
      %v2629 = vsub.f32 %v2627, %v2628
      %v2630 = vand.u32 %v2629, 4294901760
      %2631 = vmatpush.msra.mxu0 %v2630
      %v2632 = vand.u32 %v327, 4294901760
      %v2633 = vsub.f32 %v327, %v2632
      %v2634 = vand.u32 %v2633, 4294901760
      %v2635 = vsub.f32 %v2633, %v2634
      %v2636 = vand.u32 %v2635, 4294901760
      %2637 = vmatpush.msra.mxu0 %v2636
      %v2638 = vand.u32 %v315, 4294901760
      %v2639 = vsub.f32 %v315, %v2638
      %v2640 = vand.u32 %v2639, 4294901760
      %v2641 = vsub.f32 %v2639, %v2640
      %v2642 = vand.u32 %v2641, 4294901760
      %2643 = vmatpush.msra.mxu0 %v2642
      %v2644 = vand.u32 %v303, 4294901760
      %v2645 = vsub.f32 %v303, %v2644
      %v2646 = vand.u32 %v2645, 4294901760
      %v2647 = vsub.f32 %v2645, %v2646
      %v2648 = vand.u32 %v2647, 4294901760
      %2649 = vmatpush.msra.mxu0 %v2648
      %v2650 = vand.u32 %v291, 4294901760
      %v2651 = vsub.f32 %v291, %v2650
      %v2652 = vand.u32 %v2651, 4294901760
      %v2653 = vsub.f32 %v2651, %v2652
      %v2654 = vand.u32 %v2653, 4294901760
      %2655 = vmatpush.msra.mxu0 %v2654
      %v2656 = vand.u32 %v279, 4294901760
      %v2657 = vsub.f32 %v279, %v2656
      %v2658 = vand.u32 %v2657, 4294901760
      %v2659 = vsub.f32 %v2657, %v2658
      %v2660 = vand.u32 %v2659, 4294901760
      %2661 = vmatpush.msra.mxu0 %v2660
      %v2662 = vand.u32 %v267, 4294901760
      %v2663 = vsub.f32 %v267, %v2662
      %v2664 = vand.u32 %v2663, 4294901760
      %v2665 = vsub.f32 %v2663, %v2664
      %v2666 = vand.u32 %v2665, 4294901760
      %2667 = vmatpush.msra.mxu0 %v2666
      %v2668 = vand.u32 %v255, 4294901760
      %v2669 = vsub.f32 %v255, %v2668
      %v2670 = vand.u32 %v2669, 4294901760
      %v2671 = vsub.f32 %v2669, %v2670
      %v2672 = vand.u32 %v2671, 4294901760
      %2673 = vmatpush.msra.mxu0 %v2672
      %v2674 = vand.u32 %v243, 4294901760
      %v2675 = vsub.f32 %v243, %v2674
      %v2676 = vand.u32 %v2675, 4294901760
      %v2677 = vsub.f32 %v2675, %v2676
      %v2678 = vand.u32 %v2677, 4294901760
      %2679 = vmatpush.msra.mxu0 %v2678
      %v2680 = vand.u32 %v231, 4294901760
      %v2681 = vsub.f32 %v231, %v2680
      %v2682 = vand.u32 %v2681, 4294901760
      %v2683 = vsub.f32 %v2681, %v2682
      %v2684 = vand.u32 %v2683, 4294901760
      %2685 = vmatpush.msra.mxu0 %v2684
      %v2686 = vand.u32 %v198, 4294901760
      %2687 = vmatmul.f32.gmra.mxu0 %v2686
      %v2688 = vpop.f32.mrf.mxu0
      %v2689 = vadd.f32 %v2580, %v2688
      %v2690 = vand.u32 %v200, 4294901760
      %2691 = vmatmul.f32.gmra.mxu0 %v2690
      %v2692 = vpop.f32.mrf.mxu0
      %v2693 = vadd.f32 %v2588, %v2692
      %2694 = vdwg.mxu0
      %v2695 = vand.u32 %v411, 4294901760
      %v2696 = vsub.f32 %v411, %v2695
      %2697 = vmatpush.msra.mxu0 %v2696
      %v2698 = vand.u32 %v399, 4294901760
      %v2699 = vsub.f32 %v399, %v2698
      %2700 = vmatpush.msra.mxu0 %v2699
      %v2701 = vand.u32 %v387, 4294901760
      %v2702 = vsub.f32 %v387, %v2701
      %2703 = vmatpush.msra.mxu0 %v2702
      %v2704 = vand.u32 %v375, 4294901760
      %v2705 = vsub.f32 %v375, %v2704
      %2706 = vmatpush.msra.mxu0 %v2705
      %v2707 = vand.u32 %v363, 4294901760
      %v2708 = vsub.f32 %v363, %v2707
      %2709 = vmatpush.msra.mxu0 %v2708
      %v2710 = vand.u32 %v351, 4294901760
      %v2711 = vsub.f32 %v351, %v2710
      %2712 = vmatpush.msra.mxu0 %v2711
      %v2713 = vand.u32 %v339, 4294901760
      %v2714 = vsub.f32 %v339, %v2713
      %2715 = vmatpush.msra.mxu0 %v2714
      %v2716 = vand.u32 %v327, 4294901760
      %v2717 = vsub.f32 %v327, %v2716
      %2718 = vmatpush.msra.mxu0 %v2717
      %v2719 = vand.u32 %v315, 4294901760
      %v2720 = vsub.f32 %v315, %v2719
      %2721 = vmatpush.msra.mxu0 %v2720
      %v2722 = vand.u32 %v303, 4294901760
      %v2723 = vsub.f32 %v303, %v2722
      %2724 = vmatpush.msra.mxu0 %v2723
      %v2725 = vand.u32 %v291, 4294901760
      %v2726 = vsub.f32 %v291, %v2725
      %2727 = vmatpush.msra.mxu0 %v2726
      %v2728 = vand.u32 %v279, 4294901760
      %v2729 = vsub.f32 %v279, %v2728
      %2730 = vmatpush.msra.mxu0 %v2729
      %v2731 = vand.u32 %v267, 4294901760
      %v2732 = vsub.f32 %v267, %v2731
      %2733 = vmatpush.msra.mxu0 %v2732
      %v2734 = vand.u32 %v255, 4294901760
      %v2735 = vsub.f32 %v255, %v2734
      %2736 = vmatpush.msra.mxu0 %v2735
      %v2737 = vand.u32 %v243, 4294901760
      %v2738 = vsub.f32 %v243, %v2737
      %2739 = vmatpush.msra.mxu0 %v2738
      %v2740 = vand.u32 %v231, 4294901760
      %v2741 = vsub.f32 %v231, %v2740
      %2742 = vmatpush.msra.mxu0 %v2741
      %v2743 = vand.u32 %v198, 4294901760
      %v2744 = vsub.f32 %v198, %v2743
      %2745 = vmatmul.f32.gmra.mxu0 %v2744
      %v2746 = vpop.f32.mrf.mxu0
      %v2747 = vadd.f32 %v2689, %v2746
      %v2748 = vand.u32 %v200, 4294901760
      %v2749 = vsub.f32 %v200, %v2748
      %2750 = vmatmul.f32.gmra.mxu0 %v2749
      %v2751 = vpop.f32.mrf.mxu0
      %v2752 = vadd.f32 %v2693, %v2751
      %2753 = vdwg.mxu0
      %v2754 = vand.u32 %v411, 4294901760
      %2755 = vmatpush.msra.mxu0 %v2754
      %v2756 = vand.u32 %v399, 4294901760
      %2757 = vmatpush.msra.mxu0 %v2756
      %v2758 = vand.u32 %v387, 4294901760
      %2759 = vmatpush.msra.mxu0 %v2758
      %v2760 = vand.u32 %v375, 4294901760
      %2761 = vmatpush.msra.mxu0 %v2760
      %v2762 = vand.u32 %v363, 4294901760
      %2763 = vmatpush.msra.mxu0 %v2762
      %v2764 = vand.u32 %v351, 4294901760
      %2765 = vmatpush.msra.mxu0 %v2764
      %v2766 = vand.u32 %v339, 4294901760
      %2767 = vmatpush.msra.mxu0 %v2766
      %v2768 = vand.u32 %v327, 4294901760
      %2769 = vmatpush.msra.mxu0 %v2768
      %v2770 = vand.u32 %v315, 4294901760
      %2771 = vmatpush.msra.mxu0 %v2770
      %v2772 = vand.u32 %v303, 4294901760
      %2773 = vmatpush.msra.mxu0 %v2772
      %v2774 = vand.u32 %v291, 4294901760
      %2775 = vmatpush.msra.mxu0 %v2774
      %v2776 = vand.u32 %v279, 4294901760
      %2777 = vmatpush.msra.mxu0 %v2776
      %v2778 = vand.u32 %v267, 4294901760
      %2779 = vmatpush.msra.mxu0 %v2778
      %v2780 = vand.u32 %v255, 4294901760
      %2781 = vmatpush.msra.mxu0 %v2780
      %v2782 = vand.u32 %v243, 4294901760
      %2783 = vmatpush.msra.mxu0 %v2782
      %v2784 = vand.u32 %v231, 4294901760
      %2785 = vmatpush.msra.mxu0 %v2784
      %v2786 = vand.u32 %v198, 4294901760
      %v2787 = vsub.f32 %v198, %v2786
      %v2788 = vand.u32 %v2787, 4294901760
      %2789 = vmatmul.f32.gmra.mxu0 %v2788
      %v2790 = vpop.f32.mrf.mxu0
      %v2791 = vadd.f32 %v2747, %v2790
      %v2792 = vand.u32 %v200, 4294901760
      %v2793 = vsub.f32 %v200, %v2792
      %v2794 = vand.u32 %v2793, 4294901760
      %2795 = vmatmul.f32.gmra.mxu0 %v2794
      %v2796 = vpop.f32.mrf.mxu0
      %v2797 = vadd.f32 %v2752, %v2796
      %2798 = vdwg.mxu0
      %v2799 = vand.u32 %v411, 4294901760
      %v2800 = vsub.f32 %v411, %v2799
      %v2801 = vand.u32 %v2800, 4294901760
      %2802 = vmatpush.msra.mxu0 %v2801
      %v2803 = vand.u32 %v399, 4294901760
      %v2804 = vsub.f32 %v399, %v2803
      %v2805 = vand.u32 %v2804, 4294901760
      %2806 = vmatpush.msra.mxu0 %v2805
      %v2807 = vand.u32 %v387, 4294901760
      %v2808 = vsub.f32 %v387, %v2807
      %v2809 = vand.u32 %v2808, 4294901760
      %2810 = vmatpush.msra.mxu0 %v2809
      %v2811 = vand.u32 %v375, 4294901760
      %v2812 = vsub.f32 %v375, %v2811
      %v2813 = vand.u32 %v2812, 4294901760
      %2814 = vmatpush.msra.mxu0 %v2813
      %v2815 = vand.u32 %v363, 4294901760
      %v2816 = vsub.f32 %v363, %v2815
      %v2817 = vand.u32 %v2816, 4294901760
      %2818 = vmatpush.msra.mxu0 %v2817
      %v2819 = vand.u32 %v351, 4294901760
      %v2820 = vsub.f32 %v351, %v2819
      %v2821 = vand.u32 %v2820, 4294901760
      %2822 = vmatpush.msra.mxu0 %v2821
      %v2823 = vand.u32 %v339, 4294901760
      %v2824 = vsub.f32 %v339, %v2823
      %v2825 = vand.u32 %v2824, 4294901760
      %2826 = vmatpush.msra.mxu0 %v2825
      %v2827 = vand.u32 %v327, 4294901760
      %v2828 = vsub.f32 %v327, %v2827
      %v2829 = vand.u32 %v2828, 4294901760
      %2830 = vmatpush.msra.mxu0 %v2829
      %v2831 = vand.u32 %v315, 4294901760
      %v2832 = vsub.f32 %v315, %v2831
      %v2833 = vand.u32 %v2832, 4294901760
      %2834 = vmatpush.msra.mxu0 %v2833
      %v2835 = vand.u32 %v303, 4294901760
      %v2836 = vsub.f32 %v303, %v2835
      %v2837 = vand.u32 %v2836, 4294901760
      %2838 = vmatpush.msra.mxu0 %v2837
      %v2839 = vand.u32 %v291, 4294901760
      %v2840 = vsub.f32 %v291, %v2839
      %v2841 = vand.u32 %v2840, 4294901760
      %2842 = vmatpush.msra.mxu0 %v2841
      %v2843 = vand.u32 %v279, 4294901760
      %v2844 = vsub.f32 %v279, %v2843
      %v2845 = vand.u32 %v2844, 4294901760
      %2846 = vmatpush.msra.mxu0 %v2845
      %v2847 = vand.u32 %v267, 4294901760
      %v2848 = vsub.f32 %v267, %v2847
      %v2849 = vand.u32 %v2848, 4294901760
      %2850 = vmatpush.msra.mxu0 %v2849
      %v2851 = vand.u32 %v255, 4294901760
      %v2852 = vsub.f32 %v255, %v2851
      %v2853 = vand.u32 %v2852, 4294901760
      %2854 = vmatpush.msra.mxu0 %v2853
      %v2855 = vand.u32 %v243, 4294901760
      %v2856 = vsub.f32 %v243, %v2855
      %v2857 = vand.u32 %v2856, 4294901760
      %2858 = vmatpush.msra.mxu0 %v2857
      %v2859 = vand.u32 %v231, 4294901760
      %v2860 = vsub.f32 %v231, %v2859
      %v2861 = vand.u32 %v2860, 4294901760
      %2862 = vmatpush.msra.mxu0 %v2861
      %v2863 = vand.u32 %v198, 4294901760
      %2864 = vmatmul.f32.gmra.mxu0 %v2863
      %v2865 = vpop.f32.mrf.mxu0
      %v2866 = vadd.f32 %v2791, %v2865
      %v2867 = vand.u32 %v200, 4294901760
      %2868 = vmatmul.f32.gmra.mxu0 %v2867
      %v2869 = vpop.f32.mrf.mxu0
      %v2870 = vadd.f32 %v2797, %v2869
      %2871 = vdwg.mxu0
      %v2872 = vand.u32 %v411, 4294901760
      %2873 = vmatpush.msra.mxu0 %v2872
      %v2874 = vand.u32 %v399, 4294901760
      %2875 = vmatpush.msra.mxu0 %v2874
      %v2876 = vand.u32 %v387, 4294901760
      %2877 = vmatpush.msra.mxu0 %v2876
      %v2878 = vand.u32 %v375, 4294901760
      %2879 = vmatpush.msra.mxu0 %v2878
      %v2880 = vand.u32 %v363, 4294901760
      %2881 = vmatpush.msra.mxu0 %v2880
      %v2882 = vand.u32 %v351, 4294901760
      %2883 = vmatpush.msra.mxu0 %v2882
      %v2884 = vand.u32 %v339, 4294901760
      %2885 = vmatpush.msra.mxu0 %v2884
      %v2886 = vand.u32 %v327, 4294901760
      %2887 = vmatpush.msra.mxu0 %v2886
      %v2888 = vand.u32 %v315, 4294901760
      %2889 = vmatpush.msra.mxu0 %v2888
      %v2890 = vand.u32 %v303, 4294901760
      %2891 = vmatpush.msra.mxu0 %v2890
      %v2892 = vand.u32 %v291, 4294901760
      %2893 = vmatpush.msra.mxu0 %v2892
      %v2894 = vand.u32 %v279, 4294901760
      %2895 = vmatpush.msra.mxu0 %v2894
      %v2896 = vand.u32 %v267, 4294901760
      %2897 = vmatpush.msra.mxu0 %v2896
      %v2898 = vand.u32 %v255, 4294901760
      %2899 = vmatpush.msra.mxu0 %v2898
      %v2900 = vand.u32 %v243, 4294901760
      %2901 = vmatpush.msra.mxu0 %v2900
      %v2902 = vand.u32 %v231, 4294901760
      %2903 = vmatpush.msra.mxu0 %v2902
      %v2904 = vand.u32 %v198, 4294901760
      %2905 = vmatmul.f32.gmra.mxu0 %v2904
      %v2906 = vpop.f32.mrf.mxu0
      %v2907 = vadd.f32 %v2866, %v2906
      %v2908 = vand.u32 %v200, 4294901760
      %2909 = vmatmul.f32.gmra.mxu0 %v2908
      %v2910 = vpop.f32.mrf.mxu0
      %v2911 = vadd.f32 %v2870, %v2910
      %2912 = vdwg.mxu0
      %2913 = vmatpush.msra.mxu0 0.0
      %2914 = vmatpush.msra.mxu0 0.0
      %2915 = vmatpush.msra.mxu0 0.0
      %2916 = vmatpush.msra.mxu0 0.0
      %2917 = vmatpush.msra.mxu0 0.0
      %2918 = vmatpush.msra.mxu0 0.0
      %2919 = vmatpush.msra.mxu0 0.0
      %v2920 = vand.u32 %v556, 4294901760
      %2921 = vmatpush.msra.mxu0 %v2920
      %v2922 = vand.u32 %v507, 4294901760
      %2923 = vmatpush.msra.mxu0 %v2922
      %v2924 = vand.u32 %v495, 4294901760
      %2925 = vmatpush.msra.mxu0 %v2924
      %v2926 = vand.u32 %v483, 4294901760
      %2927 = vmatpush.msra.mxu0 %v2926
      %v2928 = vand.u32 %v471, 4294901760
      %2929 = vmatpush.msra.mxu0 %v2928
      %v2930 = vand.u32 %v459, 4294901760
      %2931 = vmatpush.msra.mxu0 %v2930
      %v2932 = vand.u32 %v447, 4294901760
      %2933 = vmatpush.msra.mxu0 %v2932
      %v2934 = vand.u32 %v435, 4294901760
      %2935 = vmatpush.msra.mxu0 %v2934
      %v2936 = vand.u32 %v423, 4294901760
      %2937 = vmatpush.msra.mxu0 %v2936
      %v2938 = vand.u32 %v540, 4294901760
      %v2939 = vsub.f32 %v540, %v2938
      %v2940 = vand.u32 %v2939, 4294901760
      %v2941 = vsub.f32 %v2939, %v2940
      %v2942 = vand.u32 %v2941, 4294901760
      %2943 = vmatmul.f32.gmra.mxu0 %v2942
      %v2944 = vpop.f32.mrf.mxu0
      %v2945 = vadd.f32 %v2907, %v2944
      %v2946 = vand.u32 %v543, 4294901760
      %v2947 = vsub.f32 %v543, %v2946
      %v2948 = vand.u32 %v2947, 4294901760
      %v2949 = vsub.f32 %v2947, %v2948
      %v2950 = vand.u32 %v2949, 4294901760
      %2951 = vmatmul.f32.gmra.mxu0 %v2950
      %v2952 = vpop.f32.mrf.mxu0
      %v2953 = vadd.f32 %v2911, %v2952
      %2954 = vdwg.mxu0
      %2955 = vmatpush.msra.mxu0 0.0
      %2956 = vmatpush.msra.mxu0 0.0
      %2957 = vmatpush.msra.mxu0 0.0
      %2958 = vmatpush.msra.mxu0 0.0
      %2959 = vmatpush.msra.mxu0 0.0
      %2960 = vmatpush.msra.mxu0 0.0
      %2961 = vmatpush.msra.mxu0 0.0
      %v2962 = vand.u32 %v556, 4294901760
      %v2963 = vsub.f32 %v556, %v2962
      %v2964 = vand.u32 %v2963, 4294901760
      %v2965 = vsub.f32 %v2963, %v2964
      %v2966 = vand.u32 %v2965, 4294901760
      %2967 = vmatpush.msra.mxu0 %v2966
      %v2968 = vand.u32 %v507, 4294901760
      %v2969 = vsub.f32 %v507, %v2968
      %v2970 = vand.u32 %v2969, 4294901760
      %v2971 = vsub.f32 %v2969, %v2970
      %v2972 = vand.u32 %v2971, 4294901760
      %2973 = vmatpush.msra.mxu0 %v2972
      %v2974 = vand.u32 %v495, 4294901760
      %v2975 = vsub.f32 %v495, %v2974
      %v2976 = vand.u32 %v2975, 4294901760
      %v2977 = vsub.f32 %v2975, %v2976
      %v2978 = vand.u32 %v2977, 4294901760
      %2979 = vmatpush.msra.mxu0 %v2978
      %v2980 = vand.u32 %v483, 4294901760
      %v2981 = vsub.f32 %v483, %v2980
      %v2982 = vand.u32 %v2981, 4294901760
      %v2983 = vsub.f32 %v2981, %v2982
      %v2984 = vand.u32 %v2983, 4294901760
      %2985 = vmatpush.msra.mxu0 %v2984
      %v2986 = vand.u32 %v471, 4294901760
      %v2987 = vsub.f32 %v471, %v2986
      %v2988 = vand.u32 %v2987, 4294901760
      %v2989 = vsub.f32 %v2987, %v2988
      %v2990 = vand.u32 %v2989, 4294901760
      %2991 = vmatpush.msra.mxu0 %v2990
      %v2992 = vand.u32 %v459, 4294901760
      %v2993 = vsub.f32 %v459, %v2992
      %v2994 = vand.u32 %v2993, 4294901760
      %v2995 = vsub.f32 %v2993, %v2994
      %v2996 = vand.u32 %v2995, 4294901760
      %2997 = vmatpush.msra.mxu0 %v2996
      %v2998 = vand.u32 %v447, 4294901760
      %v2999 = vsub.f32 %v447, %v2998
      %v3000 = vand.u32 %v2999, 4294901760
      %v3001 = vsub.f32 %v2999, %v3000
      %v3002 = vand.u32 %v3001, 4294901760
      %3003 = vmatpush.msra.mxu0 %v3002
      %v3004 = vand.u32 %v435, 4294901760
      %v3005 = vsub.f32 %v435, %v3004
      %v3006 = vand.u32 %v3005, 4294901760
      %v3007 = vsub.f32 %v3005, %v3006
      %v3008 = vand.u32 %v3007, 4294901760
      %3009 = vmatpush.msra.mxu0 %v3008
      %v3010 = vand.u32 %v423, 4294901760
      %v3011 = vsub.f32 %v423, %v3010
      %v3012 = vand.u32 %v3011, 4294901760
      %v3013 = vsub.f32 %v3011, %v3012
      %v3014 = vand.u32 %v3013, 4294901760
      %3015 = vmatpush.msra.mxu0 %v3014
      %v3016 = vand.u32 %v540, 4294901760
      %3017 = vmatmul.f32.gmra.mxu0 %v3016
      %v3018 = vpop.f32.mrf.mxu0
      %v3019 = vadd.f32 %v2945, %v3018
      %v3020 = vand.u32 %v543, 4294901760
      %3021 = vmatmul.f32.gmra.mxu0 %v3020
      %v3022 = vpop.f32.mrf.mxu0
      %v3023 = vadd.f32 %v2953, %v3022
      %3024 = vdwg.mxu0
      %3025 = vmatpush.msra.mxu0 0.0
      %3026 = vmatpush.msra.mxu0 0.0
      %3027 = vmatpush.msra.mxu0 0.0
      %3028 = vmatpush.msra.mxu0 0.0
      %3029 = vmatpush.msra.mxu0 0.0
      %3030 = vmatpush.msra.mxu0 0.0
      %3031 = vmatpush.msra.mxu0 0.0
      %v3032 = vand.u32 %v556, 4294901760
      %v3033 = vsub.f32 %v556, %v3032
      %3034 = vmatpush.msra.mxu0 %v3033
      %v3035 = vand.u32 %v507, 4294901760
      %v3036 = vsub.f32 %v507, %v3035
      %3037 = vmatpush.msra.mxu0 %v3036
      %v3038 = vand.u32 %v495, 4294901760
      %v3039 = vsub.f32 %v495, %v3038
      %3040 = vmatpush.msra.mxu0 %v3039
      %v3041 = vand.u32 %v483, 4294901760
      %v3042 = vsub.f32 %v483, %v3041
      %3043 = vmatpush.msra.mxu0 %v3042
      %v3044 = vand.u32 %v471, 4294901760
      %v3045 = vsub.f32 %v471, %v3044
      %3046 = vmatpush.msra.mxu0 %v3045
      %v3047 = vand.u32 %v459, 4294901760
      %v3048 = vsub.f32 %v459, %v3047
      %3049 = vmatpush.msra.mxu0 %v3048
      %v3050 = vand.u32 %v447, 4294901760
      %v3051 = vsub.f32 %v447, %v3050
      %3052 = vmatpush.msra.mxu0 %v3051
      %v3053 = vand.u32 %v435, 4294901760
      %v3054 = vsub.f32 %v435, %v3053
      %3055 = vmatpush.msra.mxu0 %v3054
      %v3056 = vand.u32 %v423, 4294901760
      %v3057 = vsub.f32 %v423, %v3056
      %3058 = vmatpush.msra.mxu0 %v3057
      %v3059 = vand.u32 %v540, 4294901760
      %v3060 = vsub.f32 %v540, %v3059
      %3061 = vmatmul.f32.gmra.mxu0 %v3060
      %v3062 = vpop.f32.mrf.mxu0
      %v3063 = vadd.f32 %v3019, %v3062
      %v3064 = vand.u32 %v543, 4294901760
      %v3065 = vsub.f32 %v543, %v3064
      %3066 = vmatmul.f32.gmra.mxu0 %v3065
      %v3067 = vpop.f32.mrf.mxu0
      %v3068 = vadd.f32 %v3023, %v3067
      %3069 = vdwg.mxu0
      %3070 = vmatpush.msra.mxu0 0.0
      %3071 = vmatpush.msra.mxu0 0.0
      %3072 = vmatpush.msra.mxu0 0.0
      %3073 = vmatpush.msra.mxu0 0.0
      %3074 = vmatpush.msra.mxu0 0.0
      %3075 = vmatpush.msra.mxu0 0.0
      %3076 = vmatpush.msra.mxu0 0.0
      %v3077 = vand.u32 %v556, 4294901760
      %3078 = vmatpush.msra.mxu0 %v3077
      %v3079 = vand.u32 %v507, 4294901760
      %3080 = vmatpush.msra.mxu0 %v3079
      %v3081 = vand.u32 %v495, 4294901760
      %3082 = vmatpush.msra.mxu0 %v3081
      %v3083 = vand.u32 %v483, 4294901760
      %3084 = vmatpush.msra.mxu0 %v3083
      %v3085 = vand.u32 %v471, 4294901760
      %3086 = vmatpush.msra.mxu0 %v3085
      %v3087 = vand.u32 %v459, 4294901760
      %3088 = vmatpush.msra.mxu0 %v3087
      %v3089 = vand.u32 %v447, 4294901760
      %3090 = vmatpush.msra.mxu0 %v3089
      %v3091 = vand.u32 %v435, 4294901760
      %3092 = vmatpush.msra.mxu0 %v3091
      %v3093 = vand.u32 %v423, 4294901760
      %3094 = vmatpush.msra.mxu0 %v3093
      %v3095 = vand.u32 %v540, 4294901760
      %v3096 = vsub.f32 %v540, %v3095
      %v3097 = vand.u32 %v3096, 4294901760
      %3098 = vmatmul.f32.gmra.mxu0 %v3097
      %v3099 = vpop.f32.mrf.mxu0
      %v3100 = vadd.f32 %v3063, %v3099
      %v3101 = vand.u32 %v543, 4294901760
      %v3102 = vsub.f32 %v543, %v3101
      %v3103 = vand.u32 %v3102, 4294901760
      %3104 = vmatmul.f32.gmra.mxu0 %v3103
      %v3105 = vpop.f32.mrf.mxu0
      %v3106 = vadd.f32 %v3068, %v3105
      %3107 = vdwg.mxu0
      %3108 = vmatpush.msra.mxu0 0.0
      %3109 = vmatpush.msra.mxu0 0.0
      %3110 = vmatpush.msra.mxu0 0.0
      %3111 = vmatpush.msra.mxu0 0.0
      %3112 = vmatpush.msra.mxu0 0.0
      %3113 = vmatpush.msra.mxu0 0.0
      %3114 = vmatpush.msra.mxu0 0.0
      %v3115 = vand.u32 %v556, 4294901760
      %v3116 = vsub.f32 %v556, %v3115
      %v3117 = vand.u32 %v3116, 4294901760
      %3118 = vmatpush.msra.mxu0 %v3117
      %v3119 = vand.u32 %v507, 4294901760
      %v3120 = vsub.f32 %v507, %v3119
      %v3121 = vand.u32 %v3120, 4294901760
      %3122 = vmatpush.msra.mxu0 %v3121
      %v3123 = vand.u32 %v495, 4294901760
      %v3124 = vsub.f32 %v495, %v3123
      %v3125 = vand.u32 %v3124, 4294901760
      %3126 = vmatpush.msra.mxu0 %v3125
      %v3127 = vand.u32 %v483, 4294901760
      %v3128 = vsub.f32 %v483, %v3127
      %v3129 = vand.u32 %v3128, 4294901760
      %3130 = vmatpush.msra.mxu0 %v3129
      %v3131 = vand.u32 %v471, 4294901760
      %v3132 = vsub.f32 %v471, %v3131
      %v3133 = vand.u32 %v3132, 4294901760
      %3134 = vmatpush.msra.mxu0 %v3133
      %v3135 = vand.u32 %v459, 4294901760
      %v3136 = vsub.f32 %v459, %v3135
      %v3137 = vand.u32 %v3136, 4294901760
      %3138 = vmatpush.msra.mxu0 %v3137
      %v3139 = vand.u32 %v447, 4294901760
      %v3140 = vsub.f32 %v447, %v3139
      %v3141 = vand.u32 %v3140, 4294901760
      %3142 = vmatpush.msra.mxu0 %v3141
      %v3143 = vand.u32 %v435, 4294901760
      %v3144 = vsub.f32 %v435, %v3143
      %v3145 = vand.u32 %v3144, 4294901760
      %3146 = vmatpush.msra.mxu0 %v3145
      %v3147 = vand.u32 %v423, 4294901760
      %v3148 = vsub.f32 %v423, %v3147
      %v3149 = vand.u32 %v3148, 4294901760
      %3150 = vmatpush.msra.mxu0 %v3149
      %v3151 = vand.u32 %v540, 4294901760
      %3152 = vmatmul.f32.gmra.mxu0 %v3151
      %v3153 = vpop.f32.mrf.mxu0
      %v3154 = vadd.f32 %v3100, %v3153
      %v3155 = vand.u32 %v543, 4294901760
      %3156 = vmatmul.f32.gmra.mxu0 %v3155
      %v3157 = vpop.f32.mrf.mxu0
      %v3158 = vadd.f32 %v3106, %v3157
      %3159 = vdwg.mxu0
      %3160 = vmatpush.msra.mxu0 0.0
      %3161 = vmatpush.msra.mxu0 0.0
      %3162 = vmatpush.msra.mxu0 0.0
      %3163 = vmatpush.msra.mxu0 0.0
      %3164 = vmatpush.msra.mxu0 0.0
      %3165 = vmatpush.msra.mxu0 0.0
      %3166 = vmatpush.msra.mxu0 0.0
      %v3167 = vand.u32 %v556, 4294901760
      %3168 = vmatpush.msra.mxu0 %v3167
      %v3169 = vand.u32 %v507, 4294901760
      %3170 = vmatpush.msra.mxu0 %v3169
      %v3171 = vand.u32 %v495, 4294901760
      %3172 = vmatpush.msra.mxu0 %v3171
      %v3173 = vand.u32 %v483, 4294901760
      %3174 = vmatpush.msra.mxu0 %v3173
      %v3175 = vand.u32 %v471, 4294901760
      %3176 = vmatpush.msra.mxu0 %v3175
      %v3177 = vand.u32 %v459, 4294901760
      %3178 = vmatpush.msra.mxu0 %v3177
      %v3179 = vand.u32 %v447, 4294901760
      %3180 = vmatpush.msra.mxu0 %v3179
      %v3181 = vand.u32 %v435, 4294901760
      %3182 = vmatpush.msra.mxu0 %v3181
      %v3183 = vand.u32 %v423, 4294901760
      %3184 = vmatpush.msra.mxu0 %v3183
      %v3185 = vand.u32 %v540, 4294901760
      %3186 = vmatmul.f32.gmra.mxu0 %v3185
      %v3187 = vpop.f32.mrf.mxu0
      %v3188 = vadd.f32 %v3154, %v3187
      %v3189 = vand.u32 %v543, 4294901760
      %3190 = vmatmul.f32.gmra.mxu0 %v3189
      %v3191 = vpop.f32.mrf.mxu0
      %v3192 = vadd.f32 %v3158, %v3191
      %3193 = vdwg.mxu0
      %v3194 = vand.u32 %v412, 4294901760
      %3195 = vmatpush.msra.mxu0 %v3194
      %v3196 = vand.u32 %v400, 4294901760
      %3197 = vmatpush.msra.mxu0 %v3196
      %v3198 = vand.u32 %v388, 4294901760
      %3199 = vmatpush.msra.mxu0 %v3198
      %v3200 = vand.u32 %v376, 4294901760
      %3201 = vmatpush.msra.mxu0 %v3200
      %v3202 = vand.u32 %v364, 4294901760
      %3203 = vmatpush.msra.mxu0 %v3202
      %v3204 = vand.u32 %v352, 4294901760
      %3205 = vmatpush.msra.mxu0 %v3204
      %v3206 = vand.u32 %v340, 4294901760
      %3207 = vmatpush.msra.mxu0 %v3206
      %v3208 = vand.u32 %v328, 4294901760
      %3209 = vmatpush.msra.mxu0 %v3208
      %v3210 = vand.u32 %v316, 4294901760
      %3211 = vmatpush.msra.mxu0 %v3210
      %v3212 = vand.u32 %v304, 4294901760
      %3213 = vmatpush.msra.mxu0 %v3212
      %v3214 = vand.u32 %v292, 4294901760
      %3215 = vmatpush.msra.mxu0 %v3214
      %v3216 = vand.u32 %v280, 4294901760
      %3217 = vmatpush.msra.mxu0 %v3216
      %v3218 = vand.u32 %v268, 4294901760
      %3219 = vmatpush.msra.mxu0 %v3218
      %v3220 = vand.u32 %v256, 4294901760
      %3221 = vmatpush.msra.mxu0 %v3220
      %v3222 = vand.u32 %v244, 4294901760
      %3223 = vmatpush.msra.mxu0 %v3222
      %v3224 = vand.u32 %v232, 4294901760
      %3225 = vmatpush.msra.mxu0 %v3224
      %v3226 = vand.u32 %v198, 4294901760
      %v3227 = vsub.f32 %v198, %v3226
      %v3228 = vand.u32 %v3227, 4294901760
      %v3229 = vsub.f32 %v3227, %v3228
      %v3230 = vand.u32 %v3229, 4294901760
      %3231 = vmatmul.f32.gmra.mxu0 %v3230
      %v3232 = vpop.f32.mrf.mxu0
      %v3233 = vadd.f32 %v531, %v3232
      %v3234 = vand.u32 %v200, 4294901760
      %v3235 = vsub.f32 %v200, %v3234
      %v3236 = vand.u32 %v3235, 4294901760
      %v3237 = vsub.f32 %v3235, %v3236
      %v3238 = vand.u32 %v3237, 4294901760
      %3239 = vmatmul.f32.gmra.mxu0 %v3238
      %v3240 = vpop.f32.mrf.mxu0
      %v3241 = vadd.f32 %v536, %v3240
      %3242 = vdwg.mxu0
      %v3243 = vand.u32 %v412, 4294901760
      %v3244 = vsub.f32 %v412, %v3243
      %v3245 = vand.u32 %v3244, 4294901760
      %v3246 = vsub.f32 %v3244, %v3245
      %v3247 = vand.u32 %v3246, 4294901760
      %3248 = vmatpush.msra.mxu0 %v3247
      %v3249 = vand.u32 %v400, 4294901760
      %v3250 = vsub.f32 %v400, %v3249
      %v3251 = vand.u32 %v3250, 4294901760
      %v3252 = vsub.f32 %v3250, %v3251
      %v3253 = vand.u32 %v3252, 4294901760
      %3254 = vmatpush.msra.mxu0 %v3253
      %v3255 = vand.u32 %v388, 4294901760
      %v3256 = vsub.f32 %v388, %v3255
      %v3257 = vand.u32 %v3256, 4294901760
      %v3258 = vsub.f32 %v3256, %v3257
      %v3259 = vand.u32 %v3258, 4294901760
      %3260 = vmatpush.msra.mxu0 %v3259
      %v3261 = vand.u32 %v376, 4294901760
      %v3262 = vsub.f32 %v376, %v3261
      %v3263 = vand.u32 %v3262, 4294901760
      %v3264 = vsub.f32 %v3262, %v3263
      %v3265 = vand.u32 %v3264, 4294901760
      %3266 = vmatpush.msra.mxu0 %v3265
      %v3267 = vand.u32 %v364, 4294901760
      %v3268 = vsub.f32 %v364, %v3267
      %v3269 = vand.u32 %v3268, 4294901760
      %v3270 = vsub.f32 %v3268, %v3269
      %v3271 = vand.u32 %v3270, 4294901760
      %3272 = vmatpush.msra.mxu0 %v3271
      %v3273 = vand.u32 %v352, 4294901760
      %v3274 = vsub.f32 %v352, %v3273
      %v3275 = vand.u32 %v3274, 4294901760
      %v3276 = vsub.f32 %v3274, %v3275
      %v3277 = vand.u32 %v3276, 4294901760
      %3278 = vmatpush.msra.mxu0 %v3277
      %v3279 = vand.u32 %v340, 4294901760
      %v3280 = vsub.f32 %v340, %v3279
      %v3281 = vand.u32 %v3280, 4294901760
      %v3282 = vsub.f32 %v3280, %v3281
      %v3283 = vand.u32 %v3282, 4294901760
      %3284 = vmatpush.msra.mxu0 %v3283
      %v3285 = vand.u32 %v328, 4294901760
      %v3286 = vsub.f32 %v328, %v3285
      %v3287 = vand.u32 %v3286, 4294901760
      %v3288 = vsub.f32 %v3286, %v3287
      %v3289 = vand.u32 %v3288, 4294901760
      %3290 = vmatpush.msra.mxu0 %v3289
      %v3291 = vand.u32 %v316, 4294901760
      %v3292 = vsub.f32 %v316, %v3291
      %v3293 = vand.u32 %v3292, 4294901760
      %v3294 = vsub.f32 %v3292, %v3293
      %v3295 = vand.u32 %v3294, 4294901760
      %3296 = vmatpush.msra.mxu0 %v3295
      %v3297 = vand.u32 %v304, 4294901760
      %v3298 = vsub.f32 %v304, %v3297
      %v3299 = vand.u32 %v3298, 4294901760
      %v3300 = vsub.f32 %v3298, %v3299
      %v3301 = vand.u32 %v3300, 4294901760
      %3302 = vmatpush.msra.mxu0 %v3301
      %v3303 = vand.u32 %v292, 4294901760
      %v3304 = vsub.f32 %v292, %v3303
      %v3305 = vand.u32 %v3304, 4294901760
      %v3306 = vsub.f32 %v3304, %v3305
      %v3307 = vand.u32 %v3306, 4294901760
      %3308 = vmatpush.msra.mxu0 %v3307
      %v3309 = vand.u32 %v280, 4294901760
      %v3310 = vsub.f32 %v280, %v3309
      %v3311 = vand.u32 %v3310, 4294901760
      %v3312 = vsub.f32 %v3310, %v3311
      %v3313 = vand.u32 %v3312, 4294901760
      %3314 = vmatpush.msra.mxu0 %v3313
      %v3315 = vand.u32 %v268, 4294901760
      %v3316 = vsub.f32 %v268, %v3315
      %v3317 = vand.u32 %v3316, 4294901760
      %v3318 = vsub.f32 %v3316, %v3317
      %v3319 = vand.u32 %v3318, 4294901760
      %3320 = vmatpush.msra.mxu0 %v3319
      %v3321 = vand.u32 %v256, 4294901760
      %v3322 = vsub.f32 %v256, %v3321
      %v3323 = vand.u32 %v3322, 4294901760
      %v3324 = vsub.f32 %v3322, %v3323
      %v3325 = vand.u32 %v3324, 4294901760
      %3326 = vmatpush.msra.mxu0 %v3325
      %v3327 = vand.u32 %v244, 4294901760
      %v3328 = vsub.f32 %v244, %v3327
      %v3329 = vand.u32 %v3328, 4294901760
      %v3330 = vsub.f32 %v3328, %v3329
      %v3331 = vand.u32 %v3330, 4294901760
      %3332 = vmatpush.msra.mxu0 %v3331
      %v3333 = vand.u32 %v232, 4294901760
      %v3334 = vsub.f32 %v232, %v3333
      %v3335 = vand.u32 %v3334, 4294901760
      %v3336 = vsub.f32 %v3334, %v3335
      %v3337 = vand.u32 %v3336, 4294901760
      %3338 = vmatpush.msra.mxu0 %v3337
      %v3339 = vand.u32 %v198, 4294901760
      %3340 = vmatmul.f32.gmra.mxu0 %v3339
      %v3341 = vpop.f32.mrf.mxu0
      %v3342 = vadd.f32 %v3233, %v3341
      %v3343 = vand.u32 %v200, 4294901760
      %3344 = vmatmul.f32.gmra.mxu0 %v3343
      %v3345 = vpop.f32.mrf.mxu0
      %v3346 = vadd.f32 %v3241, %v3345
      %3347 = vdwg.mxu0
      %v3348 = vand.u32 %v412, 4294901760
      %v3349 = vsub.f32 %v412, %v3348
      %3350 = vmatpush.msra.mxu0 %v3349
      %v3351 = vand.u32 %v400, 4294901760
      %v3352 = vsub.f32 %v400, %v3351
      %3353 = vmatpush.msra.mxu0 %v3352
      %v3354 = vand.u32 %v388, 4294901760
      %v3355 = vsub.f32 %v388, %v3354
      %3356 = vmatpush.msra.mxu0 %v3355
      %v3357 = vand.u32 %v376, 4294901760
      %v3358 = vsub.f32 %v376, %v3357
      %3359 = vmatpush.msra.mxu0 %v3358
      %v3360 = vand.u32 %v364, 4294901760
      %v3361 = vsub.f32 %v364, %v3360
      %3362 = vmatpush.msra.mxu0 %v3361
      %v3363 = vand.u32 %v352, 4294901760
      %v3364 = vsub.f32 %v352, %v3363
      %3365 = vmatpush.msra.mxu0 %v3364
      %v3366 = vand.u32 %v340, 4294901760
      %v3367 = vsub.f32 %v340, %v3366
      %3368 = vmatpush.msra.mxu0 %v3367
      %v3369 = vand.u32 %v328, 4294901760
      %v3370 = vsub.f32 %v328, %v3369
      %3371 = vmatpush.msra.mxu0 %v3370
      %v3372 = vand.u32 %v316, 4294901760
      %v3373 = vsub.f32 %v316, %v3372
      %3374 = vmatpush.msra.mxu0 %v3373
      %v3375 = vand.u32 %v304, 4294901760
      %v3376 = vsub.f32 %v304, %v3375
      %3377 = vmatpush.msra.mxu0 %v3376
      %v3378 = vand.u32 %v292, 4294901760
      %v3379 = vsub.f32 %v292, %v3378
      %3380 = vmatpush.msra.mxu0 %v3379
      %v3381 = vand.u32 %v280, 4294901760
      %v3382 = vsub.f32 %v280, %v3381
      %3383 = vmatpush.msra.mxu0 %v3382
      %v3384 = vand.u32 %v268, 4294901760
      %v3385 = vsub.f32 %v268, %v3384
      %3386 = vmatpush.msra.mxu0 %v3385
      %v3387 = vand.u32 %v256, 4294901760
      %v3388 = vsub.f32 %v256, %v3387
      %3389 = vmatpush.msra.mxu0 %v3388
      %v3390 = vand.u32 %v244, 4294901760
      %v3391 = vsub.f32 %v244, %v3390
      %3392 = vmatpush.msra.mxu0 %v3391
      %v3393 = vand.u32 %v232, 4294901760
      %v3394 = vsub.f32 %v232, %v3393
      %3395 = vmatpush.msra.mxu0 %v3394
      %v3396 = vand.u32 %v198, 4294901760
      %v3397 = vsub.f32 %v198, %v3396
      %3398 = vmatmul.f32.gmra.mxu0 %v3397
      %v3399 = vpop.f32.mrf.mxu0
      %v3400 = vadd.f32 %v3342, %v3399
      %v3401 = vand.u32 %v200, 4294901760
      %v3402 = vsub.f32 %v200, %v3401
      %3403 = vmatmul.f32.gmra.mxu0 %v3402
      %v3404 = vpop.f32.mrf.mxu0
      %v3405 = vadd.f32 %v3346, %v3404
      %3406 = vdwg.mxu0
      %v3407 = vand.u32 %v412, 4294901760
      %3408 = vmatpush.msra.mxu0 %v3407
      %v3409 = vand.u32 %v400, 4294901760
      %3410 = vmatpush.msra.mxu0 %v3409
      %v3411 = vand.u32 %v388, 4294901760
      %3412 = vmatpush.msra.mxu0 %v3411
      %v3413 = vand.u32 %v376, 4294901760
      %3414 = vmatpush.msra.mxu0 %v3413
      %v3415 = vand.u32 %v364, 4294901760
      %3416 = vmatpush.msra.mxu0 %v3415
      %v3417 = vand.u32 %v352, 4294901760
      %3418 = vmatpush.msra.mxu0 %v3417
      %v3419 = vand.u32 %v340, 4294901760
      %3420 = vmatpush.msra.mxu0 %v3419
      %v3421 = vand.u32 %v328, 4294901760
      %3422 = vmatpush.msra.mxu0 %v3421
      %v3423 = vand.u32 %v316, 4294901760
      %3424 = vmatpush.msra.mxu0 %v3423
      %v3425 = vand.u32 %v304, 4294901760
      %3426 = vmatpush.msra.mxu0 %v3425
      %v3427 = vand.u32 %v292, 4294901760
      %3428 = vmatpush.msra.mxu0 %v3427
      %v3429 = vand.u32 %v280, 4294901760
      %3430 = vmatpush.msra.mxu0 %v3429
      %v3431 = vand.u32 %v268, 4294901760
      %3432 = vmatpush.msra.mxu0 %v3431
      %v3433 = vand.u32 %v256, 4294901760
      %3434 = vmatpush.msra.mxu0 %v3433
      %v3435 = vand.u32 %v244, 4294901760
      %3436 = vmatpush.msra.mxu0 %v3435
      %v3437 = vand.u32 %v232, 4294901760
      %3438 = vmatpush.msra.mxu0 %v3437
      %v3439 = vand.u32 %v198, 4294901760
      %v3440 = vsub.f32 %v198, %v3439
      %v3441 = vand.u32 %v3440, 4294901760
      %3442 = vmatmul.f32.gmra.mxu0 %v3441
      %v3443 = vpop.f32.mrf.mxu0
      %v3444 = vadd.f32 %v3400, %v3443
      %v3445 = vand.u32 %v200, 4294901760
      %v3446 = vsub.f32 %v200, %v3445
      %v3447 = vand.u32 %v3446, 4294901760
      %3448 = vmatmul.f32.gmra.mxu0 %v3447
      %v3449 = vpop.f32.mrf.mxu0
      %v3450 = vadd.f32 %v3405, %v3449
      %3451 = vdwg.mxu0
      %v3452 = vand.u32 %v412, 4294901760
      %v3453 = vsub.f32 %v412, %v3452
      %v3454 = vand.u32 %v3453, 4294901760
      %3455 = vmatpush.msra.mxu0 %v3454
      %v3456 = vand.u32 %v400, 4294901760
      %v3457 = vsub.f32 %v400, %v3456
      %v3458 = vand.u32 %v3457, 4294901760
      %3459 = vmatpush.msra.mxu0 %v3458
      %v3460 = vand.u32 %v388, 4294901760
      %v3461 = vsub.f32 %v388, %v3460
      %v3462 = vand.u32 %v3461, 4294901760
      %3463 = vmatpush.msra.mxu0 %v3462
      %v3464 = vand.u32 %v376, 4294901760
      %v3465 = vsub.f32 %v376, %v3464
      %v3466 = vand.u32 %v3465, 4294901760
      %3467 = vmatpush.msra.mxu0 %v3466
      %v3468 = vand.u32 %v364, 4294901760
      %v3469 = vsub.f32 %v364, %v3468
      %v3470 = vand.u32 %v3469, 4294901760
      %3471 = vmatpush.msra.mxu0 %v3470
      %v3472 = vand.u32 %v352, 4294901760
      %v3473 = vsub.f32 %v352, %v3472
      %v3474 = vand.u32 %v3473, 4294901760
      %3475 = vmatpush.msra.mxu0 %v3474
      %v3476 = vand.u32 %v340, 4294901760
      %v3477 = vsub.f32 %v340, %v3476
      %v3478 = vand.u32 %v3477, 4294901760
      %3479 = vmatpush.msra.mxu0 %v3478
      %v3480 = vand.u32 %v328, 4294901760
      %v3481 = vsub.f32 %v328, %v3480
      %v3482 = vand.u32 %v3481, 4294901760
      %3483 = vmatpush.msra.mxu0 %v3482
      %v3484 = vand.u32 %v316, 4294901760
      %v3485 = vsub.f32 %v316, %v3484
      %v3486 = vand.u32 %v3485, 4294901760
      %3487 = vmatpush.msra.mxu0 %v3486
      %v3488 = vand.u32 %v304, 4294901760
      %v3489 = vsub.f32 %v304, %v3488
      %v3490 = vand.u32 %v3489, 4294901760
      %3491 = vmatpush.msra.mxu0 %v3490
      %v3492 = vand.u32 %v292, 4294901760
      %v3493 = vsub.f32 %v292, %v3492
      %v3494 = vand.u32 %v3493, 4294901760
      %3495 = vmatpush.msra.mxu0 %v3494
      %v3496 = vand.u32 %v280, 4294901760
      %v3497 = vsub.f32 %v280, %v3496
      %v3498 = vand.u32 %v3497, 4294901760
      %3499 = vmatpush.msra.mxu0 %v3498
      %v3500 = vand.u32 %v268, 4294901760
      %v3501 = vsub.f32 %v268, %v3500
      %v3502 = vand.u32 %v3501, 4294901760
      %3503 = vmatpush.msra.mxu0 %v3502
      %v3504 = vand.u32 %v256, 4294901760
      %v3505 = vsub.f32 %v256, %v3504
      %v3506 = vand.u32 %v3505, 4294901760
      %3507 = vmatpush.msra.mxu0 %v3506
      %v3508 = vand.u32 %v244, 4294901760
      %v3509 = vsub.f32 %v244, %v3508
      %v3510 = vand.u32 %v3509, 4294901760
      %3511 = vmatpush.msra.mxu0 %v3510
      %v3512 = vand.u32 %v232, 4294901760
      %v3513 = vsub.f32 %v232, %v3512
      %v3514 = vand.u32 %v3513, 4294901760
      %3515 = vmatpush.msra.mxu0 %v3514
      %v3516 = vand.u32 %v198, 4294901760
      %3517 = vmatmul.f32.gmra.mxu0 %v3516
      %v3518 = vpop.f32.mrf.mxu0
      %v3519 = vadd.f32 %v3444, %v3518
      %v3520 = vand.u32 %v200, 4294901760
      %3521 = vmatmul.f32.gmra.mxu0 %v3520
      %v3522 = vpop.f32.mrf.mxu0
      %v3523 = vadd.f32 %v3450, %v3522
      %3524 = vdwg.mxu0
      %v3525 = vand.u32 %v412, 4294901760
      %3526 = vmatpush.msra.mxu0 %v3525
      %v3527 = vand.u32 %v400, 4294901760
      %3528 = vmatpush.msra.mxu0 %v3527
      %v3529 = vand.u32 %v388, 4294901760
      %3530 = vmatpush.msra.mxu0 %v3529
      %v3531 = vand.u32 %v376, 4294901760
      %3532 = vmatpush.msra.mxu0 %v3531
      %v3533 = vand.u32 %v364, 4294901760
      %3534 = vmatpush.msra.mxu0 %v3533
      %v3535 = vand.u32 %v352, 4294901760
      %3536 = vmatpush.msra.mxu0 %v3535
      %v3537 = vand.u32 %v340, 4294901760
      %3538 = vmatpush.msra.mxu0 %v3537
      %v3539 = vand.u32 %v328, 4294901760
      %3540 = vmatpush.msra.mxu0 %v3539
      %v3541 = vand.u32 %v316, 4294901760
      %3542 = vmatpush.msra.mxu0 %v3541
      %v3543 = vand.u32 %v304, 4294901760
      %3544 = vmatpush.msra.mxu0 %v3543
      %v3545 = vand.u32 %v292, 4294901760
      %3546 = vmatpush.msra.mxu0 %v3545
      %v3547 = vand.u32 %v280, 4294901760
      %3548 = vmatpush.msra.mxu0 %v3547
      %v3549 = vand.u32 %v268, 4294901760
      %3550 = vmatpush.msra.mxu0 %v3549
      %v3551 = vand.u32 %v256, 4294901760
      %3552 = vmatpush.msra.mxu0 %v3551
      %v3553 = vand.u32 %v244, 4294901760
      %3554 = vmatpush.msra.mxu0 %v3553
      %v3555 = vand.u32 %v232, 4294901760
      %3556 = vmatpush.msra.mxu0 %v3555
      %v3557 = vand.u32 %v198, 4294901760
      %3558 = vmatmul.f32.gmra.mxu0 %v3557
      %v3559 = vpop.f32.mrf.mxu0
      %v3560 = vadd.f32 %v3519, %v3559
      %v3561 = vand.u32 %v200, 4294901760
      %3562 = vmatmul.f32.gmra.mxu0 %v3561
      %v3563 = vpop.f32.mrf.mxu0
      %v3564 = vadd.f32 %v3523, %v3563
      %3565 = vdwg.mxu0
      %3566 = vmatpush.msra.mxu0 0.0
      %3567 = vmatpush.msra.mxu0 0.0
      %3568 = vmatpush.msra.mxu0 0.0
      %3569 = vmatpush.msra.mxu0 0.0
      %3570 = vmatpush.msra.mxu0 0.0
      %3571 = vmatpush.msra.mxu0 0.0
      %3572 = vmatpush.msra.mxu0 0.0
      %v3573 = vand.u32 %v559, 4294901760
      %3574 = vmatpush.msra.mxu0 %v3573
      %v3575 = vand.u32 %v508, 4294901760
      %3576 = vmatpush.msra.mxu0 %v3575
      %v3577 = vand.u32 %v496, 4294901760
      %3578 = vmatpush.msra.mxu0 %v3577
      %v3579 = vand.u32 %v484, 4294901760
      %3580 = vmatpush.msra.mxu0 %v3579
      %v3581 = vand.u32 %v472, 4294901760
      %3582 = vmatpush.msra.mxu0 %v3581
      %v3583 = vand.u32 %v460, 4294901760
      %3584 = vmatpush.msra.mxu0 %v3583
      %v3585 = vand.u32 %v448, 4294901760
      %3586 = vmatpush.msra.mxu0 %v3585
      %v3587 = vand.u32 %v436, 4294901760
      %3588 = vmatpush.msra.mxu0 %v3587
      %v3589 = vand.u32 %v424, 4294901760
      %3590 = vmatpush.msra.mxu0 %v3589
      %v3591 = vand.u32 %v540, 4294901760
      %v3592 = vsub.f32 %v540, %v3591
      %v3593 = vand.u32 %v3592, 4294901760
      %v3594 = vsub.f32 %v3592, %v3593
      %v3595 = vand.u32 %v3594, 4294901760
      %3596 = vmatmul.f32.gmra.mxu0 %v3595
      %v3597 = vpop.f32.mrf.mxu0
      %v3598 = vadd.f32 %v3560, %v3597
      %v3599 = vand.u32 %v543, 4294901760
      %v3600 = vsub.f32 %v543, %v3599
      %v3601 = vand.u32 %v3600, 4294901760
      %v3602 = vsub.f32 %v3600, %v3601
      %v3603 = vand.u32 %v3602, 4294901760
      %3604 = vmatmul.f32.gmra.mxu0 %v3603
      %v3605 = vpop.f32.mrf.mxu0
      %v3606 = vadd.f32 %v3564, %v3605
      %3607 = vdwg.mxu0
      %3608 = vmatpush.msra.mxu0 0.0
      %3609 = vmatpush.msra.mxu0 0.0
      %3610 = vmatpush.msra.mxu0 0.0
      %3611 = vmatpush.msra.mxu0 0.0
      %3612 = vmatpush.msra.mxu0 0.0
      %3613 = vmatpush.msra.mxu0 0.0
      %3614 = vmatpush.msra.mxu0 0.0
      %v3615 = vand.u32 %v559, 4294901760
      %v3616 = vsub.f32 %v559, %v3615
      %v3617 = vand.u32 %v3616, 4294901760
      %v3618 = vsub.f32 %v3616, %v3617
      %v3619 = vand.u32 %v3618, 4294901760
      %3620 = vmatpush.msra.mxu0 %v3619
      %v3621 = vand.u32 %v508, 4294901760
      %v3622 = vsub.f32 %v508, %v3621
      %v3623 = vand.u32 %v3622, 4294901760
      %v3624 = vsub.f32 %v3622, %v3623
      %v3625 = vand.u32 %v3624, 4294901760
      %3626 = vmatpush.msra.mxu0 %v3625
      %v3627 = vand.u32 %v496, 4294901760
      %v3628 = vsub.f32 %v496, %v3627
      %v3629 = vand.u32 %v3628, 4294901760
      %v3630 = vsub.f32 %v3628, %v3629
      %v3631 = vand.u32 %v3630, 4294901760
      %3632 = vmatpush.msra.mxu0 %v3631
      %v3633 = vand.u32 %v484, 4294901760
      %v3634 = vsub.f32 %v484, %v3633
      %v3635 = vand.u32 %v3634, 4294901760
      %v3636 = vsub.f32 %v3634, %v3635
      %v3637 = vand.u32 %v3636, 4294901760
      %3638 = vmatpush.msra.mxu0 %v3637
      %v3639 = vand.u32 %v472, 4294901760
      %v3640 = vsub.f32 %v472, %v3639
      %v3641 = vand.u32 %v3640, 4294901760
      %v3642 = vsub.f32 %v3640, %v3641
      %v3643 = vand.u32 %v3642, 4294901760
      %3644 = vmatpush.msra.mxu0 %v3643
      %v3645 = vand.u32 %v460, 4294901760
      %v3646 = vsub.f32 %v460, %v3645
      %v3647 = vand.u32 %v3646, 4294901760
      %v3648 = vsub.f32 %v3646, %v3647
      %v3649 = vand.u32 %v3648, 4294901760
      %3650 = vmatpush.msra.mxu0 %v3649
      %v3651 = vand.u32 %v448, 4294901760
      %v3652 = vsub.f32 %v448, %v3651
      %v3653 = vand.u32 %v3652, 4294901760
      %v3654 = vsub.f32 %v3652, %v3653
      %v3655 = vand.u32 %v3654, 4294901760
      %3656 = vmatpush.msra.mxu0 %v3655
      %v3657 = vand.u32 %v436, 4294901760
      %v3658 = vsub.f32 %v436, %v3657
      %v3659 = vand.u32 %v3658, 4294901760
      %v3660 = vsub.f32 %v3658, %v3659
      %v3661 = vand.u32 %v3660, 4294901760
      %3662 = vmatpush.msra.mxu0 %v3661
      %v3663 = vand.u32 %v424, 4294901760
      %v3664 = vsub.f32 %v424, %v3663
      %v3665 = vand.u32 %v3664, 4294901760
      %v3666 = vsub.f32 %v3664, %v3665
      %v3667 = vand.u32 %v3666, 4294901760
      %3668 = vmatpush.msra.mxu0 %v3667
      %v3669 = vand.u32 %v540, 4294901760
      %3670 = vmatmul.f32.gmra.mxu0 %v3669
      %v3671 = vpop.f32.mrf.mxu0
      %v3672 = vadd.f32 %v3598, %v3671
      %v3673 = vand.u32 %v543, 4294901760
      %3674 = vmatmul.f32.gmra.mxu0 %v3673
      %v3675 = vpop.f32.mrf.mxu0
      %v3676 = vadd.f32 %v3606, %v3675
      %3677 = vdwg.mxu0
      %3678 = vmatpush.msra.mxu0 0.0
      %3679 = vmatpush.msra.mxu0 0.0
      %3680 = vmatpush.msra.mxu0 0.0
      %3681 = vmatpush.msra.mxu0 0.0
      %3682 = vmatpush.msra.mxu0 0.0
      %3683 = vmatpush.msra.mxu0 0.0
      %3684 = vmatpush.msra.mxu0 0.0
      %v3685 = vand.u32 %v559, 4294901760
      %v3686 = vsub.f32 %v559, %v3685
      %3687 = vmatpush.msra.mxu0 %v3686
      %v3688 = vand.u32 %v508, 4294901760
      %v3689 = vsub.f32 %v508, %v3688
      %3690 = vmatpush.msra.mxu0 %v3689
      %v3691 = vand.u32 %v496, 4294901760
      %v3692 = vsub.f32 %v496, %v3691
      %3693 = vmatpush.msra.mxu0 %v3692
      %v3694 = vand.u32 %v484, 4294901760
      %v3695 = vsub.f32 %v484, %v3694
      %3696 = vmatpush.msra.mxu0 %v3695
      %v3697 = vand.u32 %v472, 4294901760
      %v3698 = vsub.f32 %v472, %v3697
      %3699 = vmatpush.msra.mxu0 %v3698
      %v3700 = vand.u32 %v460, 4294901760
      %v3701 = vsub.f32 %v460, %v3700
      %3702 = vmatpush.msra.mxu0 %v3701
      %v3703 = vand.u32 %v448, 4294901760
      %v3704 = vsub.f32 %v448, %v3703
      %3705 = vmatpush.msra.mxu0 %v3704
      %v3706 = vand.u32 %v436, 4294901760
      %v3707 = vsub.f32 %v436, %v3706
      %3708 = vmatpush.msra.mxu0 %v3707
      %v3709 = vand.u32 %v424, 4294901760
      %v3710 = vsub.f32 %v424, %v3709
      %3711 = vmatpush.msra.mxu0 %v3710
      %v3712 = vand.u32 %v540, 4294901760
      %v3713 = vsub.f32 %v540, %v3712
      %3714 = vmatmul.f32.gmra.mxu0 %v3713
      %v3715 = vpop.f32.mrf.mxu0
      %v3716 = vadd.f32 %v3672, %v3715
      %v3717 = vand.u32 %v543, 4294901760
      %v3718 = vsub.f32 %v543, %v3717
      %3719 = vmatmul.f32.gmra.mxu0 %v3718
      %v3720 = vpop.f32.mrf.mxu0
      %v3721 = vadd.f32 %v3676, %v3720
      %3722 = vdwg.mxu0
      %3723 = vmatpush.msra.mxu0 0.0
      %3724 = vmatpush.msra.mxu0 0.0
      %3725 = vmatpush.msra.mxu0 0.0
      %3726 = vmatpush.msra.mxu0 0.0
      %3727 = vmatpush.msra.mxu0 0.0
      %3728 = vmatpush.msra.mxu0 0.0
      %3729 = vmatpush.msra.mxu0 0.0
      %v3730 = vand.u32 %v559, 4294901760
      %3731 = vmatpush.msra.mxu0 %v3730
      %v3732 = vand.u32 %v508, 4294901760
      %3733 = vmatpush.msra.mxu0 %v3732
      %v3734 = vand.u32 %v496, 4294901760
      %3735 = vmatpush.msra.mxu0 %v3734
      %v3736 = vand.u32 %v484, 4294901760
      %3737 = vmatpush.msra.mxu0 %v3736
      %v3738 = vand.u32 %v472, 4294901760
      %3739 = vmatpush.msra.mxu0 %v3738
      %v3740 = vand.u32 %v460, 4294901760
      %3741 = vmatpush.msra.mxu0 %v3740
      %v3742 = vand.u32 %v448, 4294901760
      %3743 = vmatpush.msra.mxu0 %v3742
      %v3744 = vand.u32 %v436, 4294901760
      %3745 = vmatpush.msra.mxu0 %v3744
      %v3746 = vand.u32 %v424, 4294901760
      %3747 = vmatpush.msra.mxu0 %v3746
      %v3748 = vand.u32 %v540, 4294901760
      %v3749 = vsub.f32 %v540, %v3748
      %v3750 = vand.u32 %v3749, 4294901760
      %3751 = vmatmul.f32.gmra.mxu0 %v3750
      %v3752 = vpop.f32.mrf.mxu0
      %v3753 = vadd.f32 %v3716, %v3752
      %v3754 = vand.u32 %v543, 4294901760
      %v3755 = vsub.f32 %v543, %v3754
      %v3756 = vand.u32 %v3755, 4294901760
      %3757 = vmatmul.f32.gmra.mxu0 %v3756
      %v3758 = vpop.f32.mrf.mxu0
      %v3759 = vadd.f32 %v3721, %v3758
      %3760 = vdwg.mxu0
      %3761 = vmatpush.msra.mxu0 0.0
      %3762 = vmatpush.msra.mxu0 0.0
      %3763 = vmatpush.msra.mxu0 0.0
      %3764 = vmatpush.msra.mxu0 0.0
      %3765 = vmatpush.msra.mxu0 0.0
      %3766 = vmatpush.msra.mxu0 0.0
      %3767 = vmatpush.msra.mxu0 0.0
      %v3768 = vand.u32 %v559, 4294901760
      %v3769 = vsub.f32 %v559, %v3768
      %v3770 = vand.u32 %v3769, 4294901760
      %3771 = vmatpush.msra.mxu0 %v3770
      %v3772 = vand.u32 %v508, 4294901760
      %v3773 = vsub.f32 %v508, %v3772
      %v3774 = vand.u32 %v3773, 4294901760
      %3775 = vmatpush.msra.mxu0 %v3774
      %v3776 = vand.u32 %v496, 4294901760
      %v3777 = vsub.f32 %v496, %v3776
      %v3778 = vand.u32 %v3777, 4294901760
      %3779 = vmatpush.msra.mxu0 %v3778
      %v3780 = vand.u32 %v484, 4294901760
      %v3781 = vsub.f32 %v484, %v3780
      %v3782 = vand.u32 %v3781, 4294901760
      %3783 = vmatpush.msra.mxu0 %v3782
      %v3784 = vand.u32 %v472, 4294901760
      %v3785 = vsub.f32 %v472, %v3784
      %v3786 = vand.u32 %v3785, 4294901760
      %3787 = vmatpush.msra.mxu0 %v3786
      %v3788 = vand.u32 %v460, 4294901760
      %v3789 = vsub.f32 %v460, %v3788
      %v3790 = vand.u32 %v3789, 4294901760
      %3791 = vmatpush.msra.mxu0 %v3790
      %v3792 = vand.u32 %v448, 4294901760
      %v3793 = vsub.f32 %v448, %v3792
      %v3794 = vand.u32 %v3793, 4294901760
      %3795 = vmatpush.msra.mxu0 %v3794
      %v3796 = vand.u32 %v436, 4294901760
      %v3797 = vsub.f32 %v436, %v3796
      %v3798 = vand.u32 %v3797, 4294901760
      %3799 = vmatpush.msra.mxu0 %v3798
      %v3800 = vand.u32 %v424, 4294901760
      %v3801 = vsub.f32 %v424, %v3800
      %v3802 = vand.u32 %v3801, 4294901760
      %3803 = vmatpush.msra.mxu0 %v3802
      %v3804 = vand.u32 %v540, 4294901760
      %3805 = vmatmul.f32.gmra.mxu0 %v3804
      %v3806 = vpop.f32.mrf.mxu0
      %v3807 = vadd.f32 %v3753, %v3806
      %v3808 = vand.u32 %v543, 4294901760
      %3809 = vmatmul.f32.gmra.mxu0 %v3808
      %v3810 = vpop.f32.mrf.mxu0
      %v3811 = vadd.f32 %v3759, %v3810
      %3812 = vdwg.mxu0
      %3813 = vmatpush.msra.mxu0 0.0
      %3814 = vmatpush.msra.mxu0 0.0
      %3815 = vmatpush.msra.mxu0 0.0
      %3816 = vmatpush.msra.mxu0 0.0
      %3817 = vmatpush.msra.mxu0 0.0
      %3818 = vmatpush.msra.mxu0 0.0
      %3819 = vmatpush.msra.mxu0 0.0
      %v3820 = vand.u32 %v559, 4294901760
      %3821 = vmatpush.msra.mxu0 %v3820
      %v3822 = vand.u32 %v508, 4294901760
      %3823 = vmatpush.msra.mxu0 %v3822
      %v3824 = vand.u32 %v496, 4294901760
      %3825 = vmatpush.msra.mxu0 %v3824
      %v3826 = vand.u32 %v484, 4294901760
      %3827 = vmatpush.msra.mxu0 %v3826
      %v3828 = vand.u32 %v472, 4294901760
      %3829 = vmatpush.msra.mxu0 %v3828
      %v3830 = vand.u32 %v460, 4294901760
      %3831 = vmatpush.msra.mxu0 %v3830
      %v3832 = vand.u32 %v448, 4294901760
      %3833 = vmatpush.msra.mxu0 %v3832
      %v3834 = vand.u32 %v436, 4294901760
      %3835 = vmatpush.msra.mxu0 %v3834
      %v3836 = vand.u32 %v424, 4294901760
      %3837 = vmatpush.msra.mxu0 %v3836
      %v3838 = vand.u32 %v540, 4294901760
      %3839 = vmatmul.f32.gmra.mxu0 %v3838
      %v3840 = vpop.f32.mrf.mxu0
      %v3841 = vadd.f32 %v3807, %v3840
      %v3842 = vand.u32 %v543, 4294901760
      %3843 = vmatmul.f32.gmra.mxu0 %v3842
      %v3844 = vpop.f32.mrf.mxu0
      %v3845 = vadd.f32 %v3811, %v3844
      %3846 = vdwg.mxu0
      %v3847 = vand.u32 %v413, 4294901760
      %3848 = vmatpush.msra.mxu0 %v3847
      %v3849 = vand.u32 %v401, 4294901760
      %3850 = vmatpush.msra.mxu0 %v3849
      %v3851 = vand.u32 %v389, 4294901760
      %3852 = vmatpush.msra.mxu0 %v3851
      %v3853 = vand.u32 %v377, 4294901760
      %3854 = vmatpush.msra.mxu0 %v3853
      %v3855 = vand.u32 %v365, 4294901760
      %3856 = vmatpush.msra.mxu0 %v3855
      %v3857 = vand.u32 %v353, 4294901760
      %3858 = vmatpush.msra.mxu0 %v3857
      %v3859 = vand.u32 %v341, 4294901760
      %3860 = vmatpush.msra.mxu0 %v3859
      %v3861 = vand.u32 %v329, 4294901760
      %3862 = vmatpush.msra.mxu0 %v3861
      %v3863 = vand.u32 %v317, 4294901760
      %3864 = vmatpush.msra.mxu0 %v3863
      %v3865 = vand.u32 %v305, 4294901760
      %3866 = vmatpush.msra.mxu0 %v3865
      %v3867 = vand.u32 %v293, 4294901760
      %3868 = vmatpush.msra.mxu0 %v3867
      %v3869 = vand.u32 %v281, 4294901760
      %3870 = vmatpush.msra.mxu0 %v3869
      %v3871 = vand.u32 %v269, 4294901760
      %3872 = vmatpush.msra.mxu0 %v3871
      %v3873 = vand.u32 %v257, 4294901760
      %3874 = vmatpush.msra.mxu0 %v3873
      %v3875 = vand.u32 %v245, 4294901760
      %3876 = vmatpush.msra.mxu0 %v3875
      %v3877 = vand.u32 %v233, 4294901760
      %3878 = vmatpush.msra.mxu0 %v3877
      %v3879 = vand.u32 %v198, 4294901760
      %v3880 = vsub.f32 %v198, %v3879
      %v3881 = vand.u32 %v3880, 4294901760
      %v3882 = vsub.f32 %v3880, %v3881
      %v3883 = vand.u32 %v3882, 4294901760
      %3884 = vmatmul.f32.gmra.mxu0 %v3883
      %v3885 = vpop.f32.mrf.mxu0
      %v3886 = vadd.f32 %v531, %v3885
      %v3887 = vand.u32 %v200, 4294901760
      %v3888 = vsub.f32 %v200, %v3887
      %v3889 = vand.u32 %v3888, 4294901760
      %v3890 = vsub.f32 %v3888, %v3889
      %v3891 = vand.u32 %v3890, 4294901760
      %3892 = vmatmul.f32.gmra.mxu0 %v3891
      %v3893 = vpop.f32.mrf.mxu0
      %v3894 = vadd.f32 %v536, %v3893
      %3895 = vdwg.mxu0
      %v3896 = vand.u32 %v413, 4294901760
      %v3897 = vsub.f32 %v413, %v3896
      %v3898 = vand.u32 %v3897, 4294901760
      %v3899 = vsub.f32 %v3897, %v3898
      %v3900 = vand.u32 %v3899, 4294901760
      %3901 = vmatpush.msra.mxu0 %v3900
      %v3902 = vand.u32 %v401, 4294901760
      %v3903 = vsub.f32 %v401, %v3902
      %v3904 = vand.u32 %v3903, 4294901760
      %v3905 = vsub.f32 %v3903, %v3904
      %v3906 = vand.u32 %v3905, 4294901760
      %3907 = vmatpush.msra.mxu0 %v3906
      %v3908 = vand.u32 %v389, 4294901760
      %v3909 = vsub.f32 %v389, %v3908
      %v3910 = vand.u32 %v3909, 4294901760
      %v3911 = vsub.f32 %v3909, %v3910
      %v3912 = vand.u32 %v3911, 4294901760
      %3913 = vmatpush.msra.mxu0 %v3912
      %v3914 = vand.u32 %v377, 4294901760
      %v3915 = vsub.f32 %v377, %v3914
      %v3916 = vand.u32 %v3915, 4294901760
      %v3917 = vsub.f32 %v3915, %v3916
      %v3918 = vand.u32 %v3917, 4294901760
      %3919 = vmatpush.msra.mxu0 %v3918
      %v3920 = vand.u32 %v365, 4294901760
      %v3921 = vsub.f32 %v365, %v3920
      %v3922 = vand.u32 %v3921, 4294901760
      %v3923 = vsub.f32 %v3921, %v3922
      %v3924 = vand.u32 %v3923, 4294901760
      %3925 = vmatpush.msra.mxu0 %v3924
      %v3926 = vand.u32 %v353, 4294901760
      %v3927 = vsub.f32 %v353, %v3926
      %v3928 = vand.u32 %v3927, 4294901760
      %v3929 = vsub.f32 %v3927, %v3928
      %v3930 = vand.u32 %v3929, 4294901760
      %3931 = vmatpush.msra.mxu0 %v3930
      %v3932 = vand.u32 %v341, 4294901760
      %v3933 = vsub.f32 %v341, %v3932
      %v3934 = vand.u32 %v3933, 4294901760
      %v3935 = vsub.f32 %v3933, %v3934
      %v3936 = vand.u32 %v3935, 4294901760
      %3937 = vmatpush.msra.mxu0 %v3936
      %v3938 = vand.u32 %v329, 4294901760
      %v3939 = vsub.f32 %v329, %v3938
      %v3940 = vand.u32 %v3939, 4294901760
      %v3941 = vsub.f32 %v3939, %v3940
      %v3942 = vand.u32 %v3941, 4294901760
      %3943 = vmatpush.msra.mxu0 %v3942
      %v3944 = vand.u32 %v317, 4294901760
      %v3945 = vsub.f32 %v317, %v3944
      %v3946 = vand.u32 %v3945, 4294901760
      %v3947 = vsub.f32 %v3945, %v3946
      %v3948 = vand.u32 %v3947, 4294901760
      %3949 = vmatpush.msra.mxu0 %v3948
      %v3950 = vand.u32 %v305, 4294901760
      %v3951 = vsub.f32 %v305, %v3950
      %v3952 = vand.u32 %v3951, 4294901760
      %v3953 = vsub.f32 %v3951, %v3952
      %v3954 = vand.u32 %v3953, 4294901760
      %3955 = vmatpush.msra.mxu0 %v3954
      %v3956 = vand.u32 %v293, 4294901760
      %v3957 = vsub.f32 %v293, %v3956
      %v3958 = vand.u32 %v3957, 4294901760
      %v3959 = vsub.f32 %v3957, %v3958
      %v3960 = vand.u32 %v3959, 4294901760
      %3961 = vmatpush.msra.mxu0 %v3960
      %v3962 = vand.u32 %v281, 4294901760
      %v3963 = vsub.f32 %v281, %v3962
      %v3964 = vand.u32 %v3963, 4294901760
      %v3965 = vsub.f32 %v3963, %v3964
      %v3966 = vand.u32 %v3965, 4294901760
      %3967 = vmatpush.msra.mxu0 %v3966
      %v3968 = vand.u32 %v269, 4294901760
      %v3969 = vsub.f32 %v269, %v3968
      %v3970 = vand.u32 %v3969, 4294901760
      %v3971 = vsub.f32 %v3969, %v3970
      %v3972 = vand.u32 %v3971, 4294901760
      %3973 = vmatpush.msra.mxu0 %v3972
      %v3974 = vand.u32 %v257, 4294901760
      %v3975 = vsub.f32 %v257, %v3974
      %v3976 = vand.u32 %v3975, 4294901760
      %v3977 = vsub.f32 %v3975, %v3976
      %v3978 = vand.u32 %v3977, 4294901760
      %3979 = vmatpush.msra.mxu0 %v3978
      %v3980 = vand.u32 %v245, 4294901760
      %v3981 = vsub.f32 %v245, %v3980
      %v3982 = vand.u32 %v3981, 4294901760
      %v3983 = vsub.f32 %v3981, %v3982
      %v3984 = vand.u32 %v3983, 4294901760
      %3985 = vmatpush.msra.mxu0 %v3984
      %v3986 = vand.u32 %v233, 4294901760
      %v3987 = vsub.f32 %v233, %v3986
      %v3988 = vand.u32 %v3987, 4294901760
      %v3989 = vsub.f32 %v3987, %v3988
      %v3990 = vand.u32 %v3989, 4294901760
      %3991 = vmatpush.msra.mxu0 %v3990
      %v3992 = vand.u32 %v198, 4294901760
      %3993 = vmatmul.f32.gmra.mxu0 %v3992
      %v3994 = vpop.f32.mrf.mxu0
      %v3995 = vadd.f32 %v3886, %v3994
      %v3996 = vand.u32 %v200, 4294901760
      %3997 = vmatmul.f32.gmra.mxu0 %v3996
      %v3998 = vpop.f32.mrf.mxu0
      %v3999 = vadd.f32 %v3894, %v3998
      %4000 = vdwg.mxu0
      %v4001 = vand.u32 %v413, 4294901760
      %v4002 = vsub.f32 %v413, %v4001
      %4003 = vmatpush.msra.mxu0 %v4002
      %v4004 = vand.u32 %v401, 4294901760
      %v4005 = vsub.f32 %v401, %v4004
      %4006 = vmatpush.msra.mxu0 %v4005
      %v4007 = vand.u32 %v389, 4294901760
      %v4008 = vsub.f32 %v389, %v4007
      %4009 = vmatpush.msra.mxu0 %v4008
      %v4010 = vand.u32 %v377, 4294901760
      %v4011 = vsub.f32 %v377, %v4010
      %4012 = vmatpush.msra.mxu0 %v4011
      %v4013 = vand.u32 %v365, 4294901760
      %v4014 = vsub.f32 %v365, %v4013
      %4015 = vmatpush.msra.mxu0 %v4014
      %v4016 = vand.u32 %v353, 4294901760
      %v4017 = vsub.f32 %v353, %v4016
      %4018 = vmatpush.msra.mxu0 %v4017
      %v4019 = vand.u32 %v341, 4294901760
      %v4020 = vsub.f32 %v341, %v4019
      %4021 = vmatpush.msra.mxu0 %v4020
      %v4022 = vand.u32 %v329, 4294901760
      %v4023 = vsub.f32 %v329, %v4022
      %4024 = vmatpush.msra.mxu0 %v4023
      %v4025 = vand.u32 %v317, 4294901760
      %v4026 = vsub.f32 %v317, %v4025
      %4027 = vmatpush.msra.mxu0 %v4026
      %v4028 = vand.u32 %v305, 4294901760
      %v4029 = vsub.f32 %v305, %v4028
      %4030 = vmatpush.msra.mxu0 %v4029
      %v4031 = vand.u32 %v293, 4294901760
      %v4032 = vsub.f32 %v293, %v4031
      %4033 = vmatpush.msra.mxu0 %v4032
      %v4034 = vand.u32 %v281, 4294901760
      %v4035 = vsub.f32 %v281, %v4034
      %4036 = vmatpush.msra.mxu0 %v4035
      %v4037 = vand.u32 %v269, 4294901760
      %v4038 = vsub.f32 %v269, %v4037
      %4039 = vmatpush.msra.mxu0 %v4038
      %v4040 = vand.u32 %v257, 4294901760
      %v4041 = vsub.f32 %v257, %v4040
      %4042 = vmatpush.msra.mxu0 %v4041
      %v4043 = vand.u32 %v245, 4294901760
      %v4044 = vsub.f32 %v245, %v4043
      %4045 = vmatpush.msra.mxu0 %v4044
      %v4046 = vand.u32 %v233, 4294901760
      %v4047 = vsub.f32 %v233, %v4046
      %4048 = vmatpush.msra.mxu0 %v4047
      %v4049 = vand.u32 %v198, 4294901760
      %v4050 = vsub.f32 %v198, %v4049
      %4051 = vmatmul.f32.gmra.mxu0 %v4050
      %v4052 = vpop.f32.mrf.mxu0
      %v4053 = vadd.f32 %v3995, %v4052
      %v4054 = vand.u32 %v200, 4294901760
      %v4055 = vsub.f32 %v200, %v4054
      %4056 = vmatmul.f32.gmra.mxu0 %v4055
      %v4057 = vpop.f32.mrf.mxu0
      %v4058 = vadd.f32 %v3999, %v4057
      %4059 = vdwg.mxu0
      %v4060 = vand.u32 %v413, 4294901760
      %4061 = vmatpush.msra.mxu0 %v4060
      %v4062 = vand.u32 %v401, 4294901760
      %4063 = vmatpush.msra.mxu0 %v4062
      %v4064 = vand.u32 %v389, 4294901760
      %4065 = vmatpush.msra.mxu0 %v4064
      %v4066 = vand.u32 %v377, 4294901760
      %4067 = vmatpush.msra.mxu0 %v4066
      %v4068 = vand.u32 %v365, 4294901760
      %4069 = vmatpush.msra.mxu0 %v4068
      %v4070 = vand.u32 %v353, 4294901760
      %4071 = vmatpush.msra.mxu0 %v4070
      %v4072 = vand.u32 %v341, 4294901760
      %4073 = vmatpush.msra.mxu0 %v4072
      %v4074 = vand.u32 %v329, 4294901760
      %4075 = vmatpush.msra.mxu0 %v4074
      %v4076 = vand.u32 %v317, 4294901760
      %4077 = vmatpush.msra.mxu0 %v4076
      %v4078 = vand.u32 %v305, 4294901760
      %4079 = vmatpush.msra.mxu0 %v4078
      %v4080 = vand.u32 %v293, 4294901760
      %4081 = vmatpush.msra.mxu0 %v4080
      %v4082 = vand.u32 %v281, 4294901760
      %4083 = vmatpush.msra.mxu0 %v4082
      %v4084 = vand.u32 %v269, 4294901760
      %4085 = vmatpush.msra.mxu0 %v4084
      %v4086 = vand.u32 %v257, 4294901760
      %4087 = vmatpush.msra.mxu0 %v4086
      %v4088 = vand.u32 %v245, 4294901760
      %4089 = vmatpush.msra.mxu0 %v4088
      %v4090 = vand.u32 %v233, 4294901760
      %4091 = vmatpush.msra.mxu0 %v4090
      %v4092 = vand.u32 %v198, 4294901760
      %v4093 = vsub.f32 %v198, %v4092
      %v4094 = vand.u32 %v4093, 4294901760
      %4095 = vmatmul.f32.gmra.mxu0 %v4094
      %v4096 = vpop.f32.mrf.mxu0
      %v4097 = vadd.f32 %v4053, %v4096
      %v4098 = vand.u32 %v200, 4294901760
      %v4099 = vsub.f32 %v200, %v4098
      %v4100 = vand.u32 %v4099, 4294901760
      %4101 = vmatmul.f32.gmra.mxu0 %v4100
      %v4102 = vpop.f32.mrf.mxu0
      %v4103 = vadd.f32 %v4058, %v4102
      %4104 = vdwg.mxu0
      %v4105 = vand.u32 %v413, 4294901760
      %v4106 = vsub.f32 %v413, %v4105
      %v4107 = vand.u32 %v4106, 4294901760
      %4108 = vmatpush.msra.mxu0 %v4107
      %v4109 = vand.u32 %v401, 4294901760
      %v4110 = vsub.f32 %v401, %v4109
      %v4111 = vand.u32 %v4110, 4294901760
      %4112 = vmatpush.msra.mxu0 %v4111
      %v4113 = vand.u32 %v389, 4294901760
      %v4114 = vsub.f32 %v389, %v4113
      %v4115 = vand.u32 %v4114, 4294901760
      %4116 = vmatpush.msra.mxu0 %v4115
      %v4117 = vand.u32 %v377, 4294901760
      %v4118 = vsub.f32 %v377, %v4117
      %v4119 = vand.u32 %v4118, 4294901760
      %4120 = vmatpush.msra.mxu0 %v4119
      %v4121 = vand.u32 %v365, 4294901760
      %v4122 = vsub.f32 %v365, %v4121
      %v4123 = vand.u32 %v4122, 4294901760
      %4124 = vmatpush.msra.mxu0 %v4123
      %v4125 = vand.u32 %v353, 4294901760
      %v4126 = vsub.f32 %v353, %v4125
      %v4127 = vand.u32 %v4126, 4294901760
      %4128 = vmatpush.msra.mxu0 %v4127
      %v4129 = vand.u32 %v341, 4294901760
      %v4130 = vsub.f32 %v341, %v4129
      %v4131 = vand.u32 %v4130, 4294901760
      %4132 = vmatpush.msra.mxu0 %v4131
      %v4133 = vand.u32 %v329, 4294901760
      %v4134 = vsub.f32 %v329, %v4133
      %v4135 = vand.u32 %v4134, 4294901760
      %4136 = vmatpush.msra.mxu0 %v4135
      %v4137 = vand.u32 %v317, 4294901760
      %v4138 = vsub.f32 %v317, %v4137
      %v4139 = vand.u32 %v4138, 4294901760
      %4140 = vmatpush.msra.mxu0 %v4139
      %v4141 = vand.u32 %v305, 4294901760
      %v4142 = vsub.f32 %v305, %v4141
      %v4143 = vand.u32 %v4142, 4294901760
      %4144 = vmatpush.msra.mxu0 %v4143
      %v4145 = vand.u32 %v293, 4294901760
      %v4146 = vsub.f32 %v293, %v4145
      %v4147 = vand.u32 %v4146, 4294901760
      %4148 = vmatpush.msra.mxu0 %v4147
      %v4149 = vand.u32 %v281, 4294901760
      %v4150 = vsub.f32 %v281, %v4149
      %v4151 = vand.u32 %v4150, 4294901760
      %4152 = vmatpush.msra.mxu0 %v4151
      %v4153 = vand.u32 %v269, 4294901760
      %v4154 = vsub.f32 %v269, %v4153
      %v4155 = vand.u32 %v4154, 4294901760
      %4156 = vmatpush.msra.mxu0 %v4155
      %v4157 = vand.u32 %v257, 4294901760
      %v4158 = vsub.f32 %v257, %v4157
      %v4159 = vand.u32 %v4158, 4294901760
      %4160 = vmatpush.msra.mxu0 %v4159
      %v4161 = vand.u32 %v245, 4294901760
      %v4162 = vsub.f32 %v245, %v4161
      %v4163 = vand.u32 %v4162, 4294901760
      %4164 = vmatpush.msra.mxu0 %v4163
      %v4165 = vand.u32 %v233, 4294901760
      %v4166 = vsub.f32 %v233, %v4165
      %v4167 = vand.u32 %v4166, 4294901760
      %4168 = vmatpush.msra.mxu0 %v4167
      %v4169 = vand.u32 %v198, 4294901760
      %4170 = vmatmul.f32.gmra.mxu0 %v4169
      %v4171 = vpop.f32.mrf.mxu0
      %v4172 = vadd.f32 %v4097, %v4171
      %v4173 = vand.u32 %v200, 4294901760
      %4174 = vmatmul.f32.gmra.mxu0 %v4173
      %v4175 = vpop.f32.mrf.mxu0
      %v4176 = vadd.f32 %v4103, %v4175
      %4177 = vdwg.mxu0
      %v4178 = vand.u32 %v413, 4294901760
      %4179 = vmatpush.msra.mxu0 %v4178
      %v4180 = vand.u32 %v401, 4294901760
      %4181 = vmatpush.msra.mxu0 %v4180
      %v4182 = vand.u32 %v389, 4294901760
      %4183 = vmatpush.msra.mxu0 %v4182
      %v4184 = vand.u32 %v377, 4294901760
      %4185 = vmatpush.msra.mxu0 %v4184
      %v4186 = vand.u32 %v365, 4294901760
      %4187 = vmatpush.msra.mxu0 %v4186
      %v4188 = vand.u32 %v353, 4294901760
      %4189 = vmatpush.msra.mxu0 %v4188
      %v4190 = vand.u32 %v341, 4294901760
      %4191 = vmatpush.msra.mxu0 %v4190
      %v4192 = vand.u32 %v329, 4294901760
      %4193 = vmatpush.msra.mxu0 %v4192
      %v4194 = vand.u32 %v317, 4294901760
      %4195 = vmatpush.msra.mxu0 %v4194
      %v4196 = vand.u32 %v305, 4294901760
      %4197 = vmatpush.msra.mxu0 %v4196
      %v4198 = vand.u32 %v293, 4294901760
      %4199 = vmatpush.msra.mxu0 %v4198
      %v4200 = vand.u32 %v281, 4294901760
      %4201 = vmatpush.msra.mxu0 %v4200
      %v4202 = vand.u32 %v269, 4294901760
      %4203 = vmatpush.msra.mxu0 %v4202
      %v4204 = vand.u32 %v257, 4294901760
      %4205 = vmatpush.msra.mxu0 %v4204
      %v4206 = vand.u32 %v245, 4294901760
      %4207 = vmatpush.msra.mxu0 %v4206
      %v4208 = vand.u32 %v233, 4294901760
      %4209 = vmatpush.msra.mxu0 %v4208
      %v4210 = vand.u32 %v198, 4294901760
      %4211 = vmatmul.f32.gmra.mxu0 %v4210
      %v4212 = vpop.f32.mrf.mxu0
      %v4213 = vadd.f32 %v4172, %v4212
      %v4214 = vand.u32 %v200, 4294901760
      %4215 = vmatmul.f32.gmra.mxu0 %v4214
      %v4216 = vpop.f32.mrf.mxu0
      %v4217 = vadd.f32 %v4176, %v4216
      %4218 = vdwg.mxu0
      %4219 = vmatpush.msra.mxu0 0.0
      %4220 = vmatpush.msra.mxu0 0.0
      %4221 = vmatpush.msra.mxu0 0.0
      %4222 = vmatpush.msra.mxu0 0.0
      %4223 = vmatpush.msra.mxu0 0.0
      %4224 = vmatpush.msra.mxu0 0.0
      %4225 = vmatpush.msra.mxu0 0.0
      %v4226 = vand.u32 %v562, 4294901760
      %4227 = vmatpush.msra.mxu0 %v4226
      %v4228 = vand.u32 %v509, 4294901760
      %4229 = vmatpush.msra.mxu0 %v4228
      %v4230 = vand.u32 %v497, 4294901760
      %4231 = vmatpush.msra.mxu0 %v4230
      %v4232 = vand.u32 %v485, 4294901760
      %4233 = vmatpush.msra.mxu0 %v4232
      %v4234 = vand.u32 %v473, 4294901760
      %4235 = vmatpush.msra.mxu0 %v4234
      %v4236 = vand.u32 %v461, 4294901760
      %4237 = vmatpush.msra.mxu0 %v4236
      %v4238 = vand.u32 %v449, 4294901760
      %4239 = vmatpush.msra.mxu0 %v4238
      %v4240 = vand.u32 %v437, 4294901760
      %4241 = vmatpush.msra.mxu0 %v4240
      %v4242 = vand.u32 %v425, 4294901760
      %4243 = vmatpush.msra.mxu0 %v4242
      %v4244 = vand.u32 %v540, 4294901760
      %v4245 = vsub.f32 %v540, %v4244
      %v4246 = vand.u32 %v4245, 4294901760
      %v4247 = vsub.f32 %v4245, %v4246
      %v4248 = vand.u32 %v4247, 4294901760
      %4249 = vmatmul.f32.gmra.mxu0 %v4248
      %v4250 = vpop.f32.mrf.mxu0
      %v4251 = vadd.f32 %v4213, %v4250
      %v4252 = vand.u32 %v543, 4294901760
      %v4253 = vsub.f32 %v543, %v4252
      %v4254 = vand.u32 %v4253, 4294901760
      %v4255 = vsub.f32 %v4253, %v4254
      %v4256 = vand.u32 %v4255, 4294901760
      %4257 = vmatmul.f32.gmra.mxu0 %v4256
      %v4258 = vpop.f32.mrf.mxu0
      %v4259 = vadd.f32 %v4217, %v4258
      %4260 = vdwg.mxu0
      %4261 = vmatpush.msra.mxu0 0.0
      %4262 = vmatpush.msra.mxu0 0.0
      %4263 = vmatpush.msra.mxu0 0.0
      %4264 = vmatpush.msra.mxu0 0.0
      %4265 = vmatpush.msra.mxu0 0.0
      %4266 = vmatpush.msra.mxu0 0.0
      %4267 = vmatpush.msra.mxu0 0.0
      %v4268 = vand.u32 %v562, 4294901760
      %v4269 = vsub.f32 %v562, %v4268
      %v4270 = vand.u32 %v4269, 4294901760
      %v4271 = vsub.f32 %v4269, %v4270
      %v4272 = vand.u32 %v4271, 4294901760
      %4273 = vmatpush.msra.mxu0 %v4272
      %v4274 = vand.u32 %v509, 4294901760
      %v4275 = vsub.f32 %v509, %v4274
      %v4276 = vand.u32 %v4275, 4294901760
      %v4277 = vsub.f32 %v4275, %v4276
      %v4278 = vand.u32 %v4277, 4294901760
      %4279 = vmatpush.msra.mxu0 %v4278
      %v4280 = vand.u32 %v497, 4294901760
      %v4281 = vsub.f32 %v497, %v4280
      %v4282 = vand.u32 %v4281, 4294901760
      %v4283 = vsub.f32 %v4281, %v4282
      %v4284 = vand.u32 %v4283, 4294901760
      %4285 = vmatpush.msra.mxu0 %v4284
      %v4286 = vand.u32 %v485, 4294901760
      %v4287 = vsub.f32 %v485, %v4286
      %v4288 = vand.u32 %v4287, 4294901760
      %v4289 = vsub.f32 %v4287, %v4288
      %v4290 = vand.u32 %v4289, 4294901760
      %4291 = vmatpush.msra.mxu0 %v4290
      %v4292 = vand.u32 %v473, 4294901760
      %v4293 = vsub.f32 %v473, %v4292
      %v4294 = vand.u32 %v4293, 4294901760
      %v4295 = vsub.f32 %v4293, %v4294
      %v4296 = vand.u32 %v4295, 4294901760
      %4297 = vmatpush.msra.mxu0 %v4296
      %v4298 = vand.u32 %v461, 4294901760
      %v4299 = vsub.f32 %v461, %v4298
      %v4300 = vand.u32 %v4299, 4294901760
      %v4301 = vsub.f32 %v4299, %v4300
      %v4302 = vand.u32 %v4301, 4294901760
      %4303 = vmatpush.msra.mxu0 %v4302
      %v4304 = vand.u32 %v449, 4294901760
      %v4305 = vsub.f32 %v449, %v4304
      %v4306 = vand.u32 %v4305, 4294901760
      %v4307 = vsub.f32 %v4305, %v4306
      %v4308 = vand.u32 %v4307, 4294901760
      %4309 = vmatpush.msra.mxu0 %v4308
      %v4310 = vand.u32 %v437, 4294901760
      %v4311 = vsub.f32 %v437, %v4310
      %v4312 = vand.u32 %v4311, 4294901760
      %v4313 = vsub.f32 %v4311, %v4312
      %v4314 = vand.u32 %v4313, 4294901760
      %4315 = vmatpush.msra.mxu0 %v4314
      %v4316 = vand.u32 %v425, 4294901760
      %v4317 = vsub.f32 %v425, %v4316
      %v4318 = vand.u32 %v4317, 4294901760
      %v4319 = vsub.f32 %v4317, %v4318
      %v4320 = vand.u32 %v4319, 4294901760
      %4321 = vmatpush.msra.mxu0 %v4320
      %v4322 = vand.u32 %v540, 4294901760
      %4323 = vmatmul.f32.gmra.mxu0 %v4322
      %v4324 = vpop.f32.mrf.mxu0
      %v4325 = vadd.f32 %v4251, %v4324
      %v4326 = vand.u32 %v543, 4294901760
      %4327 = vmatmul.f32.gmra.mxu0 %v4326
      %v4328 = vpop.f32.mrf.mxu0
      %v4329 = vadd.f32 %v4259, %v4328
      %4330 = vdwg.mxu0
      %4331 = vmatpush.msra.mxu0 0.0
      %4332 = vmatpush.msra.mxu0 0.0
      %4333 = vmatpush.msra.mxu0 0.0
      %4334 = vmatpush.msra.mxu0 0.0
      %4335 = vmatpush.msra.mxu0 0.0
      %4336 = vmatpush.msra.mxu0 0.0
      %4337 = vmatpush.msra.mxu0 0.0
      %v4338 = vand.u32 %v562, 4294901760
      %v4339 = vsub.f32 %v562, %v4338
      %4340 = vmatpush.msra.mxu0 %v4339
      %v4341 = vand.u32 %v509, 4294901760
      %v4342 = vsub.f32 %v509, %v4341
      %4343 = vmatpush.msra.mxu0 %v4342
      %v4344 = vand.u32 %v497, 4294901760
      %v4345 = vsub.f32 %v497, %v4344
      %4346 = vmatpush.msra.mxu0 %v4345
      %v4347 = vand.u32 %v485, 4294901760
      %v4348 = vsub.f32 %v485, %v4347
      %4349 = vmatpush.msra.mxu0 %v4348
      %v4350 = vand.u32 %v473, 4294901760
      %v4351 = vsub.f32 %v473, %v4350
      %4352 = vmatpush.msra.mxu0 %v4351
      %v4353 = vand.u32 %v461, 4294901760
      %v4354 = vsub.f32 %v461, %v4353
      %4355 = vmatpush.msra.mxu0 %v4354
      %v4356 = vand.u32 %v449, 4294901760
      %v4357 = vsub.f32 %v449, %v4356
      %4358 = vmatpush.msra.mxu0 %v4357
      %v4359 = vand.u32 %v437, 4294901760
      %v4360 = vsub.f32 %v437, %v4359
      %4361 = vmatpush.msra.mxu0 %v4360
      %v4362 = vand.u32 %v425, 4294901760
      %v4363 = vsub.f32 %v425, %v4362
      %4364 = vmatpush.msra.mxu0 %v4363
      %v4365 = vand.u32 %v540, 4294901760
      %v4366 = vsub.f32 %v540, %v4365
      %4367 = vmatmul.f32.gmra.mxu0 %v4366
      %v4368 = vpop.f32.mrf.mxu0
      %v4369 = vadd.f32 %v4325, %v4368
      %v4370 = vand.u32 %v543, 4294901760
      %v4371 = vsub.f32 %v543, %v4370
      %4372 = vmatmul.f32.gmra.mxu0 %v4371
      %v4373 = vpop.f32.mrf.mxu0
      %v4374 = vadd.f32 %v4329, %v4373
      %4375 = vdwg.mxu0
      %4376 = vmatpush.msra.mxu0 0.0
      %4377 = vmatpush.msra.mxu0 0.0
      %4378 = vmatpush.msra.mxu0 0.0
      %4379 = vmatpush.msra.mxu0 0.0
      %4380 = vmatpush.msra.mxu0 0.0
      %4381 = vmatpush.msra.mxu0 0.0
      %4382 = vmatpush.msra.mxu0 0.0
      %v4383 = vand.u32 %v562, 4294901760
      %4384 = vmatpush.msra.mxu0 %v4383
      %v4385 = vand.u32 %v509, 4294901760
      %4386 = vmatpush.msra.mxu0 %v4385
      %v4387 = vand.u32 %v497, 4294901760
      %4388 = vmatpush.msra.mxu0 %v4387
      %v4389 = vand.u32 %v485, 4294901760
      %4390 = vmatpush.msra.mxu0 %v4389
      %v4391 = vand.u32 %v473, 4294901760
      %4392 = vmatpush.msra.mxu0 %v4391
      %v4393 = vand.u32 %v461, 4294901760
      %4394 = vmatpush.msra.mxu0 %v4393
      %v4395 = vand.u32 %v449, 4294901760
      %4396 = vmatpush.msra.mxu0 %v4395
      %v4397 = vand.u32 %v437, 4294901760
      %4398 = vmatpush.msra.mxu0 %v4397
      %v4399 = vand.u32 %v425, 4294901760
      %4400 = vmatpush.msra.mxu0 %v4399
      %v4401 = vand.u32 %v540, 4294901760
      %v4402 = vsub.f32 %v540, %v4401
      %v4403 = vand.u32 %v4402, 4294901760
      %4404 = vmatmul.f32.gmra.mxu0 %v4403
      %v4405 = vpop.f32.mrf.mxu0
      %v4406 = vadd.f32 %v4369, %v4405
      %v4407 = vand.u32 %v543, 4294901760
      %v4408 = vsub.f32 %v543, %v4407
      %v4409 = vand.u32 %v4408, 4294901760
      %4410 = vmatmul.f32.gmra.mxu0 %v4409
      %v4411 = vpop.f32.mrf.mxu0
      %v4412 = vadd.f32 %v4374, %v4411
      %4413 = vdwg.mxu0
      %4414 = vmatpush.msra.mxu0 0.0
      %4415 = vmatpush.msra.mxu0 0.0
      %4416 = vmatpush.msra.mxu0 0.0
      %4417 = vmatpush.msra.mxu0 0.0
      %4418 = vmatpush.msra.mxu0 0.0
      %4419 = vmatpush.msra.mxu0 0.0
      %4420 = vmatpush.msra.mxu0 0.0
      %v4421 = vand.u32 %v562, 4294901760
      %v4422 = vsub.f32 %v562, %v4421
      %v4423 = vand.u32 %v4422, 4294901760
      %4424 = vmatpush.msra.mxu0 %v4423
      %v4425 = vand.u32 %v509, 4294901760
      %v4426 = vsub.f32 %v509, %v4425
      %v4427 = vand.u32 %v4426, 4294901760
      %4428 = vmatpush.msra.mxu0 %v4427
      %v4429 = vand.u32 %v497, 4294901760
      %v4430 = vsub.f32 %v497, %v4429
      %v4431 = vand.u32 %v4430, 4294901760
      %4432 = vmatpush.msra.mxu0 %v4431
      %v4433 = vand.u32 %v485, 4294901760
      %v4434 = vsub.f32 %v485, %v4433
      %v4435 = vand.u32 %v4434, 4294901760
      %4436 = vmatpush.msra.mxu0 %v4435
      %v4437 = vand.u32 %v473, 4294901760
      %v4438 = vsub.f32 %v473, %v4437
      %v4439 = vand.u32 %v4438, 4294901760
      %4440 = vmatpush.msra.mxu0 %v4439
      %v4441 = vand.u32 %v461, 4294901760
      %v4442 = vsub.f32 %v461, %v4441
      %v4443 = vand.u32 %v4442, 4294901760
      %4444 = vmatpush.msra.mxu0 %v4443
      %v4445 = vand.u32 %v449, 4294901760
      %v4446 = vsub.f32 %v449, %v4445
      %v4447 = vand.u32 %v4446, 4294901760
      %4448 = vmatpush.msra.mxu0 %v4447
      %v4449 = vand.u32 %v437, 4294901760
      %v4450 = vsub.f32 %v437, %v4449
      %v4451 = vand.u32 %v4450, 4294901760
      %4452 = vmatpush.msra.mxu0 %v4451
      %v4453 = vand.u32 %v425, 4294901760
      %v4454 = vsub.f32 %v425, %v4453
      %v4455 = vand.u32 %v4454, 4294901760
      %4456 = vmatpush.msra.mxu0 %v4455
      %v4457 = vand.u32 %v540, 4294901760
      %4458 = vmatmul.f32.gmra.mxu0 %v4457
      %v4459 = vpop.f32.mrf.mxu0
      %v4460 = vadd.f32 %v4406, %v4459
      %v4461 = vand.u32 %v543, 4294901760
      %4462 = vmatmul.f32.gmra.mxu0 %v4461
      %v4463 = vpop.f32.mrf.mxu0
      %v4464 = vadd.f32 %v4412, %v4463
      %4465 = vdwg.mxu0
      %4466 = vmatpush.msra.mxu0 0.0
      %4467 = vmatpush.msra.mxu0 0.0
      %4468 = vmatpush.msra.mxu0 0.0
      %4469 = vmatpush.msra.mxu0 0.0
      %4470 = vmatpush.msra.mxu0 0.0
      %4471 = vmatpush.msra.mxu0 0.0
      %4472 = vmatpush.msra.mxu0 0.0
      %v4473 = vand.u32 %v562, 4294901760
      %4474 = vmatpush.msra.mxu0 %v4473
      %v4475 = vand.u32 %v509, 4294901760
      %4476 = vmatpush.msra.mxu0 %v4475
      %v4477 = vand.u32 %v497, 4294901760
      %4478 = vmatpush.msra.mxu0 %v4477
      %v4479 = vand.u32 %v485, 4294901760
      %4480 = vmatpush.msra.mxu0 %v4479
      %v4481 = vand.u32 %v473, 4294901760
      %4482 = vmatpush.msra.mxu0 %v4481
      %v4483 = vand.u32 %v461, 4294901760
      %4484 = vmatpush.msra.mxu0 %v4483
      %v4485 = vand.u32 %v449, 4294901760
      %4486 = vmatpush.msra.mxu0 %v4485
      %v4487 = vand.u32 %v437, 4294901760
      %4488 = vmatpush.msra.mxu0 %v4487
      %v4489 = vand.u32 %v425, 4294901760
      %4490 = vmatpush.msra.mxu0 %v4489
      %v4491 = vand.u32 %v540, 4294901760
      %4492 = vmatmul.f32.gmra.mxu0 %v4491
      %v4493 = vpop.f32.mrf.mxu0
      %v4494 = vadd.f32 %v4460, %v4493
      %v4495 = vand.u32 %v543, 4294901760
      %4496 = vmatmul.f32.gmra.mxu0 %v4495
      %v4497 = vpop.f32.mrf.mxu0
      %v4498 = vadd.f32 %v4464, %v4497
      %4499 = vdwg.mxu0
      %v4500 = vand.u32 %v414, 4294901760
      %4501 = vmatpush.msra.mxu0 %v4500
      %v4502 = vand.u32 %v402, 4294901760
      %4503 = vmatpush.msra.mxu0 %v4502
      %v4504 = vand.u32 %v390, 4294901760
      %4505 = vmatpush.msra.mxu0 %v4504
      %v4506 = vand.u32 %v378, 4294901760
      %4507 = vmatpush.msra.mxu0 %v4506
      %v4508 = vand.u32 %v366, 4294901760
      %4509 = vmatpush.msra.mxu0 %v4508
      %v4510 = vand.u32 %v354, 4294901760
      %4511 = vmatpush.msra.mxu0 %v4510
      %v4512 = vand.u32 %v342, 4294901760
      %4513 = vmatpush.msra.mxu0 %v4512
      %v4514 = vand.u32 %v330, 4294901760
      %4515 = vmatpush.msra.mxu0 %v4514
      %v4516 = vand.u32 %v318, 4294901760
      %4517 = vmatpush.msra.mxu0 %v4516
      %v4518 = vand.u32 %v306, 4294901760
      %4519 = vmatpush.msra.mxu0 %v4518
      %v4520 = vand.u32 %v294, 4294901760
      %4521 = vmatpush.msra.mxu0 %v4520
      %v4522 = vand.u32 %v282, 4294901760
      %4523 = vmatpush.msra.mxu0 %v4522
      %v4524 = vand.u32 %v270, 4294901760
      %4525 = vmatpush.msra.mxu0 %v4524
      %v4526 = vand.u32 %v258, 4294901760
      %4527 = vmatpush.msra.mxu0 %v4526
      %v4528 = vand.u32 %v246, 4294901760
      %4529 = vmatpush.msra.mxu0 %v4528
      %v4530 = vand.u32 %v234, 4294901760
      %4531 = vmatpush.msra.mxu0 %v4530
      %v4532 = vand.u32 %v198, 4294901760
      %v4533 = vsub.f32 %v198, %v4532
      %v4534 = vand.u32 %v4533, 4294901760
      %v4535 = vsub.f32 %v4533, %v4534
      %v4536 = vand.u32 %v4535, 4294901760
      %4537 = vmatmul.f32.gmra.mxu0 %v4536
      %v4538 = vpop.f32.mrf.mxu0
      %v4539 = vadd.f32 %v531, %v4538
      %v4540 = vand.u32 %v200, 4294901760
      %v4541 = vsub.f32 %v200, %v4540
      %v4542 = vand.u32 %v4541, 4294901760
      %v4543 = vsub.f32 %v4541, %v4542
      %v4544 = vand.u32 %v4543, 4294901760
      %4545 = vmatmul.f32.gmra.mxu0 %v4544
      %v4546 = vpop.f32.mrf.mxu0
      %v4547 = vadd.f32 %v536, %v4546
      %4548 = vdwg.mxu0
      %v4549 = vand.u32 %v414, 4294901760
      %v4550 = vsub.f32 %v414, %v4549
      %v4551 = vand.u32 %v4550, 4294901760
      %v4552 = vsub.f32 %v4550, %v4551
      %v4553 = vand.u32 %v4552, 4294901760
      %4554 = vmatpush.msra.mxu0 %v4553
      %v4555 = vand.u32 %v402, 4294901760
      %v4556 = vsub.f32 %v402, %v4555
      %v4557 = vand.u32 %v4556, 4294901760
      %v4558 = vsub.f32 %v4556, %v4557
      %v4559 = vand.u32 %v4558, 4294901760
      %4560 = vmatpush.msra.mxu0 %v4559
      %v4561 = vand.u32 %v390, 4294901760
      %v4562 = vsub.f32 %v390, %v4561
      %v4563 = vand.u32 %v4562, 4294901760
      %v4564 = vsub.f32 %v4562, %v4563
      %v4565 = vand.u32 %v4564, 4294901760
      %4566 = vmatpush.msra.mxu0 %v4565
      %v4567 = vand.u32 %v378, 4294901760
      %v4568 = vsub.f32 %v378, %v4567
      %v4569 = vand.u32 %v4568, 4294901760
      %v4570 = vsub.f32 %v4568, %v4569
      %v4571 = vand.u32 %v4570, 4294901760
      %4572 = vmatpush.msra.mxu0 %v4571
      %v4573 = vand.u32 %v366, 4294901760
      %v4574 = vsub.f32 %v366, %v4573
      %v4575 = vand.u32 %v4574, 4294901760
      %v4576 = vsub.f32 %v4574, %v4575
      %v4577 = vand.u32 %v4576, 4294901760
      %4578 = vmatpush.msra.mxu0 %v4577
      %v4579 = vand.u32 %v354, 4294901760
      %v4580 = vsub.f32 %v354, %v4579
      %v4581 = vand.u32 %v4580, 4294901760
      %v4582 = vsub.f32 %v4580, %v4581
      %v4583 = vand.u32 %v4582, 4294901760
      %4584 = vmatpush.msra.mxu0 %v4583
      %v4585 = vand.u32 %v342, 4294901760
      %v4586 = vsub.f32 %v342, %v4585
      %v4587 = vand.u32 %v4586, 4294901760
      %v4588 = vsub.f32 %v4586, %v4587
      %v4589 = vand.u32 %v4588, 4294901760
      %4590 = vmatpush.msra.mxu0 %v4589
      %v4591 = vand.u32 %v330, 4294901760
      %v4592 = vsub.f32 %v330, %v4591
      %v4593 = vand.u32 %v4592, 4294901760
      %v4594 = vsub.f32 %v4592, %v4593
      %v4595 = vand.u32 %v4594, 4294901760
      %4596 = vmatpush.msra.mxu0 %v4595
      %v4597 = vand.u32 %v318, 4294901760
      %v4598 = vsub.f32 %v318, %v4597
      %v4599 = vand.u32 %v4598, 4294901760
      %v4600 = vsub.f32 %v4598, %v4599
      %v4601 = vand.u32 %v4600, 4294901760
      %4602 = vmatpush.msra.mxu0 %v4601
      %v4603 = vand.u32 %v306, 4294901760
      %v4604 = vsub.f32 %v306, %v4603
      %v4605 = vand.u32 %v4604, 4294901760
      %v4606 = vsub.f32 %v4604, %v4605
      %v4607 = vand.u32 %v4606, 4294901760
      %4608 = vmatpush.msra.mxu0 %v4607
      %v4609 = vand.u32 %v294, 4294901760
      %v4610 = vsub.f32 %v294, %v4609
      %v4611 = vand.u32 %v4610, 4294901760
      %v4612 = vsub.f32 %v4610, %v4611
      %v4613 = vand.u32 %v4612, 4294901760
      %4614 = vmatpush.msra.mxu0 %v4613
      %v4615 = vand.u32 %v282, 4294901760
      %v4616 = vsub.f32 %v282, %v4615
      %v4617 = vand.u32 %v4616, 4294901760
      %v4618 = vsub.f32 %v4616, %v4617
      %v4619 = vand.u32 %v4618, 4294901760
      %4620 = vmatpush.msra.mxu0 %v4619
      %v4621 = vand.u32 %v270, 4294901760
      %v4622 = vsub.f32 %v270, %v4621
      %v4623 = vand.u32 %v4622, 4294901760
      %v4624 = vsub.f32 %v4622, %v4623
      %v4625 = vand.u32 %v4624, 4294901760
      %4626 = vmatpush.msra.mxu0 %v4625
      %v4627 = vand.u32 %v258, 4294901760
      %v4628 = vsub.f32 %v258, %v4627
      %v4629 = vand.u32 %v4628, 4294901760
      %v4630 = vsub.f32 %v4628, %v4629
      %v4631 = vand.u32 %v4630, 4294901760
      %4632 = vmatpush.msra.mxu0 %v4631
      %v4633 = vand.u32 %v246, 4294901760
      %v4634 = vsub.f32 %v246, %v4633
      %v4635 = vand.u32 %v4634, 4294901760
      %v4636 = vsub.f32 %v4634, %v4635
      %v4637 = vand.u32 %v4636, 4294901760
      %4638 = vmatpush.msra.mxu0 %v4637
      %v4639 = vand.u32 %v234, 4294901760
      %v4640 = vsub.f32 %v234, %v4639
      %v4641 = vand.u32 %v4640, 4294901760
      %v4642 = vsub.f32 %v4640, %v4641
      %v4643 = vand.u32 %v4642, 4294901760
      %4644 = vmatpush.msra.mxu0 %v4643
      %v4645 = vand.u32 %v198, 4294901760
      %4646 = vmatmul.f32.gmra.mxu0 %v4645
      %v4647 = vpop.f32.mrf.mxu0
      %v4648 = vadd.f32 %v4539, %v4647
      %v4649 = vand.u32 %v200, 4294901760
      %4650 = vmatmul.f32.gmra.mxu0 %v4649
      %v4651 = vpop.f32.mrf.mxu0
      %v4652 = vadd.f32 %v4547, %v4651
      %4653 = vdwg.mxu0
      %v4654 = vand.u32 %v414, 4294901760
      %v4655 = vsub.f32 %v414, %v4654
      %4656 = vmatpush.msra.mxu0 %v4655
      %v4657 = vand.u32 %v402, 4294901760
      %v4658 = vsub.f32 %v402, %v4657
      %4659 = vmatpush.msra.mxu0 %v4658
      %v4660 = vand.u32 %v390, 4294901760
      %v4661 = vsub.f32 %v390, %v4660
      %4662 = vmatpush.msra.mxu0 %v4661
      %v4663 = vand.u32 %v378, 4294901760
      %v4664 = vsub.f32 %v378, %v4663
      %4665 = vmatpush.msra.mxu0 %v4664
      %v4666 = vand.u32 %v366, 4294901760
      %v4667 = vsub.f32 %v366, %v4666
      %4668 = vmatpush.msra.mxu0 %v4667
      %v4669 = vand.u32 %v354, 4294901760
      %v4670 = vsub.f32 %v354, %v4669
      %4671 = vmatpush.msra.mxu0 %v4670
      %v4672 = vand.u32 %v342, 4294901760
      %v4673 = vsub.f32 %v342, %v4672
      %4674 = vmatpush.msra.mxu0 %v4673
      %v4675 = vand.u32 %v330, 4294901760
      %v4676 = vsub.f32 %v330, %v4675
      %4677 = vmatpush.msra.mxu0 %v4676
      %v4678 = vand.u32 %v318, 4294901760
      %v4679 = vsub.f32 %v318, %v4678
      %4680 = vmatpush.msra.mxu0 %v4679
      %v4681 = vand.u32 %v306, 4294901760
      %v4682 = vsub.f32 %v306, %v4681
      %4683 = vmatpush.msra.mxu0 %v4682
      %v4684 = vand.u32 %v294, 4294901760
      %v4685 = vsub.f32 %v294, %v4684
      %4686 = vmatpush.msra.mxu0 %v4685
      %v4687 = vand.u32 %v282, 4294901760
      %v4688 = vsub.f32 %v282, %v4687
      %4689 = vmatpush.msra.mxu0 %v4688
      %v4690 = vand.u32 %v270, 4294901760
      %v4691 = vsub.f32 %v270, %v4690
      %4692 = vmatpush.msra.mxu0 %v4691
      %v4693 = vand.u32 %v258, 4294901760
      %v4694 = vsub.f32 %v258, %v4693
      %4695 = vmatpush.msra.mxu0 %v4694
      %v4696 = vand.u32 %v246, 4294901760
      %v4697 = vsub.f32 %v246, %v4696
      %4698 = vmatpush.msra.mxu0 %v4697
      %v4699 = vand.u32 %v234, 4294901760
      %v4700 = vsub.f32 %v234, %v4699
      %4701 = vmatpush.msra.mxu0 %v4700
      %v4702 = vand.u32 %v198, 4294901760
      %v4703 = vsub.f32 %v198, %v4702
      %4704 = vmatmul.f32.gmra.mxu0 %v4703
      %v4705 = vpop.f32.mrf.mxu0
      %v4706 = vadd.f32 %v4648, %v4705
      %v4707 = vand.u32 %v200, 4294901760
      %v4708 = vsub.f32 %v200, %v4707
      %4709 = vmatmul.f32.gmra.mxu0 %v4708
      %v4710 = vpop.f32.mrf.mxu0
      %v4711 = vadd.f32 %v4652, %v4710
      %4712 = vdwg.mxu0
      %v4713 = vand.u32 %v414, 4294901760
      %4714 = vmatpush.msra.mxu0 %v4713
      %v4715 = vand.u32 %v402, 4294901760
      %4716 = vmatpush.msra.mxu0 %v4715
      %v4717 = vand.u32 %v390, 4294901760
      %4718 = vmatpush.msra.mxu0 %v4717
      %v4719 = vand.u32 %v378, 4294901760
      %4720 = vmatpush.msra.mxu0 %v4719
      %v4721 = vand.u32 %v366, 4294901760
      %4722 = vmatpush.msra.mxu0 %v4721
      %v4723 = vand.u32 %v354, 4294901760
      %4724 = vmatpush.msra.mxu0 %v4723
      %v4725 = vand.u32 %v342, 4294901760
      %4726 = vmatpush.msra.mxu0 %v4725
      %v4727 = vand.u32 %v330, 4294901760
      %4728 = vmatpush.msra.mxu0 %v4727
      %v4729 = vand.u32 %v318, 4294901760
      %4730 = vmatpush.msra.mxu0 %v4729
      %v4731 = vand.u32 %v306, 4294901760
      %4732 = vmatpush.msra.mxu0 %v4731
      %v4733 = vand.u32 %v294, 4294901760
      %4734 = vmatpush.msra.mxu0 %v4733
      %v4735 = vand.u32 %v282, 4294901760
      %4736 = vmatpush.msra.mxu0 %v4735
      %v4737 = vand.u32 %v270, 4294901760
      %4738 = vmatpush.msra.mxu0 %v4737
      %v4739 = vand.u32 %v258, 4294901760
      %4740 = vmatpush.msra.mxu0 %v4739
      %v4741 = vand.u32 %v246, 4294901760
      %4742 = vmatpush.msra.mxu0 %v4741
      %v4743 = vand.u32 %v234, 4294901760
      %4744 = vmatpush.msra.mxu0 %v4743
      %v4745 = vand.u32 %v198, 4294901760
      %v4746 = vsub.f32 %v198, %v4745
      %v4747 = vand.u32 %v4746, 4294901760
      %4748 = vmatmul.f32.gmra.mxu0 %v4747
      %v4749 = vpop.f32.mrf.mxu0
      %v4750 = vadd.f32 %v4706, %v4749
      %v4751 = vand.u32 %v200, 4294901760
      %v4752 = vsub.f32 %v200, %v4751
      %v4753 = vand.u32 %v4752, 4294901760
      %4754 = vmatmul.f32.gmra.mxu0 %v4753
      %v4755 = vpop.f32.mrf.mxu0
      %v4756 = vadd.f32 %v4711, %v4755
      %4757 = vdwg.mxu0
      %v4758 = vand.u32 %v414, 4294901760
      %v4759 = vsub.f32 %v414, %v4758
      %v4760 = vand.u32 %v4759, 4294901760
      %4761 = vmatpush.msra.mxu0 %v4760
      %v4762 = vand.u32 %v402, 4294901760
      %v4763 = vsub.f32 %v402, %v4762
      %v4764 = vand.u32 %v4763, 4294901760
      %4765 = vmatpush.msra.mxu0 %v4764
      %v4766 = vand.u32 %v390, 4294901760
      %v4767 = vsub.f32 %v390, %v4766
      %v4768 = vand.u32 %v4767, 4294901760
      %4769 = vmatpush.msra.mxu0 %v4768
      %v4770 = vand.u32 %v378, 4294901760
      %v4771 = vsub.f32 %v378, %v4770
      %v4772 = vand.u32 %v4771, 4294901760
      %4773 = vmatpush.msra.mxu0 %v4772
      %v4774 = vand.u32 %v366, 4294901760
      %v4775 = vsub.f32 %v366, %v4774
      %v4776 = vand.u32 %v4775, 4294901760
      %4777 = vmatpush.msra.mxu0 %v4776
      %v4778 = vand.u32 %v354, 4294901760
      %v4779 = vsub.f32 %v354, %v4778
      %v4780 = vand.u32 %v4779, 4294901760
      %4781 = vmatpush.msra.mxu0 %v4780
      %v4782 = vand.u32 %v342, 4294901760
      %v4783 = vsub.f32 %v342, %v4782
      %v4784 = vand.u32 %v4783, 4294901760
      %4785 = vmatpush.msra.mxu0 %v4784
      %v4786 = vand.u32 %v330, 4294901760
      %v4787 = vsub.f32 %v330, %v4786
      %v4788 = vand.u32 %v4787, 4294901760
      %4789 = vmatpush.msra.mxu0 %v4788
      %v4790 = vand.u32 %v318, 4294901760
      %v4791 = vsub.f32 %v318, %v4790
      %v4792 = vand.u32 %v4791, 4294901760
      %4793 = vmatpush.msra.mxu0 %v4792
      %v4794 = vand.u32 %v306, 4294901760
      %v4795 = vsub.f32 %v306, %v4794
      %v4796 = vand.u32 %v4795, 4294901760
      %4797 = vmatpush.msra.mxu0 %v4796
      %v4798 = vand.u32 %v294, 4294901760
      %v4799 = vsub.f32 %v294, %v4798
      %v4800 = vand.u32 %v4799, 4294901760
      %4801 = vmatpush.msra.mxu0 %v4800
      %v4802 = vand.u32 %v282, 4294901760
      %v4803 = vsub.f32 %v282, %v4802
      %v4804 = vand.u32 %v4803, 4294901760
      %4805 = vmatpush.msra.mxu0 %v4804
      %v4806 = vand.u32 %v270, 4294901760
      %v4807 = vsub.f32 %v270, %v4806
      %v4808 = vand.u32 %v4807, 4294901760
      %4809 = vmatpush.msra.mxu0 %v4808
      %v4810 = vand.u32 %v258, 4294901760
      %v4811 = vsub.f32 %v258, %v4810
      %v4812 = vand.u32 %v4811, 4294901760
      %4813 = vmatpush.msra.mxu0 %v4812
      %v4814 = vand.u32 %v246, 4294901760
      %v4815 = vsub.f32 %v246, %v4814
      %v4816 = vand.u32 %v4815, 4294901760
      %4817 = vmatpush.msra.mxu0 %v4816
      %v4818 = vand.u32 %v234, 4294901760
      %v4819 = vsub.f32 %v234, %v4818
      %v4820 = vand.u32 %v4819, 4294901760
      %4821 = vmatpush.msra.mxu0 %v4820
      %v4822 = vand.u32 %v198, 4294901760
      %4823 = vmatmul.f32.gmra.mxu0 %v4822
      %v4824 = vpop.f32.mrf.mxu0
      %v4825 = vadd.f32 %v4750, %v4824
      %v4826 = vand.u32 %v200, 4294901760
      %4827 = vmatmul.f32.gmra.mxu0 %v4826
      %v4828 = vpop.f32.mrf.mxu0
      %v4829 = vadd.f32 %v4756, %v4828
      %4830 = vdwg.mxu0
      %v4831 = vand.u32 %v414, 4294901760
      %4832 = vmatpush.msra.mxu0 %v4831
      %v4833 = vand.u32 %v402, 4294901760
      %4834 = vmatpush.msra.mxu0 %v4833
      %v4835 = vand.u32 %v390, 4294901760
      %4836 = vmatpush.msra.mxu0 %v4835
      %v4837 = vand.u32 %v378, 4294901760
      %4838 = vmatpush.msra.mxu0 %v4837
      %v4839 = vand.u32 %v366, 4294901760
      %4840 = vmatpush.msra.mxu0 %v4839
      %v4841 = vand.u32 %v354, 4294901760
      %4842 = vmatpush.msra.mxu0 %v4841
      %v4843 = vand.u32 %v342, 4294901760
      %4844 = vmatpush.msra.mxu0 %v4843
      %v4845 = vand.u32 %v330, 4294901760
      %4846 = vmatpush.msra.mxu0 %v4845
      %v4847 = vand.u32 %v318, 4294901760
      %4848 = vmatpush.msra.mxu0 %v4847
      %v4849 = vand.u32 %v306, 4294901760
      %4850 = vmatpush.msra.mxu0 %v4849
      %v4851 = vand.u32 %v294, 4294901760
      %4852 = vmatpush.msra.mxu0 %v4851
      %v4853 = vand.u32 %v282, 4294901760
      %4854 = vmatpush.msra.mxu0 %v4853
      %v4855 = vand.u32 %v270, 4294901760
      %4856 = vmatpush.msra.mxu0 %v4855
      %v4857 = vand.u32 %v258, 4294901760
      %4858 = vmatpush.msra.mxu0 %v4857
      %v4859 = vand.u32 %v246, 4294901760
      %4860 = vmatpush.msra.mxu0 %v4859
      %v4861 = vand.u32 %v234, 4294901760
      %4862 = vmatpush.msra.mxu0 %v4861
      %v4863 = vand.u32 %v198, 4294901760
      %4864 = vmatmul.f32.gmra.mxu0 %v4863
      %v4865 = vpop.f32.mrf.mxu0
      %v4866 = vadd.f32 %v4825, %v4865
      %v4867 = vand.u32 %v200, 4294901760
      %4868 = vmatmul.f32.gmra.mxu0 %v4867
      %v4869 = vpop.f32.mrf.mxu0
      %v4870 = vadd.f32 %v4829, %v4869
      %4871 = vdwg.mxu0
      %4872 = vmatpush.msra.mxu0 0.0
      %4873 = vmatpush.msra.mxu0 0.0
      %4874 = vmatpush.msra.mxu0 0.0
      %4875 = vmatpush.msra.mxu0 0.0
      %4876 = vmatpush.msra.mxu0 0.0
      %4877 = vmatpush.msra.mxu0 0.0
      %4878 = vmatpush.msra.mxu0 0.0
      %v4879 = vand.u32 %v565, 4294901760
      %4880 = vmatpush.msra.mxu0 %v4879
      %v4881 = vand.u32 %v510, 4294901760
      %4882 = vmatpush.msra.mxu0 %v4881
      %v4883 = vand.u32 %v498, 4294901760
      %4884 = vmatpush.msra.mxu0 %v4883
      %v4885 = vand.u32 %v486, 4294901760
      %4886 = vmatpush.msra.mxu0 %v4885
      %v4887 = vand.u32 %v474, 4294901760
      %4888 = vmatpush.msra.mxu0 %v4887
      %v4889 = vand.u32 %v462, 4294901760
      %4890 = vmatpush.msra.mxu0 %v4889
      %v4891 = vand.u32 %v450, 4294901760
      %4892 = vmatpush.msra.mxu0 %v4891
      %v4893 = vand.u32 %v438, 4294901760
      %4894 = vmatpush.msra.mxu0 %v4893
      %v4895 = vand.u32 %v426, 4294901760
      %4896 = vmatpush.msra.mxu0 %v4895
      %v4897 = vand.u32 %v540, 4294901760
      %v4898 = vsub.f32 %v540, %v4897
      %v4899 = vand.u32 %v4898, 4294901760
      %v4900 = vsub.f32 %v4898, %v4899
      %v4901 = vand.u32 %v4900, 4294901760
      %4902 = vmatmul.f32.gmra.mxu0 %v4901
      %v4903 = vpop.f32.mrf.mxu0
      %v4904 = vadd.f32 %v4866, %v4903
      %v4905 = vand.u32 %v543, 4294901760
      %v4906 = vsub.f32 %v543, %v4905
      %v4907 = vand.u32 %v4906, 4294901760
      %v4908 = vsub.f32 %v4906, %v4907
      %v4909 = vand.u32 %v4908, 4294901760
      %4910 = vmatmul.f32.gmra.mxu0 %v4909
      %v4911 = vpop.f32.mrf.mxu0
      %v4912 = vadd.f32 %v4870, %v4911
      %4913 = vdwg.mxu0
      %4914 = vmatpush.msra.mxu0 0.0
      %4915 = vmatpush.msra.mxu0 0.0
      %4916 = vmatpush.msra.mxu0 0.0
      %4917 = vmatpush.msra.mxu0 0.0
      %4918 = vmatpush.msra.mxu0 0.0
      %4919 = vmatpush.msra.mxu0 0.0
      %4920 = vmatpush.msra.mxu0 0.0
      %v4921 = vand.u32 %v565, 4294901760
      %v4922 = vsub.f32 %v565, %v4921
      %v4923 = vand.u32 %v4922, 4294901760
      %v4924 = vsub.f32 %v4922, %v4923
      %v4925 = vand.u32 %v4924, 4294901760
      %4926 = vmatpush.msra.mxu0 %v4925
      %v4927 = vand.u32 %v510, 4294901760
      %v4928 = vsub.f32 %v510, %v4927
      %v4929 = vand.u32 %v4928, 4294901760
      %v4930 = vsub.f32 %v4928, %v4929
      %v4931 = vand.u32 %v4930, 4294901760
      %4932 = vmatpush.msra.mxu0 %v4931
      %v4933 = vand.u32 %v498, 4294901760
      %v4934 = vsub.f32 %v498, %v4933
      %v4935 = vand.u32 %v4934, 4294901760
      %v4936 = vsub.f32 %v4934, %v4935
      %v4937 = vand.u32 %v4936, 4294901760
      %4938 = vmatpush.msra.mxu0 %v4937
      %v4939 = vand.u32 %v486, 4294901760
      %v4940 = vsub.f32 %v486, %v4939
      %v4941 = vand.u32 %v4940, 4294901760
      %v4942 = vsub.f32 %v4940, %v4941
      %v4943 = vand.u32 %v4942, 4294901760
      %4944 = vmatpush.msra.mxu0 %v4943
      %v4945 = vand.u32 %v474, 4294901760
      %v4946 = vsub.f32 %v474, %v4945
      %v4947 = vand.u32 %v4946, 4294901760
      %v4948 = vsub.f32 %v4946, %v4947
      %v4949 = vand.u32 %v4948, 4294901760
      %4950 = vmatpush.msra.mxu0 %v4949
      %v4951 = vand.u32 %v462, 4294901760
      %v4952 = vsub.f32 %v462, %v4951
      %v4953 = vand.u32 %v4952, 4294901760
      %v4954 = vsub.f32 %v4952, %v4953
      %v4955 = vand.u32 %v4954, 4294901760
      %4956 = vmatpush.msra.mxu0 %v4955
      %v4957 = vand.u32 %v450, 4294901760
      %v4958 = vsub.f32 %v450, %v4957
      %v4959 = vand.u32 %v4958, 4294901760
      %v4960 = vsub.f32 %v4958, %v4959
      %v4961 = vand.u32 %v4960, 4294901760
      %4962 = vmatpush.msra.mxu0 %v4961
      %v4963 = vand.u32 %v438, 4294901760
      %v4964 = vsub.f32 %v438, %v4963
      %v4965 = vand.u32 %v4964, 4294901760
      %v4966 = vsub.f32 %v4964, %v4965
      %v4967 = vand.u32 %v4966, 4294901760
      %4968 = vmatpush.msra.mxu0 %v4967
      %v4969 = vand.u32 %v426, 4294901760
      %v4970 = vsub.f32 %v426, %v4969
      %v4971 = vand.u32 %v4970, 4294901760
      %v4972 = vsub.f32 %v4970, %v4971
      %v4973 = vand.u32 %v4972, 4294901760
      %4974 = vmatpush.msra.mxu0 %v4973
      %v4975 = vand.u32 %v540, 4294901760
      %4976 = vmatmul.f32.gmra.mxu0 %v4975
      %v4977 = vpop.f32.mrf.mxu0
      %v4978 = vadd.f32 %v4904, %v4977
      %v4979 = vand.u32 %v543, 4294901760
      %4980 = vmatmul.f32.gmra.mxu0 %v4979
      %v4981 = vpop.f32.mrf.mxu0
      %v4982 = vadd.f32 %v4912, %v4981
      %4983 = vdwg.mxu0
      %4984 = vmatpush.msra.mxu0 0.0
      %4985 = vmatpush.msra.mxu0 0.0
      %4986 = vmatpush.msra.mxu0 0.0
      %4987 = vmatpush.msra.mxu0 0.0
      %4988 = vmatpush.msra.mxu0 0.0
      %4989 = vmatpush.msra.mxu0 0.0
      %4990 = vmatpush.msra.mxu0 0.0
      %v4991 = vand.u32 %v565, 4294901760
      %v4992 = vsub.f32 %v565, %v4991
      %4993 = vmatpush.msra.mxu0 %v4992
      %v4994 = vand.u32 %v510, 4294901760
      %v4995 = vsub.f32 %v510, %v4994
      %4996 = vmatpush.msra.mxu0 %v4995
      %v4997 = vand.u32 %v498, 4294901760
      %v4998 = vsub.f32 %v498, %v4997
      %4999 = vmatpush.msra.mxu0 %v4998
      %v5000 = vand.u32 %v486, 4294901760
      %v5001 = vsub.f32 %v486, %v5000
      %5002 = vmatpush.msra.mxu0 %v5001
      %v5003 = vand.u32 %v474, 4294901760
      %v5004 = vsub.f32 %v474, %v5003
      %5005 = vmatpush.msra.mxu0 %v5004
      %v5006 = vand.u32 %v462, 4294901760
      %v5007 = vsub.f32 %v462, %v5006
      %5008 = vmatpush.msra.mxu0 %v5007
      %v5009 = vand.u32 %v450, 4294901760
      %v5010 = vsub.f32 %v450, %v5009
      %5011 = vmatpush.msra.mxu0 %v5010
      %v5012 = vand.u32 %v438, 4294901760
      %v5013 = vsub.f32 %v438, %v5012
      %5014 = vmatpush.msra.mxu0 %v5013
      %v5015 = vand.u32 %v426, 4294901760
      %v5016 = vsub.f32 %v426, %v5015
      %5017 = vmatpush.msra.mxu0 %v5016
      %v5018 = vand.u32 %v540, 4294901760
      %v5019 = vsub.f32 %v540, %v5018
      %5020 = vmatmul.f32.gmra.mxu0 %v5019
      %v5021 = vpop.f32.mrf.mxu0
      %v5022 = vadd.f32 %v4978, %v5021
      %v5023 = vand.u32 %v543, 4294901760
      %v5024 = vsub.f32 %v543, %v5023
      %5025 = vmatmul.f32.gmra.mxu0 %v5024
      %v5026 = vpop.f32.mrf.mxu0
      %v5027 = vadd.f32 %v4982, %v5026
      %5028 = vdwg.mxu0
      %5029 = vmatpush.msra.mxu0 0.0
      %5030 = vmatpush.msra.mxu0 0.0
      %5031 = vmatpush.msra.mxu0 0.0
      %5032 = vmatpush.msra.mxu0 0.0
      %5033 = vmatpush.msra.mxu0 0.0
      %5034 = vmatpush.msra.mxu0 0.0
      %5035 = vmatpush.msra.mxu0 0.0
      %v5036 = vand.u32 %v565, 4294901760
      %5037 = vmatpush.msra.mxu0 %v5036
      %v5038 = vand.u32 %v510, 4294901760
      %5039 = vmatpush.msra.mxu0 %v5038
      %v5040 = vand.u32 %v498, 4294901760
      %5041 = vmatpush.msra.mxu0 %v5040
      %v5042 = vand.u32 %v486, 4294901760
      %5043 = vmatpush.msra.mxu0 %v5042
      %v5044 = vand.u32 %v474, 4294901760
      %5045 = vmatpush.msra.mxu0 %v5044
      %v5046 = vand.u32 %v462, 4294901760
      %5047 = vmatpush.msra.mxu0 %v5046
      %v5048 = vand.u32 %v450, 4294901760
      %5049 = vmatpush.msra.mxu0 %v5048
      %v5050 = vand.u32 %v438, 4294901760
      %5051 = vmatpush.msra.mxu0 %v5050
      %v5052 = vand.u32 %v426, 4294901760
      %5053 = vmatpush.msra.mxu0 %v5052
      %v5054 = vand.u32 %v540, 4294901760
      %v5055 = vsub.f32 %v540, %v5054
      %v5056 = vand.u32 %v5055, 4294901760
      %5057 = vmatmul.f32.gmra.mxu0 %v5056
      %v5058 = vpop.f32.mrf.mxu0
      %v5059 = vadd.f32 %v5022, %v5058
      %v5060 = vand.u32 %v543, 4294901760
      %v5061 = vsub.f32 %v543, %v5060
      %v5062 = vand.u32 %v5061, 4294901760
      %5063 = vmatmul.f32.gmra.mxu0 %v5062
      %v5064 = vpop.f32.mrf.mxu0
      %v5065 = vadd.f32 %v5027, %v5064
      %5066 = vdwg.mxu0
      %5067 = vmatpush.msra.mxu0 0.0
      %5068 = vmatpush.msra.mxu0 0.0
      %5069 = vmatpush.msra.mxu0 0.0
      %5070 = vmatpush.msra.mxu0 0.0
      %5071 = vmatpush.msra.mxu0 0.0
      %5072 = vmatpush.msra.mxu0 0.0
      %5073 = vmatpush.msra.mxu0 0.0
      %v5074 = vand.u32 %v565, 4294901760
      %v5075 = vsub.f32 %v565, %v5074
      %v5076 = vand.u32 %v5075, 4294901760
      %5077 = vmatpush.msra.mxu0 %v5076
      %v5078 = vand.u32 %v510, 4294901760
      %v5079 = vsub.f32 %v510, %v5078
      %v5080 = vand.u32 %v5079, 4294901760
      %5081 = vmatpush.msra.mxu0 %v5080
      %v5082 = vand.u32 %v498, 4294901760
      %v5083 = vsub.f32 %v498, %v5082
      %v5084 = vand.u32 %v5083, 4294901760
      %5085 = vmatpush.msra.mxu0 %v5084
      %v5086 = vand.u32 %v486, 4294901760
      %v5087 = vsub.f32 %v486, %v5086
      %v5088 = vand.u32 %v5087, 4294901760
      %5089 = vmatpush.msra.mxu0 %v5088
      %v5090 = vand.u32 %v474, 4294901760
      %v5091 = vsub.f32 %v474, %v5090
      %v5092 = vand.u32 %v5091, 4294901760
      %5093 = vmatpush.msra.mxu0 %v5092
      %v5094 = vand.u32 %v462, 4294901760
      %v5095 = vsub.f32 %v462, %v5094
      %v5096 = vand.u32 %v5095, 4294901760
      %5097 = vmatpush.msra.mxu0 %v5096
      %v5098 = vand.u32 %v450, 4294901760
      %v5099 = vsub.f32 %v450, %v5098
      %v5100 = vand.u32 %v5099, 4294901760
      %5101 = vmatpush.msra.mxu0 %v5100
      %v5102 = vand.u32 %v438, 4294901760
      %v5103 = vsub.f32 %v438, %v5102
      %v5104 = vand.u32 %v5103, 4294901760
      %5105 = vmatpush.msra.mxu0 %v5104
      %v5106 = vand.u32 %v426, 4294901760
      %v5107 = vsub.f32 %v426, %v5106
      %v5108 = vand.u32 %v5107, 4294901760
      %5109 = vmatpush.msra.mxu0 %v5108
      %v5110 = vand.u32 %v540, 4294901760
      %5111 = vmatmul.f32.gmra.mxu0 %v5110
      %v5112 = vpop.f32.mrf.mxu0
      %v5113 = vadd.f32 %v5059, %v5112
      %v5114 = vand.u32 %v543, 4294901760
      %5115 = vmatmul.f32.gmra.mxu0 %v5114
      %v5116 = vpop.f32.mrf.mxu0
      %v5117 = vadd.f32 %v5065, %v5116
      %5118 = vdwg.mxu0
      %5119 = vmatpush.msra.mxu0 0.0
      %5120 = vmatpush.msra.mxu0 0.0
      %5121 = vmatpush.msra.mxu0 0.0
      %5122 = vmatpush.msra.mxu0 0.0
      %5123 = vmatpush.msra.mxu0 0.0
      %5124 = vmatpush.msra.mxu0 0.0
      %5125 = vmatpush.msra.mxu0 0.0
      %v5126 = vand.u32 %v565, 4294901760
      %5127 = vmatpush.msra.mxu0 %v5126
      %v5128 = vand.u32 %v510, 4294901760
      %5129 = vmatpush.msra.mxu0 %v5128
      %v5130 = vand.u32 %v498, 4294901760
      %5131 = vmatpush.msra.mxu0 %v5130
      %v5132 = vand.u32 %v486, 4294901760
      %5133 = vmatpush.msra.mxu0 %v5132
      %v5134 = vand.u32 %v474, 4294901760
      %5135 = vmatpush.msra.mxu0 %v5134
      %v5136 = vand.u32 %v462, 4294901760
      %5137 = vmatpush.msra.mxu0 %v5136
      %v5138 = vand.u32 %v450, 4294901760
      %5139 = vmatpush.msra.mxu0 %v5138
      %v5140 = vand.u32 %v438, 4294901760
      %5141 = vmatpush.msra.mxu0 %v5140
      %v5142 = vand.u32 %v426, 4294901760
      %5143 = vmatpush.msra.mxu0 %v5142
      %v5144 = vand.u32 %v540, 4294901760
      %5145 = vmatmul.f32.gmra.mxu0 %v5144
      %v5146 = vpop.f32.mrf.mxu0
      %v5147 = vadd.f32 %v5113, %v5146
      %v5148 = vand.u32 %v543, 4294901760
      %5149 = vmatmul.f32.gmra.mxu0 %v5148
      %v5150 = vpop.f32.mrf.mxu0
      %v5151 = vadd.f32 %v5117, %v5150
      %5152 = vdwg.mxu0
      %v5153 = vand.u32 %v415, 4294901760
      %5154 = vmatpush.msra.mxu0 %v5153
      %v5155 = vand.u32 %v403, 4294901760
      %5156 = vmatpush.msra.mxu0 %v5155
      %v5157 = vand.u32 %v391, 4294901760
      %5158 = vmatpush.msra.mxu0 %v5157
      %v5159 = vand.u32 %v379, 4294901760
      %5160 = vmatpush.msra.mxu0 %v5159
      %v5161 = vand.u32 %v367, 4294901760
      %5162 = vmatpush.msra.mxu0 %v5161
      %v5163 = vand.u32 %v355, 4294901760
      %5164 = vmatpush.msra.mxu0 %v5163
      %v5165 = vand.u32 %v343, 4294901760
      %5166 = vmatpush.msra.mxu0 %v5165
      %v5167 = vand.u32 %v331, 4294901760
      %5168 = vmatpush.msra.mxu0 %v5167
      %v5169 = vand.u32 %v319, 4294901760
      %5170 = vmatpush.msra.mxu0 %v5169
      %v5171 = vand.u32 %v307, 4294901760
      %5172 = vmatpush.msra.mxu0 %v5171
      %v5173 = vand.u32 %v295, 4294901760
      %5174 = vmatpush.msra.mxu0 %v5173
      %v5175 = vand.u32 %v283, 4294901760
      %5176 = vmatpush.msra.mxu0 %v5175
      %v5177 = vand.u32 %v271, 4294901760
      %5178 = vmatpush.msra.mxu0 %v5177
      %v5179 = vand.u32 %v259, 4294901760
      %5180 = vmatpush.msra.mxu0 %v5179
      %v5181 = vand.u32 %v247, 4294901760
      %5182 = vmatpush.msra.mxu0 %v5181
      %v5183 = vand.u32 %v235, 4294901760
      %5184 = vmatpush.msra.mxu0 %v5183
      %v5185 = vand.u32 %v198, 4294901760
      %v5186 = vsub.f32 %v198, %v5185
      %v5187 = vand.u32 %v5186, 4294901760
      %v5188 = vsub.f32 %v5186, %v5187
      %v5189 = vand.u32 %v5188, 4294901760
      %5190 = vmatmul.f32.gmra.mxu0 %v5189
      %v5191 = vpop.f32.mrf.mxu0
      %v5192 = vadd.f32 %v531, %v5191
      %v5193 = vand.u32 %v200, 4294901760
      %v5194 = vsub.f32 %v200, %v5193
      %v5195 = vand.u32 %v5194, 4294901760
      %v5196 = vsub.f32 %v5194, %v5195
      %v5197 = vand.u32 %v5196, 4294901760
      %5198 = vmatmul.f32.gmra.mxu0 %v5197
      %v5199 = vpop.f32.mrf.mxu0
      %v5200 = vadd.f32 %v536, %v5199
      %5201 = vdwg.mxu0
      %v5202 = vand.u32 %v415, 4294901760
      %v5203 = vsub.f32 %v415, %v5202
      %v5204 = vand.u32 %v5203, 4294901760
      %v5205 = vsub.f32 %v5203, %v5204
      %v5206 = vand.u32 %v5205, 4294901760
      %5207 = vmatpush.msra.mxu0 %v5206
      %v5208 = vand.u32 %v403, 4294901760
      %v5209 = vsub.f32 %v403, %v5208
      %v5210 = vand.u32 %v5209, 4294901760
      %v5211 = vsub.f32 %v5209, %v5210
      %v5212 = vand.u32 %v5211, 4294901760
      %5213 = vmatpush.msra.mxu0 %v5212
      %v5214 = vand.u32 %v391, 4294901760
      %v5215 = vsub.f32 %v391, %v5214
      %v5216 = vand.u32 %v5215, 4294901760
      %v5217 = vsub.f32 %v5215, %v5216
      %v5218 = vand.u32 %v5217, 4294901760
      %5219 = vmatpush.msra.mxu0 %v5218
      %v5220 = vand.u32 %v379, 4294901760
      %v5221 = vsub.f32 %v379, %v5220
      %v5222 = vand.u32 %v5221, 4294901760
      %v5223 = vsub.f32 %v5221, %v5222
      %v5224 = vand.u32 %v5223, 4294901760
      %5225 = vmatpush.msra.mxu0 %v5224
      %v5226 = vand.u32 %v367, 4294901760
      %v5227 = vsub.f32 %v367, %v5226
      %v5228 = vand.u32 %v5227, 4294901760
      %v5229 = vsub.f32 %v5227, %v5228
      %v5230 = vand.u32 %v5229, 4294901760
      %5231 = vmatpush.msra.mxu0 %v5230
      %v5232 = vand.u32 %v355, 4294901760
      %v5233 = vsub.f32 %v355, %v5232
      %v5234 = vand.u32 %v5233, 4294901760
      %v5235 = vsub.f32 %v5233, %v5234
      %v5236 = vand.u32 %v5235, 4294901760
      %5237 = vmatpush.msra.mxu0 %v5236
      %v5238 = vand.u32 %v343, 4294901760
      %v5239 = vsub.f32 %v343, %v5238
      %v5240 = vand.u32 %v5239, 4294901760
      %v5241 = vsub.f32 %v5239, %v5240
      %v5242 = vand.u32 %v5241, 4294901760
      %5243 = vmatpush.msra.mxu0 %v5242
      %v5244 = vand.u32 %v331, 4294901760
      %v5245 = vsub.f32 %v331, %v5244
      %v5246 = vand.u32 %v5245, 4294901760
      %v5247 = vsub.f32 %v5245, %v5246
      %v5248 = vand.u32 %v5247, 4294901760
      %5249 = vmatpush.msra.mxu0 %v5248
      %v5250 = vand.u32 %v319, 4294901760
      %v5251 = vsub.f32 %v319, %v5250
      %v5252 = vand.u32 %v5251, 4294901760
      %v5253 = vsub.f32 %v5251, %v5252
      %v5254 = vand.u32 %v5253, 4294901760
      %5255 = vmatpush.msra.mxu0 %v5254
      %v5256 = vand.u32 %v307, 4294901760
      %v5257 = vsub.f32 %v307, %v5256
      %v5258 = vand.u32 %v5257, 4294901760
      %v5259 = vsub.f32 %v5257, %v5258
      %v5260 = vand.u32 %v5259, 4294901760
      %5261 = vmatpush.msra.mxu0 %v5260
      %v5262 = vand.u32 %v295, 4294901760
      %v5263 = vsub.f32 %v295, %v5262
      %v5264 = vand.u32 %v5263, 4294901760
      %v5265 = vsub.f32 %v5263, %v5264
      %v5266 = vand.u32 %v5265, 4294901760
      %5267 = vmatpush.msra.mxu0 %v5266
      %v5268 = vand.u32 %v283, 4294901760
      %v5269 = vsub.f32 %v283, %v5268
      %v5270 = vand.u32 %v5269, 4294901760
      %v5271 = vsub.f32 %v5269, %v5270
      %v5272 = vand.u32 %v5271, 4294901760
      %5273 = vmatpush.msra.mxu0 %v5272
      %v5274 = vand.u32 %v271, 4294901760
      %v5275 = vsub.f32 %v271, %v5274
      %v5276 = vand.u32 %v5275, 4294901760
      %v5277 = vsub.f32 %v5275, %v5276
      %v5278 = vand.u32 %v5277, 4294901760
      %5279 = vmatpush.msra.mxu0 %v5278
      %v5280 = vand.u32 %v259, 4294901760
      %v5281 = vsub.f32 %v259, %v5280
      %v5282 = vand.u32 %v5281, 4294901760
      %v5283 = vsub.f32 %v5281, %v5282
      %v5284 = vand.u32 %v5283, 4294901760
      %5285 = vmatpush.msra.mxu0 %v5284
      %v5286 = vand.u32 %v247, 4294901760
      %v5287 = vsub.f32 %v247, %v5286
      %v5288 = vand.u32 %v5287, 4294901760
      %v5289 = vsub.f32 %v5287, %v5288
      %v5290 = vand.u32 %v5289, 4294901760
      %5291 = vmatpush.msra.mxu0 %v5290
      %v5292 = vand.u32 %v235, 4294901760
      %v5293 = vsub.f32 %v235, %v5292
      %v5294 = vand.u32 %v5293, 4294901760
      %v5295 = vsub.f32 %v5293, %v5294
      %v5296 = vand.u32 %v5295, 4294901760
      %5297 = vmatpush.msra.mxu0 %v5296
      %v5298 = vand.u32 %v198, 4294901760
      %5299 = vmatmul.f32.gmra.mxu0 %v5298
      %v5300 = vpop.f32.mrf.mxu0
      %v5301 = vadd.f32 %v5192, %v5300
      %v5302 = vand.u32 %v200, 4294901760
      %5303 = vmatmul.f32.gmra.mxu0 %v5302
      %v5304 = vpop.f32.mrf.mxu0
      %v5305 = vadd.f32 %v5200, %v5304
      %5306 = vdwg.mxu0
      %v5307 = vand.u32 %v415, 4294901760
      %v5308 = vsub.f32 %v415, %v5307
      %5309 = vmatpush.msra.mxu0 %v5308
      %v5310 = vand.u32 %v403, 4294901760
      %v5311 = vsub.f32 %v403, %v5310
      %5312 = vmatpush.msra.mxu0 %v5311
      %v5313 = vand.u32 %v391, 4294901760
      %v5314 = vsub.f32 %v391, %v5313
      %5315 = vmatpush.msra.mxu0 %v5314
      %v5316 = vand.u32 %v379, 4294901760
      %v5317 = vsub.f32 %v379, %v5316
      %5318 = vmatpush.msra.mxu0 %v5317
      %v5319 = vand.u32 %v367, 4294901760
      %v5320 = vsub.f32 %v367, %v5319
      %5321 = vmatpush.msra.mxu0 %v5320
      %v5322 = vand.u32 %v355, 4294901760
      %v5323 = vsub.f32 %v355, %v5322
      %5324 = vmatpush.msra.mxu0 %v5323
      %v5325 = vand.u32 %v343, 4294901760
      %v5326 = vsub.f32 %v343, %v5325
      %5327 = vmatpush.msra.mxu0 %v5326
      %v5328 = vand.u32 %v331, 4294901760
      %v5329 = vsub.f32 %v331, %v5328
      %5330 = vmatpush.msra.mxu0 %v5329
      %v5331 = vand.u32 %v319, 4294901760
      %v5332 = vsub.f32 %v319, %v5331
      %5333 = vmatpush.msra.mxu0 %v5332
      %v5334 = vand.u32 %v307, 4294901760
      %v5335 = vsub.f32 %v307, %v5334
      %5336 = vmatpush.msra.mxu0 %v5335
      %v5337 = vand.u32 %v295, 4294901760
      %v5338 = vsub.f32 %v295, %v5337
      %5339 = vmatpush.msra.mxu0 %v5338
      %v5340 = vand.u32 %v283, 4294901760
      %v5341 = vsub.f32 %v283, %v5340
      %5342 = vmatpush.msra.mxu0 %v5341
      %v5343 = vand.u32 %v271, 4294901760
      %v5344 = vsub.f32 %v271, %v5343
      %5345 = vmatpush.msra.mxu0 %v5344
      %v5346 = vand.u32 %v259, 4294901760
      %v5347 = vsub.f32 %v259, %v5346
      %5348 = vmatpush.msra.mxu0 %v5347
      %v5349 = vand.u32 %v247, 4294901760
      %v5350 = vsub.f32 %v247, %v5349
      %5351 = vmatpush.msra.mxu0 %v5350
      %v5352 = vand.u32 %v235, 4294901760
      %v5353 = vsub.f32 %v235, %v5352
      %5354 = vmatpush.msra.mxu0 %v5353
      %v5355 = vand.u32 %v198, 4294901760
      %v5356 = vsub.f32 %v198, %v5355
      %5357 = vmatmul.f32.gmra.mxu0 %v5356
      %v5358 = vpop.f32.mrf.mxu0
      %v5359 = vadd.f32 %v5301, %v5358
      %v5360 = vand.u32 %v200, 4294901760
      %v5361 = vsub.f32 %v200, %v5360
      %5362 = vmatmul.f32.gmra.mxu0 %v5361
      %v5363 = vpop.f32.mrf.mxu0
      %v5364 = vadd.f32 %v5305, %v5363
      %5365 = vdwg.mxu0
      %v5366 = vand.u32 %v415, 4294901760
      %5367 = vmatpush.msra.mxu0 %v5366
      %v5368 = vand.u32 %v403, 4294901760
      %5369 = vmatpush.msra.mxu0 %v5368
      %v5370 = vand.u32 %v391, 4294901760
      %5371 = vmatpush.msra.mxu0 %v5370
      %v5372 = vand.u32 %v379, 4294901760
      %5373 = vmatpush.msra.mxu0 %v5372
      %v5374 = vand.u32 %v367, 4294901760
      %5375 = vmatpush.msra.mxu0 %v5374
      %v5376 = vand.u32 %v355, 4294901760
      %5377 = vmatpush.msra.mxu0 %v5376
      %v5378 = vand.u32 %v343, 4294901760
      %5379 = vmatpush.msra.mxu0 %v5378
      %v5380 = vand.u32 %v331, 4294901760
      %5381 = vmatpush.msra.mxu0 %v5380
      %v5382 = vand.u32 %v319, 4294901760
      %5383 = vmatpush.msra.mxu0 %v5382
      %v5384 = vand.u32 %v307, 4294901760
      %5385 = vmatpush.msra.mxu0 %v5384
      %v5386 = vand.u32 %v295, 4294901760
      %5387 = vmatpush.msra.mxu0 %v5386
      %v5388 = vand.u32 %v283, 4294901760
      %5389 = vmatpush.msra.mxu0 %v5388
      %v5390 = vand.u32 %v271, 4294901760
      %5391 = vmatpush.msra.mxu0 %v5390
      %v5392 = vand.u32 %v259, 4294901760
      %5393 = vmatpush.msra.mxu0 %v5392
      %v5394 = vand.u32 %v247, 4294901760
      %5395 = vmatpush.msra.mxu0 %v5394
      %v5396 = vand.u32 %v235, 4294901760
      %5397 = vmatpush.msra.mxu0 %v5396
      %v5398 = vand.u32 %v198, 4294901760
      %v5399 = vsub.f32 %v198, %v5398
      %v5400 = vand.u32 %v5399, 4294901760
      %5401 = vmatmul.f32.gmra.mxu0 %v5400
      %v5402 = vpop.f32.mrf.mxu0
      %v5403 = vadd.f32 %v5359, %v5402
      %v5404 = vand.u32 %v200, 4294901760
      %v5405 = vsub.f32 %v200, %v5404
      %v5406 = vand.u32 %v5405, 4294901760
      %5407 = vmatmul.f32.gmra.mxu0 %v5406
      %v5408 = vpop.f32.mrf.mxu0
      %v5409 = vadd.f32 %v5364, %v5408
      %5410 = vdwg.mxu0
      %v5411 = vand.u32 %v415, 4294901760
      %v5412 = vsub.f32 %v415, %v5411
      %v5413 = vand.u32 %v5412, 4294901760
      %5414 = vmatpush.msra.mxu0 %v5413
      %v5415 = vand.u32 %v403, 4294901760
      %v5416 = vsub.f32 %v403, %v5415
      %v5417 = vand.u32 %v5416, 4294901760
      %5418 = vmatpush.msra.mxu0 %v5417
      %v5419 = vand.u32 %v391, 4294901760
      %v5420 = vsub.f32 %v391, %v5419
      %v5421 = vand.u32 %v5420, 4294901760
      %5422 = vmatpush.msra.mxu0 %v5421
      %v5423 = vand.u32 %v379, 4294901760
      %v5424 = vsub.f32 %v379, %v5423
      %v5425 = vand.u32 %v5424, 4294901760
      %5426 = vmatpush.msra.mxu0 %v5425
      %v5427 = vand.u32 %v367, 4294901760
      %v5428 = vsub.f32 %v367, %v5427
      %v5429 = vand.u32 %v5428, 4294901760
      %5430 = vmatpush.msra.mxu0 %v5429
      %v5431 = vand.u32 %v355, 4294901760
      %v5432 = vsub.f32 %v355, %v5431
      %v5433 = vand.u32 %v5432, 4294901760
      %5434 = vmatpush.msra.mxu0 %v5433
      %v5435 = vand.u32 %v343, 4294901760
      %v5436 = vsub.f32 %v343, %v5435
      %v5437 = vand.u32 %v5436, 4294901760
      %5438 = vmatpush.msra.mxu0 %v5437
      %v5439 = vand.u32 %v331, 4294901760
      %v5440 = vsub.f32 %v331, %v5439
      %v5441 = vand.u32 %v5440, 4294901760
      %5442 = vmatpush.msra.mxu0 %v5441
      %v5443 = vand.u32 %v319, 4294901760
      %v5444 = vsub.f32 %v319, %v5443
      %v5445 = vand.u32 %v5444, 4294901760
      %5446 = vmatpush.msra.mxu0 %v5445
      %v5447 = vand.u32 %v307, 4294901760
      %v5448 = vsub.f32 %v307, %v5447
      %v5449 = vand.u32 %v5448, 4294901760
      %5450 = vmatpush.msra.mxu0 %v5449
      %v5451 = vand.u32 %v295, 4294901760
      %v5452 = vsub.f32 %v295, %v5451
      %v5453 = vand.u32 %v5452, 4294901760
      %5454 = vmatpush.msra.mxu0 %v5453
      %v5455 = vand.u32 %v283, 4294901760
      %v5456 = vsub.f32 %v283, %v5455
      %v5457 = vand.u32 %v5456, 4294901760
      %5458 = vmatpush.msra.mxu0 %v5457
      %v5459 = vand.u32 %v271, 4294901760
      %v5460 = vsub.f32 %v271, %v5459
      %v5461 = vand.u32 %v5460, 4294901760
      %5462 = vmatpush.msra.mxu0 %v5461
      %v5463 = vand.u32 %v259, 4294901760
      %v5464 = vsub.f32 %v259, %v5463
      %v5465 = vand.u32 %v5464, 4294901760
      %5466 = vmatpush.msra.mxu0 %v5465
      %v5467 = vand.u32 %v247, 4294901760
      %v5468 = vsub.f32 %v247, %v5467
      %v5469 = vand.u32 %v5468, 4294901760
      %5470 = vmatpush.msra.mxu0 %v5469
      %v5471 = vand.u32 %v235, 4294901760
      %v5472 = vsub.f32 %v235, %v5471
      %v5473 = vand.u32 %v5472, 4294901760
      %5474 = vmatpush.msra.mxu0 %v5473
      %v5475 = vand.u32 %v198, 4294901760
      %5476 = vmatmul.f32.gmra.mxu0 %v5475
      %v5477 = vpop.f32.mrf.mxu0
      %v5478 = vadd.f32 %v5403, %v5477
      %v5479 = vand.u32 %v200, 4294901760
      %5480 = vmatmul.f32.gmra.mxu0 %v5479
      %v5481 = vpop.f32.mrf.mxu0
      %v5482 = vadd.f32 %v5409, %v5481
      %5483 = vdwg.mxu0
      %v5484 = vand.u32 %v415, 4294901760
      %5485 = vmatpush.msra.mxu0 %v5484
      %v5486 = vand.u32 %v403, 4294901760
      %5487 = vmatpush.msra.mxu0 %v5486
      %v5488 = vand.u32 %v391, 4294901760
      %5489 = vmatpush.msra.mxu0 %v5488
      %v5490 = vand.u32 %v379, 4294901760
      %5491 = vmatpush.msra.mxu0 %v5490
      %v5492 = vand.u32 %v367, 4294901760
      %5493 = vmatpush.msra.mxu0 %v5492
      %v5494 = vand.u32 %v355, 4294901760
      %5495 = vmatpush.msra.mxu0 %v5494
      %v5496 = vand.u32 %v343, 4294901760
      %5497 = vmatpush.msra.mxu0 %v5496
      %v5498 = vand.u32 %v331, 4294901760
      %5499 = vmatpush.msra.mxu0 %v5498
      %v5500 = vand.u32 %v319, 4294901760
      %5501 = vmatpush.msra.mxu0 %v5500
      %v5502 = vand.u32 %v307, 4294901760
      %5503 = vmatpush.msra.mxu0 %v5502
      %v5504 = vand.u32 %v295, 4294901760
      %5505 = vmatpush.msra.mxu0 %v5504
      %v5506 = vand.u32 %v283, 4294901760
      %5507 = vmatpush.msra.mxu0 %v5506
      %v5508 = vand.u32 %v271, 4294901760
      %5509 = vmatpush.msra.mxu0 %v5508
      %v5510 = vand.u32 %v259, 4294901760
      %5511 = vmatpush.msra.mxu0 %v5510
      %v5512 = vand.u32 %v247, 4294901760
      %5513 = vmatpush.msra.mxu0 %v5512
      %v5514 = vand.u32 %v235, 4294901760
      %5515 = vmatpush.msra.mxu0 %v5514
      %v5516 = vand.u32 %v198, 4294901760
      %5517 = vmatmul.f32.gmra.mxu0 %v5516
      %v5518 = vpop.f32.mrf.mxu0
      %v5519 = vadd.f32 %v5478, %v5518
      %v5520 = vand.u32 %v200, 4294901760
      %5521 = vmatmul.f32.gmra.mxu0 %v5520
      %v5522 = vpop.f32.mrf.mxu0
      %v5523 = vadd.f32 %v5482, %v5522
      %5524 = vdwg.mxu0
      %5525 = vmatpush.msra.mxu0 0.0
      %5526 = vmatpush.msra.mxu0 0.0
      %5527 = vmatpush.msra.mxu0 0.0
      %5528 = vmatpush.msra.mxu0 0.0
      %5529 = vmatpush.msra.mxu0 0.0
      %5530 = vmatpush.msra.mxu0 0.0
      %5531 = vmatpush.msra.mxu0 0.0
      %v5532 = vand.u32 %v568, 4294901760
      %5533 = vmatpush.msra.mxu0 %v5532
      %v5534 = vand.u32 %v511, 4294901760
      %5535 = vmatpush.msra.mxu0 %v5534
      %v5536 = vand.u32 %v499, 4294901760
      %5537 = vmatpush.msra.mxu0 %v5536
      %v5538 = vand.u32 %v487, 4294901760
      %5539 = vmatpush.msra.mxu0 %v5538
      %v5540 = vand.u32 %v475, 4294901760
      %5541 = vmatpush.msra.mxu0 %v5540
      %v5542 = vand.u32 %v463, 4294901760
      %5543 = vmatpush.msra.mxu0 %v5542
      %v5544 = vand.u32 %v451, 4294901760
      %5545 = vmatpush.msra.mxu0 %v5544
      %v5546 = vand.u32 %v439, 4294901760
      %5547 = vmatpush.msra.mxu0 %v5546
      %v5548 = vand.u32 %v427, 4294901760
      %5549 = vmatpush.msra.mxu0 %v5548
      %v5550 = vand.u32 %v540, 4294901760
      %v5551 = vsub.f32 %v540, %v5550
      %v5552 = vand.u32 %v5551, 4294901760
      %v5553 = vsub.f32 %v5551, %v5552
      %v5554 = vand.u32 %v5553, 4294901760
      %5555 = vmatmul.f32.gmra.mxu0 %v5554
      %v5556 = vpop.f32.mrf.mxu0
      %v5557 = vadd.f32 %v5519, %v5556
      %v5558 = vand.u32 %v543, 4294901760
      %v5559 = vsub.f32 %v543, %v5558
      %v5560 = vand.u32 %v5559, 4294901760
      %v5561 = vsub.f32 %v5559, %v5560
      %v5562 = vand.u32 %v5561, 4294901760
      %5563 = vmatmul.f32.gmra.mxu0 %v5562
      %v5564 = vpop.f32.mrf.mxu0
      %v5565 = vadd.f32 %v5523, %v5564
      %5566 = vdwg.mxu0
      %5567 = vmatpush.msra.mxu0 0.0
      %5568 = vmatpush.msra.mxu0 0.0
      %5569 = vmatpush.msra.mxu0 0.0
      %5570 = vmatpush.msra.mxu0 0.0
      %5571 = vmatpush.msra.mxu0 0.0
      %5572 = vmatpush.msra.mxu0 0.0
      %5573 = vmatpush.msra.mxu0 0.0
      %v5574 = vand.u32 %v568, 4294901760
      %v5575 = vsub.f32 %v568, %v5574
      %v5576 = vand.u32 %v5575, 4294901760
      %v5577 = vsub.f32 %v5575, %v5576
      %v5578 = vand.u32 %v5577, 4294901760
      %5579 = vmatpush.msra.mxu0 %v5578
      %v5580 = vand.u32 %v511, 4294901760
      %v5581 = vsub.f32 %v511, %v5580
      %v5582 = vand.u32 %v5581, 4294901760
      %v5583 = vsub.f32 %v5581, %v5582
      %v5584 = vand.u32 %v5583, 4294901760
      %5585 = vmatpush.msra.mxu0 %v5584
      %v5586 = vand.u32 %v499, 4294901760
      %v5587 = vsub.f32 %v499, %v5586
      %v5588 = vand.u32 %v5587, 4294901760
      %v5589 = vsub.f32 %v5587, %v5588
      %v5590 = vand.u32 %v5589, 4294901760
      %5591 = vmatpush.msra.mxu0 %v5590
      %v5592 = vand.u32 %v487, 4294901760
      %v5593 = vsub.f32 %v487, %v5592
      %v5594 = vand.u32 %v5593, 4294901760
      %v5595 = vsub.f32 %v5593, %v5594
      %v5596 = vand.u32 %v5595, 4294901760
      %5597 = vmatpush.msra.mxu0 %v5596
      %v5598 = vand.u32 %v475, 4294901760
      %v5599 = vsub.f32 %v475, %v5598
      %v5600 = vand.u32 %v5599, 4294901760
      %v5601 = vsub.f32 %v5599, %v5600
      %v5602 = vand.u32 %v5601, 4294901760
      %5603 = vmatpush.msra.mxu0 %v5602
      %v5604 = vand.u32 %v463, 4294901760
      %v5605 = vsub.f32 %v463, %v5604
      %v5606 = vand.u32 %v5605, 4294901760
      %v5607 = vsub.f32 %v5605, %v5606
      %v5608 = vand.u32 %v5607, 4294901760
      %5609 = vmatpush.msra.mxu0 %v5608
      %v5610 = vand.u32 %v451, 4294901760
      %v5611 = vsub.f32 %v451, %v5610
      %v5612 = vand.u32 %v5611, 4294901760
      %v5613 = vsub.f32 %v5611, %v5612
      %v5614 = vand.u32 %v5613, 4294901760
      %5615 = vmatpush.msra.mxu0 %v5614
      %v5616 = vand.u32 %v439, 4294901760
      %v5617 = vsub.f32 %v439, %v5616
      %v5618 = vand.u32 %v5617, 4294901760
      %v5619 = vsub.f32 %v5617, %v5618
      %v5620 = vand.u32 %v5619, 4294901760
      %5621 = vmatpush.msra.mxu0 %v5620
      %v5622 = vand.u32 %v427, 4294901760
      %v5623 = vsub.f32 %v427, %v5622
      %v5624 = vand.u32 %v5623, 4294901760
      %v5625 = vsub.f32 %v5623, %v5624
      %v5626 = vand.u32 %v5625, 4294901760
      %5627 = vmatpush.msra.mxu0 %v5626
      %v5628 = vand.u32 %v540, 4294901760
      %5629 = vmatmul.f32.gmra.mxu0 %v5628
      %v5630 = vpop.f32.mrf.mxu0
      %v5631 = vadd.f32 %v5557, %v5630
      %v5632 = vand.u32 %v543, 4294901760
      %5633 = vmatmul.f32.gmra.mxu0 %v5632
      %v5634 = vpop.f32.mrf.mxu0
      %v5635 = vadd.f32 %v5565, %v5634
      %5636 = vdwg.mxu0
      %5637 = vmatpush.msra.mxu0 0.0
      %5638 = vmatpush.msra.mxu0 0.0
      %5639 = vmatpush.msra.mxu0 0.0
      %5640 = vmatpush.msra.mxu0 0.0
      %5641 = vmatpush.msra.mxu0 0.0
      %5642 = vmatpush.msra.mxu0 0.0
      %5643 = vmatpush.msra.mxu0 0.0
      %v5644 = vand.u32 %v568, 4294901760
      %v5645 = vsub.f32 %v568, %v5644
      %5646 = vmatpush.msra.mxu0 %v5645
      %v5647 = vand.u32 %v511, 4294901760
      %v5648 = vsub.f32 %v511, %v5647
      %5649 = vmatpush.msra.mxu0 %v5648
      %v5650 = vand.u32 %v499, 4294901760
      %v5651 = vsub.f32 %v499, %v5650
      %5652 = vmatpush.msra.mxu0 %v5651
      %v5653 = vand.u32 %v487, 4294901760
      %v5654 = vsub.f32 %v487, %v5653
      %5655 = vmatpush.msra.mxu0 %v5654
      %v5656 = vand.u32 %v475, 4294901760
      %v5657 = vsub.f32 %v475, %v5656
      %5658 = vmatpush.msra.mxu0 %v5657
      %v5659 = vand.u32 %v463, 4294901760
      %v5660 = vsub.f32 %v463, %v5659
      %5661 = vmatpush.msra.mxu0 %v5660
      %v5662 = vand.u32 %v451, 4294901760
      %v5663 = vsub.f32 %v451, %v5662
      %5664 = vmatpush.msra.mxu0 %v5663
      %v5665 = vand.u32 %v439, 4294901760
      %v5666 = vsub.f32 %v439, %v5665
      %5667 = vmatpush.msra.mxu0 %v5666
      %v5668 = vand.u32 %v427, 4294901760
      %v5669 = vsub.f32 %v427, %v5668
      %5670 = vmatpush.msra.mxu0 %v5669
      %v5671 = vand.u32 %v540, 4294901760
      %v5672 = vsub.f32 %v540, %v5671
      %5673 = vmatmul.f32.gmra.mxu0 %v5672
      %v5674 = vpop.f32.mrf.mxu0
      %v5675 = vadd.f32 %v5631, %v5674
      %v5676 = vand.u32 %v543, 4294901760
      %v5677 = vsub.f32 %v543, %v5676
      %5678 = vmatmul.f32.gmra.mxu0 %v5677
      %v5679 = vpop.f32.mrf.mxu0
      %v5680 = vadd.f32 %v5635, %v5679
      %5681 = vdwg.mxu0
      %5682 = vmatpush.msra.mxu0 0.0
      %5683 = vmatpush.msra.mxu0 0.0
      %5684 = vmatpush.msra.mxu0 0.0
      %5685 = vmatpush.msra.mxu0 0.0
      %5686 = vmatpush.msra.mxu0 0.0
      %5687 = vmatpush.msra.mxu0 0.0
      %5688 = vmatpush.msra.mxu0 0.0
      %v5689 = vand.u32 %v568, 4294901760
      %5690 = vmatpush.msra.mxu0 %v5689
      %v5691 = vand.u32 %v511, 4294901760
      %5692 = vmatpush.msra.mxu0 %v5691
      %v5693 = vand.u32 %v499, 4294901760
      %5694 = vmatpush.msra.mxu0 %v5693
      %v5695 = vand.u32 %v487, 4294901760
      %5696 = vmatpush.msra.mxu0 %v5695
      %v5697 = vand.u32 %v475, 4294901760
      %5698 = vmatpush.msra.mxu0 %v5697
      %v5699 = vand.u32 %v463, 4294901760
      %5700 = vmatpush.msra.mxu0 %v5699
      %v5701 = vand.u32 %v451, 4294901760
      %5702 = vmatpush.msra.mxu0 %v5701
      %v5703 = vand.u32 %v439, 4294901760
      %5704 = vmatpush.msra.mxu0 %v5703
      %v5705 = vand.u32 %v427, 4294901760
      %5706 = vmatpush.msra.mxu0 %v5705
      %v5707 = vand.u32 %v540, 4294901760
      %v5708 = vsub.f32 %v540, %v5707
      %v5709 = vand.u32 %v5708, 4294901760
      %5710 = vmatmul.f32.gmra.mxu0 %v5709
      %v5711 = vpop.f32.mrf.mxu0
      %v5712 = vadd.f32 %v5675, %v5711
      %v5713 = vand.u32 %v543, 4294901760
      %v5714 = vsub.f32 %v543, %v5713
      %v5715 = vand.u32 %v5714, 4294901760
      %5716 = vmatmul.f32.gmra.mxu0 %v5715
      %v5717 = vpop.f32.mrf.mxu0
      %v5718 = vadd.f32 %v5680, %v5717
      %5719 = vdwg.mxu0
      %5720 = vmatpush.msra.mxu0 0.0
      %5721 = vmatpush.msra.mxu0 0.0
      %5722 = vmatpush.msra.mxu0 0.0
      %5723 = vmatpush.msra.mxu0 0.0
      %5724 = vmatpush.msra.mxu0 0.0
      %5725 = vmatpush.msra.mxu0 0.0
      %5726 = vmatpush.msra.mxu0 0.0
      %v5727 = vand.u32 %v568, 4294901760
      %v5728 = vsub.f32 %v568, %v5727
      %v5729 = vand.u32 %v5728, 4294901760
      %5730 = vmatpush.msra.mxu0 %v5729
      %v5731 = vand.u32 %v511, 4294901760
      %v5732 = vsub.f32 %v511, %v5731
      %v5733 = vand.u32 %v5732, 4294901760
      %5734 = vmatpush.msra.mxu0 %v5733
      %v5735 = vand.u32 %v499, 4294901760
      %v5736 = vsub.f32 %v499, %v5735
      %v5737 = vand.u32 %v5736, 4294901760
      %5738 = vmatpush.msra.mxu0 %v5737
      %v5739 = vand.u32 %v487, 4294901760
      %v5740 = vsub.f32 %v487, %v5739
      %v5741 = vand.u32 %v5740, 4294901760
      %5742 = vmatpush.msra.mxu0 %v5741
      %v5743 = vand.u32 %v475, 4294901760
      %v5744 = vsub.f32 %v475, %v5743
      %v5745 = vand.u32 %v5744, 4294901760
      %5746 = vmatpush.msra.mxu0 %v5745
      %v5747 = vand.u32 %v463, 4294901760
      %v5748 = vsub.f32 %v463, %v5747
      %v5749 = vand.u32 %v5748, 4294901760
      %5750 = vmatpush.msra.mxu0 %v5749
      %v5751 = vand.u32 %v451, 4294901760
      %v5752 = vsub.f32 %v451, %v5751
      %v5753 = vand.u32 %v5752, 4294901760
      %5754 = vmatpush.msra.mxu0 %v5753
      %v5755 = vand.u32 %v439, 4294901760
      %v5756 = vsub.f32 %v439, %v5755
      %v5757 = vand.u32 %v5756, 4294901760
      %5758 = vmatpush.msra.mxu0 %v5757
      %v5759 = vand.u32 %v427, 4294901760
      %v5760 = vsub.f32 %v427, %v5759
      %v5761 = vand.u32 %v5760, 4294901760
      %5762 = vmatpush.msra.mxu0 %v5761
      %v5763 = vand.u32 %v540, 4294901760
      %5764 = vmatmul.f32.gmra.mxu0 %v5763
      %v5765 = vpop.f32.mrf.mxu0
      %v5766 = vadd.f32 %v5712, %v5765
      %v5767 = vand.u32 %v543, 4294901760
      %5768 = vmatmul.f32.gmra.mxu0 %v5767
      %v5769 = vpop.f32.mrf.mxu0
      %v5770 = vadd.f32 %v5718, %v5769
      %5771 = vdwg.mxu0
      %5772 = vmatpush.msra.mxu0 0.0
      %5773 = vmatpush.msra.mxu0 0.0
      %5774 = vmatpush.msra.mxu0 0.0
      %5775 = vmatpush.msra.mxu0 0.0
      %5776 = vmatpush.msra.mxu0 0.0
      %5777 = vmatpush.msra.mxu0 0.0
      %5778 = vmatpush.msra.mxu0 0.0
      %v5779 = vand.u32 %v568, 4294901760
      %5780 = vmatpush.msra.mxu0 %v5779
      %v5781 = vand.u32 %v511, 4294901760
      %5782 = vmatpush.msra.mxu0 %v5781
      %v5783 = vand.u32 %v499, 4294901760
      %5784 = vmatpush.msra.mxu0 %v5783
      %v5785 = vand.u32 %v487, 4294901760
      %5786 = vmatpush.msra.mxu0 %v5785
      %v5787 = vand.u32 %v475, 4294901760
      %5788 = vmatpush.msra.mxu0 %v5787
      %v5789 = vand.u32 %v463, 4294901760
      %5790 = vmatpush.msra.mxu0 %v5789
      %v5791 = vand.u32 %v451, 4294901760
      %5792 = vmatpush.msra.mxu0 %v5791
      %v5793 = vand.u32 %v439, 4294901760
      %5794 = vmatpush.msra.mxu0 %v5793
      %v5795 = vand.u32 %v427, 4294901760
      %5796 = vmatpush.msra.mxu0 %v5795
      %v5797 = vand.u32 %v540, 4294901760
      %5798 = vmatmul.f32.gmra.mxu0 %v5797
      %v5799 = vpop.f32.mrf.mxu0
      %v5800 = vadd.f32 %v5766, %v5799
      %v5801 = vand.u32 %v543, 4294901760
      %5802 = vmatmul.f32.gmra.mxu0 %v5801
      %v5803 = vpop.f32.mrf.mxu0
      %v5804 = vadd.f32 %v5770, %v5803
      %5805 = vdwg.mxu0
      %v5806 = vand.u32 %v416, 4294901760
      %5807 = vmatpush.msra.mxu0 %v5806
      %v5808 = vand.u32 %v404, 4294901760
      %5809 = vmatpush.msra.mxu0 %v5808
      %v5810 = vand.u32 %v392, 4294901760
      %5811 = vmatpush.msra.mxu0 %v5810
      %v5812 = vand.u32 %v380, 4294901760
      %5813 = vmatpush.msra.mxu0 %v5812
      %v5814 = vand.u32 %v368, 4294901760
      %5815 = vmatpush.msra.mxu0 %v5814
      %v5816 = vand.u32 %v356, 4294901760
      %5817 = vmatpush.msra.mxu0 %v5816
      %v5818 = vand.u32 %v344, 4294901760
      %5819 = vmatpush.msra.mxu0 %v5818
      %v5820 = vand.u32 %v332, 4294901760
      %5821 = vmatpush.msra.mxu0 %v5820
      %v5822 = vand.u32 %v320, 4294901760
      %5823 = vmatpush.msra.mxu0 %v5822
      %v5824 = vand.u32 %v308, 4294901760
      %5825 = vmatpush.msra.mxu0 %v5824
      %v5826 = vand.u32 %v296, 4294901760
      %5827 = vmatpush.msra.mxu0 %v5826
      %v5828 = vand.u32 %v284, 4294901760
      %5829 = vmatpush.msra.mxu0 %v5828
      %v5830 = vand.u32 %v272, 4294901760
      %5831 = vmatpush.msra.mxu0 %v5830
      %v5832 = vand.u32 %v260, 4294901760
      %5833 = vmatpush.msra.mxu0 %v5832
      %v5834 = vand.u32 %v248, 4294901760
      %5835 = vmatpush.msra.mxu0 %v5834
      %v5836 = vand.u32 %v236, 4294901760
      %5837 = vmatpush.msra.mxu0 %v5836
      %v5838 = vand.u32 %v198, 4294901760
      %v5839 = vsub.f32 %v198, %v5838
      %v5840 = vand.u32 %v5839, 4294901760
      %v5841 = vsub.f32 %v5839, %v5840
      %v5842 = vand.u32 %v5841, 4294901760
      %5843 = vmatmul.f32.gmra.mxu0 %v5842
      %v5844 = vpop.f32.mrf.mxu0
      %v5845 = vadd.f32 %v531, %v5844
      %v5846 = vand.u32 %v200, 4294901760
      %v5847 = vsub.f32 %v200, %v5846
      %v5848 = vand.u32 %v5847, 4294901760
      %v5849 = vsub.f32 %v5847, %v5848
      %v5850 = vand.u32 %v5849, 4294901760
      %5851 = vmatmul.f32.gmra.mxu0 %v5850
      %v5852 = vpop.f32.mrf.mxu0
      %v5853 = vadd.f32 %v536, %v5852
      %5854 = vdwg.mxu0
      %v5855 = vand.u32 %v416, 4294901760
      %v5856 = vsub.f32 %v416, %v5855
      %v5857 = vand.u32 %v5856, 4294901760
      %v5858 = vsub.f32 %v5856, %v5857
      %v5859 = vand.u32 %v5858, 4294901760
      %5860 = vmatpush.msra.mxu0 %v5859
      %v5861 = vand.u32 %v404, 4294901760
      %v5862 = vsub.f32 %v404, %v5861
      %v5863 = vand.u32 %v5862, 4294901760
      %v5864 = vsub.f32 %v5862, %v5863
      %v5865 = vand.u32 %v5864, 4294901760
      %5866 = vmatpush.msra.mxu0 %v5865
      %v5867 = vand.u32 %v392, 4294901760
      %v5868 = vsub.f32 %v392, %v5867
      %v5869 = vand.u32 %v5868, 4294901760
      %v5870 = vsub.f32 %v5868, %v5869
      %v5871 = vand.u32 %v5870, 4294901760
      %5872 = vmatpush.msra.mxu0 %v5871
      %v5873 = vand.u32 %v380, 4294901760
      %v5874 = vsub.f32 %v380, %v5873
      %v5875 = vand.u32 %v5874, 4294901760
      %v5876 = vsub.f32 %v5874, %v5875
      %v5877 = vand.u32 %v5876, 4294901760
      %5878 = vmatpush.msra.mxu0 %v5877
      %v5879 = vand.u32 %v368, 4294901760
      %v5880 = vsub.f32 %v368, %v5879
      %v5881 = vand.u32 %v5880, 4294901760
      %v5882 = vsub.f32 %v5880, %v5881
      %v5883 = vand.u32 %v5882, 4294901760
      %5884 = vmatpush.msra.mxu0 %v5883
      %v5885 = vand.u32 %v356, 4294901760
      %v5886 = vsub.f32 %v356, %v5885
      %v5887 = vand.u32 %v5886, 4294901760
      %v5888 = vsub.f32 %v5886, %v5887
      %v5889 = vand.u32 %v5888, 4294901760
      %5890 = vmatpush.msra.mxu0 %v5889
      %v5891 = vand.u32 %v344, 4294901760
      %v5892 = vsub.f32 %v344, %v5891
      %v5893 = vand.u32 %v5892, 4294901760
      %v5894 = vsub.f32 %v5892, %v5893
      %v5895 = vand.u32 %v5894, 4294901760
      %5896 = vmatpush.msra.mxu0 %v5895
      %v5897 = vand.u32 %v332, 4294901760
      %v5898 = vsub.f32 %v332, %v5897
      %v5899 = vand.u32 %v5898, 4294901760
      %v5900 = vsub.f32 %v5898, %v5899
      %v5901 = vand.u32 %v5900, 4294901760
      %5902 = vmatpush.msra.mxu0 %v5901
      %v5903 = vand.u32 %v320, 4294901760
      %v5904 = vsub.f32 %v320, %v5903
      %v5905 = vand.u32 %v5904, 4294901760
      %v5906 = vsub.f32 %v5904, %v5905
      %v5907 = vand.u32 %v5906, 4294901760
      %5908 = vmatpush.msra.mxu0 %v5907
      %v5909 = vand.u32 %v308, 4294901760
      %v5910 = vsub.f32 %v308, %v5909
      %v5911 = vand.u32 %v5910, 4294901760
      %v5912 = vsub.f32 %v5910, %v5911
      %v5913 = vand.u32 %v5912, 4294901760
      %5914 = vmatpush.msra.mxu0 %v5913
      %v5915 = vand.u32 %v296, 4294901760
      %v5916 = vsub.f32 %v296, %v5915
      %v5917 = vand.u32 %v5916, 4294901760
      %v5918 = vsub.f32 %v5916, %v5917
      %v5919 = vand.u32 %v5918, 4294901760
      %5920 = vmatpush.msra.mxu0 %v5919
      %v5921 = vand.u32 %v284, 4294901760
      %v5922 = vsub.f32 %v284, %v5921
      %v5923 = vand.u32 %v5922, 4294901760
      %v5924 = vsub.f32 %v5922, %v5923
      %v5925 = vand.u32 %v5924, 4294901760
      %5926 = vmatpush.msra.mxu0 %v5925
      %v5927 = vand.u32 %v272, 4294901760
      %v5928 = vsub.f32 %v272, %v5927
      %v5929 = vand.u32 %v5928, 4294901760
      %v5930 = vsub.f32 %v5928, %v5929
      %v5931 = vand.u32 %v5930, 4294901760
      %5932 = vmatpush.msra.mxu0 %v5931
      %v5933 = vand.u32 %v260, 4294901760
      %v5934 = vsub.f32 %v260, %v5933
      %v5935 = vand.u32 %v5934, 4294901760
      %v5936 = vsub.f32 %v5934, %v5935
      %v5937 = vand.u32 %v5936, 4294901760
      %5938 = vmatpush.msra.mxu0 %v5937
      %v5939 = vand.u32 %v248, 4294901760
      %v5940 = vsub.f32 %v248, %v5939
      %v5941 = vand.u32 %v5940, 4294901760
      %v5942 = vsub.f32 %v5940, %v5941
      %v5943 = vand.u32 %v5942, 4294901760
      %5944 = vmatpush.msra.mxu0 %v5943
      %v5945 = vand.u32 %v236, 4294901760
      %v5946 = vsub.f32 %v236, %v5945
      %v5947 = vand.u32 %v5946, 4294901760
      %v5948 = vsub.f32 %v5946, %v5947
      %v5949 = vand.u32 %v5948, 4294901760
      %5950 = vmatpush.msra.mxu0 %v5949
      %v5951 = vand.u32 %v198, 4294901760
      %5952 = vmatmul.f32.gmra.mxu0 %v5951
      %v5953 = vpop.f32.mrf.mxu0
      %v5954 = vadd.f32 %v5845, %v5953
      %v5955 = vand.u32 %v200, 4294901760
      %5956 = vmatmul.f32.gmra.mxu0 %v5955
      %v5957 = vpop.f32.mrf.mxu0
      %v5958 = vadd.f32 %v5853, %v5957
      %5959 = vdwg.mxu0
      %v5960 = vand.u32 %v416, 4294901760
      %v5961 = vsub.f32 %v416, %v5960
      %5962 = vmatpush.msra.mxu0 %v5961
      %v5963 = vand.u32 %v404, 4294901760
      %v5964 = vsub.f32 %v404, %v5963
      %5965 = vmatpush.msra.mxu0 %v5964
      %v5966 = vand.u32 %v392, 4294901760
      %v5967 = vsub.f32 %v392, %v5966
      %5968 = vmatpush.msra.mxu0 %v5967
      %v5969 = vand.u32 %v380, 4294901760
      %v5970 = vsub.f32 %v380, %v5969
      %5971 = vmatpush.msra.mxu0 %v5970
      %v5972 = vand.u32 %v368, 4294901760
      %v5973 = vsub.f32 %v368, %v5972
      %5974 = vmatpush.msra.mxu0 %v5973
      %v5975 = vand.u32 %v356, 4294901760
      %v5976 = vsub.f32 %v356, %v5975
      %5977 = vmatpush.msra.mxu0 %v5976
      %v5978 = vand.u32 %v344, 4294901760
      %v5979 = vsub.f32 %v344, %v5978
      %5980 = vmatpush.msra.mxu0 %v5979
      %v5981 = vand.u32 %v332, 4294901760
      %v5982 = vsub.f32 %v332, %v5981
      %5983 = vmatpush.msra.mxu0 %v5982
      %v5984 = vand.u32 %v320, 4294901760
      %v5985 = vsub.f32 %v320, %v5984
      %5986 = vmatpush.msra.mxu0 %v5985
      %v5987 = vand.u32 %v308, 4294901760
      %v5988 = vsub.f32 %v308, %v5987
      %5989 = vmatpush.msra.mxu0 %v5988
      %v5990 = vand.u32 %v296, 4294901760
      %v5991 = vsub.f32 %v296, %v5990
      %5992 = vmatpush.msra.mxu0 %v5991
      %v5993 = vand.u32 %v284, 4294901760
      %v5994 = vsub.f32 %v284, %v5993
      %5995 = vmatpush.msra.mxu0 %v5994
      %v5996 = vand.u32 %v272, 4294901760
      %v5997 = vsub.f32 %v272, %v5996
      %5998 = vmatpush.msra.mxu0 %v5997
      %v5999 = vand.u32 %v260, 4294901760
      %v6000 = vsub.f32 %v260, %v5999
      %6001 = vmatpush.msra.mxu0 %v6000
      %v6002 = vand.u32 %v248, 4294901760
      %v6003 = vsub.f32 %v248, %v6002
      %6004 = vmatpush.msra.mxu0 %v6003
      %v6005 = vand.u32 %v236, 4294901760
      %v6006 = vsub.f32 %v236, %v6005
      %6007 = vmatpush.msra.mxu0 %v6006
      %v6008 = vand.u32 %v198, 4294901760
      %v6009 = vsub.f32 %v198, %v6008
      %6010 = vmatmul.f32.gmra.mxu0 %v6009
      %v6011 = vpop.f32.mrf.mxu0
      %v6012 = vadd.f32 %v5954, %v6011
      %v6013 = vand.u32 %v200, 4294901760
      %v6014 = vsub.f32 %v200, %v6013
      %6015 = vmatmul.f32.gmra.mxu0 %v6014
      %v6016 = vpop.f32.mrf.mxu0
      %v6017 = vadd.f32 %v5958, %v6016
      %6018 = vdwg.mxu0
      %v6019 = vand.u32 %v416, 4294901760
      %6020 = vmatpush.msra.mxu0 %v6019
      %v6021 = vand.u32 %v404, 4294901760
      %6022 = vmatpush.msra.mxu0 %v6021
      %v6023 = vand.u32 %v392, 4294901760
      %6024 = vmatpush.msra.mxu0 %v6023
      %v6025 = vand.u32 %v380, 4294901760
      %6026 = vmatpush.msra.mxu0 %v6025
      %v6027 = vand.u32 %v368, 4294901760
      %6028 = vmatpush.msra.mxu0 %v6027
      %v6029 = vand.u32 %v356, 4294901760
      %6030 = vmatpush.msra.mxu0 %v6029
      %v6031 = vand.u32 %v344, 4294901760
      %6032 = vmatpush.msra.mxu0 %v6031
      %v6033 = vand.u32 %v332, 4294901760
      %6034 = vmatpush.msra.mxu0 %v6033
      %v6035 = vand.u32 %v320, 4294901760
      %6036 = vmatpush.msra.mxu0 %v6035
      %v6037 = vand.u32 %v308, 4294901760
      %6038 = vmatpush.msra.mxu0 %v6037
      %v6039 = vand.u32 %v296, 4294901760
      %6040 = vmatpush.msra.mxu0 %v6039
      %v6041 = vand.u32 %v284, 4294901760
      %6042 = vmatpush.msra.mxu0 %v6041
      %v6043 = vand.u32 %v272, 4294901760
      %6044 = vmatpush.msra.mxu0 %v6043
      %v6045 = vand.u32 %v260, 4294901760
      %6046 = vmatpush.msra.mxu0 %v6045
      %v6047 = vand.u32 %v248, 4294901760
      %6048 = vmatpush.msra.mxu0 %v6047
      %v6049 = vand.u32 %v236, 4294901760
      %6050 = vmatpush.msra.mxu0 %v6049
      %v6051 = vand.u32 %v198, 4294901760
      %v6052 = vsub.f32 %v198, %v6051
      %v6053 = vand.u32 %v6052, 4294901760
      %6054 = vmatmul.f32.gmra.mxu0 %v6053
      %v6055 = vpop.f32.mrf.mxu0
      %v6056 = vadd.f32 %v6012, %v6055
      %v6057 = vand.u32 %v200, 4294901760
      %v6058 = vsub.f32 %v200, %v6057
      %v6059 = vand.u32 %v6058, 4294901760
      %6060 = vmatmul.f32.gmra.mxu0 %v6059
      %v6061 = vpop.f32.mrf.mxu0
      %v6062 = vadd.f32 %v6017, %v6061
      %6063 = vdwg.mxu0
      %v6064 = vand.u32 %v416, 4294901760
      %v6065 = vsub.f32 %v416, %v6064
      %v6066 = vand.u32 %v6065, 4294901760
      %6067 = vmatpush.msra.mxu0 %v6066
      %v6068 = vand.u32 %v404, 4294901760
      %v6069 = vsub.f32 %v404, %v6068
      %v6070 = vand.u32 %v6069, 4294901760
      %6071 = vmatpush.msra.mxu0 %v6070
      %v6072 = vand.u32 %v392, 4294901760
      %v6073 = vsub.f32 %v392, %v6072
      %v6074 = vand.u32 %v6073, 4294901760
      %6075 = vmatpush.msra.mxu0 %v6074
      %v6076 = vand.u32 %v380, 4294901760
      %v6077 = vsub.f32 %v380, %v6076
      %v6078 = vand.u32 %v6077, 4294901760
      %6079 = vmatpush.msra.mxu0 %v6078
      %v6080 = vand.u32 %v368, 4294901760
      %v6081 = vsub.f32 %v368, %v6080
      %v6082 = vand.u32 %v6081, 4294901760
      %6083 = vmatpush.msra.mxu0 %v6082
      %v6084 = vand.u32 %v356, 4294901760
      %v6085 = vsub.f32 %v356, %v6084
      %v6086 = vand.u32 %v6085, 4294901760
      %6087 = vmatpush.msra.mxu0 %v6086
      %v6088 = vand.u32 %v344, 4294901760
      %v6089 = vsub.f32 %v344, %v6088
      %v6090 = vand.u32 %v6089, 4294901760
      %6091 = vmatpush.msra.mxu0 %v6090
      %v6092 = vand.u32 %v332, 4294901760
      %v6093 = vsub.f32 %v332, %v6092
      %v6094 = vand.u32 %v6093, 4294901760
      %6095 = vmatpush.msra.mxu0 %v6094
      %v6096 = vand.u32 %v320, 4294901760
      %v6097 = vsub.f32 %v320, %v6096
      %v6098 = vand.u32 %v6097, 4294901760
      %6099 = vmatpush.msra.mxu0 %v6098
      %v6100 = vand.u32 %v308, 4294901760
      %v6101 = vsub.f32 %v308, %v6100
      %v6102 = vand.u32 %v6101, 4294901760
      %6103 = vmatpush.msra.mxu0 %v6102
      %v6104 = vand.u32 %v296, 4294901760
      %v6105 = vsub.f32 %v296, %v6104
      %v6106 = vand.u32 %v6105, 4294901760
      %6107 = vmatpush.msra.mxu0 %v6106
      %v6108 = vand.u32 %v284, 4294901760
      %v6109 = vsub.f32 %v284, %v6108
      %v6110 = vand.u32 %v6109, 4294901760
      %6111 = vmatpush.msra.mxu0 %v6110
      %v6112 = vand.u32 %v272, 4294901760
      %v6113 = vsub.f32 %v272, %v6112
      %v6114 = vand.u32 %v6113, 4294901760
      %6115 = vmatpush.msra.mxu0 %v6114
      %v6116 = vand.u32 %v260, 4294901760
      %v6117 = vsub.f32 %v260, %v6116
      %v6118 = vand.u32 %v6117, 4294901760
      %6119 = vmatpush.msra.mxu0 %v6118
      %v6120 = vand.u32 %v248, 4294901760
      %v6121 = vsub.f32 %v248, %v6120
      %v6122 = vand.u32 %v6121, 4294901760
      %6123 = vmatpush.msra.mxu0 %v6122
      %v6124 = vand.u32 %v236, 4294901760
      %v6125 = vsub.f32 %v236, %v6124
      %v6126 = vand.u32 %v6125, 4294901760
      %6127 = vmatpush.msra.mxu0 %v6126
      %v6128 = vand.u32 %v198, 4294901760
      %6129 = vmatmul.f32.gmra.mxu0 %v6128
      %v6130 = vpop.f32.mrf.mxu0
      %v6131 = vadd.f32 %v6056, %v6130
      %v6132 = vand.u32 %v200, 4294901760
      %6133 = vmatmul.f32.gmra.mxu0 %v6132
      %v6134 = vpop.f32.mrf.mxu0
      %v6135 = vadd.f32 %v6062, %v6134
      %6136 = vdwg.mxu0
      %v6137 = vand.u32 %v416, 4294901760
      %6138 = vmatpush.msra.mxu0 %v6137
      %v6139 = vand.u32 %v404, 4294901760
      %6140 = vmatpush.msra.mxu0 %v6139
      %v6141 = vand.u32 %v392, 4294901760
      %6142 = vmatpush.msra.mxu0 %v6141
      %v6143 = vand.u32 %v380, 4294901760
      %6144 = vmatpush.msra.mxu0 %v6143
      %v6145 = vand.u32 %v368, 4294901760
      %6146 = vmatpush.msra.mxu0 %v6145
      %v6147 = vand.u32 %v356, 4294901760
      %6148 = vmatpush.msra.mxu0 %v6147
      %v6149 = vand.u32 %v344, 4294901760
      %6150 = vmatpush.msra.mxu0 %v6149
      %v6151 = vand.u32 %v332, 4294901760
      %6152 = vmatpush.msra.mxu0 %v6151
      %v6153 = vand.u32 %v320, 4294901760
      %6154 = vmatpush.msra.mxu0 %v6153
      %v6155 = vand.u32 %v308, 4294901760
      %6156 = vmatpush.msra.mxu0 %v6155
      %v6157 = vand.u32 %v296, 4294901760
      %6158 = vmatpush.msra.mxu0 %v6157
      %v6159 = vand.u32 %v284, 4294901760
      %6160 = vmatpush.msra.mxu0 %v6159
      %v6161 = vand.u32 %v272, 4294901760
      %6162 = vmatpush.msra.mxu0 %v6161
      %v6163 = vand.u32 %v260, 4294901760
      %6164 = vmatpush.msra.mxu0 %v6163
      %v6165 = vand.u32 %v248, 4294901760
      %6166 = vmatpush.msra.mxu0 %v6165
      %v6167 = vand.u32 %v236, 4294901760
      %6168 = vmatpush.msra.mxu0 %v6167
      %v6169 = vand.u32 %v198, 4294901760
      %6170 = vmatmul.f32.gmra.mxu0 %v6169
      %v6171 = vpop.f32.mrf.mxu0
      %v6172 = vadd.f32 %v6131, %v6171
      %v6173 = vand.u32 %v200, 4294901760
      %6174 = vmatmul.f32.gmra.mxu0 %v6173
      %v6175 = vpop.f32.mrf.mxu0
      %v6176 = vadd.f32 %v6135, %v6175
      %6177 = vdwg.mxu0
      %6178 = vmatpush.msra.mxu0 0.0
      %6179 = vmatpush.msra.mxu0 0.0
      %6180 = vmatpush.msra.mxu0 0.0
      %6181 = vmatpush.msra.mxu0 0.0
      %6182 = vmatpush.msra.mxu0 0.0
      %6183 = vmatpush.msra.mxu0 0.0
      %6184 = vmatpush.msra.mxu0 0.0
      %v6185 = vand.u32 %v571, 4294901760
      %6186 = vmatpush.msra.mxu0 %v6185
      %v6187 = vand.u32 %v512, 4294901760
      %6188 = vmatpush.msra.mxu0 %v6187
      %v6189 = vand.u32 %v500, 4294901760
      %6190 = vmatpush.msra.mxu0 %v6189
      %v6191 = vand.u32 %v488, 4294901760
      %6192 = vmatpush.msra.mxu0 %v6191
      %v6193 = vand.u32 %v476, 4294901760
      %6194 = vmatpush.msra.mxu0 %v6193
      %v6195 = vand.u32 %v464, 4294901760
      %6196 = vmatpush.msra.mxu0 %v6195
      %v6197 = vand.u32 %v452, 4294901760
      %6198 = vmatpush.msra.mxu0 %v6197
      %v6199 = vand.u32 %v440, 4294901760
      %6200 = vmatpush.msra.mxu0 %v6199
      %v6201 = vand.u32 %v428, 4294901760
      %6202 = vmatpush.msra.mxu0 %v6201
      %v6203 = vand.u32 %v540, 4294901760
      %v6204 = vsub.f32 %v540, %v6203
      %v6205 = vand.u32 %v6204, 4294901760
      %v6206 = vsub.f32 %v6204, %v6205
      %v6207 = vand.u32 %v6206, 4294901760
      %6208 = vmatmul.f32.gmra.mxu0 %v6207
      %v6209 = vpop.f32.mrf.mxu0
      %v6210 = vadd.f32 %v6172, %v6209
      %v6211 = vand.u32 %v543, 4294901760
      %v6212 = vsub.f32 %v543, %v6211
      %v6213 = vand.u32 %v6212, 4294901760
      %v6214 = vsub.f32 %v6212, %v6213
      %v6215 = vand.u32 %v6214, 4294901760
      %6216 = vmatmul.f32.gmra.mxu0 %v6215
      %v6217 = vpop.f32.mrf.mxu0
      %v6218 = vadd.f32 %v6176, %v6217
      %6219 = vdwg.mxu0
      %6220 = vmatpush.msra.mxu0 0.0
      %6221 = vmatpush.msra.mxu0 0.0
      %6222 = vmatpush.msra.mxu0 0.0
      %6223 = vmatpush.msra.mxu0 0.0
      %6224 = vmatpush.msra.mxu0 0.0
      %6225 = vmatpush.msra.mxu0 0.0
      %6226 = vmatpush.msra.mxu0 0.0
      %v6227 = vand.u32 %v571, 4294901760
      %v6228 = vsub.f32 %v571, %v6227
      %v6229 = vand.u32 %v6228, 4294901760
      %v6230 = vsub.f32 %v6228, %v6229
      %v6231 = vand.u32 %v6230, 4294901760
      %6232 = vmatpush.msra.mxu0 %v6231
      %v6233 = vand.u32 %v512, 4294901760
      %v6234 = vsub.f32 %v512, %v6233
      %v6235 = vand.u32 %v6234, 4294901760
      %v6236 = vsub.f32 %v6234, %v6235
      %v6237 = vand.u32 %v6236, 4294901760
      %6238 = vmatpush.msra.mxu0 %v6237
      %v6239 = vand.u32 %v500, 4294901760
      %v6240 = vsub.f32 %v500, %v6239
      %v6241 = vand.u32 %v6240, 4294901760
      %v6242 = vsub.f32 %v6240, %v6241
      %v6243 = vand.u32 %v6242, 4294901760
      %6244 = vmatpush.msra.mxu0 %v6243
      %v6245 = vand.u32 %v488, 4294901760
      %v6246 = vsub.f32 %v488, %v6245
      %v6247 = vand.u32 %v6246, 4294901760
      %v6248 = vsub.f32 %v6246, %v6247
      %v6249 = vand.u32 %v6248, 4294901760
      %6250 = vmatpush.msra.mxu0 %v6249
      %v6251 = vand.u32 %v476, 4294901760
      %v6252 = vsub.f32 %v476, %v6251
      %v6253 = vand.u32 %v6252, 4294901760
      %v6254 = vsub.f32 %v6252, %v6253
      %v6255 = vand.u32 %v6254, 4294901760
      %6256 = vmatpush.msra.mxu0 %v6255
      %v6257 = vand.u32 %v464, 4294901760
      %v6258 = vsub.f32 %v464, %v6257
      %v6259 = vand.u32 %v6258, 4294901760
      %v6260 = vsub.f32 %v6258, %v6259
      %v6261 = vand.u32 %v6260, 4294901760
      %6262 = vmatpush.msra.mxu0 %v6261
      %v6263 = vand.u32 %v452, 4294901760
      %v6264 = vsub.f32 %v452, %v6263
      %v6265 = vand.u32 %v6264, 4294901760
      %v6266 = vsub.f32 %v6264, %v6265
      %v6267 = vand.u32 %v6266, 4294901760
      %6268 = vmatpush.msra.mxu0 %v6267
      %v6269 = vand.u32 %v440, 4294901760
      %v6270 = vsub.f32 %v440, %v6269
      %v6271 = vand.u32 %v6270, 4294901760
      %v6272 = vsub.f32 %v6270, %v6271
      %v6273 = vand.u32 %v6272, 4294901760
      %6274 = vmatpush.msra.mxu0 %v6273
      %v6275 = vand.u32 %v428, 4294901760
      %v6276 = vsub.f32 %v428, %v6275
      %v6277 = vand.u32 %v6276, 4294901760
      %v6278 = vsub.f32 %v6276, %v6277
      %v6279 = vand.u32 %v6278, 4294901760
      %6280 = vmatpush.msra.mxu0 %v6279
      %v6281 = vand.u32 %v540, 4294901760
      %6282 = vmatmul.f32.gmra.mxu0 %v6281
      %v6283 = vpop.f32.mrf.mxu0
      %v6284 = vadd.f32 %v6210, %v6283
      %v6285 = vand.u32 %v543, 4294901760
      %6286 = vmatmul.f32.gmra.mxu0 %v6285
      %v6287 = vpop.f32.mrf.mxu0
      %v6288 = vadd.f32 %v6218, %v6287
      %6289 = vdwg.mxu0
      %6290 = vmatpush.msra.mxu0 0.0
      %6291 = vmatpush.msra.mxu0 0.0
      %6292 = vmatpush.msra.mxu0 0.0
      %6293 = vmatpush.msra.mxu0 0.0
      %6294 = vmatpush.msra.mxu0 0.0
      %6295 = vmatpush.msra.mxu0 0.0
      %6296 = vmatpush.msra.mxu0 0.0
      %v6297 = vand.u32 %v571, 4294901760
      %v6298 = vsub.f32 %v571, %v6297
      %6299 = vmatpush.msra.mxu0 %v6298
      %v6300 = vand.u32 %v512, 4294901760
      %v6301 = vsub.f32 %v512, %v6300
      %6302 = vmatpush.msra.mxu0 %v6301
      %v6303 = vand.u32 %v500, 4294901760
      %v6304 = vsub.f32 %v500, %v6303
      %6305 = vmatpush.msra.mxu0 %v6304
      %v6306 = vand.u32 %v488, 4294901760
      %v6307 = vsub.f32 %v488, %v6306
      %6308 = vmatpush.msra.mxu0 %v6307
      %v6309 = vand.u32 %v476, 4294901760
      %v6310 = vsub.f32 %v476, %v6309
      %6311 = vmatpush.msra.mxu0 %v6310
      %v6312 = vand.u32 %v464, 4294901760
      %v6313 = vsub.f32 %v464, %v6312
      %6314 = vmatpush.msra.mxu0 %v6313
      %v6315 = vand.u32 %v452, 4294901760
      %v6316 = vsub.f32 %v452, %v6315
      %6317 = vmatpush.msra.mxu0 %v6316
      %v6318 = vand.u32 %v440, 4294901760
      %v6319 = vsub.f32 %v440, %v6318
      %6320 = vmatpush.msra.mxu0 %v6319
      %v6321 = vand.u32 %v428, 4294901760
      %v6322 = vsub.f32 %v428, %v6321
      %6323 = vmatpush.msra.mxu0 %v6322
      %v6324 = vand.u32 %v540, 4294901760
      %v6325 = vsub.f32 %v540, %v6324
      %6326 = vmatmul.f32.gmra.mxu0 %v6325
      %v6327 = vpop.f32.mrf.mxu0
      %v6328 = vadd.f32 %v6284, %v6327
      %v6329 = vand.u32 %v543, 4294901760
      %v6330 = vsub.f32 %v543, %v6329
      %6331 = vmatmul.f32.gmra.mxu0 %v6330
      %v6332 = vpop.f32.mrf.mxu0
      %v6333 = vadd.f32 %v6288, %v6332
      %6334 = vdwg.mxu0
      %6335 = vmatpush.msra.mxu0 0.0
      %6336 = vmatpush.msra.mxu0 0.0
      %6337 = vmatpush.msra.mxu0 0.0
      %6338 = vmatpush.msra.mxu0 0.0
      %6339 = vmatpush.msra.mxu0 0.0
      %6340 = vmatpush.msra.mxu0 0.0
      %6341 = vmatpush.msra.mxu0 0.0
      %v6342 = vand.u32 %v571, 4294901760
      %6343 = vmatpush.msra.mxu0 %v6342
      %v6344 = vand.u32 %v512, 4294901760
      %6345 = vmatpush.msra.mxu0 %v6344
      %v6346 = vand.u32 %v500, 4294901760
      %6347 = vmatpush.msra.mxu0 %v6346
      %v6348 = vand.u32 %v488, 4294901760
      %6349 = vmatpush.msra.mxu0 %v6348
      %v6350 = vand.u32 %v476, 4294901760
      %6351 = vmatpush.msra.mxu0 %v6350
      %v6352 = vand.u32 %v464, 4294901760
      %6353 = vmatpush.msra.mxu0 %v6352
      %v6354 = vand.u32 %v452, 4294901760
      %6355 = vmatpush.msra.mxu0 %v6354
      %v6356 = vand.u32 %v440, 4294901760
      %6357 = vmatpush.msra.mxu0 %v6356
      %v6358 = vand.u32 %v428, 4294901760
      %6359 = vmatpush.msra.mxu0 %v6358
      %v6360 = vand.u32 %v540, 4294901760
      %v6361 = vsub.f32 %v540, %v6360
      %v6362 = vand.u32 %v6361, 4294901760
      %6363 = vmatmul.f32.gmra.mxu0 %v6362
      %v6364 = vpop.f32.mrf.mxu0
      %v6365 = vadd.f32 %v6328, %v6364
      %v6366 = vand.u32 %v543, 4294901760
      %v6367 = vsub.f32 %v543, %v6366
      %v6368 = vand.u32 %v6367, 4294901760
      %6369 = vmatmul.f32.gmra.mxu0 %v6368
      %v6370 = vpop.f32.mrf.mxu0
      %v6371 = vadd.f32 %v6333, %v6370
      %6372 = vdwg.mxu0
      %6373 = vmatpush.msra.mxu0 0.0
      %6374 = vmatpush.msra.mxu0 0.0
      %6375 = vmatpush.msra.mxu0 0.0
      %6376 = vmatpush.msra.mxu0 0.0
      %6377 = vmatpush.msra.mxu0 0.0
      %6378 = vmatpush.msra.mxu0 0.0
      %6379 = vmatpush.msra.mxu0 0.0
      %v6380 = vand.u32 %v571, 4294901760
      %v6381 = vsub.f32 %v571, %v6380
      %v6382 = vand.u32 %v6381, 4294901760
      %6383 = vmatpush.msra.mxu0 %v6382
      %v6384 = vand.u32 %v512, 4294901760
      %v6385 = vsub.f32 %v512, %v6384
      %v6386 = vand.u32 %v6385, 4294901760
      %6387 = vmatpush.msra.mxu0 %v6386
      %v6388 = vand.u32 %v500, 4294901760
      %v6389 = vsub.f32 %v500, %v6388
      %v6390 = vand.u32 %v6389, 4294901760
      %6391 = vmatpush.msra.mxu0 %v6390
      %v6392 = vand.u32 %v488, 4294901760
      %v6393 = vsub.f32 %v488, %v6392
      %v6394 = vand.u32 %v6393, 4294901760
      %6395 = vmatpush.msra.mxu0 %v6394
      %v6396 = vand.u32 %v476, 4294901760
      %v6397 = vsub.f32 %v476, %v6396
      %v6398 = vand.u32 %v6397, 4294901760
      %6399 = vmatpush.msra.mxu0 %v6398
      %v6400 = vand.u32 %v464, 4294901760
      %v6401 = vsub.f32 %v464, %v6400
      %v6402 = vand.u32 %v6401, 4294901760
      %6403 = vmatpush.msra.mxu0 %v6402
      %v6404 = vand.u32 %v452, 4294901760
      %v6405 = vsub.f32 %v452, %v6404
      %v6406 = vand.u32 %v6405, 4294901760
      %6407 = vmatpush.msra.mxu0 %v6406
      %v6408 = vand.u32 %v440, 4294901760
      %v6409 = vsub.f32 %v440, %v6408
      %v6410 = vand.u32 %v6409, 4294901760
      %6411 = vmatpush.msra.mxu0 %v6410
      %v6412 = vand.u32 %v428, 4294901760
      %v6413 = vsub.f32 %v428, %v6412
      %v6414 = vand.u32 %v6413, 4294901760
      %6415 = vmatpush.msra.mxu0 %v6414
      %v6416 = vand.u32 %v540, 4294901760
      %6417 = vmatmul.f32.gmra.mxu0 %v6416
      %v6418 = vpop.f32.mrf.mxu0
      %v6419 = vadd.f32 %v6365, %v6418
      %v6420 = vand.u32 %v543, 4294901760
      %6421 = vmatmul.f32.gmra.mxu0 %v6420
      %v6422 = vpop.f32.mrf.mxu0
      %v6423 = vadd.f32 %v6371, %v6422
      %6424 = vdwg.mxu0
      %6425 = vmatpush.msra.mxu0 0.0
      %6426 = vmatpush.msra.mxu0 0.0
      %6427 = vmatpush.msra.mxu0 0.0
      %6428 = vmatpush.msra.mxu0 0.0
      %6429 = vmatpush.msra.mxu0 0.0
      %6430 = vmatpush.msra.mxu0 0.0
      %6431 = vmatpush.msra.mxu0 0.0
      %v6432 = vand.u32 %v571, 4294901760
      %6433 = vmatpush.msra.mxu0 %v6432
      %v6434 = vand.u32 %v512, 4294901760
      %6435 = vmatpush.msra.mxu0 %v6434
      %v6436 = vand.u32 %v500, 4294901760
      %6437 = vmatpush.msra.mxu0 %v6436
      %v6438 = vand.u32 %v488, 4294901760
      %6439 = vmatpush.msra.mxu0 %v6438
      %v6440 = vand.u32 %v476, 4294901760
      %6441 = vmatpush.msra.mxu0 %v6440
      %v6442 = vand.u32 %v464, 4294901760
      %6443 = vmatpush.msra.mxu0 %v6442
      %v6444 = vand.u32 %v452, 4294901760
      %6445 = vmatpush.msra.mxu0 %v6444
      %v6446 = vand.u32 %v440, 4294901760
      %6447 = vmatpush.msra.mxu0 %v6446
      %v6448 = vand.u32 %v428, 4294901760
      %6449 = vmatpush.msra.mxu0 %v6448
      %v6450 = vand.u32 %v540, 4294901760
      %6451 = vmatmul.f32.gmra.mxu0 %v6450
      %v6452 = vpop.f32.mrf.mxu0
      %v6453 = vadd.f32 %v6419, %v6452
      %v6454 = vand.u32 %v543, 4294901760
      %6455 = vmatmul.f32.gmra.mxu0 %v6454
      %v6456 = vpop.f32.mrf.mxu0
      %v6457 = vadd.f32 %v6423, %v6456
      %6458 = vdwg.mxu0
      %v6459 = vand.u32 %v417, 4294901760
      %6460 = vmatpush.msra.mxu0 %v6459
      %v6461 = vand.u32 %v405, 4294901760
      %6462 = vmatpush.msra.mxu0 %v6461
      %v6463 = vand.u32 %v393, 4294901760
      %6464 = vmatpush.msra.mxu0 %v6463
      %v6465 = vand.u32 %v381, 4294901760
      %6466 = vmatpush.msra.mxu0 %v6465
      %v6467 = vand.u32 %v369, 4294901760
      %6468 = vmatpush.msra.mxu0 %v6467
      %v6469 = vand.u32 %v357, 4294901760
      %6470 = vmatpush.msra.mxu0 %v6469
      %v6471 = vand.u32 %v345, 4294901760
      %6472 = vmatpush.msra.mxu0 %v6471
      %v6473 = vand.u32 %v333, 4294901760
      %6474 = vmatpush.msra.mxu0 %v6473
      %v6475 = vand.u32 %v321, 4294901760
      %6476 = vmatpush.msra.mxu0 %v6475
      %v6477 = vand.u32 %v309, 4294901760
      %6478 = vmatpush.msra.mxu0 %v6477
      %v6479 = vand.u32 %v297, 4294901760
      %6480 = vmatpush.msra.mxu0 %v6479
      %v6481 = vand.u32 %v285, 4294901760
      %6482 = vmatpush.msra.mxu0 %v6481
      %v6483 = vand.u32 %v273, 4294901760
      %6484 = vmatpush.msra.mxu0 %v6483
      %v6485 = vand.u32 %v261, 4294901760
      %6486 = vmatpush.msra.mxu0 %v6485
      %v6487 = vand.u32 %v249, 4294901760
      %6488 = vmatpush.msra.mxu0 %v6487
      %v6489 = vand.u32 %v237, 4294901760
      %6490 = vmatpush.msra.mxu0 %v6489
      %v6491 = vand.u32 %v198, 4294901760
      %v6492 = vsub.f32 %v198, %v6491
      %v6493 = vand.u32 %v6492, 4294901760
      %v6494 = vsub.f32 %v6492, %v6493
      %v6495 = vand.u32 %v6494, 4294901760
      %6496 = vmatmul.f32.gmra.mxu0 %v6495
      %v6497 = vpop.f32.mrf.mxu0
      %v6498 = vadd.f32 %v531, %v6497
      %v6499 = vand.u32 %v200, 4294901760
      %v6500 = vsub.f32 %v200, %v6499
      %v6501 = vand.u32 %v6500, 4294901760
      %v6502 = vsub.f32 %v6500, %v6501
      %v6503 = vand.u32 %v6502, 4294901760
      %6504 = vmatmul.f32.gmra.mxu0 %v6503
      %v6505 = vpop.f32.mrf.mxu0
      %v6506 = vadd.f32 %v536, %v6505
      %6507 = vdwg.mxu0
      %v6508 = vand.u32 %v417, 4294901760
      %v6509 = vsub.f32 %v417, %v6508
      %v6510 = vand.u32 %v6509, 4294901760
      %v6511 = vsub.f32 %v6509, %v6510
      %v6512 = vand.u32 %v6511, 4294901760
      %6513 = vmatpush.msra.mxu0 %v6512
      %v6514 = vand.u32 %v405, 4294901760
      %v6515 = vsub.f32 %v405, %v6514
      %v6516 = vand.u32 %v6515, 4294901760
      %v6517 = vsub.f32 %v6515, %v6516
      %v6518 = vand.u32 %v6517, 4294901760
      %6519 = vmatpush.msra.mxu0 %v6518
      %v6520 = vand.u32 %v393, 4294901760
      %v6521 = vsub.f32 %v393, %v6520
      %v6522 = vand.u32 %v6521, 4294901760
      %v6523 = vsub.f32 %v6521, %v6522
      %v6524 = vand.u32 %v6523, 4294901760
      %6525 = vmatpush.msra.mxu0 %v6524
      %v6526 = vand.u32 %v381, 4294901760
      %v6527 = vsub.f32 %v381, %v6526
      %v6528 = vand.u32 %v6527, 4294901760
      %v6529 = vsub.f32 %v6527, %v6528
      %v6530 = vand.u32 %v6529, 4294901760
      %6531 = vmatpush.msra.mxu0 %v6530
      %v6532 = vand.u32 %v369, 4294901760
      %v6533 = vsub.f32 %v369, %v6532
      %v6534 = vand.u32 %v6533, 4294901760
      %v6535 = vsub.f32 %v6533, %v6534
      %v6536 = vand.u32 %v6535, 4294901760
      %6537 = vmatpush.msra.mxu0 %v6536
      %v6538 = vand.u32 %v357, 4294901760
      %v6539 = vsub.f32 %v357, %v6538
      %v6540 = vand.u32 %v6539, 4294901760
      %v6541 = vsub.f32 %v6539, %v6540
      %v6542 = vand.u32 %v6541, 4294901760
      %6543 = vmatpush.msra.mxu0 %v6542
      %v6544 = vand.u32 %v345, 4294901760
      %v6545 = vsub.f32 %v345, %v6544
      %v6546 = vand.u32 %v6545, 4294901760
      %v6547 = vsub.f32 %v6545, %v6546
      %v6548 = vand.u32 %v6547, 4294901760
      %6549 = vmatpush.msra.mxu0 %v6548
      %v6550 = vand.u32 %v333, 4294901760
      %v6551 = vsub.f32 %v333, %v6550
      %v6552 = vand.u32 %v6551, 4294901760
      %v6553 = vsub.f32 %v6551, %v6552
      %v6554 = vand.u32 %v6553, 4294901760
      %6555 = vmatpush.msra.mxu0 %v6554
      %v6556 = vand.u32 %v321, 4294901760
      %v6557 = vsub.f32 %v321, %v6556
      %v6558 = vand.u32 %v6557, 4294901760
      %v6559 = vsub.f32 %v6557, %v6558
      %v6560 = vand.u32 %v6559, 4294901760
      %6561 = vmatpush.msra.mxu0 %v6560
      %v6562 = vand.u32 %v309, 4294901760
      %v6563 = vsub.f32 %v309, %v6562
      %v6564 = vand.u32 %v6563, 4294901760
      %v6565 = vsub.f32 %v6563, %v6564
      %v6566 = vand.u32 %v6565, 4294901760
      %6567 = vmatpush.msra.mxu0 %v6566
      %v6568 = vand.u32 %v297, 4294901760
      %v6569 = vsub.f32 %v297, %v6568
      %v6570 = vand.u32 %v6569, 4294901760
      %v6571 = vsub.f32 %v6569, %v6570
      %v6572 = vand.u32 %v6571, 4294901760
      %6573 = vmatpush.msra.mxu0 %v6572
      %v6574 = vand.u32 %v285, 4294901760
      %v6575 = vsub.f32 %v285, %v6574
      %v6576 = vand.u32 %v6575, 4294901760
      %v6577 = vsub.f32 %v6575, %v6576
      %v6578 = vand.u32 %v6577, 4294901760
      %6579 = vmatpush.msra.mxu0 %v6578
      %v6580 = vand.u32 %v273, 4294901760
      %v6581 = vsub.f32 %v273, %v6580
      %v6582 = vand.u32 %v6581, 4294901760
      %v6583 = vsub.f32 %v6581, %v6582
      %v6584 = vand.u32 %v6583, 4294901760
      %6585 = vmatpush.msra.mxu0 %v6584
      %v6586 = vand.u32 %v261, 4294901760
      %v6587 = vsub.f32 %v261, %v6586
      %v6588 = vand.u32 %v6587, 4294901760
      %v6589 = vsub.f32 %v6587, %v6588
      %v6590 = vand.u32 %v6589, 4294901760
      %6591 = vmatpush.msra.mxu0 %v6590
      %v6592 = vand.u32 %v249, 4294901760
      %v6593 = vsub.f32 %v249, %v6592
      %v6594 = vand.u32 %v6593, 4294901760
      %v6595 = vsub.f32 %v6593, %v6594
      %v6596 = vand.u32 %v6595, 4294901760
      %6597 = vmatpush.msra.mxu0 %v6596
      %v6598 = vand.u32 %v237, 4294901760
      %v6599 = vsub.f32 %v237, %v6598
      %v6600 = vand.u32 %v6599, 4294901760
      %v6601 = vsub.f32 %v6599, %v6600
      %v6602 = vand.u32 %v6601, 4294901760
      %6603 = vmatpush.msra.mxu0 %v6602
      %v6604 = vand.u32 %v198, 4294901760
      %6605 = vmatmul.f32.gmra.mxu0 %v6604
      %v6606 = vpop.f32.mrf.mxu0
      %v6607 = vadd.f32 %v6498, %v6606
      %v6608 = vand.u32 %v200, 4294901760
      %6609 = vmatmul.f32.gmra.mxu0 %v6608
      %v6610 = vpop.f32.mrf.mxu0
      %v6611 = vadd.f32 %v6506, %v6610
      %6612 = vdwg.mxu0
      %v6613 = vand.u32 %v417, 4294901760
      %v6614 = vsub.f32 %v417, %v6613
      %6615 = vmatpush.msra.mxu0 %v6614
      %v6616 = vand.u32 %v405, 4294901760
      %v6617 = vsub.f32 %v405, %v6616
      %6618 = vmatpush.msra.mxu0 %v6617
      %v6619 = vand.u32 %v393, 4294901760
      %v6620 = vsub.f32 %v393, %v6619
      %6621 = vmatpush.msra.mxu0 %v6620
      %v6622 = vand.u32 %v381, 4294901760
      %v6623 = vsub.f32 %v381, %v6622
      %6624 = vmatpush.msra.mxu0 %v6623
      %v6625 = vand.u32 %v369, 4294901760
      %v6626 = vsub.f32 %v369, %v6625
      %6627 = vmatpush.msra.mxu0 %v6626
      %v6628 = vand.u32 %v357, 4294901760
      %v6629 = vsub.f32 %v357, %v6628
      %6630 = vmatpush.msra.mxu0 %v6629
      %v6631 = vand.u32 %v345, 4294901760
      %v6632 = vsub.f32 %v345, %v6631
      %6633 = vmatpush.msra.mxu0 %v6632
      %v6634 = vand.u32 %v333, 4294901760
      %v6635 = vsub.f32 %v333, %v6634
      %6636 = vmatpush.msra.mxu0 %v6635
      %v6637 = vand.u32 %v321, 4294901760
      %v6638 = vsub.f32 %v321, %v6637
      %6639 = vmatpush.msra.mxu0 %v6638
      %v6640 = vand.u32 %v309, 4294901760
      %v6641 = vsub.f32 %v309, %v6640
      %6642 = vmatpush.msra.mxu0 %v6641
      %v6643 = vand.u32 %v297, 4294901760
      %v6644 = vsub.f32 %v297, %v6643
      %6645 = vmatpush.msra.mxu0 %v6644
      %v6646 = vand.u32 %v285, 4294901760
      %v6647 = vsub.f32 %v285, %v6646
      %6648 = vmatpush.msra.mxu0 %v6647
      %v6649 = vand.u32 %v273, 4294901760
      %v6650 = vsub.f32 %v273, %v6649
      %6651 = vmatpush.msra.mxu0 %v6650
      %v6652 = vand.u32 %v261, 4294901760
      %v6653 = vsub.f32 %v261, %v6652
      %6654 = vmatpush.msra.mxu0 %v6653
      %v6655 = vand.u32 %v249, 4294901760
      %v6656 = vsub.f32 %v249, %v6655
      %6657 = vmatpush.msra.mxu0 %v6656
      %v6658 = vand.u32 %v237, 4294901760
      %v6659 = vsub.f32 %v237, %v6658
      %6660 = vmatpush.msra.mxu0 %v6659
      %v6661 = vand.u32 %v198, 4294901760
      %v6662 = vsub.f32 %v198, %v6661
      %6663 = vmatmul.f32.gmra.mxu0 %v6662
      %v6664 = vpop.f32.mrf.mxu0
      %v6665 = vadd.f32 %v6607, %v6664
      %v6666 = vand.u32 %v200, 4294901760
      %v6667 = vsub.f32 %v200, %v6666
      %6668 = vmatmul.f32.gmra.mxu0 %v6667
      %v6669 = vpop.f32.mrf.mxu0
      %v6670 = vadd.f32 %v6611, %v6669
      %6671 = vdwg.mxu0
      %v6672 = vand.u32 %v417, 4294901760
      %6673 = vmatpush.msra.mxu0 %v6672
      %v6674 = vand.u32 %v405, 4294901760
      %6675 = vmatpush.msra.mxu0 %v6674
      %v6676 = vand.u32 %v393, 4294901760
      %6677 = vmatpush.msra.mxu0 %v6676
      %v6678 = vand.u32 %v381, 4294901760
      %6679 = vmatpush.msra.mxu0 %v6678
      %v6680 = vand.u32 %v369, 4294901760
      %6681 = vmatpush.msra.mxu0 %v6680
      %v6682 = vand.u32 %v357, 4294901760
      %6683 = vmatpush.msra.mxu0 %v6682
      %v6684 = vand.u32 %v345, 4294901760
      %6685 = vmatpush.msra.mxu0 %v6684
      %v6686 = vand.u32 %v333, 4294901760
      %6687 = vmatpush.msra.mxu0 %v6686
      %v6688 = vand.u32 %v321, 4294901760
      %6689 = vmatpush.msra.mxu0 %v6688
      %v6690 = vand.u32 %v309, 4294901760
      %6691 = vmatpush.msra.mxu0 %v6690
      %v6692 = vand.u32 %v297, 4294901760
      %6693 = vmatpush.msra.mxu0 %v6692
      %v6694 = vand.u32 %v285, 4294901760
      %6695 = vmatpush.msra.mxu0 %v6694
      %v6696 = vand.u32 %v273, 4294901760
      %6697 = vmatpush.msra.mxu0 %v6696
      %v6698 = vand.u32 %v261, 4294901760
      %6699 = vmatpush.msra.mxu0 %v6698
      %v6700 = vand.u32 %v249, 4294901760
      %6701 = vmatpush.msra.mxu0 %v6700
      %v6702 = vand.u32 %v237, 4294901760
      %6703 = vmatpush.msra.mxu0 %v6702
      %v6704 = vand.u32 %v198, 4294901760
      %v6705 = vsub.f32 %v198, %v6704
      %v6706 = vand.u32 %v6705, 4294901760
      %6707 = vmatmul.f32.gmra.mxu0 %v6706
      %v6708 = vpop.f32.mrf.mxu0
      %v6709 = vadd.f32 %v6665, %v6708
      %v6710 = vand.u32 %v200, 4294901760
      %v6711 = vsub.f32 %v200, %v6710
      %v6712 = vand.u32 %v6711, 4294901760
      %6713 = vmatmul.f32.gmra.mxu0 %v6712
      %v6714 = vpop.f32.mrf.mxu0
      %v6715 = vadd.f32 %v6670, %v6714
      %6716 = vdwg.mxu0
      %v6717 = vand.u32 %v417, 4294901760
      %v6718 = vsub.f32 %v417, %v6717
      %v6719 = vand.u32 %v6718, 4294901760
      %6720 = vmatpush.msra.mxu0 %v6719
      %v6721 = vand.u32 %v405, 4294901760
      %v6722 = vsub.f32 %v405, %v6721
      %v6723 = vand.u32 %v6722, 4294901760
      %6724 = vmatpush.msra.mxu0 %v6723
      %v6725 = vand.u32 %v393, 4294901760
      %v6726 = vsub.f32 %v393, %v6725
      %v6727 = vand.u32 %v6726, 4294901760
      %6728 = vmatpush.msra.mxu0 %v6727
      %v6729 = vand.u32 %v381, 4294901760
      %v6730 = vsub.f32 %v381, %v6729
      %v6731 = vand.u32 %v6730, 4294901760
      %6732 = vmatpush.msra.mxu0 %v6731
      %v6733 = vand.u32 %v369, 4294901760
      %v6734 = vsub.f32 %v369, %v6733
      %v6735 = vand.u32 %v6734, 4294901760
      %6736 = vmatpush.msra.mxu0 %v6735
      %v6737 = vand.u32 %v357, 4294901760
      %v6738 = vsub.f32 %v357, %v6737
      %v6739 = vand.u32 %v6738, 4294901760
      %6740 = vmatpush.msra.mxu0 %v6739
      %v6741 = vand.u32 %v345, 4294901760
      %v6742 = vsub.f32 %v345, %v6741
      %v6743 = vand.u32 %v6742, 4294901760
      %6744 = vmatpush.msra.mxu0 %v6743
      %v6745 = vand.u32 %v333, 4294901760
      %v6746 = vsub.f32 %v333, %v6745
      %v6747 = vand.u32 %v6746, 4294901760
      %6748 = vmatpush.msra.mxu0 %v6747
      %v6749 = vand.u32 %v321, 4294901760
      %v6750 = vsub.f32 %v321, %v6749
      %v6751 = vand.u32 %v6750, 4294901760
      %6752 = vmatpush.msra.mxu0 %v6751
      %v6753 = vand.u32 %v309, 4294901760
      %v6754 = vsub.f32 %v309, %v6753
      %v6755 = vand.u32 %v6754, 4294901760
      %6756 = vmatpush.msra.mxu0 %v6755
      %v6757 = vand.u32 %v297, 4294901760
      %v6758 = vsub.f32 %v297, %v6757
      %v6759 = vand.u32 %v6758, 4294901760
      %6760 = vmatpush.msra.mxu0 %v6759
      %v6761 = vand.u32 %v285, 4294901760
      %v6762 = vsub.f32 %v285, %v6761
      %v6763 = vand.u32 %v6762, 4294901760
      %6764 = vmatpush.msra.mxu0 %v6763
      %v6765 = vand.u32 %v273, 4294901760
      %v6766 = vsub.f32 %v273, %v6765
      %v6767 = vand.u32 %v6766, 4294901760
      %6768 = vmatpush.msra.mxu0 %v6767
      %v6769 = vand.u32 %v261, 4294901760
      %v6770 = vsub.f32 %v261, %v6769
      %v6771 = vand.u32 %v6770, 4294901760
      %6772 = vmatpush.msra.mxu0 %v6771
      %v6773 = vand.u32 %v249, 4294901760
      %v6774 = vsub.f32 %v249, %v6773
      %v6775 = vand.u32 %v6774, 4294901760
      %6776 = vmatpush.msra.mxu0 %v6775
      %v6777 = vand.u32 %v237, 4294901760
      %v6778 = vsub.f32 %v237, %v6777
      %v6779 = vand.u32 %v6778, 4294901760
      %6780 = vmatpush.msra.mxu0 %v6779
      %v6781 = vand.u32 %v198, 4294901760
      %6782 = vmatmul.f32.gmra.mxu0 %v6781
      %v6783 = vpop.f32.mrf.mxu0
      %v6784 = vadd.f32 %v6709, %v6783
      %v6785 = vand.u32 %v200, 4294901760
      %6786 = vmatmul.f32.gmra.mxu0 %v6785
      %v6787 = vpop.f32.mrf.mxu0
      %v6788 = vadd.f32 %v6715, %v6787
      %6789 = vdwg.mxu0
      %v6790 = vand.u32 %v417, 4294901760
      %6791 = vmatpush.msra.mxu0 %v6790
      %v6792 = vand.u32 %v405, 4294901760
      %6793 = vmatpush.msra.mxu0 %v6792
      %v6794 = vand.u32 %v393, 4294901760
      %6795 = vmatpush.msra.mxu0 %v6794
      %v6796 = vand.u32 %v381, 4294901760
      %6797 = vmatpush.msra.mxu0 %v6796
      %v6798 = vand.u32 %v369, 4294901760
      %6799 = vmatpush.msra.mxu0 %v6798
      %v6800 = vand.u32 %v357, 4294901760
      %6801 = vmatpush.msra.mxu0 %v6800
      %v6802 = vand.u32 %v345, 4294901760
      %6803 = vmatpush.msra.mxu0 %v6802
      %v6804 = vand.u32 %v333, 4294901760
      %6805 = vmatpush.msra.mxu0 %v6804
      %v6806 = vand.u32 %v321, 4294901760
      %6807 = vmatpush.msra.mxu0 %v6806
      %v6808 = vand.u32 %v309, 4294901760
      %6809 = vmatpush.msra.mxu0 %v6808
      %v6810 = vand.u32 %v297, 4294901760
      %6811 = vmatpush.msra.mxu0 %v6810
      %v6812 = vand.u32 %v285, 4294901760
      %6813 = vmatpush.msra.mxu0 %v6812
      %v6814 = vand.u32 %v273, 4294901760
      %6815 = vmatpush.msra.mxu0 %v6814
      %v6816 = vand.u32 %v261, 4294901760
      %6817 = vmatpush.msra.mxu0 %v6816
      %v6818 = vand.u32 %v249, 4294901760
      %6819 = vmatpush.msra.mxu0 %v6818
      %v6820 = vand.u32 %v237, 4294901760
      %6821 = vmatpush.msra.mxu0 %v6820
      %v6822 = vand.u32 %v198, 4294901760
      %6823 = vmatmul.f32.gmra.mxu0 %v6822
      %v6824 = vpop.f32.mrf.mxu0
      %v6825 = vadd.f32 %v6784, %v6824
      %v6826 = vand.u32 %v200, 4294901760
      %6827 = vmatmul.f32.gmra.mxu0 %v6826
      %v6828 = vpop.f32.mrf.mxu0
      %v6829 = vadd.f32 %v6788, %v6828
      %6830 = vdwg.mxu0
      %6831 = vmatpush.msra.mxu0 0.0
      %6832 = vmatpush.msra.mxu0 0.0
      %6833 = vmatpush.msra.mxu0 0.0
      %6834 = vmatpush.msra.mxu0 0.0
      %6835 = vmatpush.msra.mxu0 0.0
      %6836 = vmatpush.msra.mxu0 0.0
      %6837 = vmatpush.msra.mxu0 0.0
      %v6838 = vand.u32 %v574, 4294901760
      %6839 = vmatpush.msra.mxu0 %v6838
      %v6840 = vand.u32 %v513, 4294901760
      %6841 = vmatpush.msra.mxu0 %v6840
      %v6842 = vand.u32 %v501, 4294901760
      %6843 = vmatpush.msra.mxu0 %v6842
      %v6844 = vand.u32 %v489, 4294901760
      %6845 = vmatpush.msra.mxu0 %v6844
      %v6846 = vand.u32 %v477, 4294901760
      %6847 = vmatpush.msra.mxu0 %v6846
      %v6848 = vand.u32 %v465, 4294901760
      %6849 = vmatpush.msra.mxu0 %v6848
      %v6850 = vand.u32 %v453, 4294901760
      %6851 = vmatpush.msra.mxu0 %v6850
      %v6852 = vand.u32 %v441, 4294901760
      %6853 = vmatpush.msra.mxu0 %v6852
      %v6854 = vand.u32 %v429, 4294901760
      %6855 = vmatpush.msra.mxu0 %v6854
      %v6856 = vand.u32 %v540, 4294901760
      %v6857 = vsub.f32 %v540, %v6856
      %v6858 = vand.u32 %v6857, 4294901760
      %v6859 = vsub.f32 %v6857, %v6858
      %v6860 = vand.u32 %v6859, 4294901760
      %6861 = vmatmul.f32.gmra.mxu0 %v6860
      %v6862 = vpop.f32.mrf.mxu0
      %v6863 = vadd.f32 %v6825, %v6862
      %v6864 = vand.u32 %v543, 4294901760
      %v6865 = vsub.f32 %v543, %v6864
      %v6866 = vand.u32 %v6865, 4294901760
      %v6867 = vsub.f32 %v6865, %v6866
      %v6868 = vand.u32 %v6867, 4294901760
      %6869 = vmatmul.f32.gmra.mxu0 %v6868
      %v6870 = vpop.f32.mrf.mxu0
      %v6871 = vadd.f32 %v6829, %v6870
      %6872 = vdwg.mxu0
      %6873 = vmatpush.msra.mxu0 0.0
      %6874 = vmatpush.msra.mxu0 0.0
      %6875 = vmatpush.msra.mxu0 0.0
      %6876 = vmatpush.msra.mxu0 0.0
      %6877 = vmatpush.msra.mxu0 0.0
      %6878 = vmatpush.msra.mxu0 0.0
      %6879 = vmatpush.msra.mxu0 0.0
      %v6880 = vand.u32 %v574, 4294901760
      %v6881 = vsub.f32 %v574, %v6880
      %v6882 = vand.u32 %v6881, 4294901760
      %v6883 = vsub.f32 %v6881, %v6882
      %v6884 = vand.u32 %v6883, 4294901760
      %6885 = vmatpush.msra.mxu0 %v6884
      %v6886 = vand.u32 %v513, 4294901760
      %v6887 = vsub.f32 %v513, %v6886
      %v6888 = vand.u32 %v6887, 4294901760
      %v6889 = vsub.f32 %v6887, %v6888
      %v6890 = vand.u32 %v6889, 4294901760
      %6891 = vmatpush.msra.mxu0 %v6890
      %v6892 = vand.u32 %v501, 4294901760
      %v6893 = vsub.f32 %v501, %v6892
      %v6894 = vand.u32 %v6893, 4294901760
      %v6895 = vsub.f32 %v6893, %v6894
      %v6896 = vand.u32 %v6895, 4294901760
      %6897 = vmatpush.msra.mxu0 %v6896
      %v6898 = vand.u32 %v489, 4294901760
      %v6899 = vsub.f32 %v489, %v6898
      %v6900 = vand.u32 %v6899, 4294901760
      %v6901 = vsub.f32 %v6899, %v6900
      %v6902 = vand.u32 %v6901, 4294901760
      %6903 = vmatpush.msra.mxu0 %v6902
      %v6904 = vand.u32 %v477, 4294901760
      %v6905 = vsub.f32 %v477, %v6904
      %v6906 = vand.u32 %v6905, 4294901760
      %v6907 = vsub.f32 %v6905, %v6906
      %v6908 = vand.u32 %v6907, 4294901760
      %6909 = vmatpush.msra.mxu0 %v6908
      %v6910 = vand.u32 %v465, 4294901760
      %v6911 = vsub.f32 %v465, %v6910
      %v6912 = vand.u32 %v6911, 4294901760
      %v6913 = vsub.f32 %v6911, %v6912
      %v6914 = vand.u32 %v6913, 4294901760
      %6915 = vmatpush.msra.mxu0 %v6914
      %v6916 = vand.u32 %v453, 4294901760
      %v6917 = vsub.f32 %v453, %v6916
      %v6918 = vand.u32 %v6917, 4294901760
      %v6919 = vsub.f32 %v6917, %v6918
      %v6920 = vand.u32 %v6919, 4294901760
      %6921 = vmatpush.msra.mxu0 %v6920
      %v6922 = vand.u32 %v441, 4294901760
      %v6923 = vsub.f32 %v441, %v6922
      %v6924 = vand.u32 %v6923, 4294901760
      %v6925 = vsub.f32 %v6923, %v6924
      %v6926 = vand.u32 %v6925, 4294901760
      %6927 = vmatpush.msra.mxu0 %v6926
      %v6928 = vand.u32 %v429, 4294901760
      %v6929 = vsub.f32 %v429, %v6928
      %v6930 = vand.u32 %v6929, 4294901760
      %v6931 = vsub.f32 %v6929, %v6930
      %v6932 = vand.u32 %v6931, 4294901760
      %6933 = vmatpush.msra.mxu0 %v6932
      %v6934 = vand.u32 %v540, 4294901760
      %6935 = vmatmul.f32.gmra.mxu0 %v6934
      %v6936 = vpop.f32.mrf.mxu0
      %v6937 = vadd.f32 %v6863, %v6936
      %v6938 = vand.u32 %v543, 4294901760
      %6939 = vmatmul.f32.gmra.mxu0 %v6938
      %v6940 = vpop.f32.mrf.mxu0
      %v6941 = vadd.f32 %v6871, %v6940
      %6942 = vdwg.mxu0
      %6943 = vmatpush.msra.mxu0 0.0
      %6944 = vmatpush.msra.mxu0 0.0
      %6945 = vmatpush.msra.mxu0 0.0
      %6946 = vmatpush.msra.mxu0 0.0
      %6947 = vmatpush.msra.mxu0 0.0
      %6948 = vmatpush.msra.mxu0 0.0
      %6949 = vmatpush.msra.mxu0 0.0
      %v6950 = vand.u32 %v574, 4294901760
      %v6951 = vsub.f32 %v574, %v6950
      %6952 = vmatpush.msra.mxu0 %v6951
      %v6953 = vand.u32 %v513, 4294901760
      %v6954 = vsub.f32 %v513, %v6953
      %6955 = vmatpush.msra.mxu0 %v6954
      %v6956 = vand.u32 %v501, 4294901760
      %v6957 = vsub.f32 %v501, %v6956
      %6958 = vmatpush.msra.mxu0 %v6957
      %v6959 = vand.u32 %v489, 4294901760
      %v6960 = vsub.f32 %v489, %v6959
      %6961 = vmatpush.msra.mxu0 %v6960
      %v6962 = vand.u32 %v477, 4294901760
      %v6963 = vsub.f32 %v477, %v6962
      %6964 = vmatpush.msra.mxu0 %v6963
      %v6965 = vand.u32 %v465, 4294901760
      %v6966 = vsub.f32 %v465, %v6965
      %6967 = vmatpush.msra.mxu0 %v6966
      %v6968 = vand.u32 %v453, 4294901760
      %v6969 = vsub.f32 %v453, %v6968
      %6970 = vmatpush.msra.mxu0 %v6969
      %v6971 = vand.u32 %v441, 4294901760
      %v6972 = vsub.f32 %v441, %v6971
      %6973 = vmatpush.msra.mxu0 %v6972
      %v6974 = vand.u32 %v429, 4294901760
      %v6975 = vsub.f32 %v429, %v6974
      %6976 = vmatpush.msra.mxu0 %v6975
      %v6977 = vand.u32 %v540, 4294901760
      %v6978 = vsub.f32 %v540, %v6977
      %6979 = vmatmul.f32.gmra.mxu0 %v6978
      %v6980 = vpop.f32.mrf.mxu0
      %v6981 = vadd.f32 %v6937, %v6980
      %v6982 = vand.u32 %v543, 4294901760
      %v6983 = vsub.f32 %v543, %v6982
      %6984 = vmatmul.f32.gmra.mxu0 %v6983
      %v6985 = vpop.f32.mrf.mxu0
      %v6986 = vadd.f32 %v6941, %v6985
      %6987 = vdwg.mxu0
      %6988 = vmatpush.msra.mxu0 0.0
      %6989 = vmatpush.msra.mxu0 0.0
      %6990 = vmatpush.msra.mxu0 0.0
      %6991 = vmatpush.msra.mxu0 0.0
      %6992 = vmatpush.msra.mxu0 0.0
      %6993 = vmatpush.msra.mxu0 0.0
      %6994 = vmatpush.msra.mxu0 0.0
      %v6995 = vand.u32 %v574, 4294901760
      %6996 = vmatpush.msra.mxu0 %v6995
      %v6997 = vand.u32 %v513, 4294901760
      %6998 = vmatpush.msra.mxu0 %v6997
      %v6999 = vand.u32 %v501, 4294901760
      %7000 = vmatpush.msra.mxu0 %v6999
      %v7001 = vand.u32 %v489, 4294901760
      %7002 = vmatpush.msra.mxu0 %v7001
      %v7003 = vand.u32 %v477, 4294901760
      %7004 = vmatpush.msra.mxu0 %v7003
      %v7005 = vand.u32 %v465, 4294901760
      %7006 = vmatpush.msra.mxu0 %v7005
      %v7007 = vand.u32 %v453, 4294901760
      %7008 = vmatpush.msra.mxu0 %v7007
      %v7009 = vand.u32 %v441, 4294901760
      %7010 = vmatpush.msra.mxu0 %v7009
      %v7011 = vand.u32 %v429, 4294901760
      %7012 = vmatpush.msra.mxu0 %v7011
      %v7013 = vand.u32 %v540, 4294901760
      %v7014 = vsub.f32 %v540, %v7013
      %v7015 = vand.u32 %v7014, 4294901760
      %7016 = vmatmul.f32.gmra.mxu0 %v7015
      %v7017 = vpop.f32.mrf.mxu0
      %v7018 = vadd.f32 %v6981, %v7017
      %v7019 = vand.u32 %v543, 4294901760
      %v7020 = vsub.f32 %v543, %v7019
      %v7021 = vand.u32 %v7020, 4294901760
      %7022 = vmatmul.f32.gmra.mxu0 %v7021
      %v7023 = vpop.f32.mrf.mxu0
      %v7024 = vadd.f32 %v6986, %v7023
      %7025 = vdwg.mxu0
      %7026 = vmatpush.msra.mxu0 0.0
      %7027 = vmatpush.msra.mxu0 0.0
      %7028 = vmatpush.msra.mxu0 0.0
      %7029 = vmatpush.msra.mxu0 0.0
      %7030 = vmatpush.msra.mxu0 0.0
      %7031 = vmatpush.msra.mxu0 0.0
      %7032 = vmatpush.msra.mxu0 0.0
      %v7033 = vand.u32 %v574, 4294901760
      %v7034 = vsub.f32 %v574, %v7033
      %v7035 = vand.u32 %v7034, 4294901760
      %7036 = vmatpush.msra.mxu0 %v7035
      %v7037 = vand.u32 %v513, 4294901760
      %v7038 = vsub.f32 %v513, %v7037
      %v7039 = vand.u32 %v7038, 4294901760
      %7040 = vmatpush.msra.mxu0 %v7039
      %v7041 = vand.u32 %v501, 4294901760
      %v7042 = vsub.f32 %v501, %v7041
      %v7043 = vand.u32 %v7042, 4294901760
      %7044 = vmatpush.msra.mxu0 %v7043
      %v7045 = vand.u32 %v489, 4294901760
      %v7046 = vsub.f32 %v489, %v7045
      %v7047 = vand.u32 %v7046, 4294901760
      %7048 = vmatpush.msra.mxu0 %v7047
      %v7049 = vand.u32 %v477, 4294901760
      %v7050 = vsub.f32 %v477, %v7049
      %v7051 = vand.u32 %v7050, 4294901760
      %7052 = vmatpush.msra.mxu0 %v7051
      %v7053 = vand.u32 %v465, 4294901760
      %v7054 = vsub.f32 %v465, %v7053
      %v7055 = vand.u32 %v7054, 4294901760
      %7056 = vmatpush.msra.mxu0 %v7055
      %v7057 = vand.u32 %v453, 4294901760
      %v7058 = vsub.f32 %v453, %v7057
      %v7059 = vand.u32 %v7058, 4294901760
      %7060 = vmatpush.msra.mxu0 %v7059
      %v7061 = vand.u32 %v441, 4294901760
      %v7062 = vsub.f32 %v441, %v7061
      %v7063 = vand.u32 %v7062, 4294901760
      %7064 = vmatpush.msra.mxu0 %v7063
      %v7065 = vand.u32 %v429, 4294901760
      %v7066 = vsub.f32 %v429, %v7065
      %v7067 = vand.u32 %v7066, 4294901760
      %7068 = vmatpush.msra.mxu0 %v7067
      %v7069 = vand.u32 %v540, 4294901760
      %7070 = vmatmul.f32.gmra.mxu0 %v7069
      %v7071 = vpop.f32.mrf.mxu0
      %v7072 = vadd.f32 %v7018, %v7071
      %v7073 = vand.u32 %v543, 4294901760
      %7074 = vmatmul.f32.gmra.mxu0 %v7073
      %v7075 = vpop.f32.mrf.mxu0
      %v7076 = vadd.f32 %v7024, %v7075
      %7077 = vdwg.mxu0
      %7078 = vmatpush.msra.mxu0 0.0
      %7079 = vmatpush.msra.mxu0 0.0
      %7080 = vmatpush.msra.mxu0 0.0
      %7081 = vmatpush.msra.mxu0 0.0
      %7082 = vmatpush.msra.mxu0 0.0
      %7083 = vmatpush.msra.mxu0 0.0
      %7084 = vmatpush.msra.mxu0 0.0
      %v7085 = vand.u32 %v574, 4294901760
      %7086 = vmatpush.msra.mxu0 %v7085
      %v7087 = vand.u32 %v513, 4294901760
      %7088 = vmatpush.msra.mxu0 %v7087
      %v7089 = vand.u32 %v501, 4294901760
      %7090 = vmatpush.msra.mxu0 %v7089
      %v7091 = vand.u32 %v489, 4294901760
      %7092 = vmatpush.msra.mxu0 %v7091
      %v7093 = vand.u32 %v477, 4294901760
      %7094 = vmatpush.msra.mxu0 %v7093
      %v7095 = vand.u32 %v465, 4294901760
      %7096 = vmatpush.msra.mxu0 %v7095
      %v7097 = vand.u32 %v453, 4294901760
      %7098 = vmatpush.msra.mxu0 %v7097
      %v7099 = vand.u32 %v441, 4294901760
      %7100 = vmatpush.msra.mxu0 %v7099
      %v7101 = vand.u32 %v429, 4294901760
      %7102 = vmatpush.msra.mxu0 %v7101
      %v7103 = vand.u32 %v540, 4294901760
      %7104 = vmatmul.f32.gmra.mxu0 %v7103
      %v7105 = vpop.f32.mrf.mxu0
      %v7106 = vadd.f32 %v7072, %v7105
      %v7107 = vand.u32 %v543, 4294901760
      %7108 = vmatmul.f32.gmra.mxu0 %v7107
      %v7109 = vpop.f32.mrf.mxu0
      %v7110 = vadd.f32 %v7076, %v7109
      %7111 = vdwg.mxu0
      %v7112 = vand.u32 %v418, 4294901760
      %7113 = vmatpush.msra.mxu0 %v7112
      %v7114 = vand.u32 %v406, 4294901760
      %7115 = vmatpush.msra.mxu0 %v7114
      %v7116 = vand.u32 %v394, 4294901760
      %7117 = vmatpush.msra.mxu0 %v7116
      %v7118 = vand.u32 %v382, 4294901760
      %7119 = vmatpush.msra.mxu0 %v7118
      %v7120 = vand.u32 %v370, 4294901760
      %7121 = vmatpush.msra.mxu0 %v7120
      %v7122 = vand.u32 %v358, 4294901760
      %7123 = vmatpush.msra.mxu0 %v7122
      %v7124 = vand.u32 %v346, 4294901760
      %7125 = vmatpush.msra.mxu0 %v7124
      %v7126 = vand.u32 %v334, 4294901760
      %7127 = vmatpush.msra.mxu0 %v7126
      %v7128 = vand.u32 %v322, 4294901760
      %7129 = vmatpush.msra.mxu0 %v7128
      %v7130 = vand.u32 %v310, 4294901760
      %7131 = vmatpush.msra.mxu0 %v7130
      %v7132 = vand.u32 %v298, 4294901760
      %7133 = vmatpush.msra.mxu0 %v7132
      %v7134 = vand.u32 %v286, 4294901760
      %7135 = vmatpush.msra.mxu0 %v7134
      %v7136 = vand.u32 %v274, 4294901760
      %7137 = vmatpush.msra.mxu0 %v7136
      %v7138 = vand.u32 %v262, 4294901760
      %7139 = vmatpush.msra.mxu0 %v7138
      %v7140 = vand.u32 %v250, 4294901760
      %7141 = vmatpush.msra.mxu0 %v7140
      %v7142 = vand.u32 %v238, 4294901760
      %7143 = vmatpush.msra.mxu0 %v7142
      %v7144 = vand.u32 %v198, 4294901760
      %v7145 = vsub.f32 %v198, %v7144
      %v7146 = vand.u32 %v7145, 4294901760
      %v7147 = vsub.f32 %v7145, %v7146
      %v7148 = vand.u32 %v7147, 4294901760
      %7149 = vmatmul.f32.gmra.mxu0 %v7148
      %v7150 = vpop.f32.mrf.mxu0
      %v7151 = vadd.f32 %v531, %v7150
      %v7152 = vand.u32 %v200, 4294901760
      %v7153 = vsub.f32 %v200, %v7152
      %v7154 = vand.u32 %v7153, 4294901760
      %v7155 = vsub.f32 %v7153, %v7154
      %v7156 = vand.u32 %v7155, 4294901760
      %7157 = vmatmul.f32.gmra.mxu0 %v7156
      %v7158 = vpop.f32.mrf.mxu0
      %v7159 = vadd.f32 %v536, %v7158
      %7160 = vdwg.mxu0
      %v7161 = vand.u32 %v418, 4294901760
      %v7162 = vsub.f32 %v418, %v7161
      %v7163 = vand.u32 %v7162, 4294901760
      %v7164 = vsub.f32 %v7162, %v7163
      %v7165 = vand.u32 %v7164, 4294901760
      %7166 = vmatpush.msra.mxu0 %v7165
      %v7167 = vand.u32 %v406, 4294901760
      %v7168 = vsub.f32 %v406, %v7167
      %v7169 = vand.u32 %v7168, 4294901760
      %v7170 = vsub.f32 %v7168, %v7169
      %v7171 = vand.u32 %v7170, 4294901760
      %7172 = vmatpush.msra.mxu0 %v7171
      %v7173 = vand.u32 %v394, 4294901760
      %v7174 = vsub.f32 %v394, %v7173
      %v7175 = vand.u32 %v7174, 4294901760
      %v7176 = vsub.f32 %v7174, %v7175
      %v7177 = vand.u32 %v7176, 4294901760
      %7178 = vmatpush.msra.mxu0 %v7177
      %v7179 = vand.u32 %v382, 4294901760
      %v7180 = vsub.f32 %v382, %v7179
      %v7181 = vand.u32 %v7180, 4294901760
      %v7182 = vsub.f32 %v7180, %v7181
      %v7183 = vand.u32 %v7182, 4294901760
      %7184 = vmatpush.msra.mxu0 %v7183
      %v7185 = vand.u32 %v370, 4294901760
      %v7186 = vsub.f32 %v370, %v7185
      %v7187 = vand.u32 %v7186, 4294901760
      %v7188 = vsub.f32 %v7186, %v7187
      %v7189 = vand.u32 %v7188, 4294901760
      %7190 = vmatpush.msra.mxu0 %v7189
      %v7191 = vand.u32 %v358, 4294901760
      %v7192 = vsub.f32 %v358, %v7191
      %v7193 = vand.u32 %v7192, 4294901760
      %v7194 = vsub.f32 %v7192, %v7193
      %v7195 = vand.u32 %v7194, 4294901760
      %7196 = vmatpush.msra.mxu0 %v7195
      %v7197 = vand.u32 %v346, 4294901760
      %v7198 = vsub.f32 %v346, %v7197
      %v7199 = vand.u32 %v7198, 4294901760
      %v7200 = vsub.f32 %v7198, %v7199
      %v7201 = vand.u32 %v7200, 4294901760
      %7202 = vmatpush.msra.mxu0 %v7201
      %v7203 = vand.u32 %v334, 4294901760
      %v7204 = vsub.f32 %v334, %v7203
      %v7205 = vand.u32 %v7204, 4294901760
      %v7206 = vsub.f32 %v7204, %v7205
      %v7207 = vand.u32 %v7206, 4294901760
      %7208 = vmatpush.msra.mxu0 %v7207
      %v7209 = vand.u32 %v322, 4294901760
      %v7210 = vsub.f32 %v322, %v7209
      %v7211 = vand.u32 %v7210, 4294901760
      %v7212 = vsub.f32 %v7210, %v7211
      %v7213 = vand.u32 %v7212, 4294901760
      %7214 = vmatpush.msra.mxu0 %v7213
      %v7215 = vand.u32 %v310, 4294901760
      %v7216 = vsub.f32 %v310, %v7215
      %v7217 = vand.u32 %v7216, 4294901760
      %v7218 = vsub.f32 %v7216, %v7217
      %v7219 = vand.u32 %v7218, 4294901760
      %7220 = vmatpush.msra.mxu0 %v7219
      %v7221 = vand.u32 %v298, 4294901760
      %v7222 = vsub.f32 %v298, %v7221
      %v7223 = vand.u32 %v7222, 4294901760
      %v7224 = vsub.f32 %v7222, %v7223
      %v7225 = vand.u32 %v7224, 4294901760
      %7226 = vmatpush.msra.mxu0 %v7225
      %v7227 = vand.u32 %v286, 4294901760
      %v7228 = vsub.f32 %v286, %v7227
      %v7229 = vand.u32 %v7228, 4294901760
      %v7230 = vsub.f32 %v7228, %v7229
      %v7231 = vand.u32 %v7230, 4294901760
      %7232 = vmatpush.msra.mxu0 %v7231
      %v7233 = vand.u32 %v274, 4294901760
      %v7234 = vsub.f32 %v274, %v7233
      %v7235 = vand.u32 %v7234, 4294901760
      %v7236 = vsub.f32 %v7234, %v7235
      %v7237 = vand.u32 %v7236, 4294901760
      %7238 = vmatpush.msra.mxu0 %v7237
      %v7239 = vand.u32 %v262, 4294901760
      %v7240 = vsub.f32 %v262, %v7239
      %v7241 = vand.u32 %v7240, 4294901760
      %v7242 = vsub.f32 %v7240, %v7241
      %v7243 = vand.u32 %v7242, 4294901760
      %7244 = vmatpush.msra.mxu0 %v7243
      %v7245 = vand.u32 %v250, 4294901760
      %v7246 = vsub.f32 %v250, %v7245
      %v7247 = vand.u32 %v7246, 4294901760
      %v7248 = vsub.f32 %v7246, %v7247
      %v7249 = vand.u32 %v7248, 4294901760
      %7250 = vmatpush.msra.mxu0 %v7249
      %v7251 = vand.u32 %v238, 4294901760
      %v7252 = vsub.f32 %v238, %v7251
      %v7253 = vand.u32 %v7252, 4294901760
      %v7254 = vsub.f32 %v7252, %v7253
      %v7255 = vand.u32 %v7254, 4294901760
      %7256 = vmatpush.msra.mxu0 %v7255
      %v7257 = vand.u32 %v198, 4294901760
      %7258 = vmatmul.f32.gmra.mxu0 %v7257
      %v7259 = vpop.f32.mrf.mxu0
      %v7260 = vadd.f32 %v7151, %v7259
      %v7261 = vand.u32 %v200, 4294901760
      %7262 = vmatmul.f32.gmra.mxu0 %v7261
      %v7263 = vpop.f32.mrf.mxu0
      %v7264 = vadd.f32 %v7159, %v7263
      %7265 = vdwg.mxu0
      %v7266 = vand.u32 %v418, 4294901760
      %v7267 = vsub.f32 %v418, %v7266
      %7268 = vmatpush.msra.mxu0 %v7267
      %v7269 = vand.u32 %v406, 4294901760
      %v7270 = vsub.f32 %v406, %v7269
      %7271 = vmatpush.msra.mxu0 %v7270
      %v7272 = vand.u32 %v394, 4294901760
      %v7273 = vsub.f32 %v394, %v7272
      %7274 = vmatpush.msra.mxu0 %v7273
      %v7275 = vand.u32 %v382, 4294901760
      %v7276 = vsub.f32 %v382, %v7275
      %7277 = vmatpush.msra.mxu0 %v7276
      %v7278 = vand.u32 %v370, 4294901760
      %v7279 = vsub.f32 %v370, %v7278
      %7280 = vmatpush.msra.mxu0 %v7279
      %v7281 = vand.u32 %v358, 4294901760
      %v7282 = vsub.f32 %v358, %v7281
      %7283 = vmatpush.msra.mxu0 %v7282
      %v7284 = vand.u32 %v346, 4294901760
      %v7285 = vsub.f32 %v346, %v7284
      %7286 = vmatpush.msra.mxu0 %v7285
      %v7287 = vand.u32 %v334, 4294901760
      %v7288 = vsub.f32 %v334, %v7287
      %7289 = vmatpush.msra.mxu0 %v7288
      %v7290 = vand.u32 %v322, 4294901760
      %v7291 = vsub.f32 %v322, %v7290
      %7292 = vmatpush.msra.mxu0 %v7291
      %v7293 = vand.u32 %v310, 4294901760
      %v7294 = vsub.f32 %v310, %v7293
      %7295 = vmatpush.msra.mxu0 %v7294
      %v7296 = vand.u32 %v298, 4294901760
      %v7297 = vsub.f32 %v298, %v7296
      %7298 = vmatpush.msra.mxu0 %v7297
      %v7299 = vand.u32 %v286, 4294901760
      %v7300 = vsub.f32 %v286, %v7299
      %7301 = vmatpush.msra.mxu0 %v7300
      %v7302 = vand.u32 %v274, 4294901760
      %v7303 = vsub.f32 %v274, %v7302
      %7304 = vmatpush.msra.mxu0 %v7303
      %v7305 = vand.u32 %v262, 4294901760
      %v7306 = vsub.f32 %v262, %v7305
      %7307 = vmatpush.msra.mxu0 %v7306
      %v7308 = vand.u32 %v250, 4294901760
      %v7309 = vsub.f32 %v250, %v7308
      %7310 = vmatpush.msra.mxu0 %v7309
      %v7311 = vand.u32 %v238, 4294901760
      %v7312 = vsub.f32 %v238, %v7311
      %7313 = vmatpush.msra.mxu0 %v7312
      %v7314 = vand.u32 %v198, 4294901760
      %v7315 = vsub.f32 %v198, %v7314
      %7316 = vmatmul.f32.gmra.mxu0 %v7315
      %v7317 = vpop.f32.mrf.mxu0
      %v7318 = vadd.f32 %v7260, %v7317
      %v7319 = vand.u32 %v200, 4294901760
      %v7320 = vsub.f32 %v200, %v7319
      %7321 = vmatmul.f32.gmra.mxu0 %v7320
      %v7322 = vpop.f32.mrf.mxu0
      %v7323 = vadd.f32 %v7264, %v7322
      %7324 = vdwg.mxu0
      %v7325 = vand.u32 %v418, 4294901760
      %7326 = vmatpush.msra.mxu0 %v7325
      %v7327 = vand.u32 %v406, 4294901760
      %7328 = vmatpush.msra.mxu0 %v7327
      %v7329 = vand.u32 %v394, 4294901760
      %7330 = vmatpush.msra.mxu0 %v7329
      %v7331 = vand.u32 %v382, 4294901760
      %7332 = vmatpush.msra.mxu0 %v7331
      %v7333 = vand.u32 %v370, 4294901760
      %7334 = vmatpush.msra.mxu0 %v7333
      %v7335 = vand.u32 %v358, 4294901760
      %7336 = vmatpush.msra.mxu0 %v7335
      %v7337 = vand.u32 %v346, 4294901760
      %7338 = vmatpush.msra.mxu0 %v7337
      %v7339 = vand.u32 %v334, 4294901760
      %7340 = vmatpush.msra.mxu0 %v7339
      %v7341 = vand.u32 %v322, 4294901760
      %7342 = vmatpush.msra.mxu0 %v7341
      %v7343 = vand.u32 %v310, 4294901760
      %7344 = vmatpush.msra.mxu0 %v7343
      %v7345 = vand.u32 %v298, 4294901760
      %7346 = vmatpush.msra.mxu0 %v7345
      %v7347 = vand.u32 %v286, 4294901760
      %7348 = vmatpush.msra.mxu0 %v7347
      %v7349 = vand.u32 %v274, 4294901760
      %7350 = vmatpush.msra.mxu0 %v7349
      %v7351 = vand.u32 %v262, 4294901760
      %7352 = vmatpush.msra.mxu0 %v7351
      %v7353 = vand.u32 %v250, 4294901760
      %7354 = vmatpush.msra.mxu0 %v7353
      %v7355 = vand.u32 %v238, 4294901760
      %7356 = vmatpush.msra.mxu0 %v7355
      %v7357 = vand.u32 %v198, 4294901760
      %v7358 = vsub.f32 %v198, %v7357
      %v7359 = vand.u32 %v7358, 4294901760
      %7360 = vmatmul.f32.gmra.mxu0 %v7359
      %v7361 = vpop.f32.mrf.mxu0
      %v7362 = vadd.f32 %v7318, %v7361
      %v7363 = vand.u32 %v200, 4294901760
      %v7364 = vsub.f32 %v200, %v7363
      %v7365 = vand.u32 %v7364, 4294901760
      %7366 = vmatmul.f32.gmra.mxu0 %v7365
      %v7367 = vpop.f32.mrf.mxu0
      %v7368 = vadd.f32 %v7323, %v7367
      %7369 = vdwg.mxu0
      %v7370 = vand.u32 %v418, 4294901760
      %v7371 = vsub.f32 %v418, %v7370
      %v7372 = vand.u32 %v7371, 4294901760
      %7373 = vmatpush.msra.mxu0 %v7372
      %v7374 = vand.u32 %v406, 4294901760
      %v7375 = vsub.f32 %v406, %v7374
      %v7376 = vand.u32 %v7375, 4294901760
      %7377 = vmatpush.msra.mxu0 %v7376
      %v7378 = vand.u32 %v394, 4294901760
      %v7379 = vsub.f32 %v394, %v7378
      %v7380 = vand.u32 %v7379, 4294901760
      %7381 = vmatpush.msra.mxu0 %v7380
      %v7382 = vand.u32 %v382, 4294901760
      %v7383 = vsub.f32 %v382, %v7382
      %v7384 = vand.u32 %v7383, 4294901760
      %7385 = vmatpush.msra.mxu0 %v7384
      %v7386 = vand.u32 %v370, 4294901760
      %v7387 = vsub.f32 %v370, %v7386
      %v7388 = vand.u32 %v7387, 4294901760
      %7389 = vmatpush.msra.mxu0 %v7388
      %v7390 = vand.u32 %v358, 4294901760
      %v7391 = vsub.f32 %v358, %v7390
      %v7392 = vand.u32 %v7391, 4294901760
      %7393 = vmatpush.msra.mxu0 %v7392
      %v7394 = vand.u32 %v346, 4294901760
      %v7395 = vsub.f32 %v346, %v7394
      %v7396 = vand.u32 %v7395, 4294901760
      %7397 = vmatpush.msra.mxu0 %v7396
      %v7398 = vand.u32 %v334, 4294901760
      %v7399 = vsub.f32 %v334, %v7398
      %v7400 = vand.u32 %v7399, 4294901760
      %7401 = vmatpush.msra.mxu0 %v7400
      %v7402 = vand.u32 %v322, 4294901760
      %v7403 = vsub.f32 %v322, %v7402
      %v7404 = vand.u32 %v7403, 4294901760
      %7405 = vmatpush.msra.mxu0 %v7404
      %v7406 = vand.u32 %v310, 4294901760
      %v7407 = vsub.f32 %v310, %v7406
      %v7408 = vand.u32 %v7407, 4294901760
      %7409 = vmatpush.msra.mxu0 %v7408
      %v7410 = vand.u32 %v298, 4294901760
      %v7411 = vsub.f32 %v298, %v7410
      %v7412 = vand.u32 %v7411, 4294901760
      %7413 = vmatpush.msra.mxu0 %v7412
      %v7414 = vand.u32 %v286, 4294901760
      %v7415 = vsub.f32 %v286, %v7414
      %v7416 = vand.u32 %v7415, 4294901760
      %7417 = vmatpush.msra.mxu0 %v7416
      %v7418 = vand.u32 %v274, 4294901760
      %v7419 = vsub.f32 %v274, %v7418
      %v7420 = vand.u32 %v7419, 4294901760
      %7421 = vmatpush.msra.mxu0 %v7420
      %v7422 = vand.u32 %v262, 4294901760
      %v7423 = vsub.f32 %v262, %v7422
      %v7424 = vand.u32 %v7423, 4294901760
      %7425 = vmatpush.msra.mxu0 %v7424
      %v7426 = vand.u32 %v250, 4294901760
      %v7427 = vsub.f32 %v250, %v7426
      %v7428 = vand.u32 %v7427, 4294901760
      %7429 = vmatpush.msra.mxu0 %v7428
      %v7430 = vand.u32 %v238, 4294901760
      %v7431 = vsub.f32 %v238, %v7430
      %v7432 = vand.u32 %v7431, 4294901760
      %7433 = vmatpush.msra.mxu0 %v7432
      %v7434 = vand.u32 %v198, 4294901760
      %7435 = vmatmul.f32.gmra.mxu0 %v7434
      %v7436 = vpop.f32.mrf.mxu0
      %v7437 = vadd.f32 %v7362, %v7436
      %v7438 = vand.u32 %v200, 4294901760
      %7439 = vmatmul.f32.gmra.mxu0 %v7438
      %v7440 = vpop.f32.mrf.mxu0
      %v7441 = vadd.f32 %v7368, %v7440
      %7442 = vdwg.mxu0
      %v7443 = vand.u32 %v418, 4294901760
      %7444 = vmatpush.msra.mxu0 %v7443
      %v7445 = vand.u32 %v406, 4294901760
      %7446 = vmatpush.msra.mxu0 %v7445
      %v7447 = vand.u32 %v394, 4294901760
      %7448 = vmatpush.msra.mxu0 %v7447
      %v7449 = vand.u32 %v382, 4294901760
      %7450 = vmatpush.msra.mxu0 %v7449
      %v7451 = vand.u32 %v370, 4294901760
      %7452 = vmatpush.msra.mxu0 %v7451
      %v7453 = vand.u32 %v358, 4294901760
      %7454 = vmatpush.msra.mxu0 %v7453
      %v7455 = vand.u32 %v346, 4294901760
      %7456 = vmatpush.msra.mxu0 %v7455
      %v7457 = vand.u32 %v334, 4294901760
      %7458 = vmatpush.msra.mxu0 %v7457
      %v7459 = vand.u32 %v322, 4294901760
      %7460 = vmatpush.msra.mxu0 %v7459
      %v7461 = vand.u32 %v310, 4294901760
      %7462 = vmatpush.msra.mxu0 %v7461
      %v7463 = vand.u32 %v298, 4294901760
      %7464 = vmatpush.msra.mxu0 %v7463
      %v7465 = vand.u32 %v286, 4294901760
      %7466 = vmatpush.msra.mxu0 %v7465
      %v7467 = vand.u32 %v274, 4294901760
      %7468 = vmatpush.msra.mxu0 %v7467
      %v7469 = vand.u32 %v262, 4294901760
      %7470 = vmatpush.msra.mxu0 %v7469
      %v7471 = vand.u32 %v250, 4294901760
      %7472 = vmatpush.msra.mxu0 %v7471
      %v7473 = vand.u32 %v238, 4294901760
      %7474 = vmatpush.msra.mxu0 %v7473
      %v7475 = vand.u32 %v198, 4294901760
      %7476 = vmatmul.f32.gmra.mxu0 %v7475
      %v7477 = vpop.f32.mrf.mxu0
      %v7478 = vadd.f32 %v7437, %v7477
      %v7479 = vand.u32 %v200, 4294901760
      %7480 = vmatmul.f32.gmra.mxu0 %v7479
      %v7481 = vpop.f32.mrf.mxu0
      %v7482 = vadd.f32 %v7441, %v7481
      %7483 = vdwg.mxu0
      %7484 = vmatpush.msra.mxu0 0.0
      %7485 = vmatpush.msra.mxu0 0.0
      %7486 = vmatpush.msra.mxu0 0.0
      %7487 = vmatpush.msra.mxu0 0.0
      %7488 = vmatpush.msra.mxu0 0.0
      %7489 = vmatpush.msra.mxu0 0.0
      %7490 = vmatpush.msra.mxu0 0.0
      %v7491 = vand.u32 %v577, 4294901760
      %7492 = vmatpush.msra.mxu0 %v7491
      %v7493 = vand.u32 %v514, 4294901760
      %7494 = vmatpush.msra.mxu0 %v7493
      %v7495 = vand.u32 %v502, 4294901760
      %7496 = vmatpush.msra.mxu0 %v7495
      %v7497 = vand.u32 %v490, 4294901760
      %7498 = vmatpush.msra.mxu0 %v7497
      %v7499 = vand.u32 %v478, 4294901760
      %7500 = vmatpush.msra.mxu0 %v7499
      %v7501 = vand.u32 %v466, 4294901760
      %7502 = vmatpush.msra.mxu0 %v7501
      %v7503 = vand.u32 %v454, 4294901760
      %7504 = vmatpush.msra.mxu0 %v7503
      %v7505 = vand.u32 %v442, 4294901760
      %7506 = vmatpush.msra.mxu0 %v7505
      %v7507 = vand.u32 %v430, 4294901760
      %7508 = vmatpush.msra.mxu0 %v7507
      %v7509 = vand.u32 %v540, 4294901760
      %v7510 = vsub.f32 %v540, %v7509
      %v7511 = vand.u32 %v7510, 4294901760
      %v7512 = vsub.f32 %v7510, %v7511
      %v7513 = vand.u32 %v7512, 4294901760
      %7514 = vmatmul.f32.gmra.mxu0 %v7513
      %v7515 = vpop.f32.mrf.mxu0
      %v7516 = vadd.f32 %v7478, %v7515
      %v7517 = vand.u32 %v543, 4294901760
      %v7518 = vsub.f32 %v543, %v7517
      %v7519 = vand.u32 %v7518, 4294901760
      %v7520 = vsub.f32 %v7518, %v7519
      %v7521 = vand.u32 %v7520, 4294901760
      %7522 = vmatmul.f32.gmra.mxu0 %v7521
      %v7523 = vpop.f32.mrf.mxu0
      %v7524 = vadd.f32 %v7482, %v7523
      %7525 = vdwg.mxu0
      %7526 = vmatpush.msra.mxu0 0.0
      %7527 = vmatpush.msra.mxu0 0.0
      %7528 = vmatpush.msra.mxu0 0.0
      %7529 = vmatpush.msra.mxu0 0.0
      %7530 = vmatpush.msra.mxu0 0.0
      %7531 = vmatpush.msra.mxu0 0.0
      %7532 = vmatpush.msra.mxu0 0.0
      %v7533 = vand.u32 %v577, 4294901760
      %v7534 = vsub.f32 %v577, %v7533
      %v7535 = vand.u32 %v7534, 4294901760
      %v7536 = vsub.f32 %v7534, %v7535
      %v7537 = vand.u32 %v7536, 4294901760
      %7538 = vmatpush.msra.mxu0 %v7537
      %v7539 = vand.u32 %v514, 4294901760
      %v7540 = vsub.f32 %v514, %v7539
      %v7541 = vand.u32 %v7540, 4294901760
      %v7542 = vsub.f32 %v7540, %v7541
      %v7543 = vand.u32 %v7542, 4294901760
      %7544 = vmatpush.msra.mxu0 %v7543
      %v7545 = vand.u32 %v502, 4294901760
      %v7546 = vsub.f32 %v502, %v7545
      %v7547 = vand.u32 %v7546, 4294901760
      %v7548 = vsub.f32 %v7546, %v7547
      %v7549 = vand.u32 %v7548, 4294901760
      %7550 = vmatpush.msra.mxu0 %v7549
      %v7551 = vand.u32 %v490, 4294901760
      %v7552 = vsub.f32 %v490, %v7551
      %v7553 = vand.u32 %v7552, 4294901760
      %v7554 = vsub.f32 %v7552, %v7553
      %v7555 = vand.u32 %v7554, 4294901760
      %7556 = vmatpush.msra.mxu0 %v7555
      %v7557 = vand.u32 %v478, 4294901760
      %v7558 = vsub.f32 %v478, %v7557
      %v7559 = vand.u32 %v7558, 4294901760
      %v7560 = vsub.f32 %v7558, %v7559
      %v7561 = vand.u32 %v7560, 4294901760
      %7562 = vmatpush.msra.mxu0 %v7561
      %v7563 = vand.u32 %v466, 4294901760
      %v7564 = vsub.f32 %v466, %v7563
      %v7565 = vand.u32 %v7564, 4294901760
      %v7566 = vsub.f32 %v7564, %v7565
      %v7567 = vand.u32 %v7566, 4294901760
      %7568 = vmatpush.msra.mxu0 %v7567
      %v7569 = vand.u32 %v454, 4294901760
      %v7570 = vsub.f32 %v454, %v7569
      %v7571 = vand.u32 %v7570, 4294901760
      %v7572 = vsub.f32 %v7570, %v7571
      %v7573 = vand.u32 %v7572, 4294901760
      %7574 = vmatpush.msra.mxu0 %v7573
      %v7575 = vand.u32 %v442, 4294901760
      %v7576 = vsub.f32 %v442, %v7575
      %v7577 = vand.u32 %v7576, 4294901760
      %v7578 = vsub.f32 %v7576, %v7577
      %v7579 = vand.u32 %v7578, 4294901760
      %7580 = vmatpush.msra.mxu0 %v7579
      %v7581 = vand.u32 %v430, 4294901760
      %v7582 = vsub.f32 %v430, %v7581
      %v7583 = vand.u32 %v7582, 4294901760
      %v7584 = vsub.f32 %v7582, %v7583
      %v7585 = vand.u32 %v7584, 4294901760
      %7586 = vmatpush.msra.mxu0 %v7585
      %v7587 = vand.u32 %v540, 4294901760
      %7588 = vmatmul.f32.gmra.mxu0 %v7587
      %v7589 = vpop.f32.mrf.mxu0
      %v7590 = vadd.f32 %v7516, %v7589
      %v7591 = vand.u32 %v543, 4294901760
      %7592 = vmatmul.f32.gmra.mxu0 %v7591
      %v7593 = vpop.f32.mrf.mxu0
      %v7594 = vadd.f32 %v7524, %v7593
      %7595 = vdwg.mxu0
      %7596 = vmatpush.msra.mxu0 0.0
      %7597 = vmatpush.msra.mxu0 0.0
      %7598 = vmatpush.msra.mxu0 0.0
      %7599 = vmatpush.msra.mxu0 0.0
      %7600 = vmatpush.msra.mxu0 0.0
      %7601 = vmatpush.msra.mxu0 0.0
      %7602 = vmatpush.msra.mxu0 0.0
      %v7603 = vand.u32 %v577, 4294901760
      %v7604 = vsub.f32 %v577, %v7603
      %7605 = vmatpush.msra.mxu0 %v7604
      %v7606 = vand.u32 %v514, 4294901760
      %v7607 = vsub.f32 %v514, %v7606
      %7608 = vmatpush.msra.mxu0 %v7607
      %v7609 = vand.u32 %v502, 4294901760
      %v7610 = vsub.f32 %v502, %v7609
      %7611 = vmatpush.msra.mxu0 %v7610
      %v7612 = vand.u32 %v490, 4294901760
      %v7613 = vsub.f32 %v490, %v7612
      %7614 = vmatpush.msra.mxu0 %v7613
      %v7615 = vand.u32 %v478, 4294901760
      %v7616 = vsub.f32 %v478, %v7615
      %7617 = vmatpush.msra.mxu0 %v7616
      %v7618 = vand.u32 %v466, 4294901760
      %v7619 = vsub.f32 %v466, %v7618
      %7620 = vmatpush.msra.mxu0 %v7619
      %v7621 = vand.u32 %v454, 4294901760
      %v7622 = vsub.f32 %v454, %v7621
      %7623 = vmatpush.msra.mxu0 %v7622
      %v7624 = vand.u32 %v442, 4294901760
      %v7625 = vsub.f32 %v442, %v7624
      %7626 = vmatpush.msra.mxu0 %v7625
      %v7627 = vand.u32 %v430, 4294901760
      %v7628 = vsub.f32 %v430, %v7627
      %7629 = vmatpush.msra.mxu0 %v7628
      %v7630 = vand.u32 %v540, 4294901760
      %v7631 = vsub.f32 %v540, %v7630
      %7632 = vmatmul.f32.gmra.mxu0 %v7631
      %v7633 = vpop.f32.mrf.mxu0
      %v7634 = vadd.f32 %v7590, %v7633
      %v7635 = vand.u32 %v543, 4294901760
      %v7636 = vsub.f32 %v543, %v7635
      %7637 = vmatmul.f32.gmra.mxu0 %v7636
      %v7638 = vpop.f32.mrf.mxu0
      %v7639 = vadd.f32 %v7594, %v7638
      %7640 = vdwg.mxu0
      %7641 = vmatpush.msra.mxu0 0.0
      %7642 = vmatpush.msra.mxu0 0.0
      %7643 = vmatpush.msra.mxu0 0.0
      %7644 = vmatpush.msra.mxu0 0.0
      %7645 = vmatpush.msra.mxu0 0.0
      %7646 = vmatpush.msra.mxu0 0.0
      %7647 = vmatpush.msra.mxu0 0.0
      %v7648 = vand.u32 %v577, 4294901760
      %7649 = vmatpush.msra.mxu0 %v7648
      %v7650 = vand.u32 %v514, 4294901760
      %7651 = vmatpush.msra.mxu0 %v7650
      %v7652 = vand.u32 %v502, 4294901760
      %7653 = vmatpush.msra.mxu0 %v7652
      %v7654 = vand.u32 %v490, 4294901760
      %7655 = vmatpush.msra.mxu0 %v7654
      %v7656 = vand.u32 %v478, 4294901760
      %7657 = vmatpush.msra.mxu0 %v7656
      %v7658 = vand.u32 %v466, 4294901760
      %7659 = vmatpush.msra.mxu0 %v7658
      %v7660 = vand.u32 %v454, 4294901760
      %7661 = vmatpush.msra.mxu0 %v7660
      %v7662 = vand.u32 %v442, 4294901760
      %7663 = vmatpush.msra.mxu0 %v7662
      %v7664 = vand.u32 %v430, 4294901760
      %7665 = vmatpush.msra.mxu0 %v7664
      %v7666 = vand.u32 %v540, 4294901760
      %v7667 = vsub.f32 %v540, %v7666
      %v7668 = vand.u32 %v7667, 4294901760
      %7669 = vmatmul.f32.gmra.mxu0 %v7668
      %v7670 = vpop.f32.mrf.mxu0
      %v7671 = vadd.f32 %v7634, %v7670
      %v7672 = vand.u32 %v543, 4294901760
      %v7673 = vsub.f32 %v543, %v7672
      %v7674 = vand.u32 %v7673, 4294901760
      %7675 = vmatmul.f32.gmra.mxu0 %v7674
      %v7676 = vpop.f32.mrf.mxu0
      %v7677 = vadd.f32 %v7639, %v7676
      %7678 = vdwg.mxu0
      %7679 = vmatpush.msra.mxu0 0.0
      %7680 = vmatpush.msra.mxu0 0.0
      %7681 = vmatpush.msra.mxu0 0.0
      %7682 = vmatpush.msra.mxu0 0.0
      %7683 = vmatpush.msra.mxu0 0.0
      %7684 = vmatpush.msra.mxu0 0.0
      %7685 = vmatpush.msra.mxu0 0.0
      %v7686 = vand.u32 %v577, 4294901760
      %v7687 = vsub.f32 %v577, %v7686
      %v7688 = vand.u32 %v7687, 4294901760
      %7689 = vmatpush.msra.mxu0 %v7688
      %v7690 = vand.u32 %v514, 4294901760
      %v7691 = vsub.f32 %v514, %v7690
      %v7692 = vand.u32 %v7691, 4294901760
      %7693 = vmatpush.msra.mxu0 %v7692
      %v7694 = vand.u32 %v502, 4294901760
      %v7695 = vsub.f32 %v502, %v7694
      %v7696 = vand.u32 %v7695, 4294901760
      %7697 = vmatpush.msra.mxu0 %v7696
      %v7698 = vand.u32 %v490, 4294901760
      %v7699 = vsub.f32 %v490, %v7698
      %v7700 = vand.u32 %v7699, 4294901760
      %7701 = vmatpush.msra.mxu0 %v7700
      %v7702 = vand.u32 %v478, 4294901760
      %v7703 = vsub.f32 %v478, %v7702
      %v7704 = vand.u32 %v7703, 4294901760
      %7705 = vmatpush.msra.mxu0 %v7704
      %v7706 = vand.u32 %v466, 4294901760
      %v7707 = vsub.f32 %v466, %v7706
      %v7708 = vand.u32 %v7707, 4294901760
      %7709 = vmatpush.msra.mxu0 %v7708
      %v7710 = vand.u32 %v454, 4294901760
      %v7711 = vsub.f32 %v454, %v7710
      %v7712 = vand.u32 %v7711, 4294901760
      %7713 = vmatpush.msra.mxu0 %v7712
      %v7714 = vand.u32 %v442, 4294901760
      %v7715 = vsub.f32 %v442, %v7714
      %v7716 = vand.u32 %v7715, 4294901760
      %7717 = vmatpush.msra.mxu0 %v7716
      %v7718 = vand.u32 %v430, 4294901760
      %v7719 = vsub.f32 %v430, %v7718
      %v7720 = vand.u32 %v7719, 4294901760
      %7721 = vmatpush.msra.mxu0 %v7720
      %v7722 = vand.u32 %v540, 4294901760
      %7723 = vmatmul.f32.gmra.mxu0 %v7722
      %v7724 = vpop.f32.mrf.mxu0
      %v7725 = vadd.f32 %v7671, %v7724
      %v7726 = vand.u32 %v543, 4294901760
      %7727 = vmatmul.f32.gmra.mxu0 %v7726
      %v7728 = vpop.f32.mrf.mxu0
      %v7729 = vadd.f32 %v7677, %v7728
      %7730 = vdwg.mxu0
      %7731 = vmatpush.msra.mxu0 0.0
      %7732 = vmatpush.msra.mxu0 0.0
      %7733 = vmatpush.msra.mxu0 0.0
      %7734 = vmatpush.msra.mxu0 0.0
      %7735 = vmatpush.msra.mxu0 0.0
      %7736 = vmatpush.msra.mxu0 0.0
      %7737 = vmatpush.msra.mxu0 0.0
      %v7738 = vand.u32 %v577, 4294901760
      %7739 = vmatpush.msra.mxu0 %v7738
      %v7740 = vand.u32 %v514, 4294901760
      %7741 = vmatpush.msra.mxu0 %v7740
      %v7742 = vand.u32 %v502, 4294901760
      %7743 = vmatpush.msra.mxu0 %v7742
      %v7744 = vand.u32 %v490, 4294901760
      %7745 = vmatpush.msra.mxu0 %v7744
      %v7746 = vand.u32 %v478, 4294901760
      %7747 = vmatpush.msra.mxu0 %v7746
      %v7748 = vand.u32 %v466, 4294901760
      %7749 = vmatpush.msra.mxu0 %v7748
      %v7750 = vand.u32 %v454, 4294901760
      %7751 = vmatpush.msra.mxu0 %v7750
      %v7752 = vand.u32 %v442, 4294901760
      %7753 = vmatpush.msra.mxu0 %v7752
      %v7754 = vand.u32 %v430, 4294901760
      %7755 = vmatpush.msra.mxu0 %v7754
      %v7756 = vand.u32 %v540, 4294901760
      %7757 = vmatmul.f32.gmra.mxu0 %v7756
      %v7758 = vpop.f32.mrf.mxu0
      %v7759 = vadd.f32 %v7725, %v7758
      %v7760 = vand.u32 %v543, 4294901760
      %7761 = vmatmul.f32.gmra.mxu0 %v7760
      %v7762 = vpop.f32.mrf.mxu0
      %v7763 = vadd.f32 %v7729, %v7762
      %7764 = vdwg.mxu0
      %v7765 = vand.u32 %v419, 4294901760
      %7766 = vmatpush.msra.mxu0 %v7765
      %v7767 = vand.u32 %v407, 4294901760
      %7768 = vmatpush.msra.mxu0 %v7767
      %v7769 = vand.u32 %v395, 4294901760
      %7770 = vmatpush.msra.mxu0 %v7769
      %v7771 = vand.u32 %v383, 4294901760
      %7772 = vmatpush.msra.mxu0 %v7771
      %v7773 = vand.u32 %v371, 4294901760
      %7774 = vmatpush.msra.mxu0 %v7773
      %v7775 = vand.u32 %v359, 4294901760
      %7776 = vmatpush.msra.mxu0 %v7775
      %v7777 = vand.u32 %v347, 4294901760
      %7778 = vmatpush.msra.mxu0 %v7777
      %v7779 = vand.u32 %v335, 4294901760
      %7780 = vmatpush.msra.mxu0 %v7779
      %v7781 = vand.u32 %v323, 4294901760
      %7782 = vmatpush.msra.mxu0 %v7781
      %v7783 = vand.u32 %v311, 4294901760
      %7784 = vmatpush.msra.mxu0 %v7783
      %v7785 = vand.u32 %v299, 4294901760
      %7786 = vmatpush.msra.mxu0 %v7785
      %v7787 = vand.u32 %v287, 4294901760
      %7788 = vmatpush.msra.mxu0 %v7787
      %v7789 = vand.u32 %v275, 4294901760
      %7790 = vmatpush.msra.mxu0 %v7789
      %v7791 = vand.u32 %v263, 4294901760
      %7792 = vmatpush.msra.mxu0 %v7791
      %v7793 = vand.u32 %v251, 4294901760
      %7794 = vmatpush.msra.mxu0 %v7793
      %v7795 = vand.u32 %v239, 4294901760
      %7796 = vmatpush.msra.mxu0 %v7795
      %v7797 = vand.u32 %v198, 4294901760
      %v7798 = vsub.f32 %v198, %v7797
      %v7799 = vand.u32 %v7798, 4294901760
      %v7800 = vsub.f32 %v7798, %v7799
      %v7801 = vand.u32 %v7800, 4294901760
      %7802 = vmatmul.f32.gmra.mxu0 %v7801
      %v7803 = vpop.f32.mrf.mxu0
      %v7804 = vadd.f32 %v531, %v7803
      %v7805 = vand.u32 %v200, 4294901760
      %v7806 = vsub.f32 %v200, %v7805
      %v7807 = vand.u32 %v7806, 4294901760
      %v7808 = vsub.f32 %v7806, %v7807
      %v7809 = vand.u32 %v7808, 4294901760
      %7810 = vmatmul.f32.gmra.mxu0 %v7809
      %v7811 = vpop.f32.mrf.mxu0
      %v7812 = vadd.f32 %v536, %v7811
      %7813 = vdwg.mxu0
      %v7814 = vand.u32 %v419, 4294901760
      %v7815 = vsub.f32 %v419, %v7814
      %v7816 = vand.u32 %v7815, 4294901760
      %v7817 = vsub.f32 %v7815, %v7816
      %v7818 = vand.u32 %v7817, 4294901760
      %7819 = vmatpush.msra.mxu0 %v7818
      %v7820 = vand.u32 %v407, 4294901760
      %v7821 = vsub.f32 %v407, %v7820
      %v7822 = vand.u32 %v7821, 4294901760
      %v7823 = vsub.f32 %v7821, %v7822
      %v7824 = vand.u32 %v7823, 4294901760
      %7825 = vmatpush.msra.mxu0 %v7824
      %v7826 = vand.u32 %v395, 4294901760
      %v7827 = vsub.f32 %v395, %v7826
      %v7828 = vand.u32 %v7827, 4294901760
      %v7829 = vsub.f32 %v7827, %v7828
      %v7830 = vand.u32 %v7829, 4294901760
      %7831 = vmatpush.msra.mxu0 %v7830
      %v7832 = vand.u32 %v383, 4294901760
      %v7833 = vsub.f32 %v383, %v7832
      %v7834 = vand.u32 %v7833, 4294901760
      %v7835 = vsub.f32 %v7833, %v7834
      %v7836 = vand.u32 %v7835, 4294901760
      %7837 = vmatpush.msra.mxu0 %v7836
      %v7838 = vand.u32 %v371, 4294901760
      %v7839 = vsub.f32 %v371, %v7838
      %v7840 = vand.u32 %v7839, 4294901760
      %v7841 = vsub.f32 %v7839, %v7840
      %v7842 = vand.u32 %v7841, 4294901760
      %7843 = vmatpush.msra.mxu0 %v7842
      %v7844 = vand.u32 %v359, 4294901760
      %v7845 = vsub.f32 %v359, %v7844
      %v7846 = vand.u32 %v7845, 4294901760
      %v7847 = vsub.f32 %v7845, %v7846
      %v7848 = vand.u32 %v7847, 4294901760
      %7849 = vmatpush.msra.mxu0 %v7848
      %v7850 = vand.u32 %v347, 4294901760
      %v7851 = vsub.f32 %v347, %v7850
      %v7852 = vand.u32 %v7851, 4294901760
      %v7853 = vsub.f32 %v7851, %v7852
      %v7854 = vand.u32 %v7853, 4294901760
      %7855 = vmatpush.msra.mxu0 %v7854
      %v7856 = vand.u32 %v335, 4294901760
      %v7857 = vsub.f32 %v335, %v7856
      %v7858 = vand.u32 %v7857, 4294901760
      %v7859 = vsub.f32 %v7857, %v7858
      %v7860 = vand.u32 %v7859, 4294901760
      %7861 = vmatpush.msra.mxu0 %v7860
      %v7862 = vand.u32 %v323, 4294901760
      %v7863 = vsub.f32 %v323, %v7862
      %v7864 = vand.u32 %v7863, 4294901760
      %v7865 = vsub.f32 %v7863, %v7864
      %v7866 = vand.u32 %v7865, 4294901760
      %7867 = vmatpush.msra.mxu0 %v7866
      %v7868 = vand.u32 %v311, 4294901760
      %v7869 = vsub.f32 %v311, %v7868
      %v7870 = vand.u32 %v7869, 4294901760
      %v7871 = vsub.f32 %v7869, %v7870
      %v7872 = vand.u32 %v7871, 4294901760
      %7873 = vmatpush.msra.mxu0 %v7872
      %v7874 = vand.u32 %v299, 4294901760
      %v7875 = vsub.f32 %v299, %v7874
      %v7876 = vand.u32 %v7875, 4294901760
      %v7877 = vsub.f32 %v7875, %v7876
      %v7878 = vand.u32 %v7877, 4294901760
      %7879 = vmatpush.msra.mxu0 %v7878
      %v7880 = vand.u32 %v287, 4294901760
      %v7881 = vsub.f32 %v287, %v7880
      %v7882 = vand.u32 %v7881, 4294901760
      %v7883 = vsub.f32 %v7881, %v7882
      %v7884 = vand.u32 %v7883, 4294901760
      %7885 = vmatpush.msra.mxu0 %v7884
      %v7886 = vand.u32 %v275, 4294901760
      %v7887 = vsub.f32 %v275, %v7886
      %v7888 = vand.u32 %v7887, 4294901760
      %v7889 = vsub.f32 %v7887, %v7888
      %v7890 = vand.u32 %v7889, 4294901760
      %7891 = vmatpush.msra.mxu0 %v7890
      %v7892 = vand.u32 %v263, 4294901760
      %v7893 = vsub.f32 %v263, %v7892
      %v7894 = vand.u32 %v7893, 4294901760
      %v7895 = vsub.f32 %v7893, %v7894
      %v7896 = vand.u32 %v7895, 4294901760
      %7897 = vmatpush.msra.mxu0 %v7896
      %v7898 = vand.u32 %v251, 4294901760
      %v7899 = vsub.f32 %v251, %v7898
      %v7900 = vand.u32 %v7899, 4294901760
      %v7901 = vsub.f32 %v7899, %v7900
      %v7902 = vand.u32 %v7901, 4294901760
      %7903 = vmatpush.msra.mxu0 %v7902
      %v7904 = vand.u32 %v239, 4294901760
      %v7905 = vsub.f32 %v239, %v7904
      %v7906 = vand.u32 %v7905, 4294901760
      %v7907 = vsub.f32 %v7905, %v7906
      %v7908 = vand.u32 %v7907, 4294901760
      %7909 = vmatpush.msra.mxu0 %v7908
      %v7910 = vand.u32 %v198, 4294901760
      %7911 = vmatmul.f32.gmra.mxu0 %v7910
      %v7912 = vpop.f32.mrf.mxu0
      %v7913 = vadd.f32 %v7804, %v7912
      %v7914 = vand.u32 %v200, 4294901760
      %7915 = vmatmul.f32.gmra.mxu0 %v7914
      %v7916 = vpop.f32.mrf.mxu0
      %v7917 = vadd.f32 %v7812, %v7916
      %7918 = vdwg.mxu0
      %v7919 = vand.u32 %v419, 4294901760
      %v7920 = vsub.f32 %v419, %v7919
      %7921 = vmatpush.msra.mxu0 %v7920
      %v7922 = vand.u32 %v407, 4294901760
      %v7923 = vsub.f32 %v407, %v7922
      %7924 = vmatpush.msra.mxu0 %v7923
      %v7925 = vand.u32 %v395, 4294901760
      %v7926 = vsub.f32 %v395, %v7925
      %7927 = vmatpush.msra.mxu0 %v7926
      %v7928 = vand.u32 %v383, 4294901760
      %v7929 = vsub.f32 %v383, %v7928
      %7930 = vmatpush.msra.mxu0 %v7929
      %v7931 = vand.u32 %v371, 4294901760
      %v7932 = vsub.f32 %v371, %v7931
      %7933 = vmatpush.msra.mxu0 %v7932
      %v7934 = vand.u32 %v359, 4294901760
      %v7935 = vsub.f32 %v359, %v7934
      %7936 = vmatpush.msra.mxu0 %v7935
      %v7937 = vand.u32 %v347, 4294901760
      %v7938 = vsub.f32 %v347, %v7937
      %7939 = vmatpush.msra.mxu0 %v7938
      %v7940 = vand.u32 %v335, 4294901760
      %v7941 = vsub.f32 %v335, %v7940
      %7942 = vmatpush.msra.mxu0 %v7941
      %v7943 = vand.u32 %v323, 4294901760
      %v7944 = vsub.f32 %v323, %v7943
      %7945 = vmatpush.msra.mxu0 %v7944
      %v7946 = vand.u32 %v311, 4294901760
      %v7947 = vsub.f32 %v311, %v7946
      %7948 = vmatpush.msra.mxu0 %v7947
      %v7949 = vand.u32 %v299, 4294901760
      %v7950 = vsub.f32 %v299, %v7949
      %7951 = vmatpush.msra.mxu0 %v7950
      %v7952 = vand.u32 %v287, 4294901760
      %v7953 = vsub.f32 %v287, %v7952
      %7954 = vmatpush.msra.mxu0 %v7953
      %v7955 = vand.u32 %v275, 4294901760
      %v7956 = vsub.f32 %v275, %v7955
      %7957 = vmatpush.msra.mxu0 %v7956
      %v7958 = vand.u32 %v263, 4294901760
      %v7959 = vsub.f32 %v263, %v7958
      %7960 = vmatpush.msra.mxu0 %v7959
      %v7961 = vand.u32 %v251, 4294901760
      %v7962 = vsub.f32 %v251, %v7961
      %7963 = vmatpush.msra.mxu0 %v7962
      %v7964 = vand.u32 %v239, 4294901760
      %v7965 = vsub.f32 %v239, %v7964
      %7966 = vmatpush.msra.mxu0 %v7965
      %v7967 = vand.u32 %v198, 4294901760
      %v7968 = vsub.f32 %v198, %v7967
      %7969 = vmatmul.f32.gmra.mxu0 %v7968
      %v7970 = vpop.f32.mrf.mxu0
      %v7971 = vadd.f32 %v7913, %v7970
      %v7972 = vand.u32 %v200, 4294901760
      %v7973 = vsub.f32 %v200, %v7972
      %7974 = vmatmul.f32.gmra.mxu0 %v7973
      %v7975 = vpop.f32.mrf.mxu0
      %v7976 = vadd.f32 %v7917, %v7975
      %7977 = vdwg.mxu0
      %v7978 = vand.u32 %v419, 4294901760
      %7979 = vmatpush.msra.mxu0 %v7978
      %v7980 = vand.u32 %v407, 4294901760
      %7981 = vmatpush.msra.mxu0 %v7980
      %v7982 = vand.u32 %v395, 4294901760
      %7983 = vmatpush.msra.mxu0 %v7982
      %v7984 = vand.u32 %v383, 4294901760
      %7985 = vmatpush.msra.mxu0 %v7984
      %v7986 = vand.u32 %v371, 4294901760
      %7987 = vmatpush.msra.mxu0 %v7986
      %v7988 = vand.u32 %v359, 4294901760
      %7989 = vmatpush.msra.mxu0 %v7988
      %v7990 = vand.u32 %v347, 4294901760
      %7991 = vmatpush.msra.mxu0 %v7990
      %v7992 = vand.u32 %v335, 4294901760
      %7993 = vmatpush.msra.mxu0 %v7992
      %v7994 = vand.u32 %v323, 4294901760
      %7995 = vmatpush.msra.mxu0 %v7994
      %v7996 = vand.u32 %v311, 4294901760
      %7997 = vmatpush.msra.mxu0 %v7996
      %v7998 = vand.u32 %v299, 4294901760
      %7999 = vmatpush.msra.mxu0 %v7998
      %v8000 = vand.u32 %v287, 4294901760
      %8001 = vmatpush.msra.mxu0 %v8000
      %v8002 = vand.u32 %v275, 4294901760
      %8003 = vmatpush.msra.mxu0 %v8002
      %v8004 = vand.u32 %v263, 4294901760
      %8005 = vmatpush.msra.mxu0 %v8004
      %v8006 = vand.u32 %v251, 4294901760
      %8007 = vmatpush.msra.mxu0 %v8006
      %v8008 = vand.u32 %v239, 4294901760
      %8009 = vmatpush.msra.mxu0 %v8008
      %v8010 = vand.u32 %v198, 4294901760
      %v8011 = vsub.f32 %v198, %v8010
      %v8012 = vand.u32 %v8011, 4294901760
      %8013 = vmatmul.f32.gmra.mxu0 %v8012
      %v8014 = vpop.f32.mrf.mxu0
      %v8015 = vadd.f32 %v7971, %v8014
      %v8016 = vand.u32 %v200, 4294901760
      %v8017 = vsub.f32 %v200, %v8016
      %v8018 = vand.u32 %v8017, 4294901760
      %8019 = vmatmul.f32.gmra.mxu0 %v8018
      %v8020 = vpop.f32.mrf.mxu0
      %v8021 = vadd.f32 %v7976, %v8020
      %8022 = vdwg.mxu0
      %v8023 = vand.u32 %v419, 4294901760
      %v8024 = vsub.f32 %v419, %v8023
      %v8025 = vand.u32 %v8024, 4294901760
      %8026 = vmatpush.msra.mxu0 %v8025
      %v8027 = vand.u32 %v407, 4294901760
      %v8028 = vsub.f32 %v407, %v8027
      %v8029 = vand.u32 %v8028, 4294901760
      %8030 = vmatpush.msra.mxu0 %v8029
      %v8031 = vand.u32 %v395, 4294901760
      %v8032 = vsub.f32 %v395, %v8031
      %v8033 = vand.u32 %v8032, 4294901760
      %8034 = vmatpush.msra.mxu0 %v8033
      %v8035 = vand.u32 %v383, 4294901760
      %v8036 = vsub.f32 %v383, %v8035
      %v8037 = vand.u32 %v8036, 4294901760
      %8038 = vmatpush.msra.mxu0 %v8037
      %v8039 = vand.u32 %v371, 4294901760
      %v8040 = vsub.f32 %v371, %v8039
      %v8041 = vand.u32 %v8040, 4294901760
      %8042 = vmatpush.msra.mxu0 %v8041
      %v8043 = vand.u32 %v359, 4294901760
      %v8044 = vsub.f32 %v359, %v8043
      %v8045 = vand.u32 %v8044, 4294901760
      %8046 = vmatpush.msra.mxu0 %v8045
      %v8047 = vand.u32 %v347, 4294901760
      %v8048 = vsub.f32 %v347, %v8047
      %v8049 = vand.u32 %v8048, 4294901760
      %8050 = vmatpush.msra.mxu0 %v8049
      %v8051 = vand.u32 %v335, 4294901760
      %v8052 = vsub.f32 %v335, %v8051
      %v8053 = vand.u32 %v8052, 4294901760
      %8054 = vmatpush.msra.mxu0 %v8053
      %v8055 = vand.u32 %v323, 4294901760
      %v8056 = vsub.f32 %v323, %v8055
      %v8057 = vand.u32 %v8056, 4294901760
      %8058 = vmatpush.msra.mxu0 %v8057
      %v8059 = vand.u32 %v311, 4294901760
      %v8060 = vsub.f32 %v311, %v8059
      %v8061 = vand.u32 %v8060, 4294901760
      %8062 = vmatpush.msra.mxu0 %v8061
      %v8063 = vand.u32 %v299, 4294901760
      %v8064 = vsub.f32 %v299, %v8063
      %v8065 = vand.u32 %v8064, 4294901760
      %8066 = vmatpush.msra.mxu0 %v8065
      %v8067 = vand.u32 %v287, 4294901760
      %v8068 = vsub.f32 %v287, %v8067
      %v8069 = vand.u32 %v8068, 4294901760
      %8070 = vmatpush.msra.mxu0 %v8069
      %v8071 = vand.u32 %v275, 4294901760
      %v8072 = vsub.f32 %v275, %v8071
      %v8073 = vand.u32 %v8072, 4294901760
      %8074 = vmatpush.msra.mxu0 %v8073
      %v8075 = vand.u32 %v263, 4294901760
      %v8076 = vsub.f32 %v263, %v8075
      %v8077 = vand.u32 %v8076, 4294901760
      %8078 = vmatpush.msra.mxu0 %v8077
      %v8079 = vand.u32 %v251, 4294901760
      %v8080 = vsub.f32 %v251, %v8079
      %v8081 = vand.u32 %v8080, 4294901760
      %8082 = vmatpush.msra.mxu0 %v8081
      %v8083 = vand.u32 %v239, 4294901760
      %v8084 = vsub.f32 %v239, %v8083
      %v8085 = vand.u32 %v8084, 4294901760
      %8086 = vmatpush.msra.mxu0 %v8085
      %v8087 = vand.u32 %v198, 4294901760
      %8088 = vmatmul.f32.gmra.mxu0 %v8087
      %v8089 = vpop.f32.mrf.mxu0
      %v8090 = vadd.f32 %v8015, %v8089
      %v8091 = vand.u32 %v200, 4294901760
      %8092 = vmatmul.f32.gmra.mxu0 %v8091
      %v8093 = vpop.f32.mrf.mxu0
      %v8094 = vadd.f32 %v8021, %v8093
      %8095 = vdwg.mxu0
      %v8096 = vand.u32 %v419, 4294901760
      %8097 = vmatpush.msra.mxu0 %v8096
      %v8098 = vand.u32 %v407, 4294901760
      %8099 = vmatpush.msra.mxu0 %v8098
      %v8100 = vand.u32 %v395, 4294901760
      %8101 = vmatpush.msra.mxu0 %v8100
      %v8102 = vand.u32 %v383, 4294901760
      %8103 = vmatpush.msra.mxu0 %v8102
      %v8104 = vand.u32 %v371, 4294901760
      %8105 = vmatpush.msra.mxu0 %v8104
      %v8106 = vand.u32 %v359, 4294901760
      %8107 = vmatpush.msra.mxu0 %v8106
      %v8108 = vand.u32 %v347, 4294901760
      %8109 = vmatpush.msra.mxu0 %v8108
      %v8110 = vand.u32 %v335, 4294901760
      %8111 = vmatpush.msra.mxu0 %v8110
      %v8112 = vand.u32 %v323, 4294901760
      %8113 = vmatpush.msra.mxu0 %v8112
      %v8114 = vand.u32 %v311, 4294901760
      %8115 = vmatpush.msra.mxu0 %v8114
      %v8116 = vand.u32 %v299, 4294901760
      %8117 = vmatpush.msra.mxu0 %v8116
      %v8118 = vand.u32 %v287, 4294901760
      %8119 = vmatpush.msra.mxu0 %v8118
      %v8120 = vand.u32 %v275, 4294901760
      %8121 = vmatpush.msra.mxu0 %v8120
      %v8122 = vand.u32 %v263, 4294901760
      %8123 = vmatpush.msra.mxu0 %v8122
      %v8124 = vand.u32 %v251, 4294901760
      %8125 = vmatpush.msra.mxu0 %v8124
      %v8126 = vand.u32 %v239, 4294901760
      %8127 = vmatpush.msra.mxu0 %v8126
      %v8128 = vand.u32 %v198, 4294901760
      %8129 = vmatmul.f32.gmra.mxu0 %v8128
      %v8130 = vpop.f32.mrf.mxu0
      %v8131 = vadd.f32 %v8090, %v8130
      %v8132 = vand.u32 %v200, 4294901760
      %8133 = vmatmul.f32.gmra.mxu0 %v8132
      %v8134 = vpop.f32.mrf.mxu0
      %v8135 = vadd.f32 %v8094, %v8134
      %8136 = vdwg.mxu0
      %8137 = vmatpush.msra.mxu0 0.0
      %8138 = vmatpush.msra.mxu0 0.0
      %8139 = vmatpush.msra.mxu0 0.0
      %8140 = vmatpush.msra.mxu0 0.0
      %8141 = vmatpush.msra.mxu0 0.0
      %8142 = vmatpush.msra.mxu0 0.0
      %8143 = vmatpush.msra.mxu0 0.0
      %v8144 = vand.u32 %v580, 4294901760
      %8145 = vmatpush.msra.mxu0 %v8144
      %v8146 = vand.u32 %v515, 4294901760
      %8147 = vmatpush.msra.mxu0 %v8146
      %v8148 = vand.u32 %v503, 4294901760
      %8149 = vmatpush.msra.mxu0 %v8148
      %v8150 = vand.u32 %v491, 4294901760
      %8151 = vmatpush.msra.mxu0 %v8150
      %v8152 = vand.u32 %v479, 4294901760
      %8153 = vmatpush.msra.mxu0 %v8152
      %v8154 = vand.u32 %v467, 4294901760
      %8155 = vmatpush.msra.mxu0 %v8154
      %v8156 = vand.u32 %v455, 4294901760
      %8157 = vmatpush.msra.mxu0 %v8156
      %v8158 = vand.u32 %v443, 4294901760
      %8159 = vmatpush.msra.mxu0 %v8158
      %v8160 = vand.u32 %v431, 4294901760
      %8161 = vmatpush.msra.mxu0 %v8160
      %v8162 = vand.u32 %v540, 4294901760
      %v8163 = vsub.f32 %v540, %v8162
      %v8164 = vand.u32 %v8163, 4294901760
      %v8165 = vsub.f32 %v8163, %v8164
      %v8166 = vand.u32 %v8165, 4294901760
      %8167 = vmatmul.f32.gmra.mxu0 %v8166
      %v8168 = vpop.f32.mrf.mxu0
      %v8169 = vadd.f32 %v8131, %v8168
      %v8170 = vand.u32 %v543, 4294901760
      %v8171 = vsub.f32 %v543, %v8170
      %v8172 = vand.u32 %v8171, 4294901760
      %v8173 = vsub.f32 %v8171, %v8172
      %v8174 = vand.u32 %v8173, 4294901760
      %8175 = vmatmul.f32.gmra.mxu0 %v8174
      %v8176 = vpop.f32.mrf.mxu0
      %v8177 = vadd.f32 %v8135, %v8176
      %8178 = vdwg.mxu0
      %8179 = vmatpush.msra.mxu0 0.0
      %8180 = vmatpush.msra.mxu0 0.0
      %8181 = vmatpush.msra.mxu0 0.0
      %8182 = vmatpush.msra.mxu0 0.0
      %8183 = vmatpush.msra.mxu0 0.0
      %8184 = vmatpush.msra.mxu0 0.0
      %8185 = vmatpush.msra.mxu0 0.0
      %v8186 = vand.u32 %v580, 4294901760
      %v8187 = vsub.f32 %v580, %v8186
      %v8188 = vand.u32 %v8187, 4294901760
      %v8189 = vsub.f32 %v8187, %v8188
      %v8190 = vand.u32 %v8189, 4294901760
      %8191 = vmatpush.msra.mxu0 %v8190
      %v8192 = vand.u32 %v515, 4294901760
      %v8193 = vsub.f32 %v515, %v8192
      %v8194 = vand.u32 %v8193, 4294901760
      %v8195 = vsub.f32 %v8193, %v8194
      %v8196 = vand.u32 %v8195, 4294901760
      %8197 = vmatpush.msra.mxu0 %v8196
      %v8198 = vand.u32 %v503, 4294901760
      %v8199 = vsub.f32 %v503, %v8198
      %v8200 = vand.u32 %v8199, 4294901760
      %v8201 = vsub.f32 %v8199, %v8200
      %v8202 = vand.u32 %v8201, 4294901760
      %8203 = vmatpush.msra.mxu0 %v8202
      %v8204 = vand.u32 %v491, 4294901760
      %v8205 = vsub.f32 %v491, %v8204
      %v8206 = vand.u32 %v8205, 4294901760
      %v8207 = vsub.f32 %v8205, %v8206
      %v8208 = vand.u32 %v8207, 4294901760
      %8209 = vmatpush.msra.mxu0 %v8208
      %v8210 = vand.u32 %v479, 4294901760
      %v8211 = vsub.f32 %v479, %v8210
      %v8212 = vand.u32 %v8211, 4294901760
      %v8213 = vsub.f32 %v8211, %v8212
      %v8214 = vand.u32 %v8213, 4294901760
      %8215 = vmatpush.msra.mxu0 %v8214
      %v8216 = vand.u32 %v467, 4294901760
      %v8217 = vsub.f32 %v467, %v8216
      %v8218 = vand.u32 %v8217, 4294901760
      %v8219 = vsub.f32 %v8217, %v8218
      %v8220 = vand.u32 %v8219, 4294901760
      %8221 = vmatpush.msra.mxu0 %v8220
      %v8222 = vand.u32 %v455, 4294901760
      %v8223 = vsub.f32 %v455, %v8222
      %v8224 = vand.u32 %v8223, 4294901760
      %v8225 = vsub.f32 %v8223, %v8224
      %v8226 = vand.u32 %v8225, 4294901760
      %8227 = vmatpush.msra.mxu0 %v8226
      %v8228 = vand.u32 %v443, 4294901760
      %v8229 = vsub.f32 %v443, %v8228
      %v8230 = vand.u32 %v8229, 4294901760
      %v8231 = vsub.f32 %v8229, %v8230
      %v8232 = vand.u32 %v8231, 4294901760
      %8233 = vmatpush.msra.mxu0 %v8232
      %v8234 = vand.u32 %v431, 4294901760
      %v8235 = vsub.f32 %v431, %v8234
      %v8236 = vand.u32 %v8235, 4294901760
      %v8237 = vsub.f32 %v8235, %v8236
      %v8238 = vand.u32 %v8237, 4294901760
      %8239 = vmatpush.msra.mxu0 %v8238
      %v8240 = vand.u32 %v540, 4294901760
      %8241 = vmatmul.f32.gmra.mxu0 %v8240
      %v8242 = vpop.f32.mrf.mxu0
      %v8243 = vadd.f32 %v8169, %v8242
      %v8244 = vand.u32 %v543, 4294901760
      %8245 = vmatmul.f32.gmra.mxu0 %v8244
      %v8246 = vpop.f32.mrf.mxu0
      %v8247 = vadd.f32 %v8177, %v8246
      %8248 = vdwg.mxu0
      %8249 = vmatpush.msra.mxu0 0.0
      %8250 = vmatpush.msra.mxu0 0.0
      %8251 = vmatpush.msra.mxu0 0.0
      %8252 = vmatpush.msra.mxu0 0.0
      %8253 = vmatpush.msra.mxu0 0.0
      %8254 = vmatpush.msra.mxu0 0.0
      %8255 = vmatpush.msra.mxu0 0.0
      %v8256 = vand.u32 %v580, 4294901760
      %v8257 = vsub.f32 %v580, %v8256
      %8258 = vmatpush.msra.mxu0 %v8257
      %v8259 = vand.u32 %v515, 4294901760
      %v8260 = vsub.f32 %v515, %v8259
      %8261 = vmatpush.msra.mxu0 %v8260
      %v8262 = vand.u32 %v503, 4294901760
      %v8263 = vsub.f32 %v503, %v8262
      %8264 = vmatpush.msra.mxu0 %v8263
      %v8265 = vand.u32 %v491, 4294901760
      %v8266 = vsub.f32 %v491, %v8265
      %8267 = vmatpush.msra.mxu0 %v8266
      %v8268 = vand.u32 %v479, 4294901760
      %v8269 = vsub.f32 %v479, %v8268
      %8270 = vmatpush.msra.mxu0 %v8269
      %v8271 = vand.u32 %v467, 4294901760
      %v8272 = vsub.f32 %v467, %v8271
      %8273 = vmatpush.msra.mxu0 %v8272
      %v8274 = vand.u32 %v455, 4294901760
      %v8275 = vsub.f32 %v455, %v8274
      %8276 = vmatpush.msra.mxu0 %v8275
      %v8277 = vand.u32 %v443, 4294901760
      %v8278 = vsub.f32 %v443, %v8277
      %8279 = vmatpush.msra.mxu0 %v8278
      %v8280 = vand.u32 %v431, 4294901760
      %v8281 = vsub.f32 %v431, %v8280
      %8282 = vmatpush.msra.mxu0 %v8281
      %v8283 = vand.u32 %v540, 4294901760
      %v8284 = vsub.f32 %v540, %v8283
      %8285 = vmatmul.f32.gmra.mxu0 %v8284
      %v8286 = vpop.f32.mrf.mxu0
      %v8287 = vadd.f32 %v8243, %v8286
      %v8288 = vand.u32 %v543, 4294901760
      %v8289 = vsub.f32 %v543, %v8288
      %8290 = vmatmul.f32.gmra.mxu0 %v8289
      %v8291 = vpop.f32.mrf.mxu0
      %v8292 = vadd.f32 %v8247, %v8291
      %8293 = vdwg.mxu0
      %8294 = vmatpush.msra.mxu0 0.0
      %8295 = vmatpush.msra.mxu0 0.0
      %8296 = vmatpush.msra.mxu0 0.0
      %8297 = vmatpush.msra.mxu0 0.0
      %8298 = vmatpush.msra.mxu0 0.0
      %8299 = vmatpush.msra.mxu0 0.0
      %8300 = vmatpush.msra.mxu0 0.0
      %v8301 = vand.u32 %v580, 4294901760
      %8302 = vmatpush.msra.mxu0 %v8301
      %v8303 = vand.u32 %v515, 4294901760
      %8304 = vmatpush.msra.mxu0 %v8303
      %v8305 = vand.u32 %v503, 4294901760
      %8306 = vmatpush.msra.mxu0 %v8305
      %v8307 = vand.u32 %v491, 4294901760
      %8308 = vmatpush.msra.mxu0 %v8307
      %v8309 = vand.u32 %v479, 4294901760
      %8310 = vmatpush.msra.mxu0 %v8309
      %v8311 = vand.u32 %v467, 4294901760
      %8312 = vmatpush.msra.mxu0 %v8311
      %v8313 = vand.u32 %v455, 4294901760
      %8314 = vmatpush.msra.mxu0 %v8313
      %v8315 = vand.u32 %v443, 4294901760
      %8316 = vmatpush.msra.mxu0 %v8315
      %v8317 = vand.u32 %v431, 4294901760
      %8318 = vmatpush.msra.mxu0 %v8317
      %v8319 = vand.u32 %v540, 4294901760
      %v8320 = vsub.f32 %v540, %v8319
      %v8321 = vand.u32 %v8320, 4294901760
      %8322 = vmatmul.f32.gmra.mxu0 %v8321
      %v8323 = vpop.f32.mrf.mxu0
      %v8324 = vadd.f32 %v8287, %v8323
      %v8325 = vand.u32 %v543, 4294901760
      %v8326 = vsub.f32 %v543, %v8325
      %v8327 = vand.u32 %v8326, 4294901760
      %8328 = vmatmul.f32.gmra.mxu0 %v8327
      %v8329 = vpop.f32.mrf.mxu0
      %v8330 = vadd.f32 %v8292, %v8329
      %8331 = vdwg.mxu0
      %8332 = vmatpush.msra.mxu0 0.0
      %8333 = vmatpush.msra.mxu0 0.0
      %8334 = vmatpush.msra.mxu0 0.0
      %8335 = vmatpush.msra.mxu0 0.0
      %8336 = vmatpush.msra.mxu0 0.0
      %8337 = vmatpush.msra.mxu0 0.0
      %8338 = vmatpush.msra.mxu0 0.0
      %v8339 = vand.u32 %v580, 4294901760
      %v8340 = vsub.f32 %v580, %v8339
      %v8341 = vand.u32 %v8340, 4294901760
      %8342 = vmatpush.msra.mxu0 %v8341
      %v8343 = vand.u32 %v515, 4294901760
      %v8344 = vsub.f32 %v515, %v8343
      %v8345 = vand.u32 %v8344, 4294901760
      %8346 = vmatpush.msra.mxu0 %v8345
      %v8347 = vand.u32 %v503, 4294901760
      %v8348 = vsub.f32 %v503, %v8347
      %v8349 = vand.u32 %v8348, 4294901760
      %8350 = vmatpush.msra.mxu0 %v8349
      %v8351 = vand.u32 %v491, 4294901760
      %v8352 = vsub.f32 %v491, %v8351
      %v8353 = vand.u32 %v8352, 4294901760
      %8354 = vmatpush.msra.mxu0 %v8353
      %v8355 = vand.u32 %v479, 4294901760
      %v8356 = vsub.f32 %v479, %v8355
      %v8357 = vand.u32 %v8356, 4294901760
      %8358 = vmatpush.msra.mxu0 %v8357
      %v8359 = vand.u32 %v467, 4294901760
      %v8360 = vsub.f32 %v467, %v8359
      %v8361 = vand.u32 %v8360, 4294901760
      %8362 = vmatpush.msra.mxu0 %v8361
      %v8363 = vand.u32 %v455, 4294901760
      %v8364 = vsub.f32 %v455, %v8363
      %v8365 = vand.u32 %v8364, 4294901760
      %8366 = vmatpush.msra.mxu0 %v8365
      %v8367 = vand.u32 %v443, 4294901760
      %v8368 = vsub.f32 %v443, %v8367
      %v8369 = vand.u32 %v8368, 4294901760
      %8370 = vmatpush.msra.mxu0 %v8369
      %v8371 = vand.u32 %v431, 4294901760
      %v8372 = vsub.f32 %v431, %v8371
      %v8373 = vand.u32 %v8372, 4294901760
      %8374 = vmatpush.msra.mxu0 %v8373
      %v8375 = vand.u32 %v540, 4294901760
      %8376 = vmatmul.f32.gmra.mxu0 %v8375
      %v8377 = vpop.f32.mrf.mxu0
      %v8378 = vadd.f32 %v8324, %v8377
      %v8379 = vand.u32 %v543, 4294901760
      %8380 = vmatmul.f32.gmra.mxu0 %v8379
      %v8381 = vpop.f32.mrf.mxu0
      %v8382 = vadd.f32 %v8330, %v8381
      %8383 = vdwg.mxu0
      %8384 = vmatpush.msra.mxu0 0.0
      %8385 = vmatpush.msra.mxu0 0.0
      %8386 = vmatpush.msra.mxu0 0.0
      %8387 = vmatpush.msra.mxu0 0.0
      %8388 = vmatpush.msra.mxu0 0.0
      %8389 = vmatpush.msra.mxu0 0.0
      %8390 = vmatpush.msra.mxu0 0.0
      %v8391 = vand.u32 %v580, 4294901760
      %8392 = vmatpush.msra.mxu0 %v8391
      %v8393 = vand.u32 %v515, 4294901760
      %8394 = vmatpush.msra.mxu0 %v8393
      %v8395 = vand.u32 %v503, 4294901760
      %8396 = vmatpush.msra.mxu0 %v8395
      %v8397 = vand.u32 %v491, 4294901760
      %8398 = vmatpush.msra.mxu0 %v8397
      %v8399 = vand.u32 %v479, 4294901760
      %8400 = vmatpush.msra.mxu0 %v8399
      %v8401 = vand.u32 %v467, 4294901760
      %8402 = vmatpush.msra.mxu0 %v8401
      %v8403 = vand.u32 %v455, 4294901760
      %8404 = vmatpush.msra.mxu0 %v8403
      %v8405 = vand.u32 %v443, 4294901760
      %8406 = vmatpush.msra.mxu0 %v8405
      %v8407 = vand.u32 %v431, 4294901760
      %8408 = vmatpush.msra.mxu0 %v8407
      %v8409 = vand.u32 %v540, 4294901760
      %8410 = vmatmul.f32.gmra.mxu0 %v8409
      %v8411 = vpop.f32.mrf.mxu0
      %v8412 = vadd.f32 %v8378, %v8411
      %v8413 = vand.u32 %v543, 4294901760
      %8414 = vmatmul.f32.gmra.mxu0 %v8413
      %v8415 = vpop.f32.mrf.mxu0
      %v8416 = vadd.f32 %v8382, %v8415
      %8417 = vdwg.mxu0
      %vm8418 = vcmp.gt.f32.partialorder %v1229, 0.0
      %vm8419 = vcmp.gt.f32.partialorder %v1882, 0.0
      %vm8420 = vcmp.gt.f32.partialorder %v2535, 0.0
      %vm8421 = vcmp.gt.f32.partialorder %v3188, 0.0
      %vm8422 = vcmp.gt.f32.partialorder %v3841, 0.0
      %vm8423 = vcmp.gt.f32.partialorder %v4494, 0.0
      %vm8424 = vcmp.gt.f32.partialorder %v5147, 0.0
      %vm8425 = vcmp.gt.f32.partialorder %v5800, 0.0
      %vm8426 = vcmp.gt.f32.partialorder %v6453, 0.0
      %vm8427 = vcmp.gt.f32.partialorder %v7106, 0.0
      %vm8428 = vcmp.gt.f32.partialorder %v7759, 0.0
      %vm8429 = vcmp.gt.f32.partialorder %v8412, 0.0
      %vm8430 = vcmp.gt.f32.partialorder %v1233, 0.0
      %vm8431 = vcmp.gt.f32.partialorder %v1886, 0.0
      %vm8432 = vcmp.gt.f32.partialorder %v2539, 0.0
      %vm8433 = vcmp.gt.f32.partialorder %v3192, 0.0
      %vm8434 = vcmp.gt.f32.partialorder %v3845, 0.0
      %vm8435 = vcmp.gt.f32.partialorder %v4498, 0.0
      %vm8436 = vcmp.gt.f32.partialorder %v5151, 0.0
      %vm8437 = vcmp.gt.f32.partialorder %v5804, 0.0
      %vm8438 = vcmp.gt.f32.partialorder %v6457, 0.0
      %vm8439 = vcmp.gt.f32.partialorder %v7110, 0.0
      %vm8440 = vcmp.gt.f32.partialorder %v7763, 0.0
      %vm8441 = vcmp.gt.f32.partialorder %v8416, 0.0
      %v8442 = vmul.f32 %v1229, 0.01
      %v8443 = vmul.f32 %v1882, 0.01
      %v8444 = vmul.f32 %v2535, 0.01
      %v8445 = vmul.f32 %v3188, 0.01
      %v8446 = vmul.f32 %v3841, 0.01
      %v8447 = vmul.f32 %v4494, 0.01
      %v8448 = vmul.f32 %v5147, 0.01
      %v8449 = vmul.f32 %v5800, 0.01
      %v8450 = vmul.f32 %v6453, 0.01
      %v8451 = vmul.f32 %v7106, 0.01
      %v8452 = vmul.f32 %v7759, 0.01
      %v8453 = vmul.f32 %v8412, 0.01
      %v8454 = vmul.f32 %v1233, 0.01
      %v8455 = vmul.f32 %v1886, 0.01
      %v8456 = vmul.f32 %v2539, 0.01
      %v8457 = vmul.f32 %v3192, 0.01
      %v8458 = vmul.f32 %v3845, 0.01
      %v8459 = vmul.f32 %v4498, 0.01
      %v8460 = vmul.f32 %v5151, 0.01
      %v8461 = vmul.f32 %v5804, 0.01
      %v8462 = vmul.f32 %v6457, 0.01
      %v8463 = vmul.f32 %v7110, 0.01
      %v8464 = vmul.f32 %v7763, 0.01
      %v8465 = vmul.f32 %v8416, 0.01
      %v8466 = vsel %vm8418, %v1229, %v8442
      %v8467 = vsel %vm8419, %v1882, %v8443
      %v8468 = vsel %vm8420, %v2535, %v8444
      %v8469 = vsel %vm8421, %v3188, %v8445
      %v8470 = vsel %vm8422, %v3841, %v8446
      %v8471 = vsel %vm8423, %v4494, %v8447
      %v8472 = vsel %vm8424, %v5147, %v8448
      %v8473 = vsel %vm8425, %v5800, %v8449
      %v8474 = vsel %vm8426, %v6453, %v8450
      %v8475 = vsel %vm8427, %v7106, %v8451
      %v8476 = vsel %vm8428, %v7759, %v8452
      %v8477 = vsel %vm8429, %v8412, %v8453
      %v8478 = vsel %vm8430, %v1233, %v8454
      %v8479 = vsel %vm8431, %v1886, %v8455
      %v8480 = vsel %vm8432, %v2539, %v8456
      %v8481 = vsel %vm8433, %v3192, %v8457
      %v8482 = vsel %vm8434, %v3845, %v8458
      %v8483 = vsel %vm8435, %v4498, %v8459
      %v8484 = vsel %vm8436, %v5151, %v8460
      %v8485 = vsel %vm8437, %v5804, %v8461
      %v8486 = vsel %vm8438, %v6457, %v8462
      %v8487 = vsel %vm8439, %v7110, %v8463
      %v8488 = vsel %vm8440, %v7763, %v8464
      %v8489 = vsel %vm8441, %v8416, %v8465
      %v8490 = vmul.f32 %v8466, %v204
      %v8491 = vmul.f32 %v8467, %v205
      %v8492 = vmul.f32 %v8468, %v206
      %v8493 = vmul.f32 %v8469, %v207
      %v8494 = vmul.f32 %v8470, %v208
      %v8495 = vmul.f32 %v8471, %v209
      %v8496 = vmul.f32 %v8472, %v210
      %v8497 = vmul.f32 %v8473, %v211
      %v8498 = vmul.f32 %v8474, %v212
      %v8499 = vmul.f32 %v8475, %v213
      %v8500 = vmul.f32 %v8476, %v214
      %v8501 = vmul.f32 %v8477, %v215
      %v8502 = vmul.f32 %v8478, %v216
      %v8503 = vmul.f32 %v8479, %v217
      %v8504 = vmul.f32 %v8480, %v218
      %v8505 = vmul.f32 %v8481, %v219
      %v8506 = vmul.f32 %v8482, %v220
      %v8507 = vmul.f32 %v8483, %v221
      %v8508 = vmul.f32 %v8484, %v222
      %v8509 = vmul.f32 %v8485, %v223
      %v8510 = vmul.f32 %v8486, %v224
      %v8511 = vmul.f32 %v8487, %v225
      %v8512 = vmul.f32 %v8488, %v226
      %v8513 = vmul.f32 %v8489, %v227
      %v8514 = vadd.f32 %v8490, %v8491
      %v8515 = vadd.f32 %v8514, %v8492
      %v8516 = vadd.f32 %v8515, %v8493
      %v8517 = vadd.f32 %v8516, %v8494
      %v8518 = vadd.f32 %v8517, %v8495
      %v8519 = vadd.f32 %v8518, %v8496
      %v8520 = vadd.f32 %v8519, %v8497
      %v8521 = vadd.f32 %v8520, %v8498
      %v8522 = vadd.f32 %v8521, %v8499
      %v8523 = vadd.f32 %v8522, %v8500
      %v8524 = vadd.f32 %v8523, %v8501
      %8525 = vadd.xlane.f32.xlu0 %v8524
      %v8526 = vpop.xlane.xlu0 %8525
      %v8527 = vsel %vm545, %v8502, 0.0
      %v8528 = vsel %vm545, %v8503, 0.0
      %v8529 = vadd.f32 %v8527, %v8528
      %v8530 = vsel %vm545, %v8504, 0.0
      %v8531 = vadd.f32 %v8529, %v8530
      %v8532 = vsel %vm545, %v8505, 0.0
      %v8533 = vadd.f32 %v8531, %v8532
      %v8534 = vsel %vm545, %v8506, 0.0
      %v8535 = vadd.f32 %v8533, %v8534
      %v8536 = vsel %vm545, %v8507, 0.0
      %v8537 = vadd.f32 %v8535, %v8536
      %v8538 = vsel %vm545, %v8508, 0.0
      %v8539 = vadd.f32 %v8537, %v8538
      %v8540 = vsel %vm545, %v8509, 0.0
      %v8541 = vadd.f32 %v8539, %v8540
      %v8542 = vsel %vm545, %v8510, 0.0
      %v8543 = vadd.f32 %v8541, %v8542
      %v8544 = vsel %vm545, %v8511, 0.0
      %v8545 = vadd.f32 %v8543, %v8544
      %v8546 = vsel %vm545, %v8512, 0.0
      %v8547 = vadd.f32 %v8545, %v8546
      %v8548 = vsel %vm545, %v8513, 0.0
      %v8549 = vadd.f32 %v8547, %v8548
      %8550 = vadd.xlane.f32.xlu0 %v8549
      %v8551 = vpop.xlane.xlu0 %8550
      %vm8552 = vcmask 7168
      %8553 = vst.msk [vmem:[%s197] sm:$0xff] %vm8552, %v8526
      %vm8554 = vcmask 3072
      %8555 = vst.msk [vmem:[%s197 + $0x8] sm:$0xf] %vm8554, %v8551
      %p8556 = scmp.lt.s32.totalorder %s15, 1
      %s8557 = scalar_select %p8556, %s15, 1
      %s8558 = smul.addr %s8557, 2
      %s8559 = smul.addr %s8558, 8
      %s8560 = scalar_lea.vmem %s4, %s8559
      // Predicated region
      $region37: #{tpu_custom_call.1} parent=35 // pred_check
        %p8561 = pneg %p122
      $region38: #{tpu_custom_call.1} parent=35 // pred_check_branch
        %8563 = sbr.rel (%p8561) target = $region40
      $region39: #{tpu_custom_call.1} parent=35 // pred_region
        _
      $region40: #{tpu_custom_call.1} parent=35 // pred_fallthru
        _
    $region36: #{tpu_custom_call.1} parent=5 // pred_fallthru
      _
    %p8564 = scmp.le.s32.totalorder 2, %s10
    // Predicated region
    $region41: #{tpu_custom_call.1} parent=5 // pred_check
      %p8565 = pneg %p8564
    $region42: #{tpu_custom_call.1} parent=5 // pred_check_branch
      %8567 = sbr.rel (%p8565) target = $region44
    $region43: #{tpu_custom_call.1} parent=5 // pred_region
      %s8568 = ssub.s32 %s10, 2
      // Predicated region
      $region45: #{tpu_custom_call.1} parent=43 // pred_check
        %p8569 = pneg %p128
      $region46: #{tpu_custom_call.1} parent=43 // pred_check_branch
        %8571 = sbr.rel (%p8569) target = $region48
      $region47: #{tpu_custom_call.1} parent=43 // pred_region
        %p8572 = scmp.lt.s32.totalorder %s16, 1
        %s8573 = scalar_select %p8572, %s16, 1
        %s8574 = smul.addr %s8573, 2
        %s8575 = smul.addr %s8574, 8
        %s8576 = scalar_lea.vmem %s4, %s8575
      $region48: #{tpu_custom_call.1} parent=43 // pred_fallthru
        _
    $region44: #{tpu_custom_call.1} parent=5 // pred_fallthru
      _
  $region6: #{tpu_custom_call.1} parent=0 // loop_footer
    %s14 = sadd.s32 1, %s10
  $region7: #{tpu_custom_call.1} parent=0 // loop_footer_branch
    %9 = sbr.rel target = $region3
  $region8: #{tpu_custom_call.1} parent=0 // loop_exit
    _

</llo_original>
